<compile_context>
chip_gen: v7x
topology: tpu7x:2x2x1
jax: 0.10.0
libtpu: 0.0.40
codegen_flags: <defaults>
</compile_context>

<pallas_src>
import numpy as np
import jax
import jax.numpy as jnp
from jax.experimental import pallas as pl
from jax.experimental.pallas import tpu as pltpu

jax.config.update("jax_default_matmul_precision", "highest")

# ---------------- problem sizes (small, consistent with the module) ----------------
BS = 2          # batch
SEQ_T = 4       # time steps
N_ENTITIES = 8
N_AGENTS = 4
EDIM = 16       # input_shape
HIDDEN = 32     # rnn_hidden_dim
ATTEN = 32      # atten_dim
N_HEADS = 2
HEAD_DIM = ATTEN // N_HEADS
N_ACTIONS = 5
SCALE = float(np.sqrt(HEAD_DIM))
OUT_W = 128     # combined [hs | q | pad] output width -> one lane-dense vreg store


# ============================ fused attention + GRU kernel ============================
def _refil_kernel(x_ref, obs_ref, agm_ref, h0_ref,
                  w1_ref, b1_ref, wq_ref, bq_ref, wk_ref, bk_ref, wv_ref, bv_ref,
                  wih_ref, bih_ref, whh_ref, bhh_ref, wcmb_ref, bcmb_ref,
                  out_ref, h_scratch):
    t = pl.program_id(0)

    @pl.when(t == 0)
    def _():
        h_scratch[...] = h0_ref[...]

    # ---- attention: all bs * n_entities rows of this time step in one shot ----
    x = x_ref[0]                                                # (bs*E, edim)
    emb = jnp.maximum(
        jnp.dot(x, w1_ref[...], preferred_element_type=jnp.float32) + b1_ref[...], 0.0)
    q = jnp.dot(emb, wq_ref[...], preferred_element_type=jnp.float32) + bq_ref[...]
    k = jnp.dot(emb, wk_ref[...], preferred_element_type=jnp.float32) + bk_ref[...]
    v = jnp.maximum(
        jnp.dot(emb, wv_ref[...], preferred_element_type=jnp.float32) + bv_ref[...], 0.0)

    q3 = q.reshape(BS, N_ENTITIES, ATTEN)[:, :N_AGENTS, :]      # (bs, A, atten)
    k3 = k.reshape(BS, N_ENTITIES, ATTEN)                       # (bs, E, atten)
    v3 = v.reshape(BS, N_ENTITIES, ATTEN)

    obs = obs_ref[0] != 0                                       # (bs, A, E), True = masked
    neg = jnp.float32(-1e30)

    heads = []
    for h in range(N_HEADS):                                    # static, N_HEADS = 2
        sl = slice(h * HEAD_DIM, (h + 1) * HEAD_DIM)
        qh, kh, vh = q3[:, :, sl], k3[:, :, sl], v3[:, :, sl]
        # scale already folded into wq/bq
        s = jnp.einsum("bae,bke->bak", qh, kh,
                       preferred_element_type=jnp.float32)      # (bs, A, E)
        s = jnp.where(obs, neg, s)
        m = jnp.max(s, axis=-1, keepdims=True)
        p = jnp.where(obs, 0.0, jnp.exp(s - m))
        denom = jnp.sum(p, axis=-1, keepdims=True)
        # softmax; rows that are fully masked give NaN in torch and are zeroed.
        w = jnp.where(denom > 0.0, p / jnp.maximum(denom, 1e-30), 0.0)
        heads.append(jnp.einsum("bak,bke->bae", w, vh,
                                preferred_element_type=jnp.float32))
    attn = jnp.concatenate(heads, axis=-1).reshape(BS * N_AGENTS, ATTEN)

    ag = agm_ref[0] != 0                                        # (bs*A, 1), True = inactive
    xg = jnp.where(ag, 0.0, attn)                               # masked attention out = GRU input

    # ---- GRUCell: stacked per-gate weights -> gate extraction is a leading-axis index ----
    h_prev = h_scratch[...]
    gi_r = jnp.dot(xg, wih_ref[0], preferred_element_type=jnp.float32) + bih_ref[0]
    gi_z = jnp.dot(xg, wih_ref[1], preferred_element_type=jnp.float32) + bih_ref[1]
    gi_n = jnp.dot(xg, wih_ref[2], preferred_element_type=jnp.float32) + bih_ref[2]
    gh_r = jnp.dot(h_prev, whh_ref[0], preferred_element_type=jnp.float32) + bhh_ref[0]
    gh_z = jnp.dot(h_prev, whh_ref[1], preferred_element_type=jnp.float32) + bhh_ref[1]
    gh_n = jnp.dot(h_prev, whh_ref[2], preferred_element_type=jnp.float32) + bhh_ref[2]
    r = jax.nn.sigmoid(gi_r + gh_r)
    z = jax.nn.sigmoid(gi_z + gh_z)
    n = jnp.tanh(gi_n + r * gh_n)
    h_new = (1.0 - z) * n + z * h_prev
    h_scratch[...] = h_new                                      # carry UNmasked hidden

    # ---- combined head: [ h_new | h_new @ w_out + b_out | 0 ], single 128-lane store ----
    comb = jnp.dot(h_new, wcmb_ref[...], preferred_element_type=jnp.float32) + bcmb_ref[...]
    out_ref[0] = jnp.where(ag, 0.0, comb)


# ================================== wrapper ==================================
def prepare_params(p):
    """Kernel-ready weights: scale folded into Q, per-gate GRU stacks, combined head."""
    H = HIDDEN
    kp = dict(w1=p["w1"], b1=p["b1"],
              wq=p["wq"] / SCALE, bq=p["bq"] / SCALE,
              wk=p["wk"], bk=p["bk"], wv=p["wv"], bv=p["bv"])
    kp["w_ih3"] = jnp.stack([p["w_ih"][:, g * H:(g + 1) * H] for g in range(3)])   # (3, atten, H)
    kp["b_ih3"] = jnp.stack([p["b_ih"][:, g * H:(g + 1) * H] for g in range(3)])   # (3, 1, H)
    kp["w_hh3"] = jnp.stack([p["w_hh"][:, g * H:(g + 1) * H] for g in range(3)])   # (3, H, H)
    kp["b_hh3"] = jnp.stack([p["b_hh"][:, g * H:(g + 1) * H] for g in range(3)])   # (3, 1, H)
    w_comb = jnp.zeros((H, OUT_W), jnp.float32)
    w_comb = w_comb.at[:, :H].set(jnp.eye(H, dtype=jnp.float32))
    w_comb = w_comb.at[:, H:H + N_ACTIONS].set(p["w_out"])
    b_comb = jnp.zeros((1, OUT_W), jnp.float32)
    b_comb = b_comb.at[:, H:H + N_ACTIONS].set(p["b_out"])
    kp["w_comb"], kp["b_comb"] = w_comb, b_comb
    return kp


@jax.jit
def refil_forward(inputs, obs_mask, scenario_mask, hidden_state, kp):
    """Matches REFILAgent.forward(..., imagine=False). Returns (q, hs)."""
    bs, T, E, _ = inputs.shape
    BN = bs * N_AGENTS

    # per-time-step layouts consumed by the fused kernel
    x_t = inputs.transpose(1, 0, 2, 3).reshape(T, bs * E, EDIM)
    obs_t = obs_mask[:, :, :N_AGENTS, :].astype(jnp.float32).transpose(1, 0, 2, 3)   # (T, bs, A, E)
    agm_t = (scenario_mask[:, :, :N_AGENTS].astype(jnp.float32)
             .transpose(1, 0, 2).reshape(T, BN, 1))
    h0 = hidden_state.reshape(BN, HIDDEN).astype(jnp.float32)

    def full_spec(arr):
        nd = arr.ndim
        return pl.BlockSpec(arr.shape, lambda t, _nd=nd: (0,) * _nd)

    grid_spec = pltpu.PrefetchScalarGridSpec(
        num_scalar_prefetch=0,
        grid=(T,),
        in_specs=[
            pl.BlockSpec((1, bs * E, EDIM), lambda t: (t, 0, 0)),
            pl.BlockSpec((1, bs, N_AGENTS, N_ENTITIES), lambda t: (t, 0, 0, 0)),
            pl.BlockSpec((1, BN, 1), lambda t: (t, 0, 0)),
            pl.BlockSpec((BN, HIDDEN), lambda t: (0, 0)),
            full_spec(kp["w1"]), full_spec(kp["b1"]),
            full_spec(kp["wq"]), full_spec(kp["bq"]),
            full_spec(kp["wk"]), full_spec(kp["bk"]),
            full_spec(kp["wv"]), full_spec(kp["bv"]),
            full_spec(kp["w_ih3"]), full_spec(kp["b_ih3"]),
            full_spec(kp["w_hh3"]), full_spec(kp["b_hh3"]),
            full_spec(kp["w_comb"]), full_spec(kp["b_comb"]),
        ],
        out_specs=pl.BlockSpec((1, BN, OUT_W), lambda t: (t, 0, 0)),
        scratch_shapes=[pltpu.VMEM((BN, HIDDEN), jnp.float32)],
    )
    out = pl.pallas_call(
        _refil_kernel,
        out_shape=jax.ShapeDtypeStruct((T, BN, OUT_W), jnp.float32),
        grid_spec=grid_spec,
        compiler_params=pltpu.CompilerParams(dimension_semantics=("arbitrary",)),
    )(x_t, obs_t, agm_t, h0,
      kp["w1"], kp["b1"], kp["wq"], kp["bq"], kp["wk"], kp["bk"], kp["wv"], kp["bv"],
      kp["w_ih3"], kp["b_ih3"], kp["w_hh3"], kp["b_hh3"], kp["w_comb"], kp["b_comb"])

    hs = out[..., :HIDDEN].reshape(T, bs, N_AGENTS, HIDDEN).transpose(1, 0, 2, 3)
    q = (out[..., HIDDEN:HIDDEN + N_ACTIONS]
         .reshape(T, bs, N_AGENTS, N_ACTIONS).transpose(1, 0, 2, 3))
    return q, hs


# ================================== reference (pure JAX) ==================================
def refil_reference(inputs, obs_mask, scenario_mask, hidden_state, p):
    bs, T, E, _ = inputs.shape
    BT = bs * T
    x = inputs.reshape(BT, E, EDIM)
    emb = jax.nn.relu(x @ p["w1"] + p["b1"])
    Q = emb @ p["wq"] + p["bq"]
    K = emb @ p["wk"] + p["bk"]
    V = jax.nn.relu(emb @ p["wv"] + p["bv"])
    Qh = Q[:, :N_AGENTS].reshape(BT, N_AGENTS, N_HEADS, HEAD_DIM)
    Kh = K.reshape(BT, E, N_HEADS, HEAD_DIM)
    Vh = V.reshape(BT, E, N_HEADS, HEAD_DIM)
    score = jnp.einsum("bahe,bkhe->bhak", Qh, Kh) / SCALE
    mask = obs_mask.reshape(BT, E, E)[:, :N_AGENTS, :].astype(bool)
    score = jnp.where(mask[:, None], -jnp.inf, score)
    w = jax.nn.softmax(score, axis=-1)
    w = jnp.where(jnp.isnan(w), 0.0, w)
    ao = jnp.einsum("bhak,bkhe->bahe", w, Vh).reshape(BT, N_AGENTS, ATTEN)
    agm = scenario_mask.reshape(BT, E)[:, :N_AGENTS].astype(bool)
    ao = jnp.where(agm[..., None], 0.0, ao).reshape(bs, T, N_AGENTS, ATTEN)

    h = hidden_state.reshape(-1, HIDDEN)
    hs = []
    for t in range(T):
        xt = ao[:, t].reshape(-1, ATTEN)
        gi = xt @ p["w_ih"] + p["b_ih"]
        gh = h @ p["w_hh"] + p["b_hh"]
        H = HIDDEN
        r = jax.nn.sigmoid(gi[:, :H] + gh[:, :H])
        z = jax.nn.sigmoid(gi[:, H:2 * H] + gh[:, H:2 * H])
        n = jnp.tanh(gi[:, 2 * H:] + r * gh[:, 2 * H:])
        h = (1.0 - z) * n + z * h
        hs.append(h.reshape(bs, N_AGENTS, HIDDEN))
    hs = jnp.stack(hs, axis=1)
    q = hs @ p["w_out"] + p["b_out"]
    agm4 = scenario_mask[..., :N_AGENTS].astype(bool)[..., None]
    return jnp.where(agm4, 0.0, q), jnp.where(agm4, 0.0, hs)


# ================================== params / main ==================================
def _init_linear(key, fan_in, fan_out):
    k = 1.0 / np.sqrt(fan_in)
    kw, kb = jax.random.split(key)
    w = jax.random.uniform(kw, (fan_in, fan_out), jnp.float32, -k, k)
    b = jax.random.uniform(kb, (1, fan_out), jnp.float32, -k, k)
    return w, b


def make_params(key):
    keys = jax.random.split(key, 8)
    p = {}
    p["w1"], p["b1"] = _init_linear(keys[0], EDIM, HIDDEN)
    p["wq"], p["bq"] = _init_linear(keys[1], HIDDEN, ATTEN)
    p["wk"], p["bk"] = _init_linear(keys[2], HIDDEN, ATTEN)
    p["wv"], p["bv"] = _init_linear(keys[3], HIDDEN, ATTEN)
    p["w_ih"], p["b_ih"] = _init_linear(keys[4], ATTEN, 3 * HIDDEN)
    p["w_hh"], p["b_hh"] = _init_linear(keys[5], HIDDEN, 3 * HIDDEN)
    p["w_out"], p["b_out"] = _init_linear(keys[6], HIDDEN, N_ACTIONS)
    return p


if __name__ == "__main__":
    root = jax.random.PRNGKey(0)
    k_param, k_in, k_obs, k_scen, k_h = jax.random.split(root, 5)

    params = make_params(k_param)
    kparams = prepare_params(params)

    inputs = jax.random.normal(k_in, (BS, SEQ_T, N_ENTITIES, EDIM), jnp.float32)
    obs_mask = jax.random.bernoulli(k_obs, 0.3,
                                    (BS, SEQ_T, N_ENTITIES, N_ENTITIES)).astype(jnp.float32)
    scenario_mask = jax.random.bernoulli(k_scen, 0.2,
                                         (BS, SEQ_T, N_ENTITIES)).astype(jnp.float32)
    hidden_state = jax.random.normal(k_h, (BS * N_AGENTS, HIDDEN), jnp.float32)

    q, hs = refil_forward(inputs, obs_mask, scenario_mask, hidden_state, kparams)
    q = jax.block_until_ready(q)
    hs = jax.block_until_ready(hs)

    q_ref, hs_ref = refil_reference(inputs, obs_mask, scenario_mask, hidden_state, params)

    assert q.shape == (BS, SEQ_T, N_AGENTS, N_ACTIONS)
    assert hs.shape == (BS, SEQ_T, N_AGENTS, HIDDEN)
    np.testing.assert_allclose(np.asarray(q), np.asarray(q_ref), atol=5e-3, rtol=5e-3)
    np.testing.assert_allclose(np.asarray(hs), np.asarray(hs_ref), atol=5e-3, rtol=5e-3)

    print("KERNEL_OK")
</pallas_src>

<mosaic_0001>
module attributes {stable_mosaic.version = 11 : i64} {
  func.func @_refil_kernel(%arg0: i32, %arg1: memref<1x16x16xf32, #tpu.memory_space<vmem>>, %arg2: memref<1x2x4x8xf32, #tpu.memory_space<vmem>>, %arg3: memref<1x8x1xf32, #tpu.memory_space<vmem>>, %arg4: memref<8x32xf32, #tpu.memory_space<vmem>>, %arg5: memref<16x32xf32, #tpu.memory_space<vmem>>, %arg6: memref<1x32xf32, #tpu.memory_space<vmem>>, %arg7: memref<32x32xf32, #tpu.memory_space<vmem>>, %arg8: memref<1x32xf32, #tpu.memory_space<vmem>>, %arg9: memref<32x32xf32, #tpu.memory_space<vmem>>, %arg10: memref<1x32xf32, #tpu.memory_space<vmem>>, %arg11: memref<32x32xf32, #tpu.memory_space<vmem>>, %arg12: memref<1x32xf32, #tpu.memory_space<vmem>>, %arg13: memref<3x32x32xf32, #tpu.memory_space<vmem>>, %arg14: memref<3x1x32xf32, #tpu.memory_space<vmem>>, %arg15: memref<3x32x32xf32, #tpu.memory_space<vmem>>, %arg16: memref<3x1x32xf32, #tpu.memory_space<vmem>>, %arg17: memref<32x128xf32, #tpu.memory_space<vmem>>, %arg18: memref<1x128xf32, #tpu.memory_space<vmem>>, %arg19: memref<1x8x128xf32, #tpu.memory_space<vmem>>, %arg20: memref<8x32xf32, #tpu.memory_space<vmem>>) attributes {dimension_semantics = [#tpu.dimension_semantics<arbitrary>], iteration_bounds = array<i64: 4>, scalar_prefetch = 0 : i64, scratch_operands = 1 : i64, tpu.core_type = #tpu.core_type<tc>, window_params = [{transform_indices = @transform_0, window_bounds = array<i64: 1, 16, 16>}, {transform_indices = @transform_1, window_bounds = array<i64: 1, 2, 4, 8>}, {transform_indices = @transform_2, window_bounds = array<i64: 1, 8, 1>}, {pipeline_mode = #tpu.pipeline_mode<synchronous>, transform_indices = @transform_3, window_bounds = array<i64: 8, 32>}, {pipeline_mode = #tpu.pipeline_mode<synchronous>, transform_indices = @transform_4, window_bounds = array<i64: 16, 32>}, {pipeline_mode = #tpu.pipeline_mode<synchronous>, transform_indices = @transform_5, window_bounds = array<i64: 1, 32>}, {pipeline_mode = #tpu.pipeline_mode<synchronous>, transform_indices = @transform_6, window_bounds = array<i64: 32, 32>}, {pipeline_mode = #tpu.pipeline_mode<synchronous>, transform_indices = @transform_7, window_bounds = array<i64: 1, 32>}, {pipeline_mode = #tpu.pipeline_mode<synchronous>, transform_indices = @transform_8, window_bounds = array<i64: 32, 32>}, {pipeline_mode = #tpu.pipeline_mode<synchronous>, transform_indices = @transform_9, window_bounds = array<i64: 1, 32>}, {pipeline_mode = #tpu.pipeline_mode<synchronous>, transform_indices = @transform_10, window_bounds = array<i64: 32, 32>}, {pipeline_mode = #tpu.pipeline_mode<synchronous>, transform_indices = @transform_11, window_bounds = array<i64: 1, 32>}, {pipeline_mode = #tpu.pipeline_mode<synchronous>, transform_indices = @transform_12, window_bounds = array<i64: 3, 32, 32>}, {pipeline_mode = #tpu.pipeline_mode<synchronous>, transform_indices = @transform_13, window_bounds = array<i64: 3, 1, 32>}, {pipeline_mode = #tpu.pipeline_mode<synchronous>, transform_indices = @transform_14, window_bounds = array<i64: 3, 32, 32>}, {pipeline_mode = #tpu.pipeline_mode<synchronous>, transform_indices = @transform_15, window_bounds = array<i64: 3, 1, 32>}, {pipeline_mode = #tpu.pipeline_mode<synchronous>, transform_indices = @transform_16, window_bounds = array<i64: 32, 128>}, {pipeline_mode = #tpu.pipeline_mode<synchronous>, transform_indices = @transform_17, window_bounds = array<i64: 1, 128>}, {transform_indices = @transform_18, window_bounds = array<i64: 1, 8, 128>}]} {
    %c0_i32 = arith.constant 0 : i32
    %0 = arith.cmpi eq, %arg0, %c0_i32 : i32
    %1 = arith.extui %0 : i1 to i32
    %c0_i32_0 = arith.constant 0 : i32
    %2 = arith.cmpi ne, %1, %c0_i32_0 : i32
    scf.if %2 {
      %c0_108 = arith.constant 0 : index
      %c0_109 = arith.constant 0 : index
      %175 = vector.load %arg4[%c0_108, %c0_109] : memref<8x32xf32, #tpu.memory_space<vmem>>, vector<8x32xf32>
      %c0_110 = arith.constant 0 : index
      %c0_111 = arith.constant 0 : index
      %176 = vector.load %arg20[%c0_110, %c0_111] : memref<8x32xf32, #tpu.memory_space<vmem>>, vector<8x32xf32>
      tpu.vector_store %arg20[%c0_110, %c0_111], %175 {strides = array<i32>} : memref<8x32xf32, #tpu.memory_space<vmem>>, vector<8x32xf32>,
    } else {
    }
    %c0 = arith.constant 0 : index
    %c0_1 = arith.constant 0 : index
    %c0_2 = arith.constant 0 : index
    %3 = vector.load %arg1[%c0, %c0_1, %c0_2] : memref<1x16x16xf32, #tpu.memory_space<vmem>>, vector<1x16x16xf32>
    %4 = vector.shape_cast %3 : vector<1x16x16xf32> to vector<16x16xf32>
    %c0_3 = arith.constant 0 : index
    %c0_4 = arith.constant 0 : index
    %5 = vector.load %arg5[%c0_3, %c0_4] : memref<16x32xf32, #tpu.memory_space<vmem>>, vector<16x32xf32>
    %cst = arith.constant dense<0.000000e+00> : vector<16x32xf32>
    %6 = tpu.matmul %4, %5, %cst {dimension_numbers = #tpu.dot_dimension_numbers<[1], [0], [0], [1], [0, 0, 1, 1], [], []>, precision = #tpu.contract_precision<fp32>} : vector<16x16xf32>, vector<16x32xf32>, vector<16x32xf32> -> vector<16x32xf32>
    %c0_5 = arith.constant 0 : index
    %c0_6 = arith.constant 0 : index
    %7 = vector.load %arg6[%c0_5, %c0_6] : memref<1x32xf32, #tpu.memory_space<vmem>>, vector<1x32xf32>
    %8 = vector.broadcast %7 : vector<1x32xf32> to vector<16x32xf32>
    %9 = arith.addf %6, %8 : vector<16x32xf32>
    %cst_7 = arith.constant 0.000000e+00 : f32
    %10 = vector.broadcast %cst_7 : f32 to vector<16x32xf32>
    %11 = arith.maximumf %9, %10 : vector<16x32xf32>
    %c0_8 = arith.constant 0 : index
    %c0_9 = arith.constant 0 : index
    %12 = vector.load %arg7[%c0_8, %c0_9] : memref<32x32xf32, #tpu.memory_space<vmem>>, vector<32x32xf32>
    %cst_10 = arith.constant dense<0.000000e+00> : vector<16x32xf32>
    %13 = tpu.matmul %11, %12, %cst_10 {dimension_numbers = #tpu.dot_dimension_numbers<[1], [0], [0], [1], [0, 0, 1, 1], [], []>, precision = #tpu.contract_precision<fp32>} : vector<16x32xf32>, vector<32x32xf32>, vector<16x32xf32> -> vector<16x32xf32>
    %c0_11 = arith.constant 0 : index
    %c0_12 = arith.constant 0 : index
    %14 = vector.load %arg8[%c0_11, %c0_12] : memref<1x32xf32, #tpu.memory_space<vmem>>, vector<1x32xf32>
    %15 = vector.broadcast %14 : vector<1x32xf32> to vector<16x32xf32>
    %16 = arith.addf %13, %15 : vector<16x32xf32>
    %c0_13 = arith.constant 0 : index
    %c0_14 = arith.constant 0 : index
    %17 = vector.load %arg9[%c0_13, %c0_14] : memref<32x32xf32, #tpu.memory_space<vmem>>, vector<32x32xf32>
    %cst_15 = arith.constant dense<0.000000e+00> : vector<16x32xf32>
    %18 = tpu.matmul %11, %17, %cst_15 {dimension_numbers = #tpu.dot_dimension_numbers<[1], [0], [0], [1], [0, 0, 1, 1], [], []>, precision = #tpu.contract_precision<fp32>} : vector<16x32xf32>, vector<32x32xf32>, vector<16x32xf32> -> vector<16x32xf32>
    %c0_16 = arith.constant 0 : index
    %c0_17 = arith.constant 0 : index
    %19 = vector.load %arg10[%c0_16, %c0_17] : memref<1x32xf32, #tpu.memory_space<vmem>>, vector<1x32xf32>
    %20 = vector.broadcast %19 : vector<1x32xf32> to vector<16x32xf32>
    %21 = arith.addf %18, %20 : vector<16x32xf32>
    %c0_18 = arith.constant 0 : index
    %c0_19 = arith.constant 0 : index
    %22 = vector.load %arg11[%c0_18, %c0_19] : memref<32x32xf32, #tpu.memory_space<vmem>>, vector<32x32xf32>
    %cst_20 = arith.constant dense<0.000000e+00> : vector<16x32xf32>
    %23 = tpu.matmul %11, %22, %cst_20 {dimension_numbers = #tpu.dot_dimension_numbers<[1], [0], [0], [1], [0, 0, 1, 1], [], []>, precision = #tpu.contract_precision<fp32>} : vector<16x32xf32>, vector<32x32xf32>, vector<16x32xf32> -> vector<16x32xf32>
    %c0_21 = arith.constant 0 : index
    %c0_22 = arith.constant 0 : index
    %24 = vector.load %arg12[%c0_21, %c0_22] : memref<1x32xf32, #tpu.memory_space<vmem>>, vector<1x32xf32>
    %25 = vector.broadcast %24 : vector<1x32xf32> to vector<16x32xf32>
    %26 = arith.addf %23, %25 : vector<16x32xf32>
    %cst_23 = arith.constant 0.000000e+00 : f32
    %27 = vector.broadcast %cst_23 : f32 to vector<16x32xf32>
    %28 = arith.maximumf %26, %27 : vector<16x32xf32>
    %29 = vector.shape_cast %16 : vector<16x32xf32> to vector<2x8x32xf32>
    %30 = vector.extract_strided_slice %29 {offsets = [0, 0, 0], sizes = [2, 4, 32], strides = [1, 1, 1]} : vector<2x8x32xf32> to vector<2x4x32xf32>
    %31 = vector.shape_cast %21 : vector<16x32xf32> to vector<2x8x32xf32>
    %32 = vector.shape_cast %28 : vector<16x32xf32> to vector<2x8x32xf32>
    %c0_24 = arith.constant 0 : index
    %c0_25 = arith.constant 0 : index
    %c0_26 = arith.constant 0 : index
    %c0_27 = arith.constant 0 : index
    %33 = vector.load %arg2[%c0_24, %c0_25, %c0_26, %c0_27] : memref<1x2x4x8xf32, #tpu.memory_space<vmem>>, vector<1x2x4x8xf32>
    %34 = vector.shape_cast %33 : vector<1x2x4x8xf32> to vector<2x4x8xf32>
    %cst_28 = arith.constant 0.000000e+00 : f32
    %35 = vector.broadcast %cst_28 : f32 to vector<2x4x8xf32>
    %36 = arith.cmpf one, %34, %35 : vector<2x4x8xf32>
    %37 = vector.extract_strided_slice %30 {offsets = [0, 0, 0], sizes = [2, 4, 16], strides = [1, 1, 1]} : vector<2x4x32xf32> to vector<2x4x16xf32>
    %38 = vector.extract_strided_slice %31 {offsets = [0, 0, 0], sizes = [2, 8, 16], strides = [1, 1, 1]} : vector<2x8x32xf32> to vector<2x8x16xf32>
    %39 = vector.extract_strided_slice %32 {offsets = [0, 0, 0], sizes = [2, 8, 16], strides = [1, 1, 1]} : vector<2x8x32xf32> to vector<2x8x16xf32>
    "tpu.trace_start"() <{level = 10 : i32, message = "bae,bke->bak"}> : () -> ()
    %cst_29 = arith.constant dense<0.000000e+00> : vector<2x4x8xf32>
    %40 = tpu.matmul %37, %38, %cst_29 {dimension_numbers = #tpu.dot_dimension_numbers<[2], [2], [1], [1], [0, 0, 0, 1, 1, 1], [0], [0]>, precision = #tpu.contract_precision<fp32>} : vector<2x4x16xf32>, vector<2x8x16xf32>, vector<2x4x8xf32> -> vector<2x4x8xf32>
    %cst_30 = arith.constant -1.000000e+30 : f32
    "tpu.trace_stop"() : () -> ()
    %41 = vector.broadcast %cst_30 : f32 to vector<2x4x8xf32>
    %42 = arith.select %36, %41, %40 : vector<2x4x8xi1>, vector<2x4x8xf32>
    %cst_31 = arith.constant dense<0xFF800000> : vector<2x4xf32>
    %43 = vector.multi_reduction <maximumf>, %42, %cst_31 [2] : vector<2x4x8xf32> to vector<2x4xf32>
    %44 = vector.shape_cast %43 : vector<2x4xf32> to vector<2x4x1xf32>
    %45 = vector.broadcast %44 : vector<2x4x1xf32> to vector<2x4x8xf32>
    %46 = arith.subf %42, %45 : vector<2x4x8xf32>
    %47 = math.exp %46 : vector<2x4x8xf32>
    %cst_32 = arith.constant 0.000000e+00 : f32
    %48 = vector.broadcast %cst_32 : f32 to vector<2x4x8xf32>
    %49 = arith.select %36, %48, %47 : vector<2x4x8xi1>, vector<2x4x8xf32>
    %cst_33 = arith.constant dense<0.000000e+00> : vector<2x4xf32>
    %50 = vector.multi_reduction <add>, %49, %cst_33 [2] : vector<2x4x8xf32> to vector<2x4xf32>
    %51 = vector.shape_cast %50 : vector<2x4xf32> to vector<2x4x1xf32>
    %cst_34 = arith.constant 0.000000e+00 : f32
    %52 = vector.broadcast %cst_34 : f32 to vector<2x4x1xf32>
    %53 = arith.cmpf ogt, %51, %52 : vector<2x4x1xf32>
    %cst_35 = arith.constant 1.000000e-30 : f32
    %54 = vector.broadcast %cst_35 : f32 to vector<2x4x1xf32>
    %55 = arith.maximumf %51, %54 : vector<2x4x1xf32>
    %56 = vector.broadcast %55 : vector<2x4x1xf32> to vector<2x4x8xf32>
    %57 = arith.divf %49, %56 : vector<2x4x8xf32>
    %cst_36 = arith.constant 0.000000e+00 : f32
    %58 = vector.shape_cast %53 : vector<2x4x1xi1> to vector<2x4x1xi1>
    %59 = vector.broadcast %58 : vector<2x4x1xi1> to vector<2x4x8xi1>
    %60 = vector.broadcast %cst_36 : f32 to vector<2x4x8xf32>
    %61 = arith.select %59, %57, %60 : vector<2x4x8xi1>, vector<2x4x8xf32>
    "tpu.trace_start"() <{level = 10 : i32, message = "bak,bke->bae"}> : () -> ()
    %cst_37 = arith.constant dense<0.000000e+00> : vector<2x4x16xf32>
    %62 = tpu.matmul %61, %39, %cst_37 {dimension_numbers = #tpu.dot_dimension_numbers<[2], [1], [1], [2], [0, 0, 0, 1, 1, 2], [0], [0]>, precision = #tpu.contract_precision<fp32>} : vector<2x4x8xf32>, vector<2x8x16xf32>, vector<2x4x16xf32> -> vector<2x4x16xf32>
    "tpu.trace_stop"() : () -> ()
    %63 = vector.extract_strided_slice %30 {offsets = [0, 0, 16], sizes = [2, 4, 16], strides = [1, 1, 1]} : vector<2x4x32xf32> to vector<2x4x16xf32>
    %64 = vector.extract_strided_slice %31 {offsets = [0, 0, 16], sizes = [2, 8, 16], strides = [1, 1, 1]} : vector<2x8x32xf32> to vector<2x8x16xf32>
    %65 = vector.extract_strided_slice %32 {offsets = [0, 0, 16], sizes = [2, 8, 16], strides = [1, 1, 1]} : vector<2x8x32xf32> to vector<2x8x16xf32>
    "tpu.trace_start"() <{level = 10 : i32, message = "bae,bke->bak"}> : () -> ()
    %cst_38 = arith.constant dense<0.000000e+00> : vector<2x4x8xf32>
    %66 = tpu.matmul %63, %64, %cst_38 {dimension_numbers = #tpu.dot_dimension_numbers<[2], [2], [1], [1], [0, 0, 0, 1, 1, 1], [0], [0]>, precision = #tpu.contract_precision<fp32>} : vector<2x4x16xf32>, vector<2x8x16xf32>, vector<2x4x8xf32> -> vector<2x4x8xf32>
    %cst_39 = arith.constant -1.000000e+30 : f32
    "tpu.trace_stop"() : () -> ()
    %67 = vector.broadcast %cst_39 : f32 to vector<2x4x8xf32>
    %68 = arith.select %36, %67, %66 : vector<2x4x8xi1>, vector<2x4x8xf32>
    %cst_40 = arith.constant dense<0xFF800000> : vector<2x4xf32>
    %69 = vector.multi_reduction <maximumf>, %68, %cst_40 [2] : vector<2x4x8xf32> to vector<2x4xf32>
    %70 = vector.shape_cast %69 : vector<2x4xf32> to vector<2x4x1xf32>
    %71 = vector.broadcast %70 : vector<2x4x1xf32> to vector<2x4x8xf32>
    %72 = arith.subf %68, %71 : vector<2x4x8xf32>
    %73 = math.exp %72 : vector<2x4x8xf32>
    %cst_41 = arith.constant 0.000000e+00 : f32
    %74 = vector.broadcast %cst_41 : f32 to vector<2x4x8xf32>
    %75 = arith.select %36, %74, %73 : vector<2x4x8xi1>, vector<2x4x8xf32>
    %cst_42 = arith.constant dense<0.000000e+00> : vector<2x4xf32>
    %76 = vector.multi_reduction <add>, %75, %cst_42 [2] : vector<2x4x8xf32> to vector<2x4xf32>
    %77 = vector.shape_cast %76 : vector<2x4xf32> to vector<2x4x1xf32>
    %cst_43 = arith.constant 0.000000e+00 : f32
    %78 = vector.broadcast %cst_43 : f32 to vector<2x4x1xf32>
    %79 = arith.cmpf ogt, %77, %78 : vector<2x4x1xf32>
    %cst_44 = arith.constant 1.000000e-30 : f32
    %80 = vector.broadcast %cst_44 : f32 to vector<2x4x1xf32>
    %81 = arith.maximumf %77, %80 : vector<2x4x1xf32>
    %82 = vector.broadcast %81 : vector<2x4x1xf32> to vector<2x4x8xf32>
    %83 = arith.divf %75, %82 : vector<2x4x8xf32>
    %cst_45 = arith.constant 0.000000e+00 : f32
    %84 = vector.shape_cast %79 : vector<2x4x1xi1> to vector<2x4x1xi1>
    %85 = vector.broadcast %84 : vector<2x4x1xi1> to vector<2x4x8xi1>
    %86 = vector.broadcast %cst_45 : f32 to vector<2x4x8xf32>
    %87 = arith.select %85, %83, %86 : vector<2x4x8xi1>, vector<2x4x8xf32>
    "tpu.trace_start"() <{level = 10 : i32, message = "bak,bke->bae"}> : () -> ()
    %cst_46 = arith.constant dense<0.000000e+00> : vector<2x4x16xf32>
    %88 = tpu.matmul %87, %65, %cst_46 {dimension_numbers = #tpu.dot_dimension_numbers<[2], [1], [1], [2], [0, 0, 0, 1, 1, 2], [0], [0]>, precision = #tpu.contract_precision<fp32>} : vector<2x4x8xf32>, vector<2x8x16xf32>, vector<2x4x16xf32> -> vector<2x4x16xf32>
    "tpu.trace_stop"() : () -> ()
    %89 = tpu.concatenate %62, %88 in 2 : vector<2x4x16xf32>, vector<2x4x16xf32> -> vector<2x4x32xf32>
    %90 = vector.shape_cast %89 : vector<2x4x32xf32> to vector<8x32xf32>
    %c0_47 = arith.constant 0 : index
    %c0_48 = arith.constant 0 : index
    %c0_49 = arith.constant 0 : index
    %91 = vector.load %arg3[%c0_47, %c0_48, %c0_49] : memref<1x8x1xf32, #tpu.memory_space<vmem>>, vector<1x8x1xf32>
    %92 = vector.shape_cast %91 : vector<1x8x1xf32> to vector<8x1xf32>
    %cst_50 = arith.constant 0.000000e+00 : f32
    %93 = vector.broadcast %cst_50 : f32 to vector<8x1xf32>
    %94 = arith.cmpf one, %92, %93 : vector<8x1xf32>
    %cst_51 = arith.constant 0.000000e+00 : f32
    %95 = vector.shape_cast %94 : vector<8x1xi1> to vector<8x1xi1>
    %96 = vector.broadcast %95 : vector<8x1xi1> to vector<8x32xi1>
    %97 = vector.broadcast %cst_51 : f32 to vector<8x32xf32>
    %98 = arith.select %96, %97, %90 : vector<8x32xi1>, vector<8x32xf32>
    %c0_52 = arith.constant 0 : index
    %c0_53 = arith.constant 0 : index
    %99 = vector.load %arg20[%c0_52, %c0_53] : memref<8x32xf32, #tpu.memory_space<vmem>>, vector<8x32xf32>
    %c0_54 = arith.constant 0 : index
    %c0_55 = arith.constant 0 : index
    %c0_56 = arith.constant 0 : index
    %100 = vector.load %arg13[%c0_54, %c0_55, %c0_56] : memref<3x32x32xf32, #tpu.memory_space<vmem>>, vector<1x32x32xf32>
    %101 = vector.shape_cast %100 : vector<1x32x32xf32> to vector<32x32xf32>
    %cst_57 = arith.constant dense<0.000000e+00> : vector<8x32xf32>
    %102 = tpu.matmul %98, %101, %cst_57 {dimension_numbers = #tpu.dot_dimension_numbers<[1], [0], [0], [1], [0, 0, 1, 1], [], []>, precision = #tpu.contract_precision<fp32>} : vector<8x32xf32>, vector<32x32xf32>, vector<8x32xf32> -> vector<8x32xf32>
    %c0_58 = arith.constant 0 : index
    %c0_59 = arith.constant 0 : index
    %c0_60 = arith.constant 0 : index
    %103 = vector.load %arg14[%c0_58, %c0_59, %c0_60] : memref<3x1x32xf32, #tpu.memory_space<vmem>>, vector<1x1x32xf32>
    %104 = vector.shape_cast %103 : vector<1x1x32xf32> to vector<1x32xf32>
    %105 = vector.broadcast %104 : vector<1x32xf32> to vector<8x32xf32>
    %106 = arith.addf %102, %105 : vector<8x32xf32>
    %c1 = arith.constant 1 : index
    %c0_61 = arith.constant 0 : index
    %c0_62 = arith.constant 0 : index
    %107 = vector.load %arg13[%c1, %c0_61, %c0_62] : memref<3x32x32xf32, #tpu.memory_space<vmem>>, vector<1x32x32xf32>
    %108 = vector.shape_cast %107 : vector<1x32x32xf32> to vector<32x32xf32>
    %cst_63 = arith.constant dense<0.000000e+00> : vector<8x32xf32>
    %109 = tpu.matmul %98, %108, %cst_63 {dimension_numbers = #tpu.dot_dimension_numbers<[1], [0], [0], [1], [0, 0, 1, 1], [], []>, precision = #tpu.contract_precision<fp32>} : vector<8x32xf32>, vector<32x32xf32>, vector<8x32xf32> -> vector<8x32xf32>
    %c1_64 = arith.constant 1 : index
    %c0_65 = arith.constant 0 : index
    %c0_66 = arith.constant 0 : index
    %110 = vector.load %arg14[%c1_64, %c0_65, %c0_66] : memref<3x1x32xf32, #tpu.memory_space<vmem>>, vector<1x1x32xf32>
    %111 = vector.shape_cast %110 : vector<1x1x32xf32> to vector<1x32xf32>
    %112 = vector.broadcast %111 : vector<1x32xf32> to vector<8x32xf32>
    %113 = arith.addf %109, %112 : vector<8x32xf32>
    %c2 = arith.constant 2 : index
    %c0_67 = arith.constant 0 : index
    %c0_68 = arith.constant 0 : index
    %114 = vector.load %arg13[%c2, %c0_67, %c0_68] : memref<3x32x32xf32, #tpu.memory_space<vmem>>, vector<1x32x32xf32>
    %115 = vector.shape_cast %114 : vector<1x32x32xf32> to vector<32x32xf32>
    %cst_69 = arith.constant dense<0.000000e+00> : vector<8x32xf32>
    %116 = tpu.matmul %98, %115, %cst_69 {dimension_numbers = #tpu.dot_dimension_numbers<[1], [0], [0], [1], [0, 0, 1, 1], [], []>, precision = #tpu.contract_precision<fp32>} : vector<8x32xf32>, vector<32x32xf32>, vector<8x32xf32> -> vector<8x32xf32>
    %c2_70 = arith.constant 2 : index
    %c0_71 = arith.constant 0 : index
    %c0_72 = arith.constant 0 : index
    %117 = vector.load %arg14[%c2_70, %c0_71, %c0_72] : memref<3x1x32xf32, #tpu.memory_space<vmem>>, vector<1x1x32xf32>
    %118 = vector.shape_cast %117 : vector<1x1x32xf32> to vector<1x32xf32>
    %119 = vector.broadcast %118 : vector<1x32xf32> to vector<8x32xf32>
    %120 = arith.addf %116, %119 : vector<8x32xf32>
    %c0_73 = arith.constant 0 : index
    %c0_74 = arith.constant 0 : index
    %c0_75 = arith.constant 0 : index
    %121 = vector.load %arg15[%c0_73, %c0_74, %c0_75] : memref<3x32x32xf32, #tpu.memory_space<vmem>>, vector<1x32x32xf32>
    %122 = vector.shape_cast %121 : vector<1x32x32xf32> to vector<32x32xf32>
    %cst_76 = arith.constant dense<0.000000e+00> : vector<8x32xf32>
    %123 = tpu.matmul %99, %122, %cst_76 {dimension_numbers = #tpu.dot_dimension_numbers<[1], [0], [0], [1], [0, 0, 1, 1], [], []>, precision = #tpu.contract_precision<fp32>} : vector<8x32xf32>, vector<32x32xf32>, vector<8x32xf32> -> vector<8x32xf32>
    %c0_77 = arith.constant 0 : index
    %c0_78 = arith.constant 0 : index
    %c0_79 = arith.constant 0 : index
    %124 = vector.load %arg16[%c0_77, %c0_78, %c0_79] : memref<3x1x32xf32, #tpu.memory_space<vmem>>, vector<1x1x32xf32>
    %125 = vector.shape_cast %124 : vector<1x1x32xf32> to vector<1x32xf32>
    %126 = vector.broadcast %125 : vector<1x32xf32> to vector<8x32xf32>
    %127 = arith.addf %123, %126 : vector<8x32xf32>
    %c1_80 = arith.constant 1 : index
    %c0_81 = arith.constant 0 : index
    %c0_82 = arith.constant 0 : index
    %128 = vector.load %arg15[%c1_80, %c0_81, %c0_82] : memref<3x32x32xf32, #tpu.memory_space<vmem>>, vector<1x32x32xf32>
    %129 = vector.shape_cast %128 : vector<1x32x32xf32> to vector<32x32xf32>
    %cst_83 = arith.constant dense<0.000000e+00> : vector<8x32xf32>
    %130 = tpu.matmul %99, %129, %cst_83 {dimension_numbers = #tpu.dot_dimension_numbers<[1], [0], [0], [1], [0, 0, 1, 1], [], []>, precision = #tpu.contract_precision<fp32>} : vector<8x32xf32>, vector<32x32xf32>, vector<8x32xf32> -> vector<8x32xf32>
    %c1_84 = arith.constant 1 : index
    %c0_85 = arith.constant 0 : index
    %c0_86 = arith.constant 0 : index
    %131 = vector.load %arg16[%c1_84, %c0_85, %c0_86] : memref<3x1x32xf32, #tpu.memory_space<vmem>>, vector<1x1x32xf32>
    %132 = vector.shape_cast %131 : vector<1x1x32xf32> to vector<1x32xf32>
    %133 = vector.broadcast %132 : vector<1x32xf32> to vector<8x32xf32>
    %134 = arith.addf %130, %133 : vector<8x32xf32>
    %c2_87 = arith.constant 2 : index
    %c0_88 = arith.constant 0 : index
    %c0_89 = arith.constant 0 : index
    %135 = vector.load %arg15[%c2_87, %c0_88, %c0_89] : memref<3x32x32xf32, #tpu.memory_space<vmem>>, vector<1x32x32xf32>
    %136 = vector.shape_cast %135 : vector<1x32x32xf32> to vector<32x32xf32>
    %cst_90 = arith.constant dense<0.000000e+00> : vector<8x32xf32>
    %137 = tpu.matmul %99, %136, %cst_90 {dimension_numbers = #tpu.dot_dimension_numbers<[1], [0], [0], [1], [0, 0, 1, 1], [], []>, precision = #tpu.contract_precision<fp32>} : vector<8x32xf32>, vector<32x32xf32>, vector<8x32xf32> -> vector<8x32xf32>
    %c2_91 = arith.constant 2 : index
    %c0_92 = arith.constant 0 : index
    %c0_93 = arith.constant 0 : index
    %138 = vector.load %arg16[%c2_91, %c0_92, %c0_93] : memref<3x1x32xf32, #tpu.memory_space<vmem>>, vector<1x1x32xf32>
    %139 = vector.shape_cast %138 : vector<1x1x32xf32> to vector<1x32xf32>
    %140 = vector.broadcast %139 : vector<1x32xf32> to vector<8x32xf32>
    %141 = arith.addf %137, %140 : vector<8x32xf32>
    %142 = arith.addf %106, %127 : vector<8x32xf32>
    %143 = arith.negf %142 : vector<8x32xf32>
    %144 = math.exp %143 : vector<8x32xf32>
    %cst_94 = arith.constant 1.000000e+00 : f32
    %145 = vector.broadcast %cst_94 : f32 to vector<8x32xf32>
    %146 = arith.addf %145, %144 : vector<8x32xf32>
    %147 = arith.divf %145, %146 : vector<8x32xf32>
    %148 = arith.addf %113, %134 : vector<8x32xf32>
    %149 = arith.negf %148 : vector<8x32xf32>
    %150 = math.exp %149 : vector<8x32xf32>
    %cst_95 = arith.constant 1.000000e+00 : f32
    %151 = vector.broadcast %cst_95 : f32 to vector<8x32xf32>
    %152 = arith.addf %151, %150 : vector<8x32xf32>
    %153 = arith.divf %151, %152 : vector<8x32xf32>
    %154 = arith.mulf %147, %141 : vector<8x32xf32>
    %155 = arith.addf %120, %154 : vector<8x32xf32>
    %156 = math.tanh %155 : vector<8x32xf32>
    %cst_96 = arith.constant 1.000000e+00 : f32
    %157 = vector.broadcast %cst_96 : f32 to vector<8x32xf32>
    %158 = arith.subf %157, %153 : vector<8x32xf32>
    %159 = arith.mulf %158, %156 : vector<8x32xf32>
    %160 = arith.mulf %153, %99 : vector<8x32xf32>
    %161 = arith.addf %159, %160 : vector<8x32xf32>
    %c0_97 = arith.constant 0 : index
    %c0_98 = arith.constant 0 : index
    %162 = vector.load %arg20[%c0_97, %c0_98] : memref<8x32xf32, #tpu.memory_space<vmem>>, vector<8x32xf32>
    tpu.vector_store %arg20[%c0_97, %c0_98], %161 {strides = array<i32>} : memref<8x32xf32, #tpu.memory_space<vmem>>, vector<8x32xf32>,
    %c0_99 = arith.constant 0 : index
    %c0_100 = arith.constant 0 : index
    %163 = vector.load %arg17[%c0_99, %c0_100] : memref<32x128xf32, #tpu.memory_space<vmem>>, vector<32x128xf32>
    %cst_101 = arith.constant dense<0.000000e+00> : vector<8x128xf32>
    %164 = tpu.matmul %161, %163, %cst_101 {dimension_numbers = #tpu.dot_dimension_numbers<[1], [0], [0], [1], [0, 0, 1, 1], [], []>, precision = #tpu.contract_precision<fp32>} : vector<8x32xf32>, vector<32x128xf32>, vector<8x128xf32> -> vector<8x128xf32>
    %c0_102 = arith.constant 0 : index
    %c0_103 = arith.constant 0 : index
    %165 = vector.load %arg18[%c0_102, %c0_103] : memref<1x128xf32, #tpu.memory_space<vmem>>, vector<1x128xf32>
    %166 = vector.broadcast %165 : vector<1x128xf32> to vector<8x128xf32>
    %167 = arith.addf %164, %166 : vector<8x128xf32>
    %cst_104 = arith.constant 0.000000e+00 : f32
    %168 = vector.shape_cast %94 : vector<8x1xi1> to vector<8x1xi1>
    %169 = vector.broadcast %168 : vector<8x1xi1> to vector<8x128xi1>
    %170 = vector.broadcast %cst_104 : f32 to vector<8x128xf32>
    %171 = arith.select %169, %170, %167 : vector<8x128xi1>, vector<8x128xf32>
    %c0_105 = arith.constant 0 : index
    %c0_106 = arith.constant 0 : index
    %c0_107 = arith.constant 0 : index
    %172 = vector.load %arg19[%c0_105, %c0_106, %c0_107] : memref<1x8x128xf32, #tpu.memory_space<vmem>>, vector<1x8x128xf32>
    %173 = vector.shape_cast %172 : vector<1x8x128xf32> to vector<8x128xf32>
    %174 = vector.shape_cast %171 : vector<8x128xf32> to vector<1x8x128xf32>
    tpu.vector_store %arg19[%c0_105, %c0_106, %c0_107], %174 {strides = array<i32>} : memref<1x8x128xf32, #tpu.memory_space<vmem>>, vector<1x8x128xf32>,
    return
  }
  func.func @transform_0(%arg0: i32) -> (i32, i32, i32) {
    %c0_i32 = arith.constant 0 : i32
    %c0_i32_0 = arith.constant 0 : i32
    %c0_i32_1 = arith.constant 0 : i32
    return %arg0, %c0_i32, %c0_i32_0 : i32, i32, i32
  }
  func.func @transform_1(%arg0: i32) -> (i32, i32, i32, i32) {
    %c0_i32 = arith.constant 0 : i32
    %c0_i32_0 = arith.constant 0 : i32
    %c0_i32_1 = arith.constant 0 : i32
    %c0_i32_2 = arith.constant 0 : i32
    return %arg0, %c0_i32, %c0_i32_0, %c0_i32_1 : i32, i32, i32, i32
  }
  func.func @transform_2(%arg0: i32) -> (i32, i32, i32) {
    %c0_i32 = arith.constant 0 : i32
    %c0_i32_0 = arith.constant 0 : i32
    %c0_i32_1 = arith.constant 0 : i32
    return %arg0, %c0_i32, %c0_i32_0 : i32, i32, i32
  }
  func.func @transform_3(%arg0: i32) -> (i32, i32) {
    %c0_i32 = arith.constant 0 : i32
    %c0_i32_0 = arith.constant 0 : i32
    %c0_i32_1 = arith.constant 0 : i32
    return %c0_i32, %c0_i32_0 : i32, i32
  }
  func.func @transform_4(%arg0: i32) -> (i32, i32) {
    %c0_i32 = arith.constant 0 : i32
    %c0_i32_0 = arith.constant 0 : i32
    %c0_i32_1 = arith.constant 0 : i32
    return %c0_i32, %c0_i32_0 : i32, i32
  }
  func.func @transform_5(%arg0: i32) -> (i32, i32) {
    %c0_i32 = arith.constant 0 : i32
    %c0_i32_0 = arith.constant 0 : i32
    %c0_i32_1 = arith.constant 0 : i32
    return %c0_i32, %c0_i32_0 : i32, i32
  }
  func.func @transform_6(%arg0: i32) -> (i32, i32) {
    %c0_i32 = arith.constant 0 : i32
    %c0_i32_0 = arith.constant 0 : i32
    %c0_i32_1 = arith.constant 0 : i32
    return %c0_i32, %c0_i32_0 : i32, i32
  }
  func.func @transform_7(%arg0: i32) -> (i32, i32) {
    %c0_i32 = arith.constant 0 : i32
    %c0_i32_0 = arith.constant 0 : i32
    %c0_i32_1 = arith.constant 0 : i32
    return %c0_i32, %c0_i32_0 : i32, i32
  }
  func.func @transform_8(%arg0: i32) -> (i32, i32) {
    %c0_i32 = arith.constant 0 : i32
    %c0_i32_0 = arith.constant 0 : i32
    %c0_i32_1 = arith.constant 0 : i32
    return %c0_i32, %c0_i32_0 : i32, i32
  }
  func.func @transform_9(%arg0: i32) -> (i32, i32) {
    %c0_i32 = arith.constant 0 : i32
    %c0_i32_0 = arith.constant 0 : i32
    %c0_i32_1 = arith.constant 0 : i32
    return %c0_i32, %c0_i32_0 : i32, i32
  }
  func.func @transform_10(%arg0: i32) -> (i32, i32) {
    %c0_i32 = arith.constant 0 : i32
    %c0_i32_0 = arith.constant 0 : i32
    %c0_i32_1 = arith.constant 0 : i32
    return %c0_i32, %c0_i32_0 : i32, i32
  }
  func.func @transform_11(%arg0: i32) -> (i32, i32) {
    %c0_i32 = arith.constant 0 : i32
    %c0_i32_0 = arith.constant 0 : i32
    %c0_i32_1 = arith.constant 0 : i32
    return %c0_i32, %c0_i32_0 : i32, i32
  }
  func.func @transform_12(%arg0: i32) -> (i32, i32, i32) {
    %c0_i32 = arith.constant 0 : i32
    %c0_i32_0 = arith.constant 0 : i32
    %c0_i32_1 = arith.constant 0 : i32
    %c0_i32_2 = arith.constant 0 : i32
    return %c0_i32, %c0_i32_0, %c0_i32_1 : i32, i32, i32
  }
  func.func @transform_13(%arg0: i32) -> (i32, i32, i32) {
    %c0_i32 = arith.constant 0 : i32
    %c0_i32_0 = arith.constant 0 : i32
    %c0_i32_1 = arith.constant 0 : i32
    %c0_i32_2 = arith.constant 0 : i32
    return %c0_i32, %c0_i32_0, %c0_i32_1 : i32, i32, i32
  }
  func.func @transform_14(%arg0: i32) -> (i32, i32, i32) {
    %c0_i32 = arith.constant 0 : i32
    %c0_i32_0 = arith.constant 0 : i32
    %c0_i32_1 = arith.constant 0 : i32
    %c0_i32_2 = arith.constant 0 : i32
    return %c0_i32, %c0_i32_0, %c0_i32_1 : i32, i32, i32
  }
  func.func @transform_15(%arg0: i32) -> (i32, i32, i32) {
    %c0_i32 = arith.constant 0 : i32
    %c0_i32_0 = arith.constant 0 : i32
    %c0_i32_1 = arith.constant 0 : i32
    %c0_i32_2 = arith.constant 0 : i32
    return %c0_i32, %c0_i32_0, %c0_i32_1 : i32, i32, i32
  }
  func.func @transform_16(%arg0: i32) -> (i32, i32) {
    %c0_i32 = arith.constant 0 : i32
    %c0_i32_0 = arith.constant 0 : i32
    %c0_i32_1 = arith.constant 0 : i32
    return %c0_i32, %c0_i32_0 : i32, i32
  }
  func.func @transform_17(%arg0: i32) -> (i32, i32) {
    %c0_i32 = arith.constant 0 : i32
    %c0_i32_0 = arith.constant 0 : i32
    %c0_i32_1 = arith.constant 0 : i32
    return %c0_i32, %c0_i32_0 : i32, i32
  }
  func.func @transform_18(%arg0: i32) -> (i32, i32, i32) {
    %c0_i32 = arith.constant 0 : i32
    %c0_i32_0 = arith.constant 0 : i32
    %c0_i32_1 = arith.constant 0 : i32
    return %arg0, %c0_i32, %c0_i32_0 : i32, i32, i32
  }
}

</mosaic_0001>

<llo_original>
// kernel: refil_forward.1
$region0: #{refil_forward.1}
  #allocation0 [shape = 'u32[]', space=smem, size = 0x4, offset = 0x4, fixed_abs, tag = 'smem constant byte address 0x4 - core index']
  #allocation1 [shape = 'u32[144,128]{1,0:T(1,128)}', space=vmem, size = 0x12000, scoped, tag = 'internal scratch']
  #allocation2 [shape = 'f32[8,32]{1,0:T(8,128)}', space=vmem, size = 0x1000, scoped, tag = 'scratch operand']
  %s0 = inlined_call_operand.vmem [shape: f32[4,16,16], index: 0, kind: input, shape index: {}]
  %s1 = inlined_call_operand.vmem [shape: f32[4,2,4,8], index: 1, kind: input, shape index: {}]
  %s2 = inlined_call_operand.vmem [shape: f32[4,8,1], index: 2, kind: input, shape index: {}]
  %s3 = inlined_call_operand.hbm [shape: f32[8,32], index: 3, kind: input, shape index: {}]
  %s4 = inlined_call_operand.vmem [shape: f32[16,32], index: 4, kind: input, shape index: {}]
  %s5 = inlined_call_operand.vmem [shape: f32[1,32], index: 5, kind: input, shape index: {}]
  %s6 = inlined_call_operand.vmem [shape: f32[32,32], index: 6, kind: input, shape index: {}]
  %s7 = inlined_call_operand.hbm [shape: f32[1,32], index: 7, kind: input, shape index: {}]
  %s8 = inlined_call_operand.vmem [shape: f32[32,32], index: 8, kind: input, shape index: {}]
  %s9 = inlined_call_operand.hbm [shape: f32[1,32], index: 9, kind: input, shape index: {}]
  %s10 = inlined_call_operand.vmem [shape: f32[32,32], index: 10, kind: input, shape index: {}]
  %s11 = inlined_call_operand.hbm [shape: f32[1,32], index: 11, kind: input, shape index: {}]
  %s12 = inlined_call_operand.vmem [shape: f32[3,32,32], index: 12, kind: input, shape index: {}]
  %s13 = inlined_call_operand.hbm [shape: f32[3,1,32], index: 13, kind: input, shape index: {}]
  %s14 = inlined_call_operand.vmem [shape: f32[3,32,32], index: 14, kind: input, shape index: {}]
  %s15 = inlined_call_operand.hbm [shape: f32[3,1,32], index: 15, kind: input, shape index: {}]
  %s16 = inlined_call_operand.hbm [shape: f32[32,128], index: 16, kind: input, shape index: {}]
  %s17 = inlined_call_operand.hbm [shape: f32[1,128], index: 17, kind: input, shape index: {}]
  %s18 = inlined_call_operand.vmem [shape: f32[4,8,128], index: 18, kind: output, shape index: {}]
  %s19 = sld [smem:[#allocation0]]
  $region141: #{refil_forward.1} parent=0
    _
  %s21 = ssub.s32 1, %s19
  %s22 = scalar_select 0, %s21, %s19
  $region1: #{refil_forward.1} parent=0
    #allocation3 [shape = 'u8[4096]{0}', space=vmem, size = 0x1000, scoped, tag = 'input window, operand 3, single buffered']
    #allocation4 [shape = 's32[2]{0}', space=sflag, size = 0x8, scoped, tag = 'scoped memory for refil_forward.1']
    #allocation5 [shape = 'u8[512]{0}', space=vmem, size = 0x400, scoped, tag = 'input window, operand 7, single buffered']
    #allocation6 [shape = 's32[1]{0}', space=sflag, size = 0x4, scoped, tag = 'scoped memory for refil_forward.1']
    #allocation7 [shape = 'u8[512]{0}', space=vmem, size = 0x400, scoped, tag = 'input window, operand 9, single buffered']
    #allocation8 [shape = 'u8[512]{0}', space=vmem, size = 0x400, scoped, tag = 'input window, operand 11, single buffered']
    #allocation9 [shape = 's32[1]{0}', space=sflag, size = 0x4, scoped, tag = 'scoped memory for refil_forward.1']
    #allocation10 [shape = 'u8[1536]{0}', space=vmem, size = 0x800, scoped, tag = 'input window, operand 13, single buffered']
    #allocation11 [shape = 'u8[1536]{0}', space=vmem, size = 0x800, scoped, tag = 'input window, operand 15, single buffered']
    #allocation12 [shape = 's32[1]{0}', space=sflag, size = 0x4, scoped, tag = 'scoped memory for refil_forward.1']
    #allocation13 [shape = 'u8[16384]{0}', space=vmem, size = 0x4000, scoped, tag = 'input window, operand 16, single buffered']
    #allocation14 [shape = 'u8[512]{0}', space=vmem, size = 0x400, scoped, tag = 'input window, operand 17, single buffered']
    #allocation15 [shape = 's32[1]{0}', space=sflag, size = 0x4, scoped, tag = 'scoped memory for refil_forward.1']
    %23 = vsyncpa [#allocation4], 0
    %24 = vsyncpa [#allocation6], 0
    %25 = vsyncpa [#allocation9], 0
    %26 = vsyncpa [#allocation12], 0
    %27 = vsyncpa [#allocation15], 0
    loop: start=0, step=1, limit=6
    $region2: #{refil_forward.1} parent=1 // loop_pre_header
      _
    $region3: #{refil_forward.1} parent=1 // loop_header
      %s29 = sphi 0, %s33
      %p30 = scmp.ge.s32.totalorder %s29, 6
      %s39 = sphi 0, %s41
      %s42 = sphi 0, %s39
      %s43 = sphi 0, %s42
      %s59 = sphi 0, %s43
      %s65 = sphi 0, %s67
      %s68 = sphi 0, %s65
      %s69 = sphi 0, %s68
      %s85 = sphi 0, %s69
      %s91 = sphi 0, %s93
      %s94 = sphi 0, %s91
      %s95 = sphi 0, %s94
      %s111 = sphi 0, %s95
      %s115 = sphi 0, %s115
      %s117 = sphi 0, %s115
      %s118 = sphi 0, %s117
      %s132 = sphi 0, %s118
      %s136 = sphi 0, %s136
      %s138 = sphi 0, %s136
      %s139 = sphi 0, %s138
      %s153 = sphi 0, %s139
      %s157 = sphi 0, %s157
      %s159 = sphi 0, %s157
      %s160 = sphi 0, %s159
      %s174 = sphi 0, %s160
      %s178 = sphi 0, %s178
      %s180 = sphi 0, %s178
      %s181 = sphi 0, %s180
      %s195 = sphi 0, %s181
      %s199 = sphi 0, %s199
      %s201 = sphi 0, %s199
      %s202 = sphi 0, %s201
      %s216 = sphi 0, %s202
      %s220 = sphi 0, %s220
      %s222 = sphi 0, %s220
      %s223 = sphi 0, %s222
      %s237 = sphi 0, %s223
      %s241 = sphi 0, %s241
      %s243 = sphi 0, %s241
      %s244 = sphi 0, %s243
      %s258 = sphi 0, %s244
      %s262 = sphi 0, %s262
      %s264 = sphi 0, %s262
      %s265 = sphi 0, %s264
      %s279 = sphi 0, %s265
      %s283 = sphi 0, %s283
      %s285 = sphi 0, %s283
      %s286 = sphi 0, %s285
      %s300 = sphi 0, %s286
      %s304 = sphi 0, %s304
      %s306 = sphi 0, %s304
      %s307 = sphi 0, %s306
      %s321 = sphi 0, %s307
      %s325 = sphi 0, %s325
      %s327 = sphi 0, %s325
      %s328 = sphi 0, %s327
      %s342 = sphi 0, %s328
      %s346 = sphi 0, %s346
      %s348 = sphi 0, %s346
      %s349 = sphi 0, %s348
      %s363 = sphi 0, %s349
      %s367 = sphi 0, %s367
      %s369 = sphi 0, %s367
      %s370 = sphi 0, %s369
      %s384 = sphi 0, %s370
      %s388 = sphi 0, %s388
      %s390 = sphi 0, %s388
      %s391 = sphi 0, %s390
      %s405 = sphi 0, %s391
      %s409 = sphi 0, %s409
      %s411 = sphi 0, %s409
      %s412 = sphi 0, %s411
      %s426 = sphi 0, %s412
      %s432 = sphi 0, %s434
      %s435 = sphi 0, %s432
      %s436 = sphi 0, %s435
      %s452 = sphi 0, %s436
    $region4: #{refil_forward.1} parent=1 // loop_header_branch
      %32 = sbr.rel (%p30) target = $region8
    $region5: #{refil_forward.1} parent=1 // loop_body
      %s34 = ssub.s32 %s29, 1
      %s35 = ssub.s32 %s29, 2
      %s36 = sadd.s32 %s29, 1
      %s37 = ssub.s32 %s29, %s36
      %p38 = scmp.eq.s32.totalorder %s37, 0
      %s40 = sadd.s32 %s39, 1
      %s41 = scalar_select %p38, %s39, %s40
      %p44 = pneg %p38
      %p45 = scmp.eq.s32.totalorder %s29, 3
      %p46 = por %p44, %p45
      %p47 = scmp.ne.s32.totalorder %s39, %s42
      %p48 = scmp.eq.s32.totalorder %s29, 0
      %p49 = por %p47, %p48
      %p50 = scmp.ne.s32.totalorder %s39, %s42
      %p51 = scmp.eq.s32.totalorder %s34, 3
      %p52 = por %p50, %p51
      %p53 = scmp.ne.s32.totalorder %s42, %s43
      %p54 = scmp.eq.s32.totalorder %s34, 0
      %p55 = por %p53, %p54
      %p56 = scmp.ne.s32.totalorder %s42, %s43
      %p57 = scmp.eq.s32.totalorder %s35, 3
      %p58 = por %p56, %p57
      %p60 = scmp.ne.s32.totalorder %s43, %s59
      %p61 = scmp.eq.s32.totalorder %s35, 0
      %p62 = por %p60, %p61
      %s63 = ssub.s32 %s29, %s36
      %p64 = scmp.eq.s32.totalorder %s63, 0
      %s66 = sadd.s32 %s65, 1
      %s67 = scalar_select %p64, %s65, %s66
      %p70 = pneg %p64
      %p71 = scmp.eq.s32.totalorder %s29, 3
      %p72 = por %p70, %p71
      %p73 = scmp.ne.s32.totalorder %s65, %s68
      %p74 = scmp.eq.s32.totalorder %s29, 0
      %p75 = por %p73, %p74
      %p76 = scmp.ne.s32.totalorder %s65, %s68
      %p77 = scmp.eq.s32.totalorder %s34, 3
      %p78 = por %p76, %p77
      %p79 = scmp.ne.s32.totalorder %s68, %s69
      %p80 = scmp.eq.s32.totalorder %s34, 0
      %p81 = por %p79, %p80
      %p82 = scmp.ne.s32.totalorder %s68, %s69
      %p83 = scmp.eq.s32.totalorder %s35, 3
      %p84 = por %p82, %p83
      %p86 = scmp.ne.s32.totalorder %s69, %s85
      %p87 = scmp.eq.s32.totalorder %s35, 0
      %p88 = por %p86, %p87
      %s89 = ssub.s32 %s29, %s36
      %p90 = scmp.eq.s32.totalorder %s89, 0
      %s92 = sadd.s32 %s91, 1
      %s93 = scalar_select %p90, %s91, %s92
      %p96 = pneg %p90
      %p97 = scmp.eq.s32.totalorder %s29, 3
      %p98 = por %p96, %p97
      %p99 = scmp.ne.s32.totalorder %s91, %s94
      %p100 = scmp.eq.s32.totalorder %s29, 0
      %p101 = por %p99, %p100
      %p102 = scmp.ne.s32.totalorder %s91, %s94
      %p103 = scmp.eq.s32.totalorder %s34, 3
      %p104 = por %p102, %p103
      %p105 = scmp.ne.s32.totalorder %s94, %s95
      %p106 = scmp.eq.s32.totalorder %s34, 0
      %p107 = por %p105, %p106
      %p108 = scmp.ne.s32.totalorder %s94, %s95
      %p109 = scmp.eq.s32.totalorder %s35, 3
      %p110 = por %p108, %p109
      %p112 = scmp.ne.s32.totalorder %s95, %s111
      %p113 = scmp.eq.s32.totalorder %s35, 0
      %p114 = por %p112, %p113
      %s116 = sadd.s32 %s115, 1
      %p119 = scmp.eq.s32.totalorder %s29, 3
      %p120 = scmp.ne.s32.totalorder %s115, %s117
      %p121 = scmp.eq.s32.totalorder %s29, 0
      %p122 = por %p120, %p121
      %p123 = scmp.ne.s32.totalorder %s115, %s117
      %p124 = scmp.eq.s32.totalorder %s34, 3
      %p125 = por %p123, %p124
      %p126 = scmp.ne.s32.totalorder %s117, %s118
      %p127 = scmp.eq.s32.totalorder %s34, 0
      %p128 = por %p126, %p127
      %p129 = scmp.ne.s32.totalorder %s117, %s118
      %p130 = scmp.eq.s32.totalorder %s35, 3
      %p131 = por %p129, %p130
      %p133 = scmp.ne.s32.totalorder %s118, %s132
      %p134 = scmp.eq.s32.totalorder %s35, 0
      %p135 = por %p133, %p134
      %s137 = sadd.s32 %s136, 1
      %p140 = scmp.eq.s32.totalorder %s29, 3
      %p141 = scmp.ne.s32.totalorder %s136, %s138
      %p142 = scmp.eq.s32.totalorder %s29, 0
      %p143 = por %p141, %p142
      %p144 = scmp.ne.s32.totalorder %s136, %s138
      %p145 = scmp.eq.s32.totalorder %s34, 3
      %p146 = por %p144, %p145
      %p147 = scmp.ne.s32.totalorder %s138, %s139
      %p148 = scmp.eq.s32.totalorder %s34, 0
      %p149 = por %p147, %p148
      %p150 = scmp.ne.s32.totalorder %s138, %s139
      %p151 = scmp.eq.s32.totalorder %s35, 3
      %p152 = por %p150, %p151
      %p154 = scmp.ne.s32.totalorder %s139, %s153
      %p155 = scmp.eq.s32.totalorder %s35, 0
      %p156 = por %p154, %p155
      %s158 = sadd.s32 %s157, 1
      %p161 = scmp.eq.s32.totalorder %s29, 3
      %p162 = scmp.ne.s32.totalorder %s157, %s159
      %p163 = scmp.eq.s32.totalorder %s29, 0
      %p164 = por %p162, %p163
      %p165 = scmp.ne.s32.totalorder %s157, %s159
      %p166 = scmp.eq.s32.totalorder %s34, 3
      %p167 = por %p165, %p166
      %p168 = scmp.ne.s32.totalorder %s159, %s160
      %p169 = scmp.eq.s32.totalorder %s34, 0
      %p170 = por %p168, %p169
      %p171 = scmp.ne.s32.totalorder %s159, %s160
      %p172 = scmp.eq.s32.totalorder %s35, 3
      %p173 = por %p171, %p172
      %p175 = scmp.ne.s32.totalorder %s160, %s174
      %p176 = scmp.eq.s32.totalorder %s35, 0
      %p177 = por %p175, %p176
      %s179 = sadd.s32 %s178, 1
      %p182 = scmp.eq.s32.totalorder %s29, 3
      %p183 = scmp.ne.s32.totalorder %s178, %s180
      %p184 = scmp.eq.s32.totalorder %s29, 0
      %p185 = por %p183, %p184
      %p186 = scmp.ne.s32.totalorder %s178, %s180
      %p187 = scmp.eq.s32.totalorder %s34, 3
      %p188 = por %p186, %p187
      %p189 = scmp.ne.s32.totalorder %s180, %s181
      %p190 = scmp.eq.s32.totalorder %s34, 0
      %p191 = por %p189, %p190
      %p192 = scmp.ne.s32.totalorder %s180, %s181
      %p193 = scmp.eq.s32.totalorder %s35, 3
      %p194 = por %p192, %p193
      %p196 = scmp.ne.s32.totalorder %s181, %s195
      %p197 = scmp.eq.s32.totalorder %s35, 0
      %p198 = por %p196, %p197
      %s200 = sadd.s32 %s199, 1
      %p203 = scmp.eq.s32.totalorder %s29, 3
      %p204 = scmp.ne.s32.totalorder %s199, %s201
      %p205 = scmp.eq.s32.totalorder %s29, 0
      %p206 = por %p204, %p205
      %p207 = scmp.ne.s32.totalorder %s199, %s201
      %p208 = scmp.eq.s32.totalorder %s34, 3
      %p209 = por %p207, %p208
      %p210 = scmp.ne.s32.totalorder %s201, %s202
      %p211 = scmp.eq.s32.totalorder %s34, 0
      %p212 = por %p210, %p211
      %p213 = scmp.ne.s32.totalorder %s201, %s202
      %p214 = scmp.eq.s32.totalorder %s35, 3
      %p215 = por %p213, %p214
      %p217 = scmp.ne.s32.totalorder %s202, %s216
      %p218 = scmp.eq.s32.totalorder %s35, 0
      %p219 = por %p217, %p218
      %s221 = sadd.s32 %s220, 1
      %p224 = scmp.eq.s32.totalorder %s29, 3
      %p225 = scmp.ne.s32.totalorder %s220, %s222
      %p226 = scmp.eq.s32.totalorder %s29, 0
      %p227 = por %p225, %p226
      %p228 = scmp.ne.s32.totalorder %s220, %s222
      %p229 = scmp.eq.s32.totalorder %s34, 3
      %p230 = por %p228, %p229
      %p231 = scmp.ne.s32.totalorder %s222, %s223
      %p232 = scmp.eq.s32.totalorder %s34, 0
      %p233 = por %p231, %p232
      %p234 = scmp.ne.s32.totalorder %s222, %s223
      %p235 = scmp.eq.s32.totalorder %s35, 3
      %p236 = por %p234, %p235
      %p238 = scmp.ne.s32.totalorder %s223, %s237
      %p239 = scmp.eq.s32.totalorder %s35, 0
      %p240 = por %p238, %p239
      %s242 = sadd.s32 %s241, 1
      %p245 = scmp.eq.s32.totalorder %s29, 3
      %p246 = scmp.ne.s32.totalorder %s241, %s243
      %p247 = scmp.eq.s32.totalorder %s29, 0
      %p248 = por %p246, %p247
      %p249 = scmp.ne.s32.totalorder %s241, %s243
      %p250 = scmp.eq.s32.totalorder %s34, 3
      %p251 = por %p249, %p250
      %p252 = scmp.ne.s32.totalorder %s243, %s244
      %p253 = scmp.eq.s32.totalorder %s34, 0
      %p254 = por %p252, %p253
      %p255 = scmp.ne.s32.totalorder %s243, %s244
      %p256 = scmp.eq.s32.totalorder %s35, 3
      %p257 = por %p255, %p256
      %p259 = scmp.ne.s32.totalorder %s244, %s258
      %p260 = scmp.eq.s32.totalorder %s35, 0
      %p261 = por %p259, %p260
      %s263 = sadd.s32 %s262, 1
      %p266 = scmp.eq.s32.totalorder %s29, 3
      %p267 = scmp.ne.s32.totalorder %s262, %s264
      %p268 = scmp.eq.s32.totalorder %s29, 0
      %p269 = por %p267, %p268
      %p270 = scmp.ne.s32.totalorder %s262, %s264
      %p271 = scmp.eq.s32.totalorder %s34, 3
      %p272 = por %p270, %p271
      %p273 = scmp.ne.s32.totalorder %s264, %s265
      %p274 = scmp.eq.s32.totalorder %s34, 0
      %p275 = por %p273, %p274
      %p276 = scmp.ne.s32.totalorder %s264, %s265
      %p277 = scmp.eq.s32.totalorder %s35, 3
      %p278 = por %p276, %p277
      %p280 = scmp.ne.s32.totalorder %s265, %s279
      %p281 = scmp.eq.s32.totalorder %s35, 0
      %p282 = por %p280, %p281
      %s284 = sadd.s32 %s283, 1
      %p287 = scmp.eq.s32.totalorder %s29, 3
      %p288 = scmp.ne.s32.totalorder %s283, %s285
      %p289 = scmp.eq.s32.totalorder %s29, 0
      %p290 = por %p288, %p289
      %p291 = scmp.ne.s32.totalorder %s283, %s285
      %p292 = scmp.eq.s32.totalorder %s34, 3
      %p293 = por %p291, %p292
      %p294 = scmp.ne.s32.totalorder %s285, %s286
      %p295 = scmp.eq.s32.totalorder %s34, 0
      %p296 = por %p294, %p295
      %p297 = scmp.ne.s32.totalorder %s285, %s286
      %p298 = scmp.eq.s32.totalorder %s35, 3
      %p299 = por %p297, %p298
      %p301 = scmp.ne.s32.totalorder %s286, %s300
      %p302 = scmp.eq.s32.totalorder %s35, 0
      %p303 = por %p301, %p302
      %s305 = sadd.s32 %s304, 1
      %p308 = scmp.eq.s32.totalorder %s29, 3
      %p309 = scmp.ne.s32.totalorder %s304, %s306
      %p310 = scmp.eq.s32.totalorder %s29, 0
      %p311 = por %p309, %p310
      %p312 = scmp.ne.s32.totalorder %s304, %s306
      %p313 = scmp.eq.s32.totalorder %s34, 3
      %p314 = por %p312, %p313
      %p315 = scmp.ne.s32.totalorder %s306, %s307
      %p316 = scmp.eq.s32.totalorder %s34, 0
      %p317 = por %p315, %p316
      %p318 = scmp.ne.s32.totalorder %s306, %s307
      %p319 = scmp.eq.s32.totalorder %s35, 3
      %p320 = por %p318, %p319
      %p322 = scmp.ne.s32.totalorder %s307, %s321
      %p323 = scmp.eq.s32.totalorder %s35, 0
      %p324 = por %p322, %p323
      %s326 = sadd.s32 %s325, 1
      %p329 = scmp.eq.s32.totalorder %s29, 3
      %p330 = scmp.ne.s32.totalorder %s325, %s327
      %p331 = scmp.eq.s32.totalorder %s29, 0
      %p332 = por %p330, %p331
      %p333 = scmp.ne.s32.totalorder %s325, %s327
      %p334 = scmp.eq.s32.totalorder %s34, 3
      %p335 = por %p333, %p334
      %p336 = scmp.ne.s32.totalorder %s327, %s328
      %p337 = scmp.eq.s32.totalorder %s34, 0
      %p338 = por %p336, %p337
      %p339 = scmp.ne.s32.totalorder %s327, %s328
      %p340 = scmp.eq.s32.totalorder %s35, 3
      %p341 = por %p339, %p340
      %p343 = scmp.ne.s32.totalorder %s328, %s342
      %p344 = scmp.eq.s32.totalorder %s35, 0
      %p345 = por %p343, %p344
      %s347 = sadd.s32 %s346, 1
      %p350 = scmp.eq.s32.totalorder %s29, 3
      %p351 = scmp.ne.s32.totalorder %s346, %s348
      %p352 = scmp.eq.s32.totalorder %s29, 0
      %p353 = por %p351, %p352
      %p354 = scmp.ne.s32.totalorder %s346, %s348
      %p355 = scmp.eq.s32.totalorder %s34, 3
      %p356 = por %p354, %p355
      %p357 = scmp.ne.s32.totalorder %s348, %s349
      %p358 = scmp.eq.s32.totalorder %s34, 0
      %p359 = por %p357, %p358
      %p360 = scmp.ne.s32.totalorder %s348, %s349
      %p361 = scmp.eq.s32.totalorder %s35, 3
      %p362 = por %p360, %p361
      %p364 = scmp.ne.s32.totalorder %s349, %s363
      %p365 = scmp.eq.s32.totalorder %s35, 0
      %p366 = por %p364, %p365
      %s368 = sadd.s32 %s367, 1
      %p371 = scmp.eq.s32.totalorder %s29, 3
      %p372 = scmp.ne.s32.totalorder %s367, %s369
      %p373 = scmp.eq.s32.totalorder %s29, 0
      %p374 = por %p372, %p373
      %p375 = scmp.ne.s32.totalorder %s367, %s369
      %p376 = scmp.eq.s32.totalorder %s34, 3
      %p377 = por %p375, %p376
      %p378 = scmp.ne.s32.totalorder %s369, %s370
      %p379 = scmp.eq.s32.totalorder %s34, 0
      %p380 = por %p378, %p379
      %p381 = scmp.ne.s32.totalorder %s369, %s370
      %p382 = scmp.eq.s32.totalorder %s35, 3
      %p383 = por %p381, %p382
      %p385 = scmp.ne.s32.totalorder %s370, %s384
      %p386 = scmp.eq.s32.totalorder %s35, 0
      %p387 = por %p385, %p386
      %s389 = sadd.s32 %s388, 1
      %p392 = scmp.eq.s32.totalorder %s29, 3
      %p393 = scmp.ne.s32.totalorder %s388, %s390
      %p394 = scmp.eq.s32.totalorder %s29, 0
      %p395 = por %p393, %p394
      %p396 = scmp.ne.s32.totalorder %s388, %s390
      %p397 = scmp.eq.s32.totalorder %s34, 3
      %p398 = por %p396, %p397
      %p399 = scmp.ne.s32.totalorder %s390, %s391
      %p400 = scmp.eq.s32.totalorder %s34, 0
      %p401 = por %p399, %p400
      %p402 = scmp.ne.s32.totalorder %s390, %s391
      %p403 = scmp.eq.s32.totalorder %s35, 3
      %p404 = por %p402, %p403
      %p406 = scmp.ne.s32.totalorder %s391, %s405
      %p407 = scmp.eq.s32.totalorder %s35, 0
      %p408 = por %p406, %p407
      %s410 = sadd.s32 %s409, 1
      %p413 = scmp.eq.s32.totalorder %s29, 3
      %p414 = scmp.ne.s32.totalorder %s409, %s411
      %p415 = scmp.eq.s32.totalorder %s29, 0
      %p416 = por %p414, %p415
      %p417 = scmp.ne.s32.totalorder %s409, %s411
      %p418 = scmp.eq.s32.totalorder %s34, 3
      %p419 = por %p417, %p418
      %p420 = scmp.ne.s32.totalorder %s411, %s412
      %p421 = scmp.eq.s32.totalorder %s34, 0
      %p422 = por %p420, %p421
      %p423 = scmp.ne.s32.totalorder %s411, %s412
      %p424 = scmp.eq.s32.totalorder %s35, 3
      %p425 = por %p423, %p424
      %p427 = scmp.ne.s32.totalorder %s412, %s426
      %p428 = scmp.eq.s32.totalorder %s35, 0
      %p429 = por %p427, %p428
      %s430 = ssub.s32 %s29, %s36
      %p431 = scmp.eq.s32.totalorder %s430, 0
      %s433 = sadd.s32 %s432, 1
      %s434 = scalar_select %p431, %s432, %s433
      %p437 = pneg %p431
      %p438 = scmp.eq.s32.totalorder %s29, 3
      %p439 = por %p437, %p438
      %p440 = scmp.ne.s32.totalorder %s432, %s435
      %p441 = scmp.eq.s32.totalorder %s29, 0
      %p442 = por %p440, %p441
      %p443 = scmp.ne.s32.totalorder %s432, %s435
      %p444 = scmp.eq.s32.totalorder %s34, 3
      %p445 = por %p443, %p444
      %p446 = scmp.ne.s32.totalorder %s435, %s436
      %p447 = scmp.eq.s32.totalorder %s34, 0
      %p448 = por %p446, %p447
      %p449 = scmp.ne.s32.totalorder %s435, %s436
      %p450 = scmp.eq.s32.totalorder %s35, 3
      %p451 = por %p449, %p450
      %p453 = scmp.ne.s32.totalorder %s436, %s452
      %p454 = scmp.eq.s32.totalorder %s35, 0
      %p455 = por %p453, %p454
      %p456 = scmp.le.s32.totalorder 1, %s29
      %p457 = scmp.lt.s32.totalorder %s29, 5
      %p458 = pnand %p456, %p457
      %p459 = pneg %p458
      // Predicated region
      $region9: #{refil_forward.1} parent=5 // pred_check
        _
      $region10: #{refil_forward.1} parent=5 // pred_check_branch
        %461 = sbr.rel (%p458) target = $region12
      $region11: #{refil_forward.1} parent=5 // pred_region
        %s462 = ssub.s32 %s29, 1
        // Predicated region
        $region13: #{refil_forward.1} parent=11 // pred_check
          %p463 = pneg %p128
        $region14: #{refil_forward.1} parent=11 // pred_check_branch
          %465 = sbr.rel (%p463) target = $region16
        $region15: #{refil_forward.1} parent=11 // pred_region
          %s467 = ssub.s32 128, 128
          %468 = vsyncadd [#allocation4], %s467
          %s470 = sshll.u32 [#allocation3], 4
          %s471 = int_to_ptr.vmem [resolvable:$true] %s470
          %473 = dma.hbm_to_vmem [thread:$0]  %s3, 128, %s471, [#allocation4]
        $region16: #{refil_forward.1} parent=11 // pred_fallthru
          _
        // Predicated region
        $region17: #{refil_forward.1} parent=11 // pred_check
          %p474 = pneg %p149
        $region18: #{refil_forward.1} parent=11 // pred_check_branch
          %476 = sbr.rel (%p474) target = $region20
        $region19: #{refil_forward.1} parent=11 // pred_region
          _
        $region20: #{refil_forward.1} parent=11 // pred_fallthru
          _
        // Predicated region
        $region21: #{refil_forward.1} parent=11 // pred_check
          %p477 = pneg %p170
        $region22: #{refil_forward.1} parent=11 // pred_check_branch
          %479 = sbr.rel (%p477) target = $region24
        $region23: #{refil_forward.1} parent=11 // pred_region
          _
        $region24: #{refil_forward.1} parent=11 // pred_fallthru
          _
        // Predicated region
        $region25: #{refil_forward.1} parent=11 // pred_check
          %p480 = pneg %p191
        $region26: #{refil_forward.1} parent=11 // pred_check_branch
          %482 = sbr.rel (%p480) target = $region28
        $region27: #{refil_forward.1} parent=11 // pred_region
          _
        $region28: #{refil_forward.1} parent=11 // pred_fallthru
          _
        // Predicated region
        $region29: #{refil_forward.1} parent=11 // pred_check
          %p483 = pneg %p212
        $region30: #{refil_forward.1} parent=11 // pred_check_branch
          %485 = sbr.rel (%p483) target = $region32
        $region31: #{refil_forward.1} parent=11 // pred_region
          %s487 = ssub.s32 16, 16
          %488 = vsyncadd [#allocation6], %s487
          %s490 = sshll.u32 [#allocation5], 4
          %s491 = int_to_ptr.vmem [resolvable:$true] %s490
          %493 = dma.hbm_to_vmem [thread:$0]  %s7, 16, %s491, [#allocation6]
        $region32: #{refil_forward.1} parent=11 // pred_fallthru
          _
        // Predicated region
        $region33: #{refil_forward.1} parent=11 // pred_check
          %p494 = pneg %p233
        $region34: #{refil_forward.1} parent=11 // pred_check_branch
          %496 = sbr.rel (%p494) target = $region36
        $region35: #{refil_forward.1} parent=11 // pred_region
          _
        $region36: #{refil_forward.1} parent=11 // pred_fallthru
          _
        // Predicated region
        $region37: #{refil_forward.1} parent=11 // pred_check
          %p497 = pneg %p254
        $region38: #{refil_forward.1} parent=11 // pred_check_branch
          %499 = sbr.rel (%p497) target = $region40
        $region39: #{refil_forward.1} parent=11 // pred_region
          %s501 = ssub.s32 16, 16
          %502 = vsyncadd [#allocation6], %s501
          %s504 = sshll.u32 [#allocation7], 4
          %s505 = int_to_ptr.vmem [resolvable:$true] %s504
          %507 = dma.hbm_to_vmem [thread:$0]  %s9, 16, %s505, [#allocation6]
        $region40: #{refil_forward.1} parent=11 // pred_fallthru
          _
        // Predicated region
        $region41: #{refil_forward.1} parent=11 // pred_check
          %p508 = pneg %p275
        $region42: #{refil_forward.1} parent=11 // pred_check_branch
          %510 = sbr.rel (%p508) target = $region44
        $region43: #{refil_forward.1} parent=11 // pred_region
          _
        $region44: #{refil_forward.1} parent=11 // pred_fallthru
          _
        // Predicated region
        $region45: #{refil_forward.1} parent=11 // pred_check
          %p511 = pneg %p296
        $region46: #{refil_forward.1} parent=11 // pred_check_branch
          %513 = sbr.rel (%p511) target = $region48
        $region47: #{refil_forward.1} parent=11 // pred_region
          %s515 = ssub.s32 16, 16
          %516 = vsyncadd [#allocation9], %s515
          %s518 = sshll.u32 [#allocation8], 4
          %s519 = int_to_ptr.vmem [resolvable:$true] %s518
          %521 = dma.hbm_to_vmem [thread:$0]  %s11, 16, %s519, [#allocation9]
        $region48: #{refil_forward.1} parent=11 // pred_fallthru
          _
        // Predicated region
        $region49: #{refil_forward.1} parent=11 // pred_check
          %p522 = pneg %p317
        $region50: #{refil_forward.1} parent=11 // pred_check_branch
          %524 = sbr.rel (%p522) target = $region52
        $region51: #{refil_forward.1} parent=11 // pred_region
          _
        $region52: #{refil_forward.1} parent=11 // pred_fallthru
          _
        // Predicated region
        $region53: #{refil_forward.1} parent=11 // pred_check
          %p525 = pneg %p338
        $region54: #{refil_forward.1} parent=11 // pred_check_branch
          %527 = sbr.rel (%p525) target = $region56
        $region55: #{refil_forward.1} parent=11 // pred_region
          %s529 = ssub.s32 48, 48
          %530 = vsyncadd [#allocation9], %s529
          %s531 = sshll.u32 [#allocation10], 4
          %s532 = int_to_ptr.vmem [resolvable:$true] %s531
          %537 = dma.hbm_to_vmem [thread:$0]  %s13, 48, %s532, [#allocation9], 16, 16, 1
        $region56: #{refil_forward.1} parent=11 // pred_fallthru
          _
        // Predicated region
        $region57: #{refil_forward.1} parent=11 // pred_check
          %p538 = pneg %p359
        $region58: #{refil_forward.1} parent=11 // pred_check_branch
          %540 = sbr.rel (%p538) target = $region60
        $region59: #{refil_forward.1} parent=11 // pred_region
          _
        $region60: #{refil_forward.1} parent=11 // pred_fallthru
          _
        // Predicated region
        $region61: #{refil_forward.1} parent=11 // pred_check
          %p541 = pneg %p380
        $region62: #{refil_forward.1} parent=11 // pred_check_branch
          %543 = sbr.rel (%p541) target = $region64
        $region63: #{refil_forward.1} parent=11 // pred_region
          %s545 = ssub.s32 48, 48
          %546 = vsyncadd [#allocation12], %s545
          %s547 = sshll.u32 [#allocation11], 4
          %s548 = int_to_ptr.vmem [resolvable:$true] %s547
          %553 = dma.hbm_to_vmem [thread:$0]  %s15, 48, %s548, [#allocation12], 16, 16, 1
        $region64: #{refil_forward.1} parent=11 // pred_fallthru
          _
        // Predicated region
        $region65: #{refil_forward.1} parent=11 // pred_check
          %p554 = pneg %p401
        $region66: #{refil_forward.1} parent=11 // pred_check_branch
          %556 = sbr.rel (%p554) target = $region68
        $region67: #{refil_forward.1} parent=11 // pred_region
          %s558 = ssub.s32 512, 512
          %559 = vsyncadd [#allocation12], %s558
          %s560 = sshll.u32 [#allocation13], 4
          %s561 = int_to_ptr.vmem [resolvable:$true] %s560
          %566 = dma.hbm_to_vmem [thread:$0]  %s16, 512, %s561, [#allocation12], 128, 128, 8
        $region68: #{refil_forward.1} parent=11 // pred_fallthru
          _
        // Predicated region
        $region69: #{refil_forward.1} parent=11 // pred_check
          %p567 = pneg %p422
        $region70: #{refil_forward.1} parent=11 // pred_check_branch
          %569 = sbr.rel (%p567) target = $region72
        $region71: #{refil_forward.1} parent=11 // pred_region
          %s571 = ssub.s32 16, 16
          %572 = vsyncadd [#allocation15], %s571
          %s574 = sshll.u32 [#allocation14], 4
          %s575 = int_to_ptr.vmem [resolvable:$true] %s574
          %577 = dma.hbm_to_vmem [thread:$0]  %s17, 16, %s575, [#allocation15]
        $region72: #{refil_forward.1} parent=11 // pred_fallthru
          _
      $region12: #{refil_forward.1} parent=5 // pred_fallthru
        _
      %p578 = scmp.lt.s32.totalorder %s29, 4
      // Predicated region
      $region73: #{refil_forward.1} parent=5 // pred_check
        %p579 = pneg %p578
      $region74: #{refil_forward.1} parent=5 // pred_check_branch
        %581 = sbr.rel (%p579) target = $region76
      $region75: #{refil_forward.1} parent=5 // pred_region
        // Predicated region
        $region77: #{refil_forward.1} parent=75 // pred_check
          %p582 = pneg %p49
        $region78: #{refil_forward.1} parent=75 // pred_check_branch
          %584 = sbr.rel (%p582) target = $region80
        $region79: #{refil_forward.1} parent=75 // pred_region
          %p585 = scmp.lt.s32.totalorder %s29, 3
          %s586 = scalar_select %p585, %s29, 3
          %s587 = smul.addr %s586, 2
          %s588 = smul.addr %s587, 8
          %s589 = scalar_lea.vmem %s0, %s588
        $region80: #{refil_forward.1} parent=75 // pred_fallthru
          _
        // Predicated region
        $region81: #{refil_forward.1} parent=75 // pred_check
          %p590 = pneg %p75
        $region82: #{refil_forward.1} parent=75 // pred_check_branch
          %592 = sbr.rel (%p590) target = $region84
        $region83: #{refil_forward.1} parent=75 // pred_region
          %p593 = scmp.lt.s32.totalorder %s29, 3
          %s594 = scalar_select %p593, %s29, 3
          %s595 = smul.addr %s594, 2
          %s596 = smul.addr %s595, 4
          %s597 = scalar_lea.vmem %s1, %s596
        $region84: #{refil_forward.1} parent=75 // pred_fallthru
          _
        // Predicated region
        $region85: #{refil_forward.1} parent=75 // pred_check
          %p598 = pneg %p101
        $region86: #{refil_forward.1} parent=75 // pred_check_branch
          %600 = sbr.rel (%p598) target = $region88
        $region87: #{refil_forward.1} parent=75 // pred_region
          %p601 = scmp.lt.s32.totalorder %s29, 3
          %s602 = scalar_select %p601, %s29, 3
          %s603 = smul.addr %s602, 8
          %s604 = scalar_lea.vmem %s2, %s603
        $region88: #{refil_forward.1} parent=75 // pred_fallthru
          _
      $region76: #{refil_forward.1} parent=5 // pred_fallthru
        _
      %p605 = scmp.le.s32.totalorder 1, %s29
      %p606 = scmp.lt.s32.totalorder %s29, 5
      %p607 = pnand %p605, %p606
      %p608 = pneg %p607
      // Predicated region
      $region89: #{refil_forward.1} parent=5 // pred_check
        _
      $region90: #{refil_forward.1} parent=5 // pred_check_branch
        %610 = sbr.rel (%p607) target = $region92
      $region91: #{refil_forward.1} parent=5 // pred_region
        %s611 = ssub.s32 %s29, 1
        // Predicated region
        $region93: #{refil_forward.1} parent=91 // pred_check
          %p612 = pneg %p128
        $region94: #{refil_forward.1} parent=91 // pred_check_branch
          %614 = sbr.rel (%p612) target = $region96
        $region95: #{refil_forward.1} parent=91 // pred_region
          %615 = dma.done [#allocation4], 128
        $region96: #{refil_forward.1} parent=91 // pred_fallthru
          _
        // Predicated region
        $region97: #{refil_forward.1} parent=91 // pred_check
          %p616 = pneg %p212
        $region98: #{refil_forward.1} parent=91 // pred_check_branch
          %618 = sbr.rel (%p616) target = $region100
        $region99: #{refil_forward.1} parent=91 // pred_region
          %619 = dma.done [#allocation6], 16
        $region100: #{refil_forward.1} parent=91 // pred_fallthru
          _
        // Predicated region
        $region101: #{refil_forward.1} parent=91 // pred_check
          %p620 = pneg %p254
        $region102: #{refil_forward.1} parent=91 // pred_check_branch
          %622 = sbr.rel (%p620) target = $region104
        $region103: #{refil_forward.1} parent=91 // pred_region
          %623 = dma.done [#allocation6], 16
        $region104: #{refil_forward.1} parent=91 // pred_fallthru
          _
        // Predicated region
        $region105: #{refil_forward.1} parent=91 // pred_check
          %p624 = pneg %p296
        $region106: #{refil_forward.1} parent=91 // pred_check_branch
          %626 = sbr.rel (%p624) target = $region108
        $region107: #{refil_forward.1} parent=91 // pred_region
          %627 = dma.done [#allocation9], 16
        $region108: #{refil_forward.1} parent=91 // pred_fallthru
          _
        // Predicated region
        $region109: #{refil_forward.1} parent=91 // pred_check
          %p628 = pneg %p338
        $region110: #{refil_forward.1} parent=91 // pred_check_branch
          %630 = sbr.rel (%p628) target = $region112
        $region111: #{refil_forward.1} parent=91 // pred_region
          %631 = dma.done [#allocation9], 48
        $region112: #{refil_forward.1} parent=91 // pred_fallthru
          _
        // Predicated region
        $region113: #{refil_forward.1} parent=91 // pred_check
          %p632 = pneg %p380
        $region114: #{refil_forward.1} parent=91 // pred_check_branch
          %634 = sbr.rel (%p632) target = $region116
        $region115: #{refil_forward.1} parent=91 // pred_region
          %635 = dma.done [#allocation12], 48
        $region116: #{refil_forward.1} parent=91 // pred_fallthru
          _
        // Predicated region
        $region117: #{refil_forward.1} parent=91 // pred_check
          %p636 = pneg %p401
        $region118: #{refil_forward.1} parent=91 // pred_check_branch
          %638 = sbr.rel (%p636) target = $region120
        $region119: #{refil_forward.1} parent=91 // pred_region
          %639 = dma.done [#allocation12], 512
        $region120: #{refil_forward.1} parent=91 // pred_fallthru
          _
        // Predicated region
        $region121: #{refil_forward.1} parent=91 // pred_check
          %p640 = pneg %p422
        $region122: #{refil_forward.1} parent=91 // pred_check_branch
          %642 = sbr.rel (%p640) target = $region124
        $region123: #{refil_forward.1} parent=91 // pred_region
          %643 = dma.done [#allocation15], 16
        $region124: #{refil_forward.1} parent=91 // pred_fallthru
          _
        %p644 = scmp.lt.s32.totalorder %s34, 3
        %s645 = scalar_select %p644, %s34, 3
        %s646 = smul.addr %s645, 2
        %s647 = smul.addr %s646, 8
        %s648 = scalar_lea.vmem %s0, %s647
        %p649 = pneg %p55
        %p650 = pneg %p52
        %p651 = scmp.lt.s32.totalorder %s34, 3
        %s652 = scalar_select %p651, %s34, 3
        %s653 = smul.addr %s652, 2
        %s654 = smul.addr %s653, 4
        %s655 = scalar_lea.vmem %s1, %s654
        %p656 = pneg %p81
        %p657 = pneg %p78
        %p658 = scmp.lt.s32.totalorder %s34, 3
        %s659 = scalar_select %p658, %s34, 3
        %s660 = smul.addr %s659, 8
        %s661 = scalar_lea.vmem %s2, %s660
        %p662 = pneg %p107
        %p663 = pneg %p104
        %p664 = pneg %p128
        %p665 = pneg %p125
        %p666 = pneg %p149
        %p667 = pneg %p146
        %p668 = pneg %p170
        %p669 = pneg %p167
        %p670 = pneg %p191
        %p671 = pneg %p188
        %p672 = pneg %p212
        %p673 = pneg %p209
        %p674 = pneg %p233
        %p675 = pneg %p230
        %p676 = pneg %p254
        %p677 = pneg %p251
        %p678 = pneg %p275
        %p679 = pneg %p272
        %p680 = pneg %p296
        %p681 = pneg %p293
        %p682 = pneg %p317
        %p683 = pneg %p314
        %p684 = pneg %p338
        %p685 = pneg %p335
        %p686 = pneg %p359
        %p687 = pneg %p356
        %p688 = pneg %p380
        %p689 = pneg %p377
        %p690 = pneg %p401
        %p691 = pneg %p398
        %p692 = pneg %p422
        %p693 = pneg %p419
        %p694 = pneg %p448
        %p695 = pneg %p445
        %p696 = scmp.lt.s32.totalorder %s34, 3
        %s697 = scalar_select %p696, %s34, 3
        %s698 = smul.addr %s697, 8
        %s699 = scalar_lea.vmem %s18, %s698
        %p700 = scmp.lt.s32.totalorder %s34, 3
        %s701 = scalar_select %p700, %s34, 3
        %s702 = smul.addr %s701, 2
        %s703 = smul.addr %s702, 8
        %s704 = scalar_lea.vmem %s0, %s703
        %p705 = scmp.lt.s32.totalorder %s34, 3
        %s706 = scalar_select %p705, %s34, 3
        %s707 = smul.addr %s706, 2
        %s708 = smul.addr %s707, 4
        %s709 = scalar_lea.vmem %s1, %s708
        %p710 = scmp.lt.s32.totalorder %s34, 3
        %s711 = scalar_select %p710, %s34, 3
        %s712 = smul.addr %s711, 8
        %s713 = scalar_lea.vmem %s2, %s712
        %p714 = scmp.lt.s32.totalorder %s34, 3
        %s715 = scalar_select %p714, %s34, 3
        %s716 = smul.addr %s715, 8
        %s717 = scalar_lea.vmem %s18, %s716
        %p718 = scmp.eq.s32.totalorder %s34, 0
        // Predicated region
        $region125: #{refil_forward.1} parent=91 // pred_check
          %p719 = pneg %p718
        $region126: #{refil_forward.1} parent=91 // pred_check_branch
          %721 = sbr.rel (%p719) target = $region128
        $region127: #{refil_forward.1} parent=91 // pred_region
          %v722 = vld [vmem:[#allocation3] sm:$0xff]
          %vm723 = vcmask 261120
          %724 = vst.msk [vmem:[#allocation2] sm:$0xff] %vm723, %v722
        $region128: #{refil_forward.1} parent=91 // pred_fallthru
          _
        %v725 = vld [vmem:[%s704] sm:$0xff]
        %v726 = vld [vmem:[%s704 + $0x8] sm:$0xff]
        %v727 = vld [vmem:[%s4] sm:$0xff]
        %v728 = vld [vmem:[%s4 + $0x8] sm:$0xff]
        %v729 = vld [vmem:[%s5] sm:$0x1]
        %v731 = vlaneseq
        %v732 = vshrl.u32 %v731, 7
        %v733 = vsub.s32 0, %v732
        %v734 = vrot.slane %v729, %v733
        %vm736 = vcmask 130048
        %v738 = vsel %vm736, %v725, 0
        %v741 = vsel %vm736, %v726, 0
        %743 = vmatprep.subr.mxu0 0.0
        %v744 = vand.u32 %v727, 4294901760
        %745 = vmatpush1.msra.mxu0 %v744
        %746 = vmatprep.subr.mxu0 0.0
        %v747 = vand.u32 %v728, 4294901760
        %748 = vmatpush1.msra.mxu0 %v747
        %749 = vmatprep.subr.mxu0 0.0
        %750 = vmatpush1.msra.mxu0 0.0
        %751 = vmatprep.subr.mxu0 0.0
        %752 = vmatpush1.msra.mxu0 0.0
        %753 = vmatprep.subr.mxu0 0.0
        %754 = vmatpush1.msra.mxu0 0.0
        %755 = vmatprep.subr.mxu0 0.0
        %756 = vmatpush1.msra.mxu0 0.0
        %757 = vmatprep.subr.mxu0 0.0
        %758 = vmatpush1.msra.mxu0 0.0
        %759 = vmatprep.subr.mxu0 0.0
        %760 = vmatpush1.msra.mxu0 0.0
        %761 = vmatprep.subr.mxu0 0.0
        %762 = vmatpush1.msra.mxu0 0.0
        %763 = vmatprep.subr.mxu0 0.0
        %764 = vmatpush1.msra.mxu0 0.0
        %765 = vmatprep.subr.mxu0 0.0
        %766 = vmatpush1.msra.mxu0 0.0
        %767 = vmatprep.subr.mxu0 0.0
        %768 = vmatpush1.msra.mxu0 0.0
        %769 = vmatprep.subr.mxu0 0.0
        %770 = vmatpush1.msra.mxu0 0.0
        %771 = vmatprep.subr.mxu0 0.0
        %772 = vmatpush1.msra.mxu0 0.0
        %773 = vmatprep.subr.mxu0 0.0
        %774 = vmatpush1.msra.mxu0 0.0
        %775 = vmatprep.subr.mxu0 0.0
        %776 = vmatpush1.msra.mxu0 0.0
        %777 = vmatprep.subr.mxu0 0.0
        %778 = vmatpush1.msra.mxu0 0.0
        %779 = vmatprep.subr.mxu0 0.0
        %780 = vmatpush1.msra.mxu0 0.0
        %781 = vmatprep.subr.mxu0 0.0
        %782 = vmatpush1.msra.mxu0 0.0
        %783 = vmatprep.subr.mxu0 0.0
        %784 = vmatpush1.msra.mxu0 0.0
        %785 = vmatprep.subr.mxu0 0.0
        %786 = vmatpush1.msra.mxu0 0.0
        %787 = vmatprep.subr.mxu0 0.0
        %788 = vmatpush1.msra.mxu0 0.0
        %789 = vmatprep.subr.mxu0 0.0
        %790 = vmatpush1.msra.mxu0 0.0
        %791 = vmatprep.subr.mxu0 0.0
        %792 = vmatpush1.msra.mxu0 0.0
        %793 = vmatprep.subr.mxu0 0.0
        %794 = vmatpush1.msra.mxu0 0.0
        %795 = vmatprep.subr.mxu0 0.0
        %796 = vmatpush1.msra.mxu0 0.0
        %797 = vmatprep.subr.mxu0 0.0
        %798 = vmatpush1.msra.mxu0 0.0
        %799 = vmatprep.subr.mxu0 0.0
        %800 = vmatpush1.msra.mxu0 0.0
        %801 = vmatprep.subr.mxu0 0.0
        %802 = vmatpush1.msra.mxu0 0.0
        %803 = vmatprep.subr.mxu0 0.0
        %804 = vmatpush1.msra.mxu0 0.0
        %805 = vmatprep.subr.mxu0 0.0
        %806 = vmatpush1.msra.mxu0 0.0
        %807 = vmatprep.subr.mxu0 0.0
        %808 = vmatpush1.msra.mxu0 0.0
        %809 = vmatprep.mubr.f32.mxu0 0.0
        %v810 = vand.u32 %v738, 4294901760
        %v811 = vsub.f32 %v738, %v810
        %v812 = vand.u32 %v811, 4294901760
        %v813 = vsub.f32 %v811, %v812
        %v814 = vand.u32 %v813, 4294901760
        %815 = vmatmul.mubr.f32.gmra.mrb[0].mxu0 %v814
        %v816 = vpop.f32.mrb[0].mxu0
        %v817 = vadd.f32 %v734, %v816
        %v818 = vpop.f32.mrb[0].mxu0
        %819 = vmatprep.mubr.f32.mxu0 0.0
        %v820 = vand.u32 %v741, 4294901760
        %v821 = vsub.f32 %v741, %v820
        %v822 = vand.u32 %v821, 4294901760
        %v823 = vsub.f32 %v821, %v822
        %v824 = vand.u32 %v823, 4294901760
        %825 = vmatmul.mubr.f32.gmra.mrb[0].mxu0 %v824
        %v826 = vpop.f32.mrb[0].mxu0
        %v827 = vadd.f32 %v734, %v826
        %v828 = vpop.f32.mrb[0].mxu0
        %829 = vdwg.mxu0
        %830 = vmatprep.subr.mxu0 0.0
        %v831 = vand.u32 %v727, 4294901760
        %v832 = vsub.f32 %v727, %v831
        %v833 = vand.u32 %v832, 4294901760
        %v834 = vsub.f32 %v832, %v833
        %v835 = vand.u32 %v834, 4294901760
        %836 = vmatpush1.msra.mxu0 %v835
        %837 = vmatprep.subr.mxu0 0.0
        %v838 = vand.u32 %v728, 4294901760
        %v839 = vsub.f32 %v728, %v838
        %v840 = vand.u32 %v839, 4294901760
        %v841 = vsub.f32 %v839, %v840
        %v842 = vand.u32 %v841, 4294901760
        %843 = vmatpush1.msra.mxu0 %v842
        %844 = vmatprep.subr.mxu0 0.0
        %845 = vmatpush1.msra.mxu0 0.0
        %846 = vmatprep.subr.mxu0 0.0
        %847 = vmatpush1.msra.mxu0 0.0
        %848 = vmatprep.subr.mxu0 0.0
        %849 = vmatpush1.msra.mxu0 0.0
        %850 = vmatprep.subr.mxu0 0.0
        %851 = vmatpush1.msra.mxu0 0.0
        %852 = vmatprep.subr.mxu0 0.0
        %853 = vmatpush1.msra.mxu0 0.0
        %854 = vmatprep.subr.mxu0 0.0
        %855 = vmatpush1.msra.mxu0 0.0
        %856 = vmatprep.subr.mxu0 0.0
        %857 = vmatpush1.msra.mxu0 0.0
        %858 = vmatprep.subr.mxu0 0.0
        %859 = vmatpush1.msra.mxu0 0.0
        %860 = vmatprep.subr.mxu0 0.0
        %861 = vmatpush1.msra.mxu0 0.0
        %862 = vmatprep.subr.mxu0 0.0
        %863 = vmatpush1.msra.mxu0 0.0
        %864 = vmatprep.subr.mxu0 0.0
        %865 = vmatpush1.msra.mxu0 0.0
        %866 = vmatprep.subr.mxu0 0.0
        %867 = vmatpush1.msra.mxu0 0.0
        %868 = vmatprep.subr.mxu0 0.0
        %869 = vmatpush1.msra.mxu0 0.0
        %870 = vmatprep.subr.mxu0 0.0
        %871 = vmatpush1.msra.mxu0 0.0
        %872 = vmatprep.subr.mxu0 0.0
        %873 = vmatpush1.msra.mxu0 0.0
        %874 = vmatprep.subr.mxu0 0.0
        %875 = vmatpush1.msra.mxu0 0.0
        %876 = vmatprep.subr.mxu0 0.0
        %877 = vmatpush1.msra.mxu0 0.0
        %878 = vmatprep.subr.mxu0 0.0
        %879 = vmatpush1.msra.mxu0 0.0
        %880 = vmatprep.subr.mxu0 0.0
        %881 = vmatpush1.msra.mxu0 0.0
        %882 = vmatprep.subr.mxu0 0.0
        %883 = vmatpush1.msra.mxu0 0.0
        %884 = vmatprep.subr.mxu0 0.0
        %885 = vmatpush1.msra.mxu0 0.0
        %886 = vmatprep.subr.mxu0 0.0
        %887 = vmatpush1.msra.mxu0 0.0
        %888 = vmatprep.subr.mxu0 0.0
        %889 = vmatpush1.msra.mxu0 0.0
        %890 = vmatprep.subr.mxu0 0.0
        %891 = vmatpush1.msra.mxu0 0.0
        %892 = vmatprep.subr.mxu0 0.0
        %893 = vmatpush1.msra.mxu0 0.0
        %894 = vmatprep.subr.mxu0 0.0
        %895 = vmatpush1.msra.mxu0 0.0
        %896 = vmatprep.subr.mxu0 0.0
        %897 = vmatpush1.msra.mxu0 0.0
        %898 = vmatprep.subr.mxu0 0.0
        %899 = vmatpush1.msra.mxu0 0.0
        %900 = vmatprep.subr.mxu0 0.0
        %901 = vmatpush1.msra.mxu0 0.0
        %902 = vmatprep.subr.mxu0 0.0
        %903 = vmatpush1.msra.mxu0 0.0
        %904 = vmatprep.mubr.f32.mxu0 0.0
        %v905 = vand.u32 %v738, 4294901760
        %906 = vmatmul.mubr.f32.gmra.mrb[0].mxu0 %v905
        %v907 = vpop.f32.mrb[0].mxu0
        %v908 = vadd.f32 %v817, %v907
        %v909 = vpop.f32.mrb[0].mxu0
        %910 = vmatprep.mubr.f32.mxu0 0.0
        %v911 = vand.u32 %v741, 4294901760
        %912 = vmatmul.mubr.f32.gmra.mrb[0].mxu0 %v911
        %v913 = vpop.f32.mrb[0].mxu0
        %v914 = vadd.f32 %v827, %v913
        %v915 = vpop.f32.mrb[0].mxu0
        %916 = vdwg.mxu0
        %917 = vmatprep.subr.mxu0 0.0
        %v918 = vand.u32 %v727, 4294901760
        %v919 = vsub.f32 %v727, %v918
        %920 = vmatpush1.msra.mxu0 %v919
        %921 = vmatprep.subr.mxu0 0.0
        %v922 = vand.u32 %v728, 4294901760
        %v923 = vsub.f32 %v728, %v922
        %924 = vmatpush1.msra.mxu0 %v923
        %925 = vmatprep.subr.mxu0 0.0
        %926 = vmatpush1.msra.mxu0 0.0
        %927 = vmatprep.subr.mxu0 0.0
        %928 = vmatpush1.msra.mxu0 0.0
        %929 = vmatprep.subr.mxu0 0.0
        %930 = vmatpush1.msra.mxu0 0.0
        %931 = vmatprep.subr.mxu0 0.0
        %932 = vmatpush1.msra.mxu0 0.0
        %933 = vmatprep.subr.mxu0 0.0
        %934 = vmatpush1.msra.mxu0 0.0
        %935 = vmatprep.subr.mxu0 0.0
        %936 = vmatpush1.msra.mxu0 0.0
        %937 = vmatprep.subr.mxu0 0.0
        %938 = vmatpush1.msra.mxu0 0.0
        %939 = vmatprep.subr.mxu0 0.0
        %940 = vmatpush1.msra.mxu0 0.0
        %941 = vmatprep.subr.mxu0 0.0
        %942 = vmatpush1.msra.mxu0 0.0
        %943 = vmatprep.subr.mxu0 0.0
        %944 = vmatpush1.msra.mxu0 0.0
        %945 = vmatprep.subr.mxu0 0.0
        %946 = vmatpush1.msra.mxu0 0.0
        %947 = vmatprep.subr.mxu0 0.0
        %948 = vmatpush1.msra.mxu0 0.0
        %949 = vmatprep.subr.mxu0 0.0
        %950 = vmatpush1.msra.mxu0 0.0
        %951 = vmatprep.subr.mxu0 0.0
        %952 = vmatpush1.msra.mxu0 0.0
        %953 = vmatprep.subr.mxu0 0.0
        %954 = vmatpush1.msra.mxu0 0.0
        %955 = vmatprep.subr.mxu0 0.0
        %956 = vmatpush1.msra.mxu0 0.0
        %957 = vmatprep.subr.mxu0 0.0
        %958 = vmatpush1.msra.mxu0 0.0
        %959 = vmatprep.subr.mxu0 0.0
        %960 = vmatpush1.msra.mxu0 0.0
        %961 = vmatprep.subr.mxu0 0.0
        %962 = vmatpush1.msra.mxu0 0.0
        %963 = vmatprep.subr.mxu0 0.0
        %964 = vmatpush1.msra.mxu0 0.0
        %965 = vmatprep.subr.mxu0 0.0
        %966 = vmatpush1.msra.mxu0 0.0
        %967 = vmatprep.subr.mxu0 0.0
        %968 = vmatpush1.msra.mxu0 0.0
        %969 = vmatprep.subr.mxu0 0.0
        %970 = vmatpush1.msra.mxu0 0.0
        %971 = vmatprep.subr.mxu0 0.0
        %972 = vmatpush1.msra.mxu0 0.0
        %973 = vmatprep.subr.mxu0 0.0
        %974 = vmatpush1.msra.mxu0 0.0
        %975 = vmatprep.subr.mxu0 0.0
        %976 = vmatpush1.msra.mxu0 0.0
        %977 = vmatprep.subr.mxu0 0.0
        %978 = vmatpush1.msra.mxu0 0.0
        %979 = vmatprep.subr.mxu0 0.0
        %980 = vmatpush1.msra.mxu0 0.0
        %981 = vmatprep.subr.mxu0 0.0
        %982 = vmatpush1.msra.mxu0 0.0
        %983 = vmatprep.subr.mxu0 0.0
        %984 = vmatpush1.msra.mxu0 0.0
        %985 = vmatprep.mubr.f32.mxu0 0.0
        %v986 = vand.u32 %v738, 4294901760
        %v987 = vsub.f32 %v738, %v986
        %988 = vmatmul.mubr.f32.gmra.mrb[0].mxu0 %v987
        %v989 = vpop.f32.mrb[0].mxu0
        %v990 = vadd.f32 %v908, %v989
        %v991 = vpop.f32.mrb[0].mxu0
        %992 = vmatprep.mubr.f32.mxu0 0.0
        %v993 = vand.u32 %v741, 4294901760
        %v994 = vsub.f32 %v741, %v993
        %995 = vmatmul.mubr.f32.gmra.mrb[0].mxu0 %v994
        %v996 = vpop.f32.mrb[0].mxu0
        %v997 = vadd.f32 %v914, %v996
        %v998 = vpop.f32.mrb[0].mxu0
        %999 = vdwg.mxu0
        %1000 = vmatprep.subr.mxu0 0.0
        %v1001 = vand.u32 %v727, 4294901760
        %1002 = vmatpush1.msra.mxu0 %v1001
        %1003 = vmatprep.subr.mxu0 0.0
        %v1004 = vand.u32 %v728, 4294901760
        %1005 = vmatpush1.msra.mxu0 %v1004
        %1006 = vmatprep.subr.mxu0 0.0
        %1007 = vmatpush1.msra.mxu0 0.0
        %1008 = vmatprep.subr.mxu0 0.0
        %1009 = vmatpush1.msra.mxu0 0.0
        %1010 = vmatprep.subr.mxu0 0.0
        %1011 = vmatpush1.msra.mxu0 0.0
        %1012 = vmatprep.subr.mxu0 0.0
        %1013 = vmatpush1.msra.mxu0 0.0
        %1014 = vmatprep.subr.mxu0 0.0
        %1015 = vmatpush1.msra.mxu0 0.0
        %1016 = vmatprep.subr.mxu0 0.0
        %1017 = vmatpush1.msra.mxu0 0.0
        %1018 = vmatprep.subr.mxu0 0.0
        %1019 = vmatpush1.msra.mxu0 0.0
        %1020 = vmatprep.subr.mxu0 0.0
        %1021 = vmatpush1.msra.mxu0 0.0
        %1022 = vmatprep.subr.mxu0 0.0
        %1023 = vmatpush1.msra.mxu0 0.0
        %1024 = vmatprep.subr.mxu0 0.0
        %1025 = vmatpush1.msra.mxu0 0.0
        %1026 = vmatprep.subr.mxu0 0.0
        %1027 = vmatpush1.msra.mxu0 0.0
        %1028 = vmatprep.subr.mxu0 0.0
        %1029 = vmatpush1.msra.mxu0 0.0
        %1030 = vmatprep.subr.mxu0 0.0
        %1031 = vmatpush1.msra.mxu0 0.0
        %1032 = vmatprep.subr.mxu0 0.0
        %1033 = vmatpush1.msra.mxu0 0.0
        %1034 = vmatprep.subr.mxu0 0.0
        %1035 = vmatpush1.msra.mxu0 0.0
        %1036 = vmatprep.subr.mxu0 0.0
        %1037 = vmatpush1.msra.mxu0 0.0
        %1038 = vmatprep.subr.mxu0 0.0
        %1039 = vmatpush1.msra.mxu0 0.0
        %1040 = vmatprep.subr.mxu0 0.0
        %1041 = vmatpush1.msra.mxu0 0.0
        %1042 = vmatprep.subr.mxu0 0.0
        %1043 = vmatpush1.msra.mxu0 0.0
        %1044 = vmatprep.subr.mxu0 0.0
        %1045 = vmatpush1.msra.mxu0 0.0
        %1046 = vmatprep.subr.mxu0 0.0
        %1047 = vmatpush1.msra.mxu0 0.0
        %1048 = vmatprep.subr.mxu0 0.0
        %1049 = vmatpush1.msra.mxu0 0.0
        %1050 = vmatprep.subr.mxu0 0.0
        %1051 = vmatpush1.msra.mxu0 0.0
        %1052 = vmatprep.subr.mxu0 0.0
        %1053 = vmatpush1.msra.mxu0 0.0
        %1054 = vmatprep.subr.mxu0 0.0
        %1055 = vmatpush1.msra.mxu0 0.0
        %1056 = vmatprep.subr.mxu0 0.0
        %1057 = vmatpush1.msra.mxu0 0.0
        %1058 = vmatprep.subr.mxu0 0.0
        %1059 = vmatpush1.msra.mxu0 0.0
        %1060 = vmatprep.subr.mxu0 0.0
        %1061 = vmatpush1.msra.mxu0 0.0
        %1062 = vmatprep.subr.mxu0 0.0
        %1063 = vmatpush1.msra.mxu0 0.0
        %1064 = vmatprep.subr.mxu0 0.0
        %1065 = vmatpush1.msra.mxu0 0.0
        %1066 = vmatprep.mubr.f32.mxu0 0.0
        %v1067 = vand.u32 %v738, 4294901760
        %v1068 = vsub.f32 %v738, %v1067
        %v1069 = vand.u32 %v1068, 4294901760
        %1070 = vmatmul.mubr.f32.gmra.mrb[0].mxu0 %v1069
        %v1071 = vpop.f32.mrb[0].mxu0
        %v1072 = vadd.f32 %v990, %v1071
        %v1073 = vpop.f32.mrb[0].mxu0
        %1074 = vmatprep.mubr.f32.mxu0 0.0
        %v1075 = vand.u32 %v741, 4294901760
        %v1076 = vsub.f32 %v741, %v1075
        %v1077 = vand.u32 %v1076, 4294901760
        %1078 = vmatmul.mubr.f32.gmra.mrb[0].mxu0 %v1077
        %v1079 = vpop.f32.mrb[0].mxu0
        %v1080 = vadd.f32 %v997, %v1079
        %v1081 = vpop.f32.mrb[0].mxu0
        %1082 = vdwg.mxu0
        %1083 = vmatprep.subr.mxu0 0.0
        %v1084 = vand.u32 %v727, 4294901760
        %v1085 = vsub.f32 %v727, %v1084
        %v1086 = vand.u32 %v1085, 4294901760
        %1087 = vmatpush1.msra.mxu0 %v1086
        %1088 = vmatprep.subr.mxu0 0.0
        %v1089 = vand.u32 %v728, 4294901760
        %v1090 = vsub.f32 %v728, %v1089
        %v1091 = vand.u32 %v1090, 4294901760
        %1092 = vmatpush1.msra.mxu0 %v1091
        %1093 = vmatprep.subr.mxu0 0.0
        %1094 = vmatpush1.msra.mxu0 0.0
        %1095 = vmatprep.subr.mxu0 0.0
        %1096 = vmatpush1.msra.mxu0 0.0
        %1097 = vmatprep.subr.mxu0 0.0
        %1098 = vmatpush1.msra.mxu0 0.0
        %1099 = vmatprep.subr.mxu0 0.0
        %1100 = vmatpush1.msra.mxu0 0.0
        %1101 = vmatprep.subr.mxu0 0.0
        %1102 = vmatpush1.msra.mxu0 0.0
        %1103 = vmatprep.subr.mxu0 0.0
        %1104 = vmatpush1.msra.mxu0 0.0
        %1105 = vmatprep.subr.mxu0 0.0
        %1106 = vmatpush1.msra.mxu0 0.0
        %1107 = vmatprep.subr.mxu0 0.0
        %1108 = vmatpush1.msra.mxu0 0.0
        %1109 = vmatprep.subr.mxu0 0.0
        %1110 = vmatpush1.msra.mxu0 0.0
        %1111 = vmatprep.subr.mxu0 0.0
        %1112 = vmatpush1.msra.mxu0 0.0
        %1113 = vmatprep.subr.mxu0 0.0
        %1114 = vmatpush1.msra.mxu0 0.0
        %1115 = vmatprep.subr.mxu0 0.0
        %1116 = vmatpush1.msra.mxu0 0.0
        %1117 = vmatprep.subr.mxu0 0.0
        %1118 = vmatpush1.msra.mxu0 0.0
        %1119 = vmatprep.subr.mxu0 0.0
        %1120 = vmatpush1.msra.mxu0 0.0
        %1121 = vmatprep.subr.mxu0 0.0
        %1122 = vmatpush1.msra.mxu0 0.0
        %1123 = vmatprep.subr.mxu0 0.0
        %1124 = vmatpush1.msra.mxu0 0.0
        %1125 = vmatprep.subr.mxu0 0.0
        %1126 = vmatpush1.msra.mxu0 0.0
        %1127 = vmatprep.subr.mxu0 0.0
        %1128 = vmatpush1.msra.mxu0 0.0
        %1129 = vmatprep.subr.mxu0 0.0
        %1130 = vmatpush1.msra.mxu0 0.0
        %1131 = vmatprep.subr.mxu0 0.0
        %1132 = vmatpush1.msra.mxu0 0.0
        %1133 = vmatprep.subr.mxu0 0.0
        %1134 = vmatpush1.msra.mxu0 0.0
        %1135 = vmatprep.subr.mxu0 0.0
        %1136 = vmatpush1.msra.mxu0 0.0
        %1137 = vmatprep.subr.mxu0 0.0
        %1138 = vmatpush1.msra.mxu0 0.0
        %1139 = vmatprep.subr.mxu0 0.0
        %1140 = vmatpush1.msra.mxu0 0.0
        %1141 = vmatprep.subr.mxu0 0.0
        %1142 = vmatpush1.msra.mxu0 0.0
        %1143 = vmatprep.subr.mxu0 0.0
        %1144 = vmatpush1.msra.mxu0 0.0
        %1145 = vmatprep.subr.mxu0 0.0
        %1146 = vmatpush1.msra.mxu0 0.0
        %1147 = vmatprep.subr.mxu0 0.0
        %1148 = vmatpush1.msra.mxu0 0.0
        %1149 = vmatprep.subr.mxu0 0.0
        %1150 = vmatpush1.msra.mxu0 0.0
        %1151 = vmatprep.subr.mxu0 0.0
        %1152 = vmatpush1.msra.mxu0 0.0
        %1153 = vmatprep.mubr.f32.mxu0 0.0
        %v1154 = vand.u32 %v738, 4294901760
        %1155 = vmatmul.mubr.f32.gmra.mrb[0].mxu0 %v1154
        %v1156 = vpop.f32.mrb[0].mxu0
        %v1157 = vadd.f32 %v1072, %v1156
        %v1158 = vpop.f32.mrb[0].mxu0
        %1159 = vmatprep.mubr.f32.mxu0 0.0
        %v1160 = vand.u32 %v741, 4294901760
        %1161 = vmatmul.mubr.f32.gmra.mrb[0].mxu0 %v1160
        %v1162 = vpop.f32.mrb[0].mxu0
        %v1163 = vadd.f32 %v1080, %v1162
        %v1164 = vpop.f32.mrb[0].mxu0
        %1165 = vdwg.mxu0
        %1166 = vmatprep.subr.mxu0 0.0
        %v1167 = vand.u32 %v727, 4294901760
        %1168 = vmatpush1.msra.mxu0 %v1167
        %1169 = vmatprep.subr.mxu0 0.0
        %v1170 = vand.u32 %v728, 4294901760
        %1171 = vmatpush1.msra.mxu0 %v1170
        %1172 = vmatprep.subr.mxu0 0.0
        %1173 = vmatpush1.msra.mxu0 0.0
        %1174 = vmatprep.subr.mxu0 0.0
        %1175 = vmatpush1.msra.mxu0 0.0
        %1176 = vmatprep.subr.mxu0 0.0
        %1177 = vmatpush1.msra.mxu0 0.0
        %1178 = vmatprep.subr.mxu0 0.0
        %1179 = vmatpush1.msra.mxu0 0.0
        %1180 = vmatprep.subr.mxu0 0.0
        %1181 = vmatpush1.msra.mxu0 0.0
        %1182 = vmatprep.subr.mxu0 0.0
        %1183 = vmatpush1.msra.mxu0 0.0
        %1184 = vmatprep.subr.mxu0 0.0
        %1185 = vmatpush1.msra.mxu0 0.0
        %1186 = vmatprep.subr.mxu0 0.0
        %1187 = vmatpush1.msra.mxu0 0.0
        %1188 = vmatprep.subr.mxu0 0.0
        %1189 = vmatpush1.msra.mxu0 0.0
        %1190 = vmatprep.subr.mxu0 0.0
        %1191 = vmatpush1.msra.mxu0 0.0
        %1192 = vmatprep.subr.mxu0 0.0
        %1193 = vmatpush1.msra.mxu0 0.0
        %1194 = vmatprep.subr.mxu0 0.0
        %1195 = vmatpush1.msra.mxu0 0.0
        %1196 = vmatprep.subr.mxu0 0.0
        %1197 = vmatpush1.msra.mxu0 0.0
        %1198 = vmatprep.subr.mxu0 0.0
        %1199 = vmatpush1.msra.mxu0 0.0
        %1200 = vmatprep.subr.mxu0 0.0
        %1201 = vmatpush1.msra.mxu0 0.0
        %1202 = vmatprep.subr.mxu0 0.0
        %1203 = vmatpush1.msra.mxu0 0.0
        %1204 = vmatprep.subr.mxu0 0.0
        %1205 = vmatpush1.msra.mxu0 0.0
        %1206 = vmatprep.subr.mxu0 0.0
        %1207 = vmatpush1.msra.mxu0 0.0
        %1208 = vmatprep.subr.mxu0 0.0
        %1209 = vmatpush1.msra.mxu0 0.0
        %1210 = vmatprep.subr.mxu0 0.0
        %1211 = vmatpush1.msra.mxu0 0.0
        %1212 = vmatprep.subr.mxu0 0.0
        %1213 = vmatpush1.msra.mxu0 0.0
        %1214 = vmatprep.subr.mxu0 0.0
        %1215 = vmatpush1.msra.mxu0 0.0
        %1216 = vmatprep.subr.mxu0 0.0
        %1217 = vmatpush1.msra.mxu0 0.0
        %1218 = vmatprep.subr.mxu0 0.0
        %1219 = vmatpush1.msra.mxu0 0.0
        %1220 = vmatprep.subr.mxu0 0.0
        %1221 = vmatpush1.msra.mxu0 0.0
        %1222 = vmatprep.subr.mxu0 0.0
        %1223 = vmatpush1.msra.mxu0 0.0
        %1224 = vmatprep.subr.mxu0 0.0
        %1225 = vmatpush1.msra.mxu0 0.0
        %1226 = vmatprep.subr.mxu0 0.0
        %1227 = vmatpush1.msra.mxu0 0.0
        %1228 = vmatprep.subr.mxu0 0.0
        %1229 = vmatpush1.msra.mxu0 0.0
        %1230 = vmatprep.subr.mxu0 0.0
        %1231 = vmatpush1.msra.mxu0 0.0
        %1232 = vmatprep.mubr.f32.mxu0 0.0
        %v1233 = vand.u32 %v738, 4294901760
        %1234 = vmatmul.mubr.f32.gmra.mrb[0].mxu0 %v1233
        %v1235 = vpop.f32.mrb[0].mxu0
        %v1236 = vadd.f32 %v1157, %v1235
        %v1237 = vpop.f32.mrb[0].mxu0
        %1238 = vmatprep.mubr.f32.mxu0 0.0
        %v1239 = vand.u32 %v741, 4294901760
        %1240 = vmatmul.mubr.f32.gmra.mrb[0].mxu0 %v1239
        %v1241 = vpop.f32.mrb[0].mxu0
        %v1242 = vadd.f32 %v1163, %v1241
        %v1243 = vpop.f32.mrb[0].mxu0
        %1244 = vdwg.mxu0
        %v1245 = vmax.f32 %v1236, 0.0
        %v1246 = vmax.f32 %v1242, 0.0
        %v1247 = vld [vmem:[%s6] sm:$0xff]
        %v1248 = vld [vmem:[%s6 + $0x8] sm:$0xff]
        %v1249 = vld [vmem:[%s6 + $0x10] sm:$0xff]
        %v1250 = vld [vmem:[%s6 + $0x18] sm:$0xff]
        %v1251 = vld [vmem:[#allocation5] sm:$0x1]
        %v1253 = vlaneseq
        %v1254 = vshrl.u32 %v1253, 7
        %v1255 = vsub.s32 0, %v1254
        %v1256 = vrot.slane %v1251, %v1255
        %vm1258 = vcmask 261120
        %v1260 = vsel %vm1258, %v1245, 0
        %v1263 = vsel %vm1258, %v1246, 0
        %1265 = vmatprep.subr.mxu0 0.0
        %v1266 = vand.u32 %v1247, 4294901760
        %1267 = vmatpush1.msra.mxu0 %v1266
        %1268 = vmatprep.subr.mxu0 0.0
        %v1269 = vand.u32 %v1248, 4294901760
        %1270 = vmatpush1.msra.mxu0 %v1269
        %1271 = vmatprep.subr.mxu0 0.0
        %v1272 = vand.u32 %v1249, 4294901760
        %1273 = vmatpush1.msra.mxu0 %v1272
        %1274 = vmatprep.subr.mxu0 0.0
        %v1275 = vand.u32 %v1250, 4294901760
        %1276 = vmatpush1.msra.mxu0 %v1275
        %1277 = vmatprep.subr.mxu0 0.0
        %1278 = vmatpush1.msra.mxu0 0.0
        %1279 = vmatprep.subr.mxu0 0.0
        %1280 = vmatpush1.msra.mxu0 0.0
        %1281 = vmatprep.subr.mxu0 0.0
        %1282 = vmatpush1.msra.mxu0 0.0
        %1283 = vmatprep.subr.mxu0 0.0
        %1284 = vmatpush1.msra.mxu0 0.0
        %1285 = vmatprep.subr.mxu0 0.0
        %1286 = vmatpush1.msra.mxu0 0.0
        %1287 = vmatprep.subr.mxu0 0.0
        %1288 = vmatpush1.msra.mxu0 0.0
        %1289 = vmatprep.subr.mxu0 0.0
        %1290 = vmatpush1.msra.mxu0 0.0
        %1291 = vmatprep.subr.mxu0 0.0
        %1292 = vmatpush1.msra.mxu0 0.0
        %1293 = vmatprep.subr.mxu0 0.0
        %1294 = vmatpush1.msra.mxu0 0.0
        %1295 = vmatprep.subr.mxu0 0.0
        %1296 = vmatpush1.msra.mxu0 0.0
        %1297 = vmatprep.subr.mxu0 0.0
        %1298 = vmatpush1.msra.mxu0 0.0
        %1299 = vmatprep.subr.mxu0 0.0
        %1300 = vmatpush1.msra.mxu0 0.0
        %1301 = vmatprep.subr.mxu0 0.0
        %1302 = vmatpush1.msra.mxu0 0.0
        %1303 = vmatprep.subr.mxu0 0.0
        %1304 = vmatpush1.msra.mxu0 0.0
        %1305 = vmatprep.subr.mxu0 0.0
        %1306 = vmatpush1.msra.mxu0 0.0
        %1307 = vmatprep.subr.mxu0 0.0
        %1308 = vmatpush1.msra.mxu0 0.0
        %1309 = vmatprep.subr.mxu0 0.0
        %1310 = vmatpush1.msra.mxu0 0.0
        %1311 = vmatprep.subr.mxu0 0.0
        %1312 = vmatpush1.msra.mxu0 0.0
        %1313 = vmatprep.subr.mxu0 0.0
        %1314 = vmatpush1.msra.mxu0 0.0
        %1315 = vmatprep.subr.mxu0 0.0
        %1316 = vmatpush1.msra.mxu0 0.0
        %1317 = vmatprep.subr.mxu0 0.0
        %1318 = vmatpush1.msra.mxu0 0.0
        %1319 = vmatprep.subr.mxu0 0.0
        %1320 = vmatpush1.msra.mxu0 0.0
        %1321 = vmatprep.subr.mxu0 0.0
        %1322 = vmatpush1.msra.mxu0 0.0
        %1323 = vmatprep.subr.mxu0 0.0
        %1324 = vmatpush1.msra.mxu0 0.0
        %1325 = vmatprep.subr.mxu0 0.0
        %1326 = vmatpush1.msra.mxu0 0.0
        %1327 = vmatprep.subr.mxu0 0.0
        %1328 = vmatpush1.msra.mxu0 0.0
        %1329 = vmatprep.subr.mxu0 0.0
        %1330 = vmatpush1.msra.mxu0 0.0
        %1331 = vmatprep.subr.mxu0 0.0
        %1332 = vmatpush1.msra.mxu0 0.0
        %1333 = vmatprep.mubr.f32.mxu0 0.0
        %v1334 = vand.u32 %v1260, 4294901760
        %v1335 = vsub.f32 %v1260, %v1334
        %v1336 = vand.u32 %v1335, 4294901760
        %v1337 = vsub.f32 %v1335, %v1336
        %v1338 = vand.u32 %v1337, 4294901760
        %1339 = vmatmul.mubr.f32.gmra.mrb[0].mxu0 %v1338
        %v1340 = vpop.f32.mrb[0].mxu0
        %v1341 = vadd.f32 %v1256, %v1340
        %v1342 = vpop.f32.mrb[0].mxu0
        %1343 = vmatprep.mubr.f32.mxu0 0.0
        %v1344 = vand.u32 %v1263, 4294901760
        %v1345 = vsub.f32 %v1263, %v1344
        %v1346 = vand.u32 %v1345, 4294901760
        %v1347 = vsub.f32 %v1345, %v1346
        %v1348 = vand.u32 %v1347, 4294901760
        %1349 = vmatmul.mubr.f32.gmra.mrb[0].mxu0 %v1348
        %v1350 = vpop.f32.mrb[0].mxu0
        %v1351 = vadd.f32 %v1256, %v1350
        %v1352 = vpop.f32.mrb[0].mxu0
        %1353 = vdwg.mxu0
        %1354 = vmatprep.subr.mxu0 0.0
        %v1355 = vand.u32 %v1247, 4294901760
        %v1356 = vsub.f32 %v1247, %v1355
        %v1357 = vand.u32 %v1356, 4294901760
        %v1358 = vsub.f32 %v1356, %v1357
        %v1359 = vand.u32 %v1358, 4294901760
        %1360 = vmatpush1.msra.mxu0 %v1359
        %1361 = vmatprep.subr.mxu0 0.0
        %v1362 = vand.u32 %v1248, 4294901760
        %v1363 = vsub.f32 %v1248, %v1362
        %v1364 = vand.u32 %v1363, 4294901760
        %v1365 = vsub.f32 %v1363, %v1364
        %v1366 = vand.u32 %v1365, 4294901760
        %1367 = vmatpush1.msra.mxu0 %v1366
        %1368 = vmatprep.subr.mxu0 0.0
        %v1369 = vand.u32 %v1249, 4294901760
        %v1370 = vsub.f32 %v1249, %v1369
        %v1371 = vand.u32 %v1370, 4294901760
        %v1372 = vsub.f32 %v1370, %v1371
        %v1373 = vand.u32 %v1372, 4294901760
        %1374 = vmatpush1.msra.mxu0 %v1373
        %1375 = vmatprep.subr.mxu0 0.0
        %v1376 = vand.u32 %v1250, 4294901760
        %v1377 = vsub.f32 %v1250, %v1376
        %v1378 = vand.u32 %v1377, 4294901760
        %v1379 = vsub.f32 %v1377, %v1378
        %v1380 = vand.u32 %v1379, 4294901760
        %1381 = vmatpush1.msra.mxu0 %v1380
        %1382 = vmatprep.subr.mxu0 0.0
        %1383 = vmatpush1.msra.mxu0 0.0
        %1384 = vmatprep.subr.mxu0 0.0
        %1385 = vmatpush1.msra.mxu0 0.0
        %1386 = vmatprep.subr.mxu0 0.0
        %1387 = vmatpush1.msra.mxu0 0.0
        %1388 = vmatprep.subr.mxu0 0.0
        %1389 = vmatpush1.msra.mxu0 0.0
        %1390 = vmatprep.subr.mxu0 0.0
        %1391 = vmatpush1.msra.mxu0 0.0
        %1392 = vmatprep.subr.mxu0 0.0
        %1393 = vmatpush1.msra.mxu0 0.0
        %1394 = vmatprep.subr.mxu0 0.0
        %1395 = vmatpush1.msra.mxu0 0.0
        %1396 = vmatprep.subr.mxu0 0.0
        %1397 = vmatpush1.msra.mxu0 0.0
        %1398 = vmatprep.subr.mxu0 0.0
        %1399 = vmatpush1.msra.mxu0 0.0
        %1400 = vmatprep.subr.mxu0 0.0
        %1401 = vmatpush1.msra.mxu0 0.0
        %1402 = vmatprep.subr.mxu0 0.0
        %1403 = vmatpush1.msra.mxu0 0.0
        %1404 = vmatprep.subr.mxu0 0.0
        %1405 = vmatpush1.msra.mxu0 0.0
        %1406 = vmatprep.subr.mxu0 0.0
        %1407 = vmatpush1.msra.mxu0 0.0
        %1408 = vmatprep.subr.mxu0 0.0
        %1409 = vmatpush1.msra.mxu0 0.0
        %1410 = vmatprep.subr.mxu0 0.0
        %1411 = vmatpush1.msra.mxu0 0.0
        %1412 = vmatprep.subr.mxu0 0.0
        %1413 = vmatpush1.msra.mxu0 0.0
        %1414 = vmatprep.subr.mxu0 0.0
        %1415 = vmatpush1.msra.mxu0 0.0
        %1416 = vmatprep.subr.mxu0 0.0
        %1417 = vmatpush1.msra.mxu0 0.0
        %1418 = vmatprep.subr.mxu0 0.0
        %1419 = vmatpush1.msra.mxu0 0.0
        %1420 = vmatprep.subr.mxu0 0.0
        %1421 = vmatpush1.msra.mxu0 0.0
        %1422 = vmatprep.subr.mxu0 0.0
        %1423 = vmatpush1.msra.mxu0 0.0
        %1424 = vmatprep.subr.mxu0 0.0
        %1425 = vmatpush1.msra.mxu0 0.0
        %1426 = vmatprep.subr.mxu0 0.0
        %1427 = vmatpush1.msra.mxu0 0.0
        %1428 = vmatprep.subr.mxu0 0.0
        %1429 = vmatpush1.msra.mxu0 0.0
        %1430 = vmatprep.subr.mxu0 0.0
        %1431 = vmatpush1.msra.mxu0 0.0
        %1432 = vmatprep.subr.mxu0 0.0
        %1433 = vmatpush1.msra.mxu0 0.0
        %1434 = vmatprep.subr.mxu0 0.0
        %1435 = vmatpush1.msra.mxu0 0.0
        %1436 = vmatprep.subr.mxu0 0.0
        %1437 = vmatpush1.msra.mxu0 0.0
        %1438 = vmatprep.mubr.f32.mxu0 0.0
        %v1439 = vand.u32 %v1260, 4294901760
        %1440 = vmatmul.mubr.f32.gmra.mrb[0].mxu0 %v1439
        %v1441 = vpop.f32.mrb[0].mxu0
        %v1442 = vadd.f32 %v1341, %v1441
        %v1443 = vpop.f32.mrb[0].mxu0
        %1444 = vmatprep.mubr.f32.mxu0 0.0
        %v1445 = vand.u32 %v1263, 4294901760
        %1446 = vmatmul.mubr.f32.gmra.mrb[0].mxu0 %v1445
        %v1447 = vpop.f32.mrb[0].mxu0
        %v1448 = vadd.f32 %v1351, %v1447
        %v1449 = vpop.f32.mrb[0].mxu0
        %1450 = vdwg.mxu0
        %1451 = vmatprep.subr.mxu0 0.0
        %v1452 = vand.u32 %v1247, 4294901760
        %v1453 = vsub.f32 %v1247, %v1452
        %1454 = vmatpush1.msra.mxu0 %v1453
        %1455 = vmatprep.subr.mxu0 0.0
        %v1456 = vand.u32 %v1248, 4294901760
        %v1457 = vsub.f32 %v1248, %v1456
        %1458 = vmatpush1.msra.mxu0 %v1457
        %1459 = vmatprep.subr.mxu0 0.0
        %v1460 = vand.u32 %v1249, 4294901760
        %v1461 = vsub.f32 %v1249, %v1460
        %1462 = vmatpush1.msra.mxu0 %v1461
        %1463 = vmatprep.subr.mxu0 0.0
        %v1464 = vand.u32 %v1250, 4294901760
        %v1465 = vsub.f32 %v1250, %v1464
        %1466 = vmatpush1.msra.mxu0 %v1465
        %1467 = vmatprep.subr.mxu0 0.0
        %1468 = vmatpush1.msra.mxu0 0.0
        %1469 = vmatprep.subr.mxu0 0.0
        %1470 = vmatpush1.msra.mxu0 0.0
        %1471 = vmatprep.subr.mxu0 0.0
        %1472 = vmatpush1.msra.mxu0 0.0
        %1473 = vmatprep.subr.mxu0 0.0
        %1474 = vmatpush1.msra.mxu0 0.0
        %1475 = vmatprep.subr.mxu0 0.0
        %1476 = vmatpush1.msra.mxu0 0.0
        %1477 = vmatprep.subr.mxu0 0.0
        %1478 = vmatpush1.msra.mxu0 0.0
        %1479 = vmatprep.subr.mxu0 0.0
        %1480 = vmatpush1.msra.mxu0 0.0
        %1481 = vmatprep.subr.mxu0 0.0
        %1482 = vmatpush1.msra.mxu0 0.0
        %1483 = vmatprep.subr.mxu0 0.0
        %1484 = vmatpush1.msra.mxu0 0.0
        %1485 = vmatprep.subr.mxu0 0.0
        %1486 = vmatpush1.msra.mxu0 0.0
        %1487 = vmatprep.subr.mxu0 0.0
        %1488 = vmatpush1.msra.mxu0 0.0
        %1489 = vmatprep.subr.mxu0 0.0
        %1490 = vmatpush1.msra.mxu0 0.0
        %1491 = vmatprep.subr.mxu0 0.0
        %1492 = vmatpush1.msra.mxu0 0.0
        %1493 = vmatprep.subr.mxu0 0.0
        %1494 = vmatpush1.msra.mxu0 0.0
        %1495 = vmatprep.subr.mxu0 0.0
        %1496 = vmatpush1.msra.mxu0 0.0
        %1497 = vmatprep.subr.mxu0 0.0
        %1498 = vmatpush1.msra.mxu0 0.0
        %1499 = vmatprep.subr.mxu0 0.0
        %1500 = vmatpush1.msra.mxu0 0.0
        %1501 = vmatprep.subr.mxu0 0.0
        %1502 = vmatpush1.msra.mxu0 0.0
        %1503 = vmatprep.subr.mxu0 0.0
        %1504 = vmatpush1.msra.mxu0 0.0
        %1505 = vmatprep.subr.mxu0 0.0
        %1506 = vmatpush1.msra.mxu0 0.0
        %1507 = vmatprep.subr.mxu0 0.0
        %1508 = vmatpush1.msra.mxu0 0.0
        %1509 = vmatprep.subr.mxu0 0.0
        %1510 = vmatpush1.msra.mxu0 0.0
        %1511 = vmatprep.subr.mxu0 0.0
        %1512 = vmatpush1.msra.mxu0 0.0
        %1513 = vmatprep.subr.mxu0 0.0
        %1514 = vmatpush1.msra.mxu0 0.0
        %1515 = vmatprep.subr.mxu0 0.0
        %1516 = vmatpush1.msra.mxu0 0.0
        %1517 = vmatprep.subr.mxu0 0.0
        %1518 = vmatpush1.msra.mxu0 0.0
        %1519 = vmatprep.subr.mxu0 0.0
        %1520 = vmatpush1.msra.mxu0 0.0
        %1521 = vmatprep.subr.mxu0 0.0
        %1522 = vmatpush1.msra.mxu0 0.0
        %1523 = vmatprep.mubr.f32.mxu0 0.0
        %v1524 = vand.u32 %v1260, 4294901760
        %v1525 = vsub.f32 %v1260, %v1524
        %1526 = vmatmul.mubr.f32.gmra.mrb[0].mxu0 %v1525
        %v1527 = vpop.f32.mrb[0].mxu0
        %v1528 = vadd.f32 %v1442, %v1527
        %v1529 = vpop.f32.mrb[0].mxu0
        %1530 = vmatprep.mubr.f32.mxu0 0.0
        %v1531 = vand.u32 %v1263, 4294901760
        %v1532 = vsub.f32 %v1263, %v1531
        %1533 = vmatmul.mubr.f32.gmra.mrb[0].mxu0 %v1532
        %v1534 = vpop.f32.mrb[0].mxu0
        %v1535 = vadd.f32 %v1448, %v1534
        %v1536 = vpop.f32.mrb[0].mxu0
        %1537 = vdwg.mxu0
        %1538 = vmatprep.subr.mxu0 0.0
        %v1539 = vand.u32 %v1247, 4294901760
        %1540 = vmatpush1.msra.mxu0 %v1539
        %1541 = vmatprep.subr.mxu0 0.0
        %v1542 = vand.u32 %v1248, 4294901760
        %1543 = vmatpush1.msra.mxu0 %v1542
        %1544 = vmatprep.subr.mxu0 0.0
        %v1545 = vand.u32 %v1249, 4294901760
        %1546 = vmatpush1.msra.mxu0 %v1545
        %1547 = vmatprep.subr.mxu0 0.0
        %v1548 = vand.u32 %v1250, 4294901760
        %1549 = vmatpush1.msra.mxu0 %v1548
        %1550 = vmatprep.subr.mxu0 0.0
        %1551 = vmatpush1.msra.mxu0 0.0
        %1552 = vmatprep.subr.mxu0 0.0
        %1553 = vmatpush1.msra.mxu0 0.0
        %1554 = vmatprep.subr.mxu0 0.0
        %1555 = vmatpush1.msra.mxu0 0.0
        %1556 = vmatprep.subr.mxu0 0.0
        %1557 = vmatpush1.msra.mxu0 0.0
        %1558 = vmatprep.subr.mxu0 0.0
        %1559 = vmatpush1.msra.mxu0 0.0
        %1560 = vmatprep.subr.mxu0 0.0
        %1561 = vmatpush1.msra.mxu0 0.0
        %1562 = vmatprep.subr.mxu0 0.0
        %1563 = vmatpush1.msra.mxu0 0.0
        %1564 = vmatprep.subr.mxu0 0.0
        %1565 = vmatpush1.msra.mxu0 0.0
        %1566 = vmatprep.subr.mxu0 0.0
        %1567 = vmatpush1.msra.mxu0 0.0
        %1568 = vmatprep.subr.mxu0 0.0
        %1569 = vmatpush1.msra.mxu0 0.0
        %1570 = vmatprep.subr.mxu0 0.0
        %1571 = vmatpush1.msra.mxu0 0.0
        %1572 = vmatprep.subr.mxu0 0.0
        %1573 = vmatpush1.msra.mxu0 0.0
        %1574 = vmatprep.subr.mxu0 0.0
        %1575 = vmatpush1.msra.mxu0 0.0
        %1576 = vmatprep.subr.mxu0 0.0
        %1577 = vmatpush1.msra.mxu0 0.0
        %1578 = vmatprep.subr.mxu0 0.0
        %1579 = vmatpush1.msra.mxu0 0.0
        %1580 = vmatprep.subr.mxu0 0.0
        %1581 = vmatpush1.msra.mxu0 0.0
        %1582 = vmatprep.subr.mxu0 0.0
        %1583 = vmatpush1.msra.mxu0 0.0
        %1584 = vmatprep.subr.mxu0 0.0
        %1585 = vmatpush1.msra.mxu0 0.0
        %1586 = vmatprep.subr.mxu0 0.0
        %1587 = vmatpush1.msra.mxu0 0.0
        %1588 = vmatprep.subr.mxu0 0.0
        %1589 = vmatpush1.msra.mxu0 0.0
        %1590 = vmatprep.subr.mxu0 0.0
        %1591 = vmatpush1.msra.mxu0 0.0
        %1592 = vmatprep.subr.mxu0 0.0
        %1593 = vmatpush1.msra.mxu0 0.0
        %1594 = vmatprep.subr.mxu0 0.0
        %1595 = vmatpush1.msra.mxu0 0.0
        %1596 = vmatprep.subr.mxu0 0.0
        %1597 = vmatpush1.msra.mxu0 0.0
        %1598 = vmatprep.subr.mxu0 0.0
        %1599 = vmatpush1.msra.mxu0 0.0
        %1600 = vmatprep.subr.mxu0 0.0
        %1601 = vmatpush1.msra.mxu0 0.0
        %1602 = vmatprep.subr.mxu0 0.0
        %1603 = vmatpush1.msra.mxu0 0.0
        %1604 = vmatprep.subr.mxu0 0.0
        %1605 = vmatpush1.msra.mxu0 0.0
        %1606 = vmatprep.mubr.f32.mxu0 0.0
        %v1607 = vand.u32 %v1260, 4294901760
        %v1608 = vsub.f32 %v1260, %v1607
        %v1609 = vand.u32 %v1608, 4294901760
        %1610 = vmatmul.mubr.f32.gmra.mrb[0].mxu0 %v1609
        %v1611 = vpop.f32.mrb[0].mxu0
        %v1612 = vadd.f32 %v1528, %v1611
        %v1613 = vpop.f32.mrb[0].mxu0
        %1614 = vmatprep.mubr.f32.mxu0 0.0
        %v1615 = vand.u32 %v1263, 4294901760
        %v1616 = vsub.f32 %v1263, %v1615
        %v1617 = vand.u32 %v1616, 4294901760
        %1618 = vmatmul.mubr.f32.gmra.mrb[0].mxu0 %v1617
        %v1619 = vpop.f32.mrb[0].mxu0
        %v1620 = vadd.f32 %v1535, %v1619
        %v1621 = vpop.f32.mrb[0].mxu0
        %1622 = vdwg.mxu0
        %1623 = vmatprep.subr.mxu0 0.0
        %v1624 = vand.u32 %v1247, 4294901760
        %v1625 = vsub.f32 %v1247, %v1624
        %v1626 = vand.u32 %v1625, 4294901760
        %1627 = vmatpush1.msra.mxu0 %v1626
        %1628 = vmatprep.subr.mxu0 0.0
        %v1629 = vand.u32 %v1248, 4294901760
        %v1630 = vsub.f32 %v1248, %v1629
        %v1631 = vand.u32 %v1630, 4294901760
        %1632 = vmatpush1.msra.mxu0 %v1631
        %1633 = vmatprep.subr.mxu0 0.0
        %v1634 = vand.u32 %v1249, 4294901760
        %v1635 = vsub.f32 %v1249, %v1634
        %v1636 = vand.u32 %v1635, 4294901760
        %1637 = vmatpush1.msra.mxu0 %v1636
        %1638 = vmatprep.subr.mxu0 0.0
        %v1639 = vand.u32 %v1250, 4294901760
        %v1640 = vsub.f32 %v1250, %v1639
        %v1641 = vand.u32 %v1640, 4294901760
        %1642 = vmatpush1.msra.mxu0 %v1641
        %1643 = vmatprep.subr.mxu0 0.0
        %1644 = vmatpush1.msra.mxu0 0.0
        %1645 = vmatprep.subr.mxu0 0.0
        %1646 = vmatpush1.msra.mxu0 0.0
        %1647 = vmatprep.subr.mxu0 0.0
        %1648 = vmatpush1.msra.mxu0 0.0
        %1649 = vmatprep.subr.mxu0 0.0
        %1650 = vmatpush1.msra.mxu0 0.0
        %1651 = vmatprep.subr.mxu0 0.0
        %1652 = vmatpush1.msra.mxu0 0.0
        %1653 = vmatprep.subr.mxu0 0.0
        %1654 = vmatpush1.msra.mxu0 0.0
        %1655 = vmatprep.subr.mxu0 0.0
        %1656 = vmatpush1.msra.mxu0 0.0
        %1657 = vmatprep.subr.mxu0 0.0
        %1658 = vmatpush1.msra.mxu0 0.0
        %1659 = vmatprep.subr.mxu0 0.0
        %1660 = vmatpush1.msra.mxu0 0.0
        %1661 = vmatprep.subr.mxu0 0.0
        %1662 = vmatpush1.msra.mxu0 0.0
        %1663 = vmatprep.subr.mxu0 0.0
        %1664 = vmatpush1.msra.mxu0 0.0
        %1665 = vmatprep.subr.mxu0 0.0
        %1666 = vmatpush1.msra.mxu0 0.0
        %1667 = vmatprep.subr.mxu0 0.0
        %1668 = vmatpush1.msra.mxu0 0.0
        %1669 = vmatprep.subr.mxu0 0.0
        %1670 = vmatpush1.msra.mxu0 0.0
        %1671 = vmatprep.subr.mxu0 0.0
        %1672 = vmatpush1.msra.mxu0 0.0
        %1673 = vmatprep.subr.mxu0 0.0
        %1674 = vmatpush1.msra.mxu0 0.0
        %1675 = vmatprep.subr.mxu0 0.0
        %1676 = vmatpush1.msra.mxu0 0.0
        %1677 = vmatprep.subr.mxu0 0.0
        %1678 = vmatpush1.msra.mxu0 0.0
        %1679 = vmatprep.subr.mxu0 0.0
        %1680 = vmatpush1.msra.mxu0 0.0
        %1681 = vmatprep.subr.mxu0 0.0
        %1682 = vmatpush1.msra.mxu0 0.0
        %1683 = vmatprep.subr.mxu0 0.0
        %1684 = vmatpush1.msra.mxu0 0.0
        %1685 = vmatprep.subr.mxu0 0.0
        %1686 = vmatpush1.msra.mxu0 0.0
        %1687 = vmatprep.subr.mxu0 0.0
        %1688 = vmatpush1.msra.mxu0 0.0
        %1689 = vmatprep.subr.mxu0 0.0
        %1690 = vmatpush1.msra.mxu0 0.0
        %1691 = vmatprep.subr.mxu0 0.0
        %1692 = vmatpush1.msra.mxu0 0.0
        %1693 = vmatprep.subr.mxu0 0.0
        %1694 = vmatpush1.msra.mxu0 0.0
        %1695 = vmatprep.subr.mxu0 0.0
        %1696 = vmatpush1.msra.mxu0 0.0
        %1697 = vmatprep.subr.mxu0 0.0
        %1698 = vmatpush1.msra.mxu0 0.0
        %1699 = vmatprep.mubr.f32.mxu0 0.0
        %v1700 = vand.u32 %v1260, 4294901760
        %1701 = vmatmul.mubr.f32.gmra.mrb[0].mxu0 %v1700
        %v1702 = vpop.f32.mrb[0].mxu0
        %v1703 = vadd.f32 %v1612, %v1702
        %v1704 = vpop.f32.mrb[0].mxu0
        %1705 = vmatprep.mubr.f32.mxu0 0.0
        %v1706 = vand.u32 %v1263, 4294901760
        %1707 = vmatmul.mubr.f32.gmra.mrb[0].mxu0 %v1706
        %v1708 = vpop.f32.mrb[0].mxu0
        %v1709 = vadd.f32 %v1620, %v1708
        %v1710 = vpop.f32.mrb[0].mxu0
        %1711 = vdwg.mxu0
        %1712 = vmatprep.subr.mxu0 0.0
        %v1713 = vand.u32 %v1247, 4294901760
        %1714 = vmatpush1.msra.mxu0 %v1713
        %1715 = vmatprep.subr.mxu0 0.0
        %v1716 = vand.u32 %v1248, 4294901760
        %1717 = vmatpush1.msra.mxu0 %v1716
        %1718 = vmatprep.subr.mxu0 0.0
        %v1719 = vand.u32 %v1249, 4294901760
        %1720 = vmatpush1.msra.mxu0 %v1719
        %1721 = vmatprep.subr.mxu0 0.0
        %v1722 = vand.u32 %v1250, 4294901760
        %1723 = vmatpush1.msra.mxu0 %v1722
        %1724 = vmatprep.subr.mxu0 0.0
        %1725 = vmatpush1.msra.mxu0 0.0
        %1726 = vmatprep.subr.mxu0 0.0
        %1727 = vmatpush1.msra.mxu0 0.0
        %1728 = vmatprep.subr.mxu0 0.0
        %1729 = vmatpush1.msra.mxu0 0.0
        %1730 = vmatprep.subr.mxu0 0.0
        %1731 = vmatpush1.msra.mxu0 0.0
        %1732 = vmatprep.subr.mxu0 0.0
        %1733 = vmatpush1.msra.mxu0 0.0
        %1734 = vmatprep.subr.mxu0 0.0
        %1735 = vmatpush1.msra.mxu0 0.0
        %1736 = vmatprep.subr.mxu0 0.0
        %1737 = vmatpush1.msra.mxu0 0.0
        %1738 = vmatprep.subr.mxu0 0.0
        %1739 = vmatpush1.msra.mxu0 0.0
        %1740 = vmatprep.subr.mxu0 0.0
        %1741 = vmatpush1.msra.mxu0 0.0
        %1742 = vmatprep.subr.mxu0 0.0
        %1743 = vmatpush1.msra.mxu0 0.0
        %1744 = vmatprep.subr.mxu0 0.0
        %1745 = vmatpush1.msra.mxu0 0.0
        %1746 = vmatprep.subr.mxu0 0.0
        %1747 = vmatpush1.msra.mxu0 0.0
        %1748 = vmatprep.subr.mxu0 0.0
        %1749 = vmatpush1.msra.mxu0 0.0
        %1750 = vmatprep.subr.mxu0 0.0
        %1751 = vmatpush1.msra.mxu0 0.0
        %1752 = vmatprep.subr.mxu0 0.0
        %1753 = vmatpush1.msra.mxu0 0.0
        %1754 = vmatprep.subr.mxu0 0.0
        %1755 = vmatpush1.msra.mxu0 0.0
        %1756 = vmatprep.subr.mxu0 0.0
        %1757 = vmatpush1.msra.mxu0 0.0
        %1758 = vmatprep.subr.mxu0 0.0
        %1759 = vmatpush1.msra.mxu0 0.0
        %1760 = vmatprep.subr.mxu0 0.0
        %1761 = vmatpush1.msra.mxu0 0.0
        %1762 = vmatprep.subr.mxu0 0.0
        %1763 = vmatpush1.msra.mxu0 0.0
        %1764 = vmatprep.subr.mxu0 0.0
        %1765 = vmatpush1.msra.mxu0 0.0
        %1766 = vmatprep.subr.mxu0 0.0
        %1767 = vmatpush1.msra.mxu0 0.0
        %1768 = vmatprep.subr.mxu0 0.0
        %1769 = vmatpush1.msra.mxu0 0.0
        %1770 = vmatprep.subr.mxu0 0.0
        %1771 = vmatpush1.msra.mxu0 0.0
        %1772 = vmatprep.subr.mxu0 0.0
        %1773 = vmatpush1.msra.mxu0 0.0
        %1774 = vmatprep.subr.mxu0 0.0
        %1775 = vmatpush1.msra.mxu0 0.0
        %1776 = vmatprep.subr.mxu0 0.0
        %1777 = vmatpush1.msra.mxu0 0.0
        %1778 = vmatprep.subr.mxu0 0.0
        %1779 = vmatpush1.msra.mxu0 0.0
        %1780 = vmatprep.mubr.f32.mxu0 0.0
        %v1781 = vand.u32 %v1260, 4294901760
        %1782 = vmatmul.mubr.f32.gmra.mrb[0].mxu0 %v1781
        %v1783 = vpop.f32.mrb[0].mxu0
        %v1784 = vadd.f32 %v1703, %v1783
        %v1785 = vpop.f32.mrb[0].mxu0
        %1786 = vmatprep.mubr.f32.mxu0 0.0
        %v1787 = vand.u32 %v1263, 4294901760
        %1788 = vmatmul.mubr.f32.gmra.mrb[0].mxu0 %v1787
        %v1789 = vpop.f32.mrb[0].mxu0
        %v1790 = vadd.f32 %v1709, %v1789
        %v1791 = vpop.f32.mrb[0].mxu0
        %1792 = vdwg.mxu0
        %v1793 = vld [vmem:[%s8] sm:$0xff]
        %v1794 = vld [vmem:[%s8 + $0x8] sm:$0xff]
        %v1795 = vld [vmem:[%s8 + $0x10] sm:$0xff]
        %v1796 = vld [vmem:[%s8 + $0x18] sm:$0xff]
        %v1797 = vld [vmem:[#allocation7] sm:$0x1]
        %v1799 = vlaneseq
        %v1800 = vshrl.u32 %v1799, 7
        %v1801 = vsub.s32 0, %v1800
        %v1802 = vrot.slane %v1797, %v1801
        %1804 = vmatprep.subr.mxu0 0.0
        %v1805 = vand.u32 %v1793, 4294901760
        %1806 = vmatpush1.msra.mxu0 %v1805
        %1807 = vmatprep.subr.mxu0 0.0
        %v1808 = vand.u32 %v1794, 4294901760
        %1809 = vmatpush1.msra.mxu0 %v1808
        %1810 = vmatprep.subr.mxu0 0.0
        %v1811 = vand.u32 %v1795, 4294901760
        %1812 = vmatpush1.msra.mxu0 %v1811
        %1813 = vmatprep.subr.mxu0 0.0
        %v1814 = vand.u32 %v1796, 4294901760
        %1815 = vmatpush1.msra.mxu0 %v1814
        %1816 = vmatprep.subr.mxu0 0.0
        %1817 = vmatpush1.msra.mxu0 0.0
        %1818 = vmatprep.subr.mxu0 0.0
        %1819 = vmatpush1.msra.mxu0 0.0
        %1820 = vmatprep.subr.mxu0 0.0
        %1821 = vmatpush1.msra.mxu0 0.0
        %1822 = vmatprep.subr.mxu0 0.0
        %1823 = vmatpush1.msra.mxu0 0.0
        %1824 = vmatprep.subr.mxu0 0.0
        %1825 = vmatpush1.msra.mxu0 0.0
        %1826 = vmatprep.subr.mxu0 0.0
        %1827 = vmatpush1.msra.mxu0 0.0
        %1828 = vmatprep.subr.mxu0 0.0
        %1829 = vmatpush1.msra.mxu0 0.0
        %1830 = vmatprep.subr.mxu0 0.0
        %1831 = vmatpush1.msra.mxu0 0.0
        %1832 = vmatprep.subr.mxu0 0.0
        %1833 = vmatpush1.msra.mxu0 0.0
        %1834 = vmatprep.subr.mxu0 0.0
        %1835 = vmatpush1.msra.mxu0 0.0
        %1836 = vmatprep.subr.mxu0 0.0
        %1837 = vmatpush1.msra.mxu0 0.0
        %1838 = vmatprep.subr.mxu0 0.0
        %1839 = vmatpush1.msra.mxu0 0.0
        %1840 = vmatprep.subr.mxu0 0.0
        %1841 = vmatpush1.msra.mxu0 0.0
        %1842 = vmatprep.subr.mxu0 0.0
        %1843 = vmatpush1.msra.mxu0 0.0
        %1844 = vmatprep.subr.mxu0 0.0
        %1845 = vmatpush1.msra.mxu0 0.0
        %1846 = vmatprep.subr.mxu0 0.0
        %1847 = vmatpush1.msra.mxu0 0.0
        %1848 = vmatprep.subr.mxu0 0.0
        %1849 = vmatpush1.msra.mxu0 0.0
        %1850 = vmatprep.subr.mxu0 0.0
        %1851 = vmatpush1.msra.mxu0 0.0
        %1852 = vmatprep.subr.mxu0 0.0
        %1853 = vmatpush1.msra.mxu0 0.0
        %1854 = vmatprep.subr.mxu0 0.0
        %1855 = vmatpush1.msra.mxu0 0.0
        %1856 = vmatprep.subr.mxu0 0.0
        %1857 = vmatpush1.msra.mxu0 0.0
        %1858 = vmatprep.subr.mxu0 0.0
        %1859 = vmatpush1.msra.mxu0 0.0
        %1860 = vmatprep.subr.mxu0 0.0
        %1861 = vmatpush1.msra.mxu0 0.0
        %1862 = vmatprep.subr.mxu0 0.0
        %1863 = vmatpush1.msra.mxu0 0.0
        %1864 = vmatprep.subr.mxu0 0.0
        %1865 = vmatpush1.msra.mxu0 0.0
        %1866 = vmatprep.subr.mxu0 0.0
        %1867 = vmatpush1.msra.mxu0 0.0
        %1868 = vmatprep.subr.mxu0 0.0
        %1869 = vmatpush1.msra.mxu0 0.0
        %1870 = vmatprep.subr.mxu0 0.0
        %1871 = vmatpush1.msra.mxu0 0.0
        %1872 = vmatprep.mubr.f32.mxu0 0.0
        %v1873 = vand.u32 %v1260, 4294901760
        %v1874 = vsub.f32 %v1260, %v1873
        %v1875 = vand.u32 %v1874, 4294901760
        %v1876 = vsub.f32 %v1874, %v1875
        %v1877 = vand.u32 %v1876, 4294901760
        %1878 = vmatmul.mubr.f32.gmra.mrb[0].mxu0 %v1877
        %v1879 = vpop.f32.mrb[0].mxu0
        %v1880 = vadd.f32 %v1802, %v1879
        %v1881 = vpop.f32.mrb[0].mxu0
        %1882 = vmatprep.mubr.f32.mxu0 0.0
        %v1883 = vand.u32 %v1263, 4294901760
        %v1884 = vsub.f32 %v1263, %v1883
        %v1885 = vand.u32 %v1884, 4294901760
        %v1886 = vsub.f32 %v1884, %v1885
        %v1887 = vand.u32 %v1886, 4294901760
        %1888 = vmatmul.mubr.f32.gmra.mrb[0].mxu0 %v1887
        %v1889 = vpop.f32.mrb[0].mxu0
        %v1890 = vadd.f32 %v1802, %v1889
        %v1891 = vpop.f32.mrb[0].mxu0
        %1892 = vdwg.mxu0
        %1893 = vmatprep.subr.mxu0 0.0
        %v1894 = vand.u32 %v1793, 4294901760
        %v1895 = vsub.f32 %v1793, %v1894
        %v1896 = vand.u32 %v1895, 4294901760
        %v1897 = vsub.f32 %v1895, %v1896
        %v1898 = vand.u32 %v1897, 4294901760
        %1899 = vmatpush1.msra.mxu0 %v1898
        %1900 = vmatprep.subr.mxu0 0.0
        %v1901 = vand.u32 %v1794, 4294901760
        %v1902 = vsub.f32 %v1794, %v1901
        %v1903 = vand.u32 %v1902, 4294901760
        %v1904 = vsub.f32 %v1902, %v1903
        %v1905 = vand.u32 %v1904, 4294901760
        %1906 = vmatpush1.msra.mxu0 %v1905
        %1907 = vmatprep.subr.mxu0 0.0
        %v1908 = vand.u32 %v1795, 4294901760
        %v1909 = vsub.f32 %v1795, %v1908
        %v1910 = vand.u32 %v1909, 4294901760
        %v1911 = vsub.f32 %v1909, %v1910
        %v1912 = vand.u32 %v1911, 4294901760
        %1913 = vmatpush1.msra.mxu0 %v1912
        %1914 = vmatprep.subr.mxu0 0.0
        %v1915 = vand.u32 %v1796, 4294901760
        %v1916 = vsub.f32 %v1796, %v1915
        %v1917 = vand.u32 %v1916, 4294901760
        %v1918 = vsub.f32 %v1916, %v1917
        %v1919 = vand.u32 %v1918, 4294901760
        %1920 = vmatpush1.msra.mxu0 %v1919
        %1921 = vmatprep.subr.mxu0 0.0
        %1922 = vmatpush1.msra.mxu0 0.0
        %1923 = vmatprep.subr.mxu0 0.0
        %1924 = vmatpush1.msra.mxu0 0.0
        %1925 = vmatprep.subr.mxu0 0.0
        %1926 = vmatpush1.msra.mxu0 0.0
        %1927 = vmatprep.subr.mxu0 0.0
        %1928 = vmatpush1.msra.mxu0 0.0
        %1929 = vmatprep.subr.mxu0 0.0
        %1930 = vmatpush1.msra.mxu0 0.0
        %1931 = vmatprep.subr.mxu0 0.0
        %1932 = vmatpush1.msra.mxu0 0.0
        %1933 = vmatprep.subr.mxu0 0.0
        %1934 = vmatpush1.msra.mxu0 0.0
        %1935 = vmatprep.subr.mxu0 0.0
        %1936 = vmatpush1.msra.mxu0 0.0
        %1937 = vmatprep.subr.mxu0 0.0
        %1938 = vmatpush1.msra.mxu0 0.0
        %1939 = vmatprep.subr.mxu0 0.0
        %1940 = vmatpush1.msra.mxu0 0.0
        %1941 = vmatprep.subr.mxu0 0.0
        %1942 = vmatpush1.msra.mxu0 0.0
        %1943 = vmatprep.subr.mxu0 0.0
        %1944 = vmatpush1.msra.mxu0 0.0
        %1945 = vmatprep.subr.mxu0 0.0
        %1946 = vmatpush1.msra.mxu0 0.0
        %1947 = vmatprep.subr.mxu0 0.0
        %1948 = vmatpush1.msra.mxu0 0.0
        %1949 = vmatprep.subr.mxu0 0.0
        %1950 = vmatpush1.msra.mxu0 0.0
        %1951 = vmatprep.subr.mxu0 0.0
        %1952 = vmatpush1.msra.mxu0 0.0
        %1953 = vmatprep.subr.mxu0 0.0
        %1954 = vmatpush1.msra.mxu0 0.0
        %1955 = vmatprep.subr.mxu0 0.0
        %1956 = vmatpush1.msra.mxu0 0.0
        %1957 = vmatprep.subr.mxu0 0.0
        %1958 = vmatpush1.msra.mxu0 0.0
        %1959 = vmatprep.subr.mxu0 0.0
        %1960 = vmatpush1.msra.mxu0 0.0
        %1961 = vmatprep.subr.mxu0 0.0
        %1962 = vmatpush1.msra.mxu0 0.0
        %1963 = vmatprep.subr.mxu0 0.0
        %1964 = vmatpush1.msra.mxu0 0.0
        %1965 = vmatprep.subr.mxu0 0.0
        %1966 = vmatpush1.msra.mxu0 0.0
        %1967 = vmatprep.subr.mxu0 0.0
        %1968 = vmatpush1.msra.mxu0 0.0
        %1969 = vmatprep.subr.mxu0 0.0
        %1970 = vmatpush1.msra.mxu0 0.0
        %1971 = vmatprep.subr.mxu0 0.0
        %1972 = vmatpush1.msra.mxu0 0.0
        %1973 = vmatprep.subr.mxu0 0.0
        %1974 = vmatpush1.msra.mxu0 0.0
        %1975 = vmatprep.subr.mxu0 0.0
        %1976 = vmatpush1.msra.mxu0 0.0
        %1977 = vmatprep.mubr.f32.mxu0 0.0
        %v1978 = vand.u32 %v1260, 4294901760
        %1979 = vmatmul.mubr.f32.gmra.mrb[0].mxu0 %v1978
        %v1980 = vpop.f32.mrb[0].mxu0
        %v1981 = vadd.f32 %v1880, %v1980
        %v1982 = vpop.f32.mrb[0].mxu0
        %1983 = vmatprep.mubr.f32.mxu0 0.0
        %v1984 = vand.u32 %v1263, 4294901760
        %1985 = vmatmul.mubr.f32.gmra.mrb[0].mxu0 %v1984
        %v1986 = vpop.f32.mrb[0].mxu0
        %v1987 = vadd.f32 %v1890, %v1986
        %v1988 = vpop.f32.mrb[0].mxu0
        %1989 = vdwg.mxu0
        %1990 = vmatprep.subr.mxu0 0.0
        %v1991 = vand.u32 %v1793, 4294901760
        %v1992 = vsub.f32 %v1793, %v1991
        %1993 = vmatpush1.msra.mxu0 %v1992
        %1994 = vmatprep.subr.mxu0 0.0
        %v1995 = vand.u32 %v1794, 4294901760
        %v1996 = vsub.f32 %v1794, %v1995
        %1997 = vmatpush1.msra.mxu0 %v1996
        %1998 = vmatprep.subr.mxu0 0.0
        %v1999 = vand.u32 %v1795, 4294901760
        %v2000 = vsub.f32 %v1795, %v1999
        %2001 = vmatpush1.msra.mxu0 %v2000
        %2002 = vmatprep.subr.mxu0 0.0
        %v2003 = vand.u32 %v1796, 4294901760
        %v2004 = vsub.f32 %v1796, %v2003
        %2005 = vmatpush1.msra.mxu0 %v2004
        %2006 = vmatprep.subr.mxu0 0.0
        %2007 = vmatpush1.msra.mxu0 0.0
        %2008 = vmatprep.subr.mxu0 0.0
        %2009 = vmatpush1.msra.mxu0 0.0
        %2010 = vmatprep.subr.mxu0 0.0
        %2011 = vmatpush1.msra.mxu0 0.0
        %2012 = vmatprep.subr.mxu0 0.0
        %2013 = vmatpush1.msra.mxu0 0.0
        %2014 = vmatprep.subr.mxu0 0.0
        %2015 = vmatpush1.msra.mxu0 0.0
        %2016 = vmatprep.subr.mxu0 0.0
        %2017 = vmatpush1.msra.mxu0 0.0
        %2018 = vmatprep.subr.mxu0 0.0
        %2019 = vmatpush1.msra.mxu0 0.0
        %2020 = vmatprep.subr.mxu0 0.0
        %2021 = vmatpush1.msra.mxu0 0.0
        %2022 = vmatprep.subr.mxu0 0.0
        %2023 = vmatpush1.msra.mxu0 0.0
        %2024 = vmatprep.subr.mxu0 0.0
        %2025 = vmatpush1.msra.mxu0 0.0
        %2026 = vmatprep.subr.mxu0 0.0
        %2027 = vmatpush1.msra.mxu0 0.0
        %2028 = vmatprep.subr.mxu0 0.0
        %2029 = vmatpush1.msra.mxu0 0.0
        %2030 = vmatprep.subr.mxu0 0.0
        %2031 = vmatpush1.msra.mxu0 0.0
        %2032 = vmatprep.subr.mxu0 0.0
        %2033 = vmatpush1.msra.mxu0 0.0
        %2034 = vmatprep.subr.mxu0 0.0
        %2035 = vmatpush1.msra.mxu0 0.0
        %2036 = vmatprep.subr.mxu0 0.0
        %2037 = vmatpush1.msra.mxu0 0.0
        %2038 = vmatprep.subr.mxu0 0.0
        %2039 = vmatpush1.msra.mxu0 0.0
        %2040 = vmatprep.subr.mxu0 0.0
        %2041 = vmatpush1.msra.mxu0 0.0
        %2042 = vmatprep.subr.mxu0 0.0
        %2043 = vmatpush1.msra.mxu0 0.0
        %2044 = vmatprep.subr.mxu0 0.0
        %2045 = vmatpush1.msra.mxu0 0.0
        %2046 = vmatprep.subr.mxu0 0.0
        %2047 = vmatpush1.msra.mxu0 0.0
        %2048 = vmatprep.subr.mxu0 0.0
        %2049 = vmatpush1.msra.mxu0 0.0
        %2050 = vmatprep.subr.mxu0 0.0
        %2051 = vmatpush1.msra.mxu0 0.0
        %2052 = vmatprep.subr.mxu0 0.0
        %2053 = vmatpush1.msra.mxu0 0.0
        %2054 = vmatprep.subr.mxu0 0.0
        %2055 = vmatpush1.msra.mxu0 0.0
        %2056 = vmatprep.subr.mxu0 0.0
        %2057 = vmatpush1.msra.mxu0 0.0
        %2058 = vmatprep.subr.mxu0 0.0
        %2059 = vmatpush1.msra.mxu0 0.0
        %2060 = vmatprep.subr.mxu0 0.0
        %2061 = vmatpush1.msra.mxu0 0.0
        %2062 = vmatprep.mubr.f32.mxu0 0.0
        %v2063 = vand.u32 %v1260, 4294901760
        %v2064 = vsub.f32 %v1260, %v2063
        %2065 = vmatmul.mubr.f32.gmra.mrb[0].mxu0 %v2064
        %v2066 = vpop.f32.mrb[0].mxu0
        %v2067 = vadd.f32 %v1981, %v2066
        %v2068 = vpop.f32.mrb[0].mxu0
        %2069 = vmatprep.mubr.f32.mxu0 0.0
        %v2070 = vand.u32 %v1263, 4294901760
        %v2071 = vsub.f32 %v1263, %v2070
        %2072 = vmatmul.mubr.f32.gmra.mrb[0].mxu0 %v2071
        %v2073 = vpop.f32.mrb[0].mxu0
        %v2074 = vadd.f32 %v1987, %v2073
        %v2075 = vpop.f32.mrb[0].mxu0
        %2076 = vdwg.mxu0
        %2077 = vmatprep.subr.mxu0 0.0
        %v2078 = vand.u32 %v1793, 4294901760
        %2079 = vmatpush1.msra.mxu0 %v2078
        %2080 = vmatprep.subr.mxu0 0.0
        %v2081 = vand.u32 %v1794, 4294901760
        %2082 = vmatpush1.msra.mxu0 %v2081
        %2083 = vmatprep.subr.mxu0 0.0
        %v2084 = vand.u32 %v1795, 4294901760
        %2085 = vmatpush1.msra.mxu0 %v2084
        %2086 = vmatprep.subr.mxu0 0.0
        %v2087 = vand.u32 %v1796, 4294901760
        %2088 = vmatpush1.msra.mxu0 %v2087
        %2089 = vmatprep.subr.mxu0 0.0
        %2090 = vmatpush1.msra.mxu0 0.0
        %2091 = vmatprep.subr.mxu0 0.0
        %2092 = vmatpush1.msra.mxu0 0.0
        %2093 = vmatprep.subr.mxu0 0.0
        %2094 = vmatpush1.msra.mxu0 0.0
        %2095 = vmatprep.subr.mxu0 0.0
        %2096 = vmatpush1.msra.mxu0 0.0
        %2097 = vmatprep.subr.mxu0 0.0
        %2098 = vmatpush1.msra.mxu0 0.0
        %2099 = vmatprep.subr.mxu0 0.0
        %2100 = vmatpush1.msra.mxu0 0.0
        %2101 = vmatprep.subr.mxu0 0.0
        %2102 = vmatpush1.msra.mxu0 0.0
        %2103 = vmatprep.subr.mxu0 0.0
        %2104 = vmatpush1.msra.mxu0 0.0
        %2105 = vmatprep.subr.mxu0 0.0
        %2106 = vmatpush1.msra.mxu0 0.0
        %2107 = vmatprep.subr.mxu0 0.0
        %2108 = vmatpush1.msra.mxu0 0.0
        %2109 = vmatprep.subr.mxu0 0.0
        %2110 = vmatpush1.msra.mxu0 0.0
        %2111 = vmatprep.subr.mxu0 0.0
        %2112 = vmatpush1.msra.mxu0 0.0
        %2113 = vmatprep.subr.mxu0 0.0
        %2114 = vmatpush1.msra.mxu0 0.0
        %2115 = vmatprep.subr.mxu0 0.0
        %2116 = vmatpush1.msra.mxu0 0.0
        %2117 = vmatprep.subr.mxu0 0.0
        %2118 = vmatpush1.msra.mxu0 0.0
        %2119 = vmatprep.subr.mxu0 0.0
        %2120 = vmatpush1.msra.mxu0 0.0
        %2121 = vmatprep.subr.mxu0 0.0
        %2122 = vmatpush1.msra.mxu0 0.0
        %2123 = vmatprep.subr.mxu0 0.0
        %2124 = vmatpush1.msra.mxu0 0.0
        %2125 = vmatprep.subr.mxu0 0.0
        %2126 = vmatpush1.msra.mxu0 0.0
        %2127 = vmatprep.subr.mxu0 0.0
        %2128 = vmatpush1.msra.mxu0 0.0
        %2129 = vmatprep.subr.mxu0 0.0
        %2130 = vmatpush1.msra.mxu0 0.0
        %2131 = vmatprep.subr.mxu0 0.0
        %2132 = vmatpush1.msra.mxu0 0.0
        %2133 = vmatprep.subr.mxu0 0.0
        %2134 = vmatpush1.msra.mxu0 0.0
        %2135 = vmatprep.subr.mxu0 0.0
        %2136 = vmatpush1.msra.mxu0 0.0
        %2137 = vmatprep.subr.mxu0 0.0
        %2138 = vmatpush1.msra.mxu0 0.0
        %2139 = vmatprep.subr.mxu0 0.0
        %2140 = vmatpush1.msra.mxu0 0.0
        %2141 = vmatprep.subr.mxu0 0.0
        %2142 = vmatpush1.msra.mxu0 0.0
        %2143 = vmatprep.subr.mxu0 0.0
        %2144 = vmatpush1.msra.mxu0 0.0
        %2145 = vmatprep.mubr.f32.mxu0 0.0
        %v2146 = vand.u32 %v1260, 4294901760
        %v2147 = vsub.f32 %v1260, %v2146
        %v2148 = vand.u32 %v2147, 4294901760
        %2149 = vmatmul.mubr.f32.gmra.mrb[0].mxu0 %v2148
        %v2150 = vpop.f32.mrb[0].mxu0
        %v2151 = vadd.f32 %v2067, %v2150
        %v2152 = vpop.f32.mrb[0].mxu0
        %2153 = vmatprep.mubr.f32.mxu0 0.0
        %v2154 = vand.u32 %v1263, 4294901760
        %v2155 = vsub.f32 %v1263, %v2154
        %v2156 = vand.u32 %v2155, 4294901760
        %2157 = vmatmul.mubr.f32.gmra.mrb[0].mxu0 %v2156
        %v2158 = vpop.f32.mrb[0].mxu0
        %v2159 = vadd.f32 %v2074, %v2158
        %v2160 = vpop.f32.mrb[0].mxu0
        %2161 = vdwg.mxu0
        %2162 = vmatprep.subr.mxu0 0.0
        %v2163 = vand.u32 %v1793, 4294901760
        %v2164 = vsub.f32 %v1793, %v2163
        %v2165 = vand.u32 %v2164, 4294901760
        %2166 = vmatpush1.msra.mxu0 %v2165
        %2167 = vmatprep.subr.mxu0 0.0
        %v2168 = vand.u32 %v1794, 4294901760
        %v2169 = vsub.f32 %v1794, %v2168
        %v2170 = vand.u32 %v2169, 4294901760
        %2171 = vmatpush1.msra.mxu0 %v2170
        %2172 = vmatprep.subr.mxu0 0.0
        %v2173 = vand.u32 %v1795, 4294901760
        %v2174 = vsub.f32 %v1795, %v2173
        %v2175 = vand.u32 %v2174, 4294901760
        %2176 = vmatpush1.msra.mxu0 %v2175
        %2177 = vmatprep.subr.mxu0 0.0
        %v2178 = vand.u32 %v1796, 4294901760
        %v2179 = vsub.f32 %v1796, %v2178
        %v2180 = vand.u32 %v2179, 4294901760
        %2181 = vmatpush1.msra.mxu0 %v2180
        %2182 = vmatprep.subr.mxu0 0.0
        %2183 = vmatpush1.msra.mxu0 0.0
        %2184 = vmatprep.subr.mxu0 0.0
        %2185 = vmatpush1.msra.mxu0 0.0
        %2186 = vmatprep.subr.mxu0 0.0
        %2187 = vmatpush1.msra.mxu0 0.0
        %2188 = vmatprep.subr.mxu0 0.0
        %2189 = vmatpush1.msra.mxu0 0.0
        %2190 = vmatprep.subr.mxu0 0.0
        %2191 = vmatpush1.msra.mxu0 0.0
        %2192 = vmatprep.subr.mxu0 0.0
        %2193 = vmatpush1.msra.mxu0 0.0
        %2194 = vmatprep.subr.mxu0 0.0
        %2195 = vmatpush1.msra.mxu0 0.0
        %2196 = vmatprep.subr.mxu0 0.0
        %2197 = vmatpush1.msra.mxu0 0.0
        %2198 = vmatprep.subr.mxu0 0.0
        %2199 = vmatpush1.msra.mxu0 0.0
        %2200 = vmatprep.subr.mxu0 0.0
        %2201 = vmatpush1.msra.mxu0 0.0
        %2202 = vmatprep.subr.mxu0 0.0
        %2203 = vmatpush1.msra.mxu0 0.0
        %2204 = vmatprep.subr.mxu0 0.0
        %2205 = vmatpush1.msra.mxu0 0.0
        %2206 = vmatprep.subr.mxu0 0.0
        %2207 = vmatpush1.msra.mxu0 0.0
        %2208 = vmatprep.subr.mxu0 0.0
        %2209 = vmatpush1.msra.mxu0 0.0
        %2210 = vmatprep.subr.mxu0 0.0
        %2211 = vmatpush1.msra.mxu0 0.0
        %2212 = vmatprep.subr.mxu0 0.0
        %2213 = vmatpush1.msra.mxu0 0.0
        %2214 = vmatprep.subr.mxu0 0.0
        %2215 = vmatpush1.msra.mxu0 0.0
        %2216 = vmatprep.subr.mxu0 0.0
        %2217 = vmatpush1.msra.mxu0 0.0
        %2218 = vmatprep.subr.mxu0 0.0
        %2219 = vmatpush1.msra.mxu0 0.0
        %2220 = vmatprep.subr.mxu0 0.0
        %2221 = vmatpush1.msra.mxu0 0.0
        %2222 = vmatprep.subr.mxu0 0.0
        %2223 = vmatpush1.msra.mxu0 0.0
        %2224 = vmatprep.subr.mxu0 0.0
        %2225 = vmatpush1.msra.mxu0 0.0
        %2226 = vmatprep.subr.mxu0 0.0
        %2227 = vmatpush1.msra.mxu0 0.0
        %2228 = vmatprep.subr.mxu0 0.0
        %2229 = vmatpush1.msra.mxu0 0.0
        %2230 = vmatprep.subr.mxu0 0.0
        %2231 = vmatpush1.msra.mxu0 0.0
        %2232 = vmatprep.subr.mxu0 0.0
        %2233 = vmatpush1.msra.mxu0 0.0
        %2234 = vmatprep.subr.mxu0 0.0
        %2235 = vmatpush1.msra.mxu0 0.0
        %2236 = vmatprep.subr.mxu0 0.0
        %2237 = vmatpush1.msra.mxu0 0.0
        %2238 = vmatprep.mubr.f32.mxu0 0.0
        %v2239 = vand.u32 %v1260, 4294901760
        %2240 = vmatmul.mubr.f32.gmra.mrb[0].mxu0 %v2239
        %v2241 = vpop.f32.mrb[0].mxu0
        %v2242 = vadd.f32 %v2151, %v2241
        %v2243 = vpop.f32.mrb[0].mxu0
        %2244 = vmatprep.mubr.f32.mxu0 0.0
        %v2245 = vand.u32 %v1263, 4294901760
        %2246 = vmatmul.mubr.f32.gmra.mrb[0].mxu0 %v2245
        %v2247 = vpop.f32.mrb[0].mxu0
        %v2248 = vadd.f32 %v2159, %v2247
        %v2249 = vpop.f32.mrb[0].mxu0
        %2250 = vdwg.mxu0
        %2251 = vmatprep.subr.mxu0 0.0
        %v2252 = vand.u32 %v1793, 4294901760
        %2253 = vmatpush1.msra.mxu0 %v2252
        %2254 = vmatprep.subr.mxu0 0.0
        %v2255 = vand.u32 %v1794, 4294901760
        %2256 = vmatpush1.msra.mxu0 %v2255
        %2257 = vmatprep.subr.mxu0 0.0
        %v2258 = vand.u32 %v1795, 4294901760
        %2259 = vmatpush1.msra.mxu0 %v2258
        %2260 = vmatprep.subr.mxu0 0.0
        %v2261 = vand.u32 %v1796, 4294901760
        %2262 = vmatpush1.msra.mxu0 %v2261
        %2263 = vmatprep.subr.mxu0 0.0
        %2264 = vmatpush1.msra.mxu0 0.0
        %2265 = vmatprep.subr.mxu0 0.0
        %2266 = vmatpush1.msra.mxu0 0.0
        %2267 = vmatprep.subr.mxu0 0.0
        %2268 = vmatpush1.msra.mxu0 0.0
        %2269 = vmatprep.subr.mxu0 0.0
        %2270 = vmatpush1.msra.mxu0 0.0
        %2271 = vmatprep.subr.mxu0 0.0
        %2272 = vmatpush1.msra.mxu0 0.0
        %2273 = vmatprep.subr.mxu0 0.0
        %2274 = vmatpush1.msra.mxu0 0.0
        %2275 = vmatprep.subr.mxu0 0.0
        %2276 = vmatpush1.msra.mxu0 0.0
        %2277 = vmatprep.subr.mxu0 0.0
        %2278 = vmatpush1.msra.mxu0 0.0
        %2279 = vmatprep.subr.mxu0 0.0
        %2280 = vmatpush1.msra.mxu0 0.0
        %2281 = vmatprep.subr.mxu0 0.0
        %2282 = vmatpush1.msra.mxu0 0.0
        %2283 = vmatprep.subr.mxu0 0.0
        %2284 = vmatpush1.msra.mxu0 0.0
        %2285 = vmatprep.subr.mxu0 0.0
        %2286 = vmatpush1.msra.mxu0 0.0
        %2287 = vmatprep.subr.mxu0 0.0
        %2288 = vmatpush1.msra.mxu0 0.0
        %2289 = vmatprep.subr.mxu0 0.0
        %2290 = vmatpush1.msra.mxu0 0.0
        %2291 = vmatprep.subr.mxu0 0.0
        %2292 = vmatpush1.msra.mxu0 0.0
        %2293 = vmatprep.subr.mxu0 0.0
        %2294 = vmatpush1.msra.mxu0 0.0
        %2295 = vmatprep.subr.mxu0 0.0
        %2296 = vmatpush1.msra.mxu0 0.0
        %2297 = vmatprep.subr.mxu0 0.0
        %2298 = vmatpush1.msra.mxu0 0.0
        %2299 = vmatprep.subr.mxu0 0.0
        %2300 = vmatpush1.msra.mxu0 0.0
        %2301 = vmatprep.subr.mxu0 0.0
        %2302 = vmatpush1.msra.mxu0 0.0
        %2303 = vmatprep.subr.mxu0 0.0
        %2304 = vmatpush1.msra.mxu0 0.0
        %2305 = vmatprep.subr.mxu0 0.0
        %2306 = vmatpush1.msra.mxu0 0.0
        %2307 = vmatprep.subr.mxu0 0.0
        %2308 = vmatpush1.msra.mxu0 0.0
        %2309 = vmatprep.subr.mxu0 0.0
        %2310 = vmatpush1.msra.mxu0 0.0
        %2311 = vmatprep.subr.mxu0 0.0
        %2312 = vmatpush1.msra.mxu0 0.0
        %2313 = vmatprep.subr.mxu0 0.0
        %2314 = vmatpush1.msra.mxu0 0.0
        %2315 = vmatprep.subr.mxu0 0.0
        %2316 = vmatpush1.msra.mxu0 0.0
        %2317 = vmatprep.subr.mxu0 0.0
        %2318 = vmatpush1.msra.mxu0 0.0
        %2319 = vmatprep.mubr.f32.mxu0 0.0
        %v2320 = vand.u32 %v1260, 4294901760
        %2321 = vmatmul.mubr.f32.gmra.mrb[0].mxu0 %v2320
        %v2322 = vpop.f32.mrb[0].mxu0
        %v2323 = vadd.f32 %v2242, %v2322
        %v2324 = vpop.f32.mrb[0].mxu0
        %2325 = vmatprep.mubr.f32.mxu0 0.0
        %v2326 = vand.u32 %v1263, 4294901760
        %2327 = vmatmul.mubr.f32.gmra.mrb[0].mxu0 %v2326
        %v2328 = vpop.f32.mrb[0].mxu0
        %v2329 = vadd.f32 %v2248, %v2328
        %v2330 = vpop.f32.mrb[0].mxu0
        %2331 = vdwg.mxu0
        %v2332 = vld [vmem:[%s10] sm:$0xff]
        %v2333 = vld [vmem:[%s10 + $0x8] sm:$0xff]
        %v2334 = vld [vmem:[%s10 + $0x10] sm:$0xff]
        %v2335 = vld [vmem:[%s10 + $0x18] sm:$0xff]
        %v2336 = vld [vmem:[#allocation8] sm:$0x1]
        %v2338 = vlaneseq
        %v2339 = vshrl.u32 %v2338, 7
        %v2340 = vsub.s32 0, %v2339
        %v2341 = vrot.slane %v2336, %v2340
        %2343 = vmatprep.subr.mxu0 0.0
        %v2344 = vand.u32 %v2332, 4294901760
        %2345 = vmatpush1.msra.mxu0 %v2344
        %2346 = vmatprep.subr.mxu0 0.0
        %v2347 = vand.u32 %v2333, 4294901760
        %2348 = vmatpush1.msra.mxu0 %v2347
        %2349 = vmatprep.subr.mxu0 0.0
        %v2350 = vand.u32 %v2334, 4294901760
        %2351 = vmatpush1.msra.mxu0 %v2350
        %2352 = vmatprep.subr.mxu0 0.0
        %v2353 = vand.u32 %v2335, 4294901760
        %2354 = vmatpush1.msra.mxu0 %v2353
        %2355 = vmatprep.subr.mxu0 0.0
        %2356 = vmatpush1.msra.mxu0 0.0
        %2357 = vmatprep.subr.mxu0 0.0
        %2358 = vmatpush1.msra.mxu0 0.0
        %2359 = vmatprep.subr.mxu0 0.0
        %2360 = vmatpush1.msra.mxu0 0.0
        %2361 = vmatprep.subr.mxu0 0.0
        %2362 = vmatpush1.msra.mxu0 0.0
        %2363 = vmatprep.subr.mxu0 0.0
        %2364 = vmatpush1.msra.mxu0 0.0
        %2365 = vmatprep.subr.mxu0 0.0
        %2366 = vmatpush1.msra.mxu0 0.0
        %2367 = vmatprep.subr.mxu0 0.0
        %2368 = vmatpush1.msra.mxu0 0.0
        %2369 = vmatprep.subr.mxu0 0.0
        %2370 = vmatpush1.msra.mxu0 0.0
        %2371 = vmatprep.subr.mxu0 0.0
        %2372 = vmatpush1.msra.mxu0 0.0
        %2373 = vmatprep.subr.mxu0 0.0
        %2374 = vmatpush1.msra.mxu0 0.0
        %2375 = vmatprep.subr.mxu0 0.0
        %2376 = vmatpush1.msra.mxu0 0.0
        %2377 = vmatprep.subr.mxu0 0.0
        %2378 = vmatpush1.msra.mxu0 0.0
        %2379 = vmatprep.subr.mxu0 0.0
        %2380 = vmatpush1.msra.mxu0 0.0
        %2381 = vmatprep.subr.mxu0 0.0
        %2382 = vmatpush1.msra.mxu0 0.0
        %2383 = vmatprep.subr.mxu0 0.0
        %2384 = vmatpush1.msra.mxu0 0.0
        %2385 = vmatprep.subr.mxu0 0.0
        %2386 = vmatpush1.msra.mxu0 0.0
        %2387 = vmatprep.subr.mxu0 0.0
        %2388 = vmatpush1.msra.mxu0 0.0
        %2389 = vmatprep.subr.mxu0 0.0
        %2390 = vmatpush1.msra.mxu0 0.0
        %2391 = vmatprep.subr.mxu0 0.0
        %2392 = vmatpush1.msra.mxu0 0.0
        %2393 = vmatprep.subr.mxu0 0.0
        %2394 = vmatpush1.msra.mxu0 0.0
        %2395 = vmatprep.subr.mxu0 0.0
        %2396 = vmatpush1.msra.mxu0 0.0
        %2397 = vmatprep.subr.mxu0 0.0
        %2398 = vmatpush1.msra.mxu0 0.0
        %2399 = vmatprep.subr.mxu0 0.0
        %2400 = vmatpush1.msra.mxu0 0.0
        %2401 = vmatprep.subr.mxu0 0.0
        %2402 = vmatpush1.msra.mxu0 0.0
        %2403 = vmatprep.subr.mxu0 0.0
        %2404 = vmatpush1.msra.mxu0 0.0
        %2405 = vmatprep.subr.mxu0 0.0
        %2406 = vmatpush1.msra.mxu0 0.0
        %2407 = vmatprep.subr.mxu0 0.0
        %2408 = vmatpush1.msra.mxu0 0.0
        %2409 = vmatprep.subr.mxu0 0.0
        %2410 = vmatpush1.msra.mxu0 0.0
        %2411 = vmatprep.mubr.f32.mxu0 0.0
        %v2412 = vand.u32 %v1260, 4294901760
        %v2413 = vsub.f32 %v1260, %v2412
        %v2414 = vand.u32 %v2413, 4294901760
        %v2415 = vsub.f32 %v2413, %v2414
        %v2416 = vand.u32 %v2415, 4294901760
        %2417 = vmatmul.mubr.f32.gmra.mrb[0].mxu0 %v2416
        %v2418 = vpop.f32.mrb[0].mxu0
        %v2419 = vadd.f32 %v2341, %v2418
        %v2420 = vpop.f32.mrb[0].mxu0
        %2421 = vmatprep.mubr.f32.mxu0 0.0
        %v2422 = vand.u32 %v1263, 4294901760
        %v2423 = vsub.f32 %v1263, %v2422
        %v2424 = vand.u32 %v2423, 4294901760
        %v2425 = vsub.f32 %v2423, %v2424
        %v2426 = vand.u32 %v2425, 4294901760
        %2427 = vmatmul.mubr.f32.gmra.mrb[0].mxu0 %v2426
        %v2428 = vpop.f32.mrb[0].mxu0
        %v2429 = vadd.f32 %v2341, %v2428
        %v2430 = vpop.f32.mrb[0].mxu0
        %2431 = vdwg.mxu0
        %2432 = vmatprep.subr.mxu0 0.0
        %v2433 = vand.u32 %v2332, 4294901760
        %v2434 = vsub.f32 %v2332, %v2433
        %v2435 = vand.u32 %v2434, 4294901760
        %v2436 = vsub.f32 %v2434, %v2435
        %v2437 = vand.u32 %v2436, 4294901760
        %2438 = vmatpush1.msra.mxu0 %v2437
        %2439 = vmatprep.subr.mxu0 0.0
        %v2440 = vand.u32 %v2333, 4294901760
        %v2441 = vsub.f32 %v2333, %v2440
        %v2442 = vand.u32 %v2441, 4294901760
        %v2443 = vsub.f32 %v2441, %v2442
        %v2444 = vand.u32 %v2443, 4294901760
        %2445 = vmatpush1.msra.mxu0 %v2444
        %2446 = vmatprep.subr.mxu0 0.0
        %v2447 = vand.u32 %v2334, 4294901760
        %v2448 = vsub.f32 %v2334, %v2447
        %v2449 = vand.u32 %v2448, 4294901760
        %v2450 = vsub.f32 %v2448, %v2449
        %v2451 = vand.u32 %v2450, 4294901760
        %2452 = vmatpush1.msra.mxu0 %v2451
        %2453 = vmatprep.subr.mxu0 0.0
        %v2454 = vand.u32 %v2335, 4294901760
        %v2455 = vsub.f32 %v2335, %v2454
        %v2456 = vand.u32 %v2455, 4294901760
        %v2457 = vsub.f32 %v2455, %v2456
        %v2458 = vand.u32 %v2457, 4294901760
        %2459 = vmatpush1.msra.mxu0 %v2458
        %2460 = vmatprep.subr.mxu0 0.0
        %2461 = vmatpush1.msra.mxu0 0.0
        %2462 = vmatprep.subr.mxu0 0.0
        %2463 = vmatpush1.msra.mxu0 0.0
        %2464 = vmatprep.subr.mxu0 0.0
        %2465 = vmatpush1.msra.mxu0 0.0
        %2466 = vmatprep.subr.mxu0 0.0
        %2467 = vmatpush1.msra.mxu0 0.0
        %2468 = vmatprep.subr.mxu0 0.0
        %2469 = vmatpush1.msra.mxu0 0.0
        %2470 = vmatprep.subr.mxu0 0.0
        %2471 = vmatpush1.msra.mxu0 0.0
        %2472 = vmatprep.subr.mxu0 0.0
        %2473 = vmatpush1.msra.mxu0 0.0
        %2474 = vmatprep.subr.mxu0 0.0
        %2475 = vmatpush1.msra.mxu0 0.0
        %2476 = vmatprep.subr.mxu0 0.0
        %2477 = vmatpush1.msra.mxu0 0.0
        %2478 = vmatprep.subr.mxu0 0.0
        %2479 = vmatpush1.msra.mxu0 0.0
        %2480 = vmatprep.subr.mxu0 0.0
        %2481 = vmatpush1.msra.mxu0 0.0
        %2482 = vmatprep.subr.mxu0 0.0
        %2483 = vmatpush1.msra.mxu0 0.0
        %2484 = vmatprep.subr.mxu0 0.0
        %2485 = vmatpush1.msra.mxu0 0.0
        %2486 = vmatprep.subr.mxu0 0.0
        %2487 = vmatpush1.msra.mxu0 0.0
        %2488 = vmatprep.subr.mxu0 0.0
        %2489 = vmatpush1.msra.mxu0 0.0
        %2490 = vmatprep.subr.mxu0 0.0
        %2491 = vmatpush1.msra.mxu0 0.0
        %2492 = vmatprep.subr.mxu0 0.0
        %2493 = vmatpush1.msra.mxu0 0.0
        %2494 = vmatprep.subr.mxu0 0.0
        %2495 = vmatpush1.msra.mxu0 0.0
        %2496 = vmatprep.subr.mxu0 0.0
        %2497 = vmatpush1.msra.mxu0 0.0
        %2498 = vmatprep.subr.mxu0 0.0
        %2499 = vmatpush1.msra.mxu0 0.0
        %2500 = vmatprep.subr.mxu0 0.0
        %2501 = vmatpush1.msra.mxu0 0.0
        %2502 = vmatprep.subr.mxu0 0.0
        %2503 = vmatpush1.msra.mxu0 0.0
        %2504 = vmatprep.subr.mxu0 0.0
        %2505 = vmatpush1.msra.mxu0 0.0
        %2506 = vmatprep.subr.mxu0 0.0
        %2507 = vmatpush1.msra.mxu0 0.0
        %2508 = vmatprep.subr.mxu0 0.0
        %2509 = vmatpush1.msra.mxu0 0.0
        %2510 = vmatprep.subr.mxu0 0.0
        %2511 = vmatpush1.msra.mxu0 0.0
        %2512 = vmatprep.subr.mxu0 0.0
        %2513 = vmatpush1.msra.mxu0 0.0
        %2514 = vmatprep.subr.mxu0 0.0
        %2515 = vmatpush1.msra.mxu0 0.0
        %2516 = vmatprep.mubr.f32.mxu0 0.0
        %v2517 = vand.u32 %v1260, 4294901760
        %2518 = vmatmul.mubr.f32.gmra.mrb[0].mxu0 %v2517
        %v2519 = vpop.f32.mrb[0].mxu0
        %v2520 = vadd.f32 %v2419, %v2519
        %v2521 = vpop.f32.mrb[0].mxu0
        %2522 = vmatprep.mubr.f32.mxu0 0.0
        %v2523 = vand.u32 %v1263, 4294901760
        %2524 = vmatmul.mubr.f32.gmra.mrb[0].mxu0 %v2523
        %v2525 = vpop.f32.mrb[0].mxu0
        %v2526 = vadd.f32 %v2429, %v2525
        %v2527 = vpop.f32.mrb[0].mxu0
        %2528 = vdwg.mxu0
        %2529 = vmatprep.subr.mxu0 0.0
        %v2530 = vand.u32 %v2332, 4294901760
        %v2531 = vsub.f32 %v2332, %v2530
        %2532 = vmatpush1.msra.mxu0 %v2531
        %2533 = vmatprep.subr.mxu0 0.0
        %v2534 = vand.u32 %v2333, 4294901760
        %v2535 = vsub.f32 %v2333, %v2534
        %2536 = vmatpush1.msra.mxu0 %v2535
        %2537 = vmatprep.subr.mxu0 0.0
        %v2538 = vand.u32 %v2334, 4294901760
        %v2539 = vsub.f32 %v2334, %v2538
        %2540 = vmatpush1.msra.mxu0 %v2539
        %2541 = vmatprep.subr.mxu0 0.0
        %v2542 = vand.u32 %v2335, 4294901760
        %v2543 = vsub.f32 %v2335, %v2542
        %2544 = vmatpush1.msra.mxu0 %v2543
        %2545 = vmatprep.subr.mxu0 0.0
        %2546 = vmatpush1.msra.mxu0 0.0
        %2547 = vmatprep.subr.mxu0 0.0
        %2548 = vmatpush1.msra.mxu0 0.0
        %2549 = vmatprep.subr.mxu0 0.0
        %2550 = vmatpush1.msra.mxu0 0.0
        %2551 = vmatprep.subr.mxu0 0.0
        %2552 = vmatpush1.msra.mxu0 0.0
        %2553 = vmatprep.subr.mxu0 0.0
        %2554 = vmatpush1.msra.mxu0 0.0
        %2555 = vmatprep.subr.mxu0 0.0
        %2556 = vmatpush1.msra.mxu0 0.0
        %2557 = vmatprep.subr.mxu0 0.0
        %2558 = vmatpush1.msra.mxu0 0.0
        %2559 = vmatprep.subr.mxu0 0.0
        %2560 = vmatpush1.msra.mxu0 0.0
        %2561 = vmatprep.subr.mxu0 0.0
        %2562 = vmatpush1.msra.mxu0 0.0
        %2563 = vmatprep.subr.mxu0 0.0
        %2564 = vmatpush1.msra.mxu0 0.0
        %2565 = vmatprep.subr.mxu0 0.0
        %2566 = vmatpush1.msra.mxu0 0.0
        %2567 = vmatprep.subr.mxu0 0.0
        %2568 = vmatpush1.msra.mxu0 0.0
        %2569 = vmatprep.subr.mxu0 0.0
        %2570 = vmatpush1.msra.mxu0 0.0
        %2571 = vmatprep.subr.mxu0 0.0
        %2572 = vmatpush1.msra.mxu0 0.0
        %2573 = vmatprep.subr.mxu0 0.0
        %2574 = vmatpush1.msra.mxu0 0.0
        %2575 = vmatprep.subr.mxu0 0.0
        %2576 = vmatpush1.msra.mxu0 0.0
        %2577 = vmatprep.subr.mxu0 0.0
        %2578 = vmatpush1.msra.mxu0 0.0
        %2579 = vmatprep.subr.mxu0 0.0
        %2580 = vmatpush1.msra.mxu0 0.0
        %2581 = vmatprep.subr.mxu0 0.0
        %2582 = vmatpush1.msra.mxu0 0.0
        %2583 = vmatprep.subr.mxu0 0.0
        %2584 = vmatpush1.msra.mxu0 0.0
        %2585 = vmatprep.subr.mxu0 0.0
        %2586 = vmatpush1.msra.mxu0 0.0
        %2587 = vmatprep.subr.mxu0 0.0
        %2588 = vmatpush1.msra.mxu0 0.0
        %2589 = vmatprep.subr.mxu0 0.0
        %2590 = vmatpush1.msra.mxu0 0.0
        %2591 = vmatprep.subr.mxu0 0.0
        %2592 = vmatpush1.msra.mxu0 0.0
        %2593 = vmatprep.subr.mxu0 0.0
        %2594 = vmatpush1.msra.mxu0 0.0
        %2595 = vmatprep.subr.mxu0 0.0
        %2596 = vmatpush1.msra.mxu0 0.0
        %2597 = vmatprep.subr.mxu0 0.0
        %2598 = vmatpush1.msra.mxu0 0.0
        %2599 = vmatprep.subr.mxu0 0.0
        %2600 = vmatpush1.msra.mxu0 0.0
        %2601 = vmatprep.mubr.f32.mxu0 0.0
        %v2602 = vand.u32 %v1260, 4294901760
        %v2603 = vsub.f32 %v1260, %v2602
        %2604 = vmatmul.mubr.f32.gmra.mrb[0].mxu0 %v2603
        %v2605 = vpop.f32.mrb[0].mxu0
        %v2606 = vadd.f32 %v2520, %v2605
        %v2607 = vpop.f32.mrb[0].mxu0
        %2608 = vmatprep.mubr.f32.mxu0 0.0
        %v2609 = vand.u32 %v1263, 4294901760
        %v2610 = vsub.f32 %v1263, %v2609
        %2611 = vmatmul.mubr.f32.gmra.mrb[0].mxu0 %v2610
        %v2612 = vpop.f32.mrb[0].mxu0
        %v2613 = vadd.f32 %v2526, %v2612
        %v2614 = vpop.f32.mrb[0].mxu0
        %2615 = vdwg.mxu0
        %2616 = vmatprep.subr.mxu0 0.0
        %v2617 = vand.u32 %v2332, 4294901760
        %2618 = vmatpush1.msra.mxu0 %v2617
        %2619 = vmatprep.subr.mxu0 0.0
        %v2620 = vand.u32 %v2333, 4294901760
        %2621 = vmatpush1.msra.mxu0 %v2620
        %2622 = vmatprep.subr.mxu0 0.0
        %v2623 = vand.u32 %v2334, 4294901760
        %2624 = vmatpush1.msra.mxu0 %v2623
        %2625 = vmatprep.subr.mxu0 0.0
        %v2626 = vand.u32 %v2335, 4294901760
        %2627 = vmatpush1.msra.mxu0 %v2626
        %2628 = vmatprep.subr.mxu0 0.0
        %2629 = vmatpush1.msra.mxu0 0.0
        %2630 = vmatprep.subr.mxu0 0.0
        %2631 = vmatpush1.msra.mxu0 0.0
        %2632 = vmatprep.subr.mxu0 0.0
        %2633 = vmatpush1.msra.mxu0 0.0
        %2634 = vmatprep.subr.mxu0 0.0
        %2635 = vmatpush1.msra.mxu0 0.0
        %2636 = vmatprep.subr.mxu0 0.0
        %2637 = vmatpush1.msra.mxu0 0.0
        %2638 = vmatprep.subr.mxu0 0.0
        %2639 = vmatpush1.msra.mxu0 0.0
        %2640 = vmatprep.subr.mxu0 0.0
        %2641 = vmatpush1.msra.mxu0 0.0
        %2642 = vmatprep.subr.mxu0 0.0
        %2643 = vmatpush1.msra.mxu0 0.0
        %2644 = vmatprep.subr.mxu0 0.0
        %2645 = vmatpush1.msra.mxu0 0.0
        %2646 = vmatprep.subr.mxu0 0.0
        %2647 = vmatpush1.msra.mxu0 0.0
        %2648 = vmatprep.subr.mxu0 0.0
        %2649 = vmatpush1.msra.mxu0 0.0
        %2650 = vmatprep.subr.mxu0 0.0
        %2651 = vmatpush1.msra.mxu0 0.0
        %2652 = vmatprep.subr.mxu0 0.0
        %2653 = vmatpush1.msra.mxu0 0.0
        %2654 = vmatprep.subr.mxu0 0.0
        %2655 = vmatpush1.msra.mxu0 0.0
        %2656 = vmatprep.subr.mxu0 0.0
        %2657 = vmatpush1.msra.mxu0 0.0
        %2658 = vmatprep.subr.mxu0 0.0
        %2659 = vmatpush1.msra.mxu0 0.0
        %2660 = vmatprep.subr.mxu0 0.0
        %2661 = vmatpush1.msra.mxu0 0.0
        %2662 = vmatprep.subr.mxu0 0.0
        %2663 = vmatpush1.msra.mxu0 0.0
        %2664 = vmatprep.subr.mxu0 0.0
        %2665 = vmatpush1.msra.mxu0 0.0
        %2666 = vmatprep.subr.mxu0 0.0
        %2667 = vmatpush1.msra.mxu0 0.0
        %2668 = vmatprep.subr.mxu0 0.0
        %2669 = vmatpush1.msra.mxu0 0.0
        %2670 = vmatprep.subr.mxu0 0.0
        %2671 = vmatpush1.msra.mxu0 0.0
        %2672 = vmatprep.subr.mxu0 0.0
        %2673 = vmatpush1.msra.mxu0 0.0
        %2674 = vmatprep.subr.mxu0 0.0
        %2675 = vmatpush1.msra.mxu0 0.0
        %2676 = vmatprep.subr.mxu0 0.0
        %2677 = vmatpush1.msra.mxu0 0.0
        %2678 = vmatprep.subr.mxu0 0.0
        %2679 = vmatpush1.msra.mxu0 0.0
        %2680 = vmatprep.subr.mxu0 0.0
        %2681 = vmatpush1.msra.mxu0 0.0
        %2682 = vmatprep.subr.mxu0 0.0
        %2683 = vmatpush1.msra.mxu0 0.0
        %2684 = vmatprep.mubr.f32.mxu0 0.0
        %v2685 = vand.u32 %v1260, 4294901760
        %v2686 = vsub.f32 %v1260, %v2685
        %v2687 = vand.u32 %v2686, 4294901760
        %2688 = vmatmul.mubr.f32.gmra.mrb[0].mxu0 %v2687
        %v2689 = vpop.f32.mrb[0].mxu0
        %v2690 = vadd.f32 %v2606, %v2689
        %v2691 = vpop.f32.mrb[0].mxu0
        %2692 = vmatprep.mubr.f32.mxu0 0.0
        %v2693 = vand.u32 %v1263, 4294901760
        %v2694 = vsub.f32 %v1263, %v2693
        %v2695 = vand.u32 %v2694, 4294901760
        %2696 = vmatmul.mubr.f32.gmra.mrb[0].mxu0 %v2695
        %v2697 = vpop.f32.mrb[0].mxu0
        %v2698 = vadd.f32 %v2613, %v2697
        %v2699 = vpop.f32.mrb[0].mxu0
        %2700 = vdwg.mxu0
        %2701 = vmatprep.subr.mxu0 0.0
        %v2702 = vand.u32 %v2332, 4294901760
        %v2703 = vsub.f32 %v2332, %v2702
        %v2704 = vand.u32 %v2703, 4294901760
        %2705 = vmatpush1.msra.mxu0 %v2704
        %2706 = vmatprep.subr.mxu0 0.0
        %v2707 = vand.u32 %v2333, 4294901760
        %v2708 = vsub.f32 %v2333, %v2707
        %v2709 = vand.u32 %v2708, 4294901760
        %2710 = vmatpush1.msra.mxu0 %v2709
        %2711 = vmatprep.subr.mxu0 0.0
        %v2712 = vand.u32 %v2334, 4294901760
        %v2713 = vsub.f32 %v2334, %v2712
        %v2714 = vand.u32 %v2713, 4294901760
        %2715 = vmatpush1.msra.mxu0 %v2714
        %2716 = vmatprep.subr.mxu0 0.0
        %v2717 = vand.u32 %v2335, 4294901760
        %v2718 = vsub.f32 %v2335, %v2717
        %v2719 = vand.u32 %v2718, 4294901760
        %2720 = vmatpush1.msra.mxu0 %v2719
        %2721 = vmatprep.subr.mxu0 0.0
        %2722 = vmatpush1.msra.mxu0 0.0
        %2723 = vmatprep.subr.mxu0 0.0
        %2724 = vmatpush1.msra.mxu0 0.0
        %2725 = vmatprep.subr.mxu0 0.0
        %2726 = vmatpush1.msra.mxu0 0.0
        %2727 = vmatprep.subr.mxu0 0.0
        %2728 = vmatpush1.msra.mxu0 0.0
        %2729 = vmatprep.subr.mxu0 0.0
        %2730 = vmatpush1.msra.mxu0 0.0
        %2731 = vmatprep.subr.mxu0 0.0
        %2732 = vmatpush1.msra.mxu0 0.0
        %2733 = vmatprep.subr.mxu0 0.0
        %2734 = vmatpush1.msra.mxu0 0.0
        %2735 = vmatprep.subr.mxu0 0.0
        %2736 = vmatpush1.msra.mxu0 0.0
        %2737 = vmatprep.subr.mxu0 0.0
        %2738 = vmatpush1.msra.mxu0 0.0
        %2739 = vmatprep.subr.mxu0 0.0
        %2740 = vmatpush1.msra.mxu0 0.0
        %2741 = vmatprep.subr.mxu0 0.0
        %2742 = vmatpush1.msra.mxu0 0.0
        %2743 = vmatprep.subr.mxu0 0.0
        %2744 = vmatpush1.msra.mxu0 0.0
        %2745 = vmatprep.subr.mxu0 0.0
        %2746 = vmatpush1.msra.mxu0 0.0
        %2747 = vmatprep.subr.mxu0 0.0
        %2748 = vmatpush1.msra.mxu0 0.0
        %2749 = vmatprep.subr.mxu0 0.0
        %2750 = vmatpush1.msra.mxu0 0.0
        %2751 = vmatprep.subr.mxu0 0.0
        %2752 = vmatpush1.msra.mxu0 0.0
        %2753 = vmatprep.subr.mxu0 0.0
        %2754 = vmatpush1.msra.mxu0 0.0
        %2755 = vmatprep.subr.mxu0 0.0
        %2756 = vmatpush1.msra.mxu0 0.0
        %2757 = vmatprep.subr.mxu0 0.0
        %2758 = vmatpush1.msra.mxu0 0.0
        %2759 = vmatprep.subr.mxu0 0.0
        %2760 = vmatpush1.msra.mxu0 0.0
        %2761 = vmatprep.subr.mxu0 0.0
        %2762 = vmatpush1.msra.mxu0 0.0
        %2763 = vmatprep.subr.mxu0 0.0
        %2764 = vmatpush1.msra.mxu0 0.0
        %2765 = vmatprep.subr.mxu0 0.0
        %2766 = vmatpush1.msra.mxu0 0.0
        %2767 = vmatprep.subr.mxu0 0.0
        %2768 = vmatpush1.msra.mxu0 0.0
        %2769 = vmatprep.subr.mxu0 0.0
        %2770 = vmatpush1.msra.mxu0 0.0
        %2771 = vmatprep.subr.mxu0 0.0
        %2772 = vmatpush1.msra.mxu0 0.0
        %2773 = vmatprep.subr.mxu0 0.0
        %2774 = vmatpush1.msra.mxu0 0.0
        %2775 = vmatprep.subr.mxu0 0.0
        %2776 = vmatpush1.msra.mxu0 0.0
        %2777 = vmatprep.mubr.f32.mxu0 0.0
        %v2778 = vand.u32 %v1260, 4294901760
        %2779 = vmatmul.mubr.f32.gmra.mrb[0].mxu0 %v2778
        %v2780 = vpop.f32.mrb[0].mxu0
        %v2781 = vadd.f32 %v2690, %v2780
        %v2782 = vpop.f32.mrb[0].mxu0
        %2783 = vmatprep.mubr.f32.mxu0 0.0
        %v2784 = vand.u32 %v1263, 4294901760
        %2785 = vmatmul.mubr.f32.gmra.mrb[0].mxu0 %v2784
        %v2786 = vpop.f32.mrb[0].mxu0
        %v2787 = vadd.f32 %v2698, %v2786
        %v2788 = vpop.f32.mrb[0].mxu0
        %2789 = vdwg.mxu0
        %2790 = vmatprep.subr.mxu0 0.0
        %v2791 = vand.u32 %v2332, 4294901760
        %2792 = vmatpush1.msra.mxu0 %v2791
        %2793 = vmatprep.subr.mxu0 0.0
        %v2794 = vand.u32 %v2333, 4294901760
        %2795 = vmatpush1.msra.mxu0 %v2794
        %2796 = vmatprep.subr.mxu0 0.0
        %v2797 = vand.u32 %v2334, 4294901760
        %2798 = vmatpush1.msra.mxu0 %v2797
        %2799 = vmatprep.subr.mxu0 0.0
        %v2800 = vand.u32 %v2335, 4294901760
        %2801 = vmatpush1.msra.mxu0 %v2800
        %2802 = vmatprep.subr.mxu0 0.0
        %2803 = vmatpush1.msra.mxu0 0.0
        %2804 = vmatprep.subr.mxu0 0.0
        %2805 = vmatpush1.msra.mxu0 0.0
        %2806 = vmatprep.subr.mxu0 0.0
        %2807 = vmatpush1.msra.mxu0 0.0
        %2808 = vmatprep.subr.mxu0 0.0
        %2809 = vmatpush1.msra.mxu0 0.0
        %2810 = vmatprep.subr.mxu0 0.0
        %2811 = vmatpush1.msra.mxu0 0.0
        %2812 = vmatprep.subr.mxu0 0.0
        %2813 = vmatpush1.msra.mxu0 0.0
        %2814 = vmatprep.subr.mxu0 0.0
        %2815 = vmatpush1.msra.mxu0 0.0
        %2816 = vmatprep.subr.mxu0 0.0
        %2817 = vmatpush1.msra.mxu0 0.0
        %2818 = vmatprep.subr.mxu0 0.0
        %2819 = vmatpush1.msra.mxu0 0.0
        %2820 = vmatprep.subr.mxu0 0.0
        %2821 = vmatpush1.msra.mxu0 0.0
        %2822 = vmatprep.subr.mxu0 0.0
        %2823 = vmatpush1.msra.mxu0 0.0
        %2824 = vmatprep.subr.mxu0 0.0
        %2825 = vmatpush1.msra.mxu0 0.0
        %2826 = vmatprep.subr.mxu0 0.0
        %2827 = vmatpush1.msra.mxu0 0.0
        %2828 = vmatprep.subr.mxu0 0.0
        %2829 = vmatpush1.msra.mxu0 0.0
        %2830 = vmatprep.subr.mxu0 0.0
        %2831 = vmatpush1.msra.mxu0 0.0
        %2832 = vmatprep.subr.mxu0 0.0
        %2833 = vmatpush1.msra.mxu0 0.0
        %2834 = vmatprep.subr.mxu0 0.0
        %2835 = vmatpush1.msra.mxu0 0.0
        %2836 = vmatprep.subr.mxu0 0.0
        %2837 = vmatpush1.msra.mxu0 0.0
        %2838 = vmatprep.subr.mxu0 0.0
        %2839 = vmatpush1.msra.mxu0 0.0
        %2840 = vmatprep.subr.mxu0 0.0
        %2841 = vmatpush1.msra.mxu0 0.0
        %2842 = vmatprep.subr.mxu0 0.0
        %2843 = vmatpush1.msra.mxu0 0.0
        %2844 = vmatprep.subr.mxu0 0.0
        %2845 = vmatpush1.msra.mxu0 0.0
        %2846 = vmatprep.subr.mxu0 0.0
        %2847 = vmatpush1.msra.mxu0 0.0
        %2848 = vmatprep.subr.mxu0 0.0
        %2849 = vmatpush1.msra.mxu0 0.0
        %2850 = vmatprep.subr.mxu0 0.0
        %2851 = vmatpush1.msra.mxu0 0.0
        %2852 = vmatprep.subr.mxu0 0.0
        %2853 = vmatpush1.msra.mxu0 0.0
        %2854 = vmatprep.subr.mxu0 0.0
        %2855 = vmatpush1.msra.mxu0 0.0
        %2856 = vmatprep.subr.mxu0 0.0
        %2857 = vmatpush1.msra.mxu0 0.0
        %2858 = vmatprep.mubr.f32.mxu0 0.0
        %v2859 = vand.u32 %v1260, 4294901760
        %2860 = vmatmul.mubr.f32.gmra.mrb[0].mxu0 %v2859
        %v2861 = vpop.f32.mrb[0].mxu0
        %v2862 = vadd.f32 %v2781, %v2861
        %v2863 = vpop.f32.mrb[0].mxu0
        %2864 = vmatprep.mubr.f32.mxu0 0.0
        %v2865 = vand.u32 %v1263, 4294901760
        %2866 = vmatmul.mubr.f32.gmra.mrb[0].mxu0 %v2865
        %v2867 = vpop.f32.mrb[0].mxu0
        %v2868 = vadd.f32 %v2787, %v2867
        %v2869 = vpop.f32.mrb[0].mxu0
        %2870 = vdwg.mxu0
        %v2871 = vmax.f32 %v2862, 0.0
        %v2872 = vmax.f32 %v2868, 0.0
        %v2873 = vld [vmem:[%s709] sm:$0xf]
        %v2874 = vld [vmem:[%s709 + $0x4] sm:$0xf]
        %vm2875 = vcmp.ne.f32.partialorder %v2873, 0.0
        %vm2876 = vcmp.ne.f32.partialorder %v2874, 0.0
        %v2878 = vsel %vm736, %v1784, 0
        %v2881 = vsel %vm736, %v2323, 0
        %2883 = vmatprep.subr.mxu0 0.0
        %v2884 = vand.u32 %v2881, 4294901760
        %2885 = vmatpush1.xpose.msra.mxu0 %v2884
        %2886 = vmatprep.subr.mxu0 0.0
        %2887 = vmatpush1.xpose.msra.mxu0 0.0
        %2888 = vmatprep.subr.mxu0 0.0
        %2889 = vmatpush1.xpose.msra.mxu0 0.0
        %2890 = vmatprep.subr.mxu0 0.0
        %2891 = vmatpush1.xpose.msra.mxu0 0.0
        %2892 = vmatprep.subr.mxu0 0.0
        %2893 = vmatpush1.xpose.msra.mxu0 0.0
        %2894 = vmatprep.subr.mxu0 0.0
        %2895 = vmatpush1.xpose.msra.mxu0 0.0
        %2896 = vmatprep.subr.mxu0 0.0
        %2897 = vmatpush1.xpose.msra.mxu0 0.0
        %2898 = vmatprep.subr.mxu0 0.0
        %2899 = vmatpush1.xpose.msra.mxu0 0.0
        %2900 = vmatprep.subr.mxu0 0.0
        %2901 = vmatpush1.xpose.msra.mxu0 0.0
        %2902 = vmatprep.subr.mxu0 0.0
        %2903 = vmatpush1.xpose.msra.mxu0 0.0
        %2904 = vmatprep.subr.mxu0 0.0
        %2905 = vmatpush1.xpose.msra.mxu0 0.0
        %2906 = vmatprep.subr.mxu0 0.0
        %2907 = vmatpush1.xpose.msra.mxu0 0.0
        %2908 = vmatprep.subr.mxu0 0.0
        %2909 = vmatpush1.xpose.msra.mxu0 0.0
        %2910 = vmatprep.subr.mxu0 0.0
        %2911 = vmatpush1.xpose.msra.mxu0 0.0
        %2912 = vmatprep.subr.mxu0 0.0
        %2913 = vmatpush1.xpose.msra.mxu0 0.0
        %2914 = vmatprep.subr.mxu0 0.0
        %2915 = vmatpush1.xpose.msra.mxu0 0.0
        %2916 = vmatprep.subr.mxu0 0.0
        %2917 = vmatpush1.xpose.msra.mxu0 0.0
        %2918 = vmatprep.subr.mxu0 0.0
        %2919 = vmatpush1.xpose.msra.mxu0 0.0
        %2920 = vmatprep.subr.mxu0 0.0
        %2921 = vmatpush1.xpose.msra.mxu0 0.0
        %2922 = vmatprep.subr.mxu0 0.0
        %2923 = vmatpush1.xpose.msra.mxu0 0.0
        %2924 = vmatprep.subr.mxu0 0.0
        %2925 = vmatpush1.xpose.msra.mxu0 0.0
        %2926 = vmatprep.subr.mxu0 0.0
        %2927 = vmatpush1.xpose.msra.mxu0 0.0
        %2928 = vmatprep.subr.mxu0 0.0
        %2929 = vmatpush1.xpose.msra.mxu0 0.0
        %2930 = vmatprep.subr.mxu0 0.0
        %2931 = vmatpush1.xpose.msra.mxu0 0.0
        %2932 = vmatprep.subr.mxu0 0.0
        %2933 = vmatpush1.xpose.msra.mxu0 0.0
        %2934 = vmatprep.subr.mxu0 0.0
        %2935 = vmatpush1.xpose.msra.mxu0 0.0
        %2936 = vmatprep.subr.mxu0 0.0
        %2937 = vmatpush1.xpose.msra.mxu0 0.0
        %2938 = vmatprep.subr.mxu0 0.0
        %2939 = vmatpush1.xpose.msra.mxu0 0.0
        %2940 = vmatprep.subr.mxu0 0.0
        %2941 = vmatpush1.xpose.msra.mxu0 0.0
        %2942 = vmatprep.subr.mxu0 0.0
        %2943 = vmatpush1.xpose.msra.mxu0 0.0
        %2944 = vmatprep.subr.mxu0 0.0
        %2945 = vmatpush1.xpose.msra.mxu0 0.0
        %2946 = vmatprep.subr.mxu0 0.0
        %2947 = vmatpush1.xpose.msra.mxu0 0.0
        %2948 = vmatprep.mubr.f32.mxu0 0.0
        %v2949 = vand.u32 %v2878, 4294901760
        %v2950 = vsub.f32 %v2878, %v2949
        %v2951 = vand.u32 %v2950, 4294901760
        %v2952 = vsub.f32 %v2950, %v2951
        %v2953 = vand.u32 %v2952, 4294901760
        %2954 = vmatmul.mubr.f32.gmra.mrb[0].mxu0 %v2953
        %v2955 = vpop.f32.mrb[0].mxu0
        %v2956 = vadd.f32 0.0, %v2955
        %v2957 = vpop.f32.mrb[0].mxu0
        %2958 = vdwg.mxu0
        %2959 = vmatprep.subr.mxu0 0.0
        %v2960 = vand.u32 %v2881, 4294901760
        %v2961 = vsub.f32 %v2881, %v2960
        %v2962 = vand.u32 %v2961, 4294901760
        %v2963 = vsub.f32 %v2961, %v2962
        %v2964 = vand.u32 %v2963, 4294901760
        %2965 = vmatpush1.xpose.msra.mxu0 %v2964
        %2966 = vmatprep.subr.mxu0 0.0
        %2967 = vmatpush1.xpose.msra.mxu0 0.0
        %2968 = vmatprep.subr.mxu0 0.0
        %2969 = vmatpush1.xpose.msra.mxu0 0.0
        %2970 = vmatprep.subr.mxu0 0.0
        %2971 = vmatpush1.xpose.msra.mxu0 0.0
        %2972 = vmatprep.subr.mxu0 0.0
        %2973 = vmatpush1.xpose.msra.mxu0 0.0
        %2974 = vmatprep.subr.mxu0 0.0
        %2975 = vmatpush1.xpose.msra.mxu0 0.0
        %2976 = vmatprep.subr.mxu0 0.0
        %2977 = vmatpush1.xpose.msra.mxu0 0.0
        %2978 = vmatprep.subr.mxu0 0.0
        %2979 = vmatpush1.xpose.msra.mxu0 0.0
        %2980 = vmatprep.subr.mxu0 0.0
        %2981 = vmatpush1.xpose.msra.mxu0 0.0
        %2982 = vmatprep.subr.mxu0 0.0
        %2983 = vmatpush1.xpose.msra.mxu0 0.0
        %2984 = vmatprep.subr.mxu0 0.0
        %2985 = vmatpush1.xpose.msra.mxu0 0.0
        %2986 = vmatprep.subr.mxu0 0.0
        %2987 = vmatpush1.xpose.msra.mxu0 0.0
        %2988 = vmatprep.subr.mxu0 0.0
        %2989 = vmatpush1.xpose.msra.mxu0 0.0
        %2990 = vmatprep.subr.mxu0 0.0
        %2991 = vmatpush1.xpose.msra.mxu0 0.0
        %2992 = vmatprep.subr.mxu0 0.0
        %2993 = vmatpush1.xpose.msra.mxu0 0.0
        %2994 = vmatprep.subr.mxu0 0.0
        %2995 = vmatpush1.xpose.msra.mxu0 0.0
        %2996 = vmatprep.subr.mxu0 0.0
        %2997 = vmatpush1.xpose.msra.mxu0 0.0
        %2998 = vmatprep.subr.mxu0 0.0
        %2999 = vmatpush1.xpose.msra.mxu0 0.0
        %3000 = vmatprep.subr.mxu0 0.0
        %3001 = vmatpush1.xpose.msra.mxu0 0.0
        %3002 = vmatprep.subr.mxu0 0.0
        %3003 = vmatpush1.xpose.msra.mxu0 0.0
        %3004 = vmatprep.subr.mxu0 0.0
        %3005 = vmatpush1.xpose.msra.mxu0 0.0
        %3006 = vmatprep.subr.mxu0 0.0
        %3007 = vmatpush1.xpose.msra.mxu0 0.0
        %3008 = vmatprep.subr.mxu0 0.0
        %3009 = vmatpush1.xpose.msra.mxu0 0.0
        %3010 = vmatprep.subr.mxu0 0.0
        %3011 = vmatpush1.xpose.msra.mxu0 0.0
        %3012 = vmatprep.subr.mxu0 0.0
        %3013 = vmatpush1.xpose.msra.mxu0 0.0
        %3014 = vmatprep.subr.mxu0 0.0
        %3015 = vmatpush1.xpose.msra.mxu0 0.0
        %3016 = vmatprep.subr.mxu0 0.0
        %3017 = vmatpush1.xpose.msra.mxu0 0.0
        %3018 = vmatprep.subr.mxu0 0.0
        %3019 = vmatpush1.xpose.msra.mxu0 0.0
        %3020 = vmatprep.subr.mxu0 0.0
        %3021 = vmatpush1.xpose.msra.mxu0 0.0
        %3022 = vmatprep.subr.mxu0 0.0
        %3023 = vmatpush1.xpose.msra.mxu0 0.0
        %3024 = vmatprep.subr.mxu0 0.0
        %3025 = vmatpush1.xpose.msra.mxu0 0.0
        %3026 = vmatprep.subr.mxu0 0.0
        %3027 = vmatpush1.xpose.msra.mxu0 0.0
        %3028 = vmatprep.mubr.f32.mxu0 0.0
        %v3029 = vand.u32 %v2878, 4294901760
        %3030 = vmatmul.mubr.f32.gmra.mrb[0].mxu0 %v3029
        %v3031 = vpop.f32.mrb[0].mxu0
        %v3032 = vadd.f32 %v2956, %v3031
        %v3033 = vpop.f32.mrb[0].mxu0
        %3034 = vdwg.mxu0
        %3035 = vmatprep.subr.mxu0 0.0
        %v3036 = vand.u32 %v2881, 4294901760
        %v3037 = vsub.f32 %v2881, %v3036
        %3038 = vmatpush1.xpose.msra.mxu0 %v3037
        %3039 = vmatprep.subr.mxu0 0.0
        %3040 = vmatpush1.xpose.msra.mxu0 0.0
        %3041 = vmatprep.subr.mxu0 0.0
        %3042 = vmatpush1.xpose.msra.mxu0 0.0
        %3043 = vmatprep.subr.mxu0 0.0
        %3044 = vmatpush1.xpose.msra.mxu0 0.0
        %3045 = vmatprep.subr.mxu0 0.0
        %3046 = vmatpush1.xpose.msra.mxu0 0.0
        %3047 = vmatprep.subr.mxu0 0.0
        %3048 = vmatpush1.xpose.msra.mxu0 0.0
        %3049 = vmatprep.subr.mxu0 0.0
        %3050 = vmatpush1.xpose.msra.mxu0 0.0
        %3051 = vmatprep.subr.mxu0 0.0
        %3052 = vmatpush1.xpose.msra.mxu0 0.0
        %3053 = vmatprep.subr.mxu0 0.0
        %3054 = vmatpush1.xpose.msra.mxu0 0.0
        %3055 = vmatprep.subr.mxu0 0.0
        %3056 = vmatpush1.xpose.msra.mxu0 0.0
        %3057 = vmatprep.subr.mxu0 0.0
        %3058 = vmatpush1.xpose.msra.mxu0 0.0
        %3059 = vmatprep.subr.mxu0 0.0
        %3060 = vmatpush1.xpose.msra.mxu0 0.0
        %3061 = vmatprep.subr.mxu0 0.0
        %3062 = vmatpush1.xpose.msra.mxu0 0.0
        %3063 = vmatprep.subr.mxu0 0.0
        %3064 = vmatpush1.xpose.msra.mxu0 0.0
        %3065 = vmatprep.subr.mxu0 0.0
        %3066 = vmatpush1.xpose.msra.mxu0 0.0
        %3067 = vmatprep.subr.mxu0 0.0
        %3068 = vmatpush1.xpose.msra.mxu0 0.0
        %3069 = vmatprep.subr.mxu0 0.0
        %3070 = vmatpush1.xpose.msra.mxu0 0.0
        %3071 = vmatprep.subr.mxu0 0.0
        %3072 = vmatpush1.xpose.msra.mxu0 0.0
        %3073 = vmatprep.subr.mxu0 0.0
        %3074 = vmatpush1.xpose.msra.mxu0 0.0
        %3075 = vmatprep.subr.mxu0 0.0
        %3076 = vmatpush1.xpose.msra.mxu0 0.0
        %3077 = vmatprep.subr.mxu0 0.0
        %3078 = vmatpush1.xpose.msra.mxu0 0.0
        %3079 = vmatprep.subr.mxu0 0.0
        %3080 = vmatpush1.xpose.msra.mxu0 0.0
        %3081 = vmatprep.subr.mxu0 0.0
        %3082 = vmatpush1.xpose.msra.mxu0 0.0
        %3083 = vmatprep.subr.mxu0 0.0
        %3084 = vmatpush1.xpose.msra.mxu0 0.0
        %3085 = vmatprep.subr.mxu0 0.0
        %3086 = vmatpush1.xpose.msra.mxu0 0.0
        %3087 = vmatprep.subr.mxu0 0.0
        %3088 = vmatpush1.xpose.msra.mxu0 0.0
        %3089 = vmatprep.subr.mxu0 0.0
        %3090 = vmatpush1.xpose.msra.mxu0 0.0
        %3091 = vmatprep.subr.mxu0 0.0
        %3092 = vmatpush1.xpose.msra.mxu0 0.0
        %3093 = vmatprep.subr.mxu0 0.0
        %3094 = vmatpush1.xpose.msra.mxu0 0.0
        %3095 = vmatprep.subr.mxu0 0.0
        %3096 = vmatpush1.xpose.msra.mxu0 0.0
        %3097 = vmatprep.subr.mxu0 0.0
        %3098 = vmatpush1.xpose.msra.mxu0 0.0
        %3099 = vmatprep.subr.mxu0 0.0
        %3100 = vmatpush1.xpose.msra.mxu0 0.0
        %3101 = vmatprep.mubr.f32.mxu0 0.0
        %v3102 = vand.u32 %v2878, 4294901760
        %v3103 = vsub.f32 %v2878, %v3102
        %3104 = vmatmul.mubr.f32.gmra.mrb[0].mxu0 %v3103
        %v3105 = vpop.f32.mrb[0].mxu0
        %v3106 = vadd.f32 %v3032, %v3105
        %v3107 = vpop.f32.mrb[0].mxu0
        %3108 = vdwg.mxu0
        %3109 = vmatprep.subr.mxu0 0.0
        %v3110 = vand.u32 %v2881, 4294901760
        %3111 = vmatpush1.xpose.msra.mxu0 %v3110
        %3112 = vmatprep.subr.mxu0 0.0
        %3113 = vmatpush1.xpose.msra.mxu0 0.0
        %3114 = vmatprep.subr.mxu0 0.0
        %3115 = vmatpush1.xpose.msra.mxu0 0.0
        %3116 = vmatprep.subr.mxu0 0.0
        %3117 = vmatpush1.xpose.msra.mxu0 0.0
        %3118 = vmatprep.subr.mxu0 0.0
        %3119 = vmatpush1.xpose.msra.mxu0 0.0
        %3120 = vmatprep.subr.mxu0 0.0
        %3121 = vmatpush1.xpose.msra.mxu0 0.0
        %3122 = vmatprep.subr.mxu0 0.0
        %3123 = vmatpush1.xpose.msra.mxu0 0.0
        %3124 = vmatprep.subr.mxu0 0.0
        %3125 = vmatpush1.xpose.msra.mxu0 0.0
        %3126 = vmatprep.subr.mxu0 0.0
        %3127 = vmatpush1.xpose.msra.mxu0 0.0
        %3128 = vmatprep.subr.mxu0 0.0
        %3129 = vmatpush1.xpose.msra.mxu0 0.0
        %3130 = vmatprep.subr.mxu0 0.0
        %3131 = vmatpush1.xpose.msra.mxu0 0.0
        %3132 = vmatprep.subr.mxu0 0.0
        %3133 = vmatpush1.xpose.msra.mxu0 0.0
        %3134 = vmatprep.subr.mxu0 0.0
        %3135 = vmatpush1.xpose.msra.mxu0 0.0
        %3136 = vmatprep.subr.mxu0 0.0
        %3137 = vmatpush1.xpose.msra.mxu0 0.0
        %3138 = vmatprep.subr.mxu0 0.0
        %3139 = vmatpush1.xpose.msra.mxu0 0.0
        %3140 = vmatprep.subr.mxu0 0.0
        %3141 = vmatpush1.xpose.msra.mxu0 0.0
        %3142 = vmatprep.subr.mxu0 0.0
        %3143 = vmatpush1.xpose.msra.mxu0 0.0
        %3144 = vmatprep.subr.mxu0 0.0
        %3145 = vmatpush1.xpose.msra.mxu0 0.0
        %3146 = vmatprep.subr.mxu0 0.0
        %3147 = vmatpush1.xpose.msra.mxu0 0.0
        %3148 = vmatprep.subr.mxu0 0.0
        %3149 = vmatpush1.xpose.msra.mxu0 0.0
        %3150 = vmatprep.subr.mxu0 0.0
        %3151 = vmatpush1.xpose.msra.mxu0 0.0
        %3152 = vmatprep.subr.mxu0 0.0
        %3153 = vmatpush1.xpose.msra.mxu0 0.0
        %3154 = vmatprep.subr.mxu0 0.0
        %3155 = vmatpush1.xpose.msra.mxu0 0.0
        %3156 = vmatprep.subr.mxu0 0.0
        %3157 = vmatpush1.xpose.msra.mxu0 0.0
        %3158 = vmatprep.subr.mxu0 0.0
        %3159 = vmatpush1.xpose.msra.mxu0 0.0
        %3160 = vmatprep.subr.mxu0 0.0
        %3161 = vmatpush1.xpose.msra.mxu0 0.0
        %3162 = vmatprep.subr.mxu0 0.0
        %3163 = vmatpush1.xpose.msra.mxu0 0.0
        %3164 = vmatprep.subr.mxu0 0.0
        %3165 = vmatpush1.xpose.msra.mxu0 0.0
        %3166 = vmatprep.subr.mxu0 0.0
        %3167 = vmatpush1.xpose.msra.mxu0 0.0
        %3168 = vmatprep.subr.mxu0 0.0
        %3169 = vmatpush1.xpose.msra.mxu0 0.0
        %3170 = vmatprep.subr.mxu0 0.0
        %3171 = vmatpush1.xpose.msra.mxu0 0.0
        %3172 = vmatprep.subr.mxu0 0.0
        %3173 = vmatpush1.xpose.msra.mxu0 0.0
        %3174 = vmatprep.mubr.f32.mxu0 0.0
        %v3175 = vand.u32 %v2878, 4294901760
        %v3176 = vsub.f32 %v2878, %v3175
        %v3177 = vand.u32 %v3176, 4294901760
        %3178 = vmatmul.mubr.f32.gmra.mrb[0].mxu0 %v3177
        %v3179 = vpop.f32.mrb[0].mxu0
        %v3180 = vadd.f32 %v3106, %v3179
        %v3181 = vpop.f32.mrb[0].mxu0
        %3182 = vdwg.mxu0
        %3183 = vmatprep.subr.mxu0 0.0
        %v3184 = vand.u32 %v2881, 4294901760
        %v3185 = vsub.f32 %v2881, %v3184
        %v3186 = vand.u32 %v3185, 4294901760
        %3187 = vmatpush1.xpose.msra.mxu0 %v3186
        %3188 = vmatprep.subr.mxu0 0.0
        %3189 = vmatpush1.xpose.msra.mxu0 0.0
        %3190 = vmatprep.subr.mxu0 0.0
        %3191 = vmatpush1.xpose.msra.mxu0 0.0
        %3192 = vmatprep.subr.mxu0 0.0
        %3193 = vmatpush1.xpose.msra.mxu0 0.0
        %3194 = vmatprep.subr.mxu0 0.0
        %3195 = vmatpush1.xpose.msra.mxu0 0.0
        %3196 = vmatprep.subr.mxu0 0.0
        %3197 = vmatpush1.xpose.msra.mxu0 0.0
        %3198 = vmatprep.subr.mxu0 0.0
        %3199 = vmatpush1.xpose.msra.mxu0 0.0
        %3200 = vmatprep.subr.mxu0 0.0
        %3201 = vmatpush1.xpose.msra.mxu0 0.0
        %3202 = vmatprep.subr.mxu0 0.0
        %3203 = vmatpush1.xpose.msra.mxu0 0.0
        %3204 = vmatprep.subr.mxu0 0.0
        %3205 = vmatpush1.xpose.msra.mxu0 0.0
        %3206 = vmatprep.subr.mxu0 0.0
        %3207 = vmatpush1.xpose.msra.mxu0 0.0
        %3208 = vmatprep.subr.mxu0 0.0
        %3209 = vmatpush1.xpose.msra.mxu0 0.0
        %3210 = vmatprep.subr.mxu0 0.0
        %3211 = vmatpush1.xpose.msra.mxu0 0.0
        %3212 = vmatprep.subr.mxu0 0.0
        %3213 = vmatpush1.xpose.msra.mxu0 0.0
        %3214 = vmatprep.subr.mxu0 0.0
        %3215 = vmatpush1.xpose.msra.mxu0 0.0
        %3216 = vmatprep.subr.mxu0 0.0
        %3217 = vmatpush1.xpose.msra.mxu0 0.0
        %3218 = vmatprep.subr.mxu0 0.0
        %3219 = vmatpush1.xpose.msra.mxu0 0.0
        %3220 = vmatprep.subr.mxu0 0.0
        %3221 = vmatpush1.xpose.msra.mxu0 0.0
        %3222 = vmatprep.subr.mxu0 0.0
        %3223 = vmatpush1.xpose.msra.mxu0 0.0
        %3224 = vmatprep.subr.mxu0 0.0
        %3225 = vmatpush1.xpose.msra.mxu0 0.0
        %3226 = vmatprep.subr.mxu0 0.0
        %3227 = vmatpush1.xpose.msra.mxu0 0.0
        %3228 = vmatprep.subr.mxu0 0.0
        %3229 = vmatpush1.xpose.msra.mxu0 0.0
        %3230 = vmatprep.subr.mxu0 0.0
        %3231 = vmatpush1.xpose.msra.mxu0 0.0
        %3232 = vmatprep.subr.mxu0 0.0
        %3233 = vmatpush1.xpose.msra.mxu0 0.0
        %3234 = vmatprep.subr.mxu0 0.0
        %3235 = vmatpush1.xpose.msra.mxu0 0.0
        %3236 = vmatprep.subr.mxu0 0.0
        %3237 = vmatpush1.xpose.msra.mxu0 0.0
        %3238 = vmatprep.subr.mxu0 0.0
        %3239 = vmatpush1.xpose.msra.mxu0 0.0
        %3240 = vmatprep.subr.mxu0 0.0
        %3241 = vmatpush1.xpose.msra.mxu0 0.0
        %3242 = vmatprep.subr.mxu0 0.0
        %3243 = vmatpush1.xpose.msra.mxu0 0.0
        %3244 = vmatprep.subr.mxu0 0.0
        %3245 = vmatpush1.xpose.msra.mxu0 0.0
        %3246 = vmatprep.subr.mxu0 0.0
        %3247 = vmatpush1.xpose.msra.mxu0 0.0
        %3248 = vmatprep.subr.mxu0 0.0
        %3249 = vmatpush1.xpose.msra.mxu0 0.0
        %3250 = vmatprep.mubr.f32.mxu0 0.0
        %v3251 = vand.u32 %v2878, 4294901760
        %3252 = vmatmul.mubr.f32.gmra.mrb[0].mxu0 %v3251
        %v3253 = vpop.f32.mrb[0].mxu0
        %v3254 = vadd.f32 %v3180, %v3253
        %v3255 = vpop.f32.mrb[0].mxu0
        %3256 = vdwg.mxu0
        %3257 = vmatprep.subr.mxu0 0.0
        %v3258 = vand.u32 %v2881, 4294901760
        %3259 = vmatpush1.xpose.msra.mxu0 %v3258
        %3260 = vmatprep.subr.mxu0 0.0
        %3261 = vmatpush1.xpose.msra.mxu0 0.0
        %3262 = vmatprep.subr.mxu0 0.0
        %3263 = vmatpush1.xpose.msra.mxu0 0.0
        %3264 = vmatprep.subr.mxu0 0.0
        %3265 = vmatpush1.xpose.msra.mxu0 0.0
        %3266 = vmatprep.subr.mxu0 0.0
        %3267 = vmatpush1.xpose.msra.mxu0 0.0
        %3268 = vmatprep.subr.mxu0 0.0
        %3269 = vmatpush1.xpose.msra.mxu0 0.0
        %3270 = vmatprep.subr.mxu0 0.0
        %3271 = vmatpush1.xpose.msra.mxu0 0.0
        %3272 = vmatprep.subr.mxu0 0.0
        %3273 = vmatpush1.xpose.msra.mxu0 0.0
        %3274 = vmatprep.subr.mxu0 0.0
        %3275 = vmatpush1.xpose.msra.mxu0 0.0
        %3276 = vmatprep.subr.mxu0 0.0
        %3277 = vmatpush1.xpose.msra.mxu0 0.0
        %3278 = vmatprep.subr.mxu0 0.0
        %3279 = vmatpush1.xpose.msra.mxu0 0.0
        %3280 = vmatprep.subr.mxu0 0.0
        %3281 = vmatpush1.xpose.msra.mxu0 0.0
        %3282 = vmatprep.subr.mxu0 0.0
        %3283 = vmatpush1.xpose.msra.mxu0 0.0
        %3284 = vmatprep.subr.mxu0 0.0
        %3285 = vmatpush1.xpose.msra.mxu0 0.0
        %3286 = vmatprep.subr.mxu0 0.0
        %3287 = vmatpush1.xpose.msra.mxu0 0.0
        %3288 = vmatprep.subr.mxu0 0.0
        %3289 = vmatpush1.xpose.msra.mxu0 0.0
        %3290 = vmatprep.subr.mxu0 0.0
        %3291 = vmatpush1.xpose.msra.mxu0 0.0
        %3292 = vmatprep.subr.mxu0 0.0
        %3293 = vmatpush1.xpose.msra.mxu0 0.0
        %3294 = vmatprep.subr.mxu0 0.0
        %3295 = vmatpush1.xpose.msra.mxu0 0.0
        %3296 = vmatprep.subr.mxu0 0.0
        %3297 = vmatpush1.xpose.msra.mxu0 0.0
        %3298 = vmatprep.subr.mxu0 0.0
        %3299 = vmatpush1.xpose.msra.mxu0 0.0
        %3300 = vmatprep.subr.mxu0 0.0
        %3301 = vmatpush1.xpose.msra.mxu0 0.0
        %3302 = vmatprep.subr.mxu0 0.0
        %3303 = vmatpush1.xpose.msra.mxu0 0.0
        %3304 = vmatprep.subr.mxu0 0.0
        %3305 = vmatpush1.xpose.msra.mxu0 0.0
        %3306 = vmatprep.subr.mxu0 0.0
        %3307 = vmatpush1.xpose.msra.mxu0 0.0
        %3308 = vmatprep.subr.mxu0 0.0
        %3309 = vmatpush1.xpose.msra.mxu0 0.0
        %3310 = vmatprep.subr.mxu0 0.0
        %3311 = vmatpush1.xpose.msra.mxu0 0.0
        %3312 = vmatprep.subr.mxu0 0.0
        %3313 = vmatpush1.xpose.msra.mxu0 0.0
        %3314 = vmatprep.subr.mxu0 0.0
        %3315 = vmatpush1.xpose.msra.mxu0 0.0
        %3316 = vmatprep.subr.mxu0 0.0
        %3317 = vmatpush1.xpose.msra.mxu0 0.0
        %3318 = vmatprep.subr.mxu0 0.0
        %3319 = vmatpush1.xpose.msra.mxu0 0.0
        %3320 = vmatprep.subr.mxu0 0.0
        %3321 = vmatpush1.xpose.msra.mxu0 0.0
        %3322 = vmatprep.mubr.f32.mxu0 0.0
        %v3323 = vand.u32 %v2878, 4294901760
        %3324 = vmatmul.mubr.f32.gmra.mrb[0].mxu0 %v3323
        %v3325 = vpop.f32.mrb[0].mxu0
        %v3326 = vadd.f32 %v3254, %v3325
        %v3327 = vpop.f32.mrb[0].mxu0
        %3328 = vdwg.mxu0
        %v3330 = vsel %vm736, %v1790, 0
        %v3333 = vsel %vm736, %v2329, 0
        %3335 = vmatprep.subr.mxu0 0.0
        %v3336 = vand.u32 %v3333, 4294901760
        %3337 = vmatpush1.xpose.msra.mxu0 %v3336
        %3338 = vmatprep.subr.mxu0 0.0
        %3339 = vmatpush1.xpose.msra.mxu0 0.0
        %3340 = vmatprep.subr.mxu0 0.0
        %3341 = vmatpush1.xpose.msra.mxu0 0.0
        %3342 = vmatprep.subr.mxu0 0.0
        %3343 = vmatpush1.xpose.msra.mxu0 0.0
        %3344 = vmatprep.subr.mxu0 0.0
        %3345 = vmatpush1.xpose.msra.mxu0 0.0
        %3346 = vmatprep.subr.mxu0 0.0
        %3347 = vmatpush1.xpose.msra.mxu0 0.0
        %3348 = vmatprep.subr.mxu0 0.0
        %3349 = vmatpush1.xpose.msra.mxu0 0.0
        %3350 = vmatprep.subr.mxu0 0.0
        %3351 = vmatpush1.xpose.msra.mxu0 0.0
        %3352 = vmatprep.subr.mxu0 0.0
        %3353 = vmatpush1.xpose.msra.mxu0 0.0
        %3354 = vmatprep.subr.mxu0 0.0
        %3355 = vmatpush1.xpose.msra.mxu0 0.0
        %3356 = vmatprep.subr.mxu0 0.0
        %3357 = vmatpush1.xpose.msra.mxu0 0.0
        %3358 = vmatprep.subr.mxu0 0.0
        %3359 = vmatpush1.xpose.msra.mxu0 0.0
        %3360 = vmatprep.subr.mxu0 0.0
        %3361 = vmatpush1.xpose.msra.mxu0 0.0
        %3362 = vmatprep.subr.mxu0 0.0
        %3363 = vmatpush1.xpose.msra.mxu0 0.0
        %3364 = vmatprep.subr.mxu0 0.0
        %3365 = vmatpush1.xpose.msra.mxu0 0.0
        %3366 = vmatprep.subr.mxu0 0.0
        %3367 = vmatpush1.xpose.msra.mxu0 0.0
        %3368 = vmatprep.subr.mxu0 0.0
        %3369 = vmatpush1.xpose.msra.mxu0 0.0
        %3370 = vmatprep.subr.mxu0 0.0
        %3371 = vmatpush1.xpose.msra.mxu0 0.0
        %3372 = vmatprep.subr.mxu0 0.0
        %3373 = vmatpush1.xpose.msra.mxu0 0.0
        %3374 = vmatprep.subr.mxu0 0.0
        %3375 = vmatpush1.xpose.msra.mxu0 0.0
        %3376 = vmatprep.subr.mxu0 0.0
        %3377 = vmatpush1.xpose.msra.mxu0 0.0
        %3378 = vmatprep.subr.mxu0 0.0
        %3379 = vmatpush1.xpose.msra.mxu0 0.0
        %3380 = vmatprep.subr.mxu0 0.0
        %3381 = vmatpush1.xpose.msra.mxu0 0.0
        %3382 = vmatprep.subr.mxu0 0.0
        %3383 = vmatpush1.xpose.msra.mxu0 0.0
        %3384 = vmatprep.subr.mxu0 0.0
        %3385 = vmatpush1.xpose.msra.mxu0 0.0
        %3386 = vmatprep.subr.mxu0 0.0
        %3387 = vmatpush1.xpose.msra.mxu0 0.0
        %3388 = vmatprep.subr.mxu0 0.0
        %3389 = vmatpush1.xpose.msra.mxu0 0.0
        %3390 = vmatprep.subr.mxu0 0.0
        %3391 = vmatpush1.xpose.msra.mxu0 0.0
        %3392 = vmatprep.subr.mxu0 0.0
        %3393 = vmatpush1.xpose.msra.mxu0 0.0
        %3394 = vmatprep.subr.mxu0 0.0
        %3395 = vmatpush1.xpose.msra.mxu0 0.0
        %3396 = vmatprep.subr.mxu0 0.0
        %3397 = vmatpush1.xpose.msra.mxu0 0.0
        %3398 = vmatprep.subr.mxu0 0.0
        %3399 = vmatpush1.xpose.msra.mxu0 0.0
        %3400 = vmatprep.mubr.f32.mxu0 0.0
        %v3401 = vand.u32 %v3330, 4294901760
        %v3402 = vsub.f32 %v3330, %v3401
        %v3403 = vand.u32 %v3402, 4294901760
        %v3404 = vsub.f32 %v3402, %v3403
        %v3405 = vand.u32 %v3404, 4294901760
        %3406 = vmatmul.mubr.f32.gmra.mrb[0].mxu0 %v3405
        %v3407 = vpop.f32.mrb[0].mxu0
        %v3408 = vadd.f32 0.0, %v3407
        %v3409 = vpop.f32.mrb[0].mxu0
        %3410 = vdwg.mxu0
        %3411 = vmatprep.subr.mxu0 0.0
        %v3412 = vand.u32 %v3333, 4294901760
        %v3413 = vsub.f32 %v3333, %v3412
        %v3414 = vand.u32 %v3413, 4294901760
        %v3415 = vsub.f32 %v3413, %v3414
        %v3416 = vand.u32 %v3415, 4294901760
        %3417 = vmatpush1.xpose.msra.mxu0 %v3416
        %3418 = vmatprep.subr.mxu0 0.0
        %3419 = vmatpush1.xpose.msra.mxu0 0.0
        %3420 = vmatprep.subr.mxu0 0.0
        %3421 = vmatpush1.xpose.msra.mxu0 0.0
        %3422 = vmatprep.subr.mxu0 0.0
        %3423 = vmatpush1.xpose.msra.mxu0 0.0
        %3424 = vmatprep.subr.mxu0 0.0
        %3425 = vmatpush1.xpose.msra.mxu0 0.0
        %3426 = vmatprep.subr.mxu0 0.0
        %3427 = vmatpush1.xpose.msra.mxu0 0.0
        %3428 = vmatprep.subr.mxu0 0.0
        %3429 = vmatpush1.xpose.msra.mxu0 0.0
        %3430 = vmatprep.subr.mxu0 0.0
        %3431 = vmatpush1.xpose.msra.mxu0 0.0
        %3432 = vmatprep.subr.mxu0 0.0
        %3433 = vmatpush1.xpose.msra.mxu0 0.0
        %3434 = vmatprep.subr.mxu0 0.0
        %3435 = vmatpush1.xpose.msra.mxu0 0.0
        %3436 = vmatprep.subr.mxu0 0.0
        %3437 = vmatpush1.xpose.msra.mxu0 0.0
        %3438 = vmatprep.subr.mxu0 0.0
        %3439 = vmatpush1.xpose.msra.mxu0 0.0
        %3440 = vmatprep.subr.mxu0 0.0
        %3441 = vmatpush1.xpose.msra.mxu0 0.0
        %3442 = vmatprep.subr.mxu0 0.0
        %3443 = vmatpush1.xpose.msra.mxu0 0.0
        %3444 = vmatprep.subr.mxu0 0.0
        %3445 = vmatpush1.xpose.msra.mxu0 0.0
        %3446 = vmatprep.subr.mxu0 0.0
        %3447 = vmatpush1.xpose.msra.mxu0 0.0
        %3448 = vmatprep.subr.mxu0 0.0
        %3449 = vmatpush1.xpose.msra.mxu0 0.0
        %3450 = vmatprep.subr.mxu0 0.0
        %3451 = vmatpush1.xpose.msra.mxu0 0.0
        %3452 = vmatprep.subr.mxu0 0.0
        %3453 = vmatpush1.xpose.msra.mxu0 0.0
        %3454 = vmatprep.subr.mxu0 0.0
        %3455 = vmatpush1.xpose.msra.mxu0 0.0
        %3456 = vmatprep.subr.mxu0 0.0
        %3457 = vmatpush1.xpose.msra.mxu0 0.0
        %3458 = vmatprep.subr.mxu0 0.0
        %3459 = vmatpush1.xpose.msra.mxu0 0.0
        %3460 = vmatprep.subr.mxu0 0.0
        %3461 = vmatpush1.xpose.msra.mxu0 0.0
        %3462 = vmatprep.subr.mxu0 0.0
        %3463 = vmatpush1.xpose.msra.mxu0 0.0
        %3464 = vmatprep.subr.mxu0 0.0
        %3465 = vmatpush1.xpose.msra.mxu0 0.0
        %3466 = vmatprep.subr.mxu0 0.0
        %3467 = vmatpush1.xpose.msra.mxu0 0.0
        %3468 = vmatprep.subr.mxu0 0.0
        %3469 = vmatpush1.xpose.msra.mxu0 0.0
        %3470 = vmatprep.subr.mxu0 0.0
        %3471 = vmatpush1.xpose.msra.mxu0 0.0
        %3472 = vmatprep.subr.mxu0 0.0
        %3473 = vmatpush1.xpose.msra.mxu0 0.0
        %3474 = vmatprep.subr.mxu0 0.0
        %3475 = vmatpush1.xpose.msra.mxu0 0.0
        %3476 = vmatprep.subr.mxu0 0.0
        %3477 = vmatpush1.xpose.msra.mxu0 0.0
        %3478 = vmatprep.subr.mxu0 0.0
        %3479 = vmatpush1.xpose.msra.mxu0 0.0
        %3480 = vmatprep.mubr.f32.mxu0 0.0
        %v3481 = vand.u32 %v3330, 4294901760
        %3482 = vmatmul.mubr.f32.gmra.mrb[0].mxu0 %v3481
        %v3483 = vpop.f32.mrb[0].mxu0
        %v3484 = vadd.f32 %v3408, %v3483
        %v3485 = vpop.f32.mrb[0].mxu0
        %3486 = vdwg.mxu0
        %3487 = vmatprep.subr.mxu0 0.0
        %v3488 = vand.u32 %v3333, 4294901760
        %v3489 = vsub.f32 %v3333, %v3488
        %3490 = vmatpush1.xpose.msra.mxu0 %v3489
        %3491 = vmatprep.subr.mxu0 0.0
        %3492 = vmatpush1.xpose.msra.mxu0 0.0
        %3493 = vmatprep.subr.mxu0 0.0
        %3494 = vmatpush1.xpose.msra.mxu0 0.0
        %3495 = vmatprep.subr.mxu0 0.0
        %3496 = vmatpush1.xpose.msra.mxu0 0.0
        %3497 = vmatprep.subr.mxu0 0.0
        %3498 = vmatpush1.xpose.msra.mxu0 0.0
        %3499 = vmatprep.subr.mxu0 0.0
        %3500 = vmatpush1.xpose.msra.mxu0 0.0
        %3501 = vmatprep.subr.mxu0 0.0
        %3502 = vmatpush1.xpose.msra.mxu0 0.0
        %3503 = vmatprep.subr.mxu0 0.0
        %3504 = vmatpush1.xpose.msra.mxu0 0.0
        %3505 = vmatprep.subr.mxu0 0.0
        %3506 = vmatpush1.xpose.msra.mxu0 0.0
        %3507 = vmatprep.subr.mxu0 0.0
        %3508 = vmatpush1.xpose.msra.mxu0 0.0
        %3509 = vmatprep.subr.mxu0 0.0
        %3510 = vmatpush1.xpose.msra.mxu0 0.0
        %3511 = vmatprep.subr.mxu0 0.0
        %3512 = vmatpush1.xpose.msra.mxu0 0.0
        %3513 = vmatprep.subr.mxu0 0.0
        %3514 = vmatpush1.xpose.msra.mxu0 0.0
        %3515 = vmatprep.subr.mxu0 0.0
        %3516 = vmatpush1.xpose.msra.mxu0 0.0
        %3517 = vmatprep.subr.mxu0 0.0
        %3518 = vmatpush1.xpose.msra.mxu0 0.0
        %3519 = vmatprep.subr.mxu0 0.0
        %3520 = vmatpush1.xpose.msra.mxu0 0.0
        %3521 = vmatprep.subr.mxu0 0.0
        %3522 = vmatpush1.xpose.msra.mxu0 0.0
        %3523 = vmatprep.subr.mxu0 0.0
        %3524 = vmatpush1.xpose.msra.mxu0 0.0
        %3525 = vmatprep.subr.mxu0 0.0
        %3526 = vmatpush1.xpose.msra.mxu0 0.0
        %3527 = vmatprep.subr.mxu0 0.0
        %3528 = vmatpush1.xpose.msra.mxu0 0.0
        %3529 = vmatprep.subr.mxu0 0.0
        %3530 = vmatpush1.xpose.msra.mxu0 0.0
        %3531 = vmatprep.subr.mxu0 0.0
        %3532 = vmatpush1.xpose.msra.mxu0 0.0
        %3533 = vmatprep.subr.mxu0 0.0
        %3534 = vmatpush1.xpose.msra.mxu0 0.0
        %3535 = vmatprep.subr.mxu0 0.0
        %3536 = vmatpush1.xpose.msra.mxu0 0.0
        %3537 = vmatprep.subr.mxu0 0.0
        %3538 = vmatpush1.xpose.msra.mxu0 0.0
        %3539 = vmatprep.subr.mxu0 0.0
        %3540 = vmatpush1.xpose.msra.mxu0 0.0
        %3541 = vmatprep.subr.mxu0 0.0
        %3542 = vmatpush1.xpose.msra.mxu0 0.0
        %3543 = vmatprep.subr.mxu0 0.0
        %3544 = vmatpush1.xpose.msra.mxu0 0.0
        %3545 = vmatprep.subr.mxu0 0.0
        %3546 = vmatpush1.xpose.msra.mxu0 0.0
        %3547 = vmatprep.subr.mxu0 0.0
        %3548 = vmatpush1.xpose.msra.mxu0 0.0
        %3549 = vmatprep.subr.mxu0 0.0
        %3550 = vmatpush1.xpose.msra.mxu0 0.0
        %3551 = vmatprep.subr.mxu0 0.0
        %3552 = vmatpush1.xpose.msra.mxu0 0.0
        %3553 = vmatprep.mubr.f32.mxu0 0.0
        %v3554 = vand.u32 %v3330, 4294901760
        %v3555 = vsub.f32 %v3330, %v3554
        %3556 = vmatmul.mubr.f32.gmra.mrb[0].mxu0 %v3555
        %v3557 = vpop.f32.mrb[0].mxu0
        %v3558 = vadd.f32 %v3484, %v3557
        %v3559 = vpop.f32.mrb[0].mxu0
        %3560 = vdwg.mxu0
        %3561 = vmatprep.subr.mxu0 0.0
        %v3562 = vand.u32 %v3333, 4294901760
        %3563 = vmatpush1.xpose.msra.mxu0 %v3562
        %3564 = vmatprep.subr.mxu0 0.0
        %3565 = vmatpush1.xpose.msra.mxu0 0.0
        %3566 = vmatprep.subr.mxu0 0.0
        %3567 = vmatpush1.xpose.msra.mxu0 0.0
        %3568 = vmatprep.subr.mxu0 0.0
        %3569 = vmatpush1.xpose.msra.mxu0 0.0
        %3570 = vmatprep.subr.mxu0 0.0
        %3571 = vmatpush1.xpose.msra.mxu0 0.0
        %3572 = vmatprep.subr.mxu0 0.0
        %3573 = vmatpush1.xpose.msra.mxu0 0.0
        %3574 = vmatprep.subr.mxu0 0.0
        %3575 = vmatpush1.xpose.msra.mxu0 0.0
        %3576 = vmatprep.subr.mxu0 0.0
        %3577 = vmatpush1.xpose.msra.mxu0 0.0
        %3578 = vmatprep.subr.mxu0 0.0
        %3579 = vmatpush1.xpose.msra.mxu0 0.0
        %3580 = vmatprep.subr.mxu0 0.0
        %3581 = vmatpush1.xpose.msra.mxu0 0.0
        %3582 = vmatprep.subr.mxu0 0.0
        %3583 = vmatpush1.xpose.msra.mxu0 0.0
        %3584 = vmatprep.subr.mxu0 0.0
        %3585 = vmatpush1.xpose.msra.mxu0 0.0
        %3586 = vmatprep.subr.mxu0 0.0
        %3587 = vmatpush1.xpose.msra.mxu0 0.0
        %3588 = vmatprep.subr.mxu0 0.0
        %3589 = vmatpush1.xpose.msra.mxu0 0.0
        %3590 = vmatprep.subr.mxu0 0.0
        %3591 = vmatpush1.xpose.msra.mxu0 0.0
        %3592 = vmatprep.subr.mxu0 0.0
        %3593 = vmatpush1.xpose.msra.mxu0 0.0
        %3594 = vmatprep.subr.mxu0 0.0
        %3595 = vmatpush1.xpose.msra.mxu0 0.0
        %3596 = vmatprep.subr.mxu0 0.0
        %3597 = vmatpush1.xpose.msra.mxu0 0.0
        %3598 = vmatprep.subr.mxu0 0.0
        %3599 = vmatpush1.xpose.msra.mxu0 0.0
        %3600 = vmatprep.subr.mxu0 0.0
        %3601 = vmatpush1.xpose.msra.mxu0 0.0
        %3602 = vmatprep.subr.mxu0 0.0
        %3603 = vmatpush1.xpose.msra.mxu0 0.0
        %3604 = vmatprep.subr.mxu0 0.0
        %3605 = vmatpush1.xpose.msra.mxu0 0.0
        %3606 = vmatprep.subr.mxu0 0.0
        %3607 = vmatpush1.xpose.msra.mxu0 0.0
        %3608 = vmatprep.subr.mxu0 0.0
        %3609 = vmatpush1.xpose.msra.mxu0 0.0
        %3610 = vmatprep.subr.mxu0 0.0
        %3611 = vmatpush1.xpose.msra.mxu0 0.0
        %3612 = vmatprep.subr.mxu0 0.0
        %3613 = vmatpush1.xpose.msra.mxu0 0.0
        %3614 = vmatprep.subr.mxu0 0.0
        %3615 = vmatpush1.xpose.msra.mxu0 0.0
        %3616 = vmatprep.subr.mxu0 0.0
        %3617 = vmatpush1.xpose.msra.mxu0 0.0
        %3618 = vmatprep.subr.mxu0 0.0
        %3619 = vmatpush1.xpose.msra.mxu0 0.0
        %3620 = vmatprep.subr.mxu0 0.0
        %3621 = vmatpush1.xpose.msra.mxu0 0.0
        %3622 = vmatprep.subr.mxu0 0.0
        %3623 = vmatpush1.xpose.msra.mxu0 0.0
        %3624 = vmatprep.subr.mxu0 0.0
        %3625 = vmatpush1.xpose.msra.mxu0 0.0
        %3626 = vmatprep.mubr.f32.mxu0 0.0
        %v3627 = vand.u32 %v3330, 4294901760
        %v3628 = vsub.f32 %v3330, %v3627
        %v3629 = vand.u32 %v3628, 4294901760
        %3630 = vmatmul.mubr.f32.gmra.mrb[0].mxu0 %v3629
        %v3631 = vpop.f32.mrb[0].mxu0
        %v3632 = vadd.f32 %v3558, %v3631
        %v3633 = vpop.f32.mrb[0].mxu0
        %3634 = vdwg.mxu0
        %3635 = vmatprep.subr.mxu0 0.0
        %v3636 = vand.u32 %v3333, 4294901760
        %v3637 = vsub.f32 %v3333, %v3636
        %v3638 = vand.u32 %v3637, 4294901760
        %3639 = vmatpush1.xpose.msra.mxu0 %v3638
        %3640 = vmatprep.subr.mxu0 0.0
        %3641 = vmatpush1.xpose.msra.mxu0 0.0
        %3642 = vmatprep.subr.mxu0 0.0
        %3643 = vmatpush1.xpose.msra.mxu0 0.0
        %3644 = vmatprep.subr.mxu0 0.0
        %3645 = vmatpush1.xpose.msra.mxu0 0.0
        %3646 = vmatprep.subr.mxu0 0.0
        %3647 = vmatpush1.xpose.msra.mxu0 0.0
        %3648 = vmatprep.subr.mxu0 0.0
        %3649 = vmatpush1.xpose.msra.mxu0 0.0
        %3650 = vmatprep.subr.mxu0 0.0
        %3651 = vmatpush1.xpose.msra.mxu0 0.0
        %3652 = vmatprep.subr.mxu0 0.0
        %3653 = vmatpush1.xpose.msra.mxu0 0.0
        %3654 = vmatprep.subr.mxu0 0.0
        %3655 = vmatpush1.xpose.msra.mxu0 0.0
        %3656 = vmatprep.subr.mxu0 0.0
        %3657 = vmatpush1.xpose.msra.mxu0 0.0
        %3658 = vmatprep.subr.mxu0 0.0
        %3659 = vmatpush1.xpose.msra.mxu0 0.0
        %3660 = vmatprep.subr.mxu0 0.0
        %3661 = vmatpush1.xpose.msra.mxu0 0.0
        %3662 = vmatprep.subr.mxu0 0.0
        %3663 = vmatpush1.xpose.msra.mxu0 0.0
        %3664 = vmatprep.subr.mxu0 0.0
        %3665 = vmatpush1.xpose.msra.mxu0 0.0
        %3666 = vmatprep.subr.mxu0 0.0
        %3667 = vmatpush1.xpose.msra.mxu0 0.0
        %3668 = vmatprep.subr.mxu0 0.0
        %3669 = vmatpush1.xpose.msra.mxu0 0.0
        %3670 = vmatprep.subr.mxu0 0.0
        %3671 = vmatpush1.xpose.msra.mxu0 0.0
        %3672 = vmatprep.subr.mxu0 0.0
        %3673 = vmatpush1.xpose.msra.mxu0 0.0
        %3674 = vmatprep.subr.mxu0 0.0
        %3675 = vmatpush1.xpose.msra.mxu0 0.0
        %3676 = vmatprep.subr.mxu0 0.0
        %3677 = vmatpush1.xpose.msra.mxu0 0.0
        %3678 = vmatprep.subr.mxu0 0.0
        %3679 = vmatpush1.xpose.msra.mxu0 0.0
        %3680 = vmatprep.subr.mxu0 0.0
        %3681 = vmatpush1.xpose.msra.mxu0 0.0
        %3682 = vmatprep.subr.mxu0 0.0
        %3683 = vmatpush1.xpose.msra.mxu0 0.0
        %3684 = vmatprep.subr.mxu0 0.0
        %3685 = vmatpush1.xpose.msra.mxu0 0.0
        %3686 = vmatprep.subr.mxu0 0.0
        %3687 = vmatpush1.xpose.msra.mxu0 0.0
        %3688 = vmatprep.subr.mxu0 0.0
        %3689 = vmatpush1.xpose.msra.mxu0 0.0
        %3690 = vmatprep.subr.mxu0 0.0
        %3691 = vmatpush1.xpose.msra.mxu0 0.0
        %3692 = vmatprep.subr.mxu0 0.0
        %3693 = vmatpush1.xpose.msra.mxu0 0.0
        %3694 = vmatprep.subr.mxu0 0.0
        %3695 = vmatpush1.xpose.msra.mxu0 0.0
        %3696 = vmatprep.subr.mxu0 0.0
        %3697 = vmatpush1.xpose.msra.mxu0 0.0
        %3698 = vmatprep.subr.mxu0 0.0
        %3699 = vmatpush1.xpose.msra.mxu0 0.0
        %3700 = vmatprep.subr.mxu0 0.0
        %3701 = vmatpush1.xpose.msra.mxu0 0.0
        %3702 = vmatprep.mubr.f32.mxu0 0.0
        %v3703 = vand.u32 %v3330, 4294901760
        %3704 = vmatmul.mubr.f32.gmra.mrb[0].mxu0 %v3703
        %v3705 = vpop.f32.mrb[0].mxu0
        %v3706 = vadd.f32 %v3632, %v3705
        %v3707 = vpop.f32.mrb[0].mxu0
        %3708 = vdwg.mxu0
        %3709 = vmatprep.subr.mxu0 0.0
        %v3710 = vand.u32 %v3333, 4294901760
        %3711 = vmatpush1.xpose.msra.mxu0 %v3710
        %3712 = vmatprep.subr.mxu0 0.0
        %3713 = vmatpush1.xpose.msra.mxu0 0.0
        %3714 = vmatprep.subr.mxu0 0.0
        %3715 = vmatpush1.xpose.msra.mxu0 0.0
        %3716 = vmatprep.subr.mxu0 0.0
        %3717 = vmatpush1.xpose.msra.mxu0 0.0
        %3718 = vmatprep.subr.mxu0 0.0
        %3719 = vmatpush1.xpose.msra.mxu0 0.0
        %3720 = vmatprep.subr.mxu0 0.0
        %3721 = vmatpush1.xpose.msra.mxu0 0.0
        %3722 = vmatprep.subr.mxu0 0.0
        %3723 = vmatpush1.xpose.msra.mxu0 0.0
        %3724 = vmatprep.subr.mxu0 0.0
        %3725 = vmatpush1.xpose.msra.mxu0 0.0
        %3726 = vmatprep.subr.mxu0 0.0
        %3727 = vmatpush1.xpose.msra.mxu0 0.0
        %3728 = vmatprep.subr.mxu0 0.0
        %3729 = vmatpush1.xpose.msra.mxu0 0.0
        %3730 = vmatprep.subr.mxu0 0.0
        %3731 = vmatpush1.xpose.msra.mxu0 0.0
        %3732 = vmatprep.subr.mxu0 0.0
        %3733 = vmatpush1.xpose.msra.mxu0 0.0
        %3734 = vmatprep.subr.mxu0 0.0
        %3735 = vmatpush1.xpose.msra.mxu0 0.0
        %3736 = vmatprep.subr.mxu0 0.0
        %3737 = vmatpush1.xpose.msra.mxu0 0.0
        %3738 = vmatprep.subr.mxu0 0.0
        %3739 = vmatpush1.xpose.msra.mxu0 0.0
        %3740 = vmatprep.subr.mxu0 0.0
        %3741 = vmatpush1.xpose.msra.mxu0 0.0
        %3742 = vmatprep.subr.mxu0 0.0
        %3743 = vmatpush1.xpose.msra.mxu0 0.0
        %3744 = vmatprep.subr.mxu0 0.0
        %3745 = vmatpush1.xpose.msra.mxu0 0.0
        %3746 = vmatprep.subr.mxu0 0.0
        %3747 = vmatpush1.xpose.msra.mxu0 0.0
        %3748 = vmatprep.subr.mxu0 0.0
        %3749 = vmatpush1.xpose.msra.mxu0 0.0
        %3750 = vmatprep.subr.mxu0 0.0
        %3751 = vmatpush1.xpose.msra.mxu0 0.0
        %3752 = vmatprep.subr.mxu0 0.0
        %3753 = vmatpush1.xpose.msra.mxu0 0.0
        %3754 = vmatprep.subr.mxu0 0.0
        %3755 = vmatpush1.xpose.msra.mxu0 0.0
        %3756 = vmatprep.subr.mxu0 0.0
        %3757 = vmatpush1.xpose.msra.mxu0 0.0
        %3758 = vmatprep.subr.mxu0 0.0
        %3759 = vmatpush1.xpose.msra.mxu0 0.0
        %3760 = vmatprep.subr.mxu0 0.0
        %3761 = vmatpush1.xpose.msra.mxu0 0.0
        %3762 = vmatprep.subr.mxu0 0.0
        %3763 = vmatpush1.xpose.msra.mxu0 0.0
        %3764 = vmatprep.subr.mxu0 0.0
        %3765 = vmatpush1.xpose.msra.mxu0 0.0
        %3766 = vmatprep.subr.mxu0 0.0
        %3767 = vmatpush1.xpose.msra.mxu0 0.0
        %3768 = vmatprep.subr.mxu0 0.0
        %3769 = vmatpush1.xpose.msra.mxu0 0.0
        %3770 = vmatprep.subr.mxu0 0.0
        %3771 = vmatpush1.xpose.msra.mxu0 0.0
        %3772 = vmatprep.subr.mxu0 0.0
        %3773 = vmatpush1.xpose.msra.mxu0 0.0
        %3774 = vmatprep.mubr.f32.mxu0 0.0
        %v3775 = vand.u32 %v3330, 4294901760
        %3776 = vmatmul.mubr.f32.gmra.mrb[0].mxu0 %v3775
        %v3777 = vpop.f32.mrb[0].mxu0
        %v3778 = vadd.f32 %v3706, %v3777
        %v3779 = vpop.f32.mrb[0].mxu0
        %3780 = vdwg.mxu0
        %v3781 = vsel %vm2875, -1e+30, %v3326
        %v3782 = vsel %vm2876, -1e+30, %v3778
        %vm3783 = vcmask 60416
        %v3784 = vsel %vm3783, %v3781, -inf
        %3785 = vmax.xlane.f32.xlu0 %v3784
        %v3786 = vpop.xlane.xlu0 %3785
        %v3787 = vsel %vm3783, %v3782, -inf
        %3788 = vmax.xlane.f32.xlu0 %v3787
        %v3789 = vpop.xlane.xlu0 %3788
        %v3790 = vsub.f32 %v3781, %v3786
        %v3791 = vsub.f32 %v3782, %v3789
        %v3792 = vmul.f32 %v3790, 1.442695
        %v3793 = vpow.pop %v3792
        %v3794 = vmul.f32 %v3791, 1.442695
        %v3795 = vpow.pop %v3794
        %v3796 = vsel %vm2875, 0.0, %v3793
        %v3797 = vsel %vm2876, 0.0, %v3795
        %v3798 = vsel %vm3783, %v3796, 0.0
        %3799 = vadd.xlane.f32.xlu0 %v3798
        %v3800 = vpop.xlane.xlu0 %3799
        %v3801 = vsel %vm3783, %v3797, 0.0
        %3802 = vadd.xlane.f32.xlu0 %v3801
        %v3803 = vpop.xlane.xlu0 %3802
        %vm3804 = vcmp.gt.f32.partialorder %v3800, 0.0
        %vm3805 = vcmp.gt.f32.partialorder %v3803, 0.0
        %v3806 = vmax.f32 %v3800, 1e-30
        %v3807 = vmax.f32 %v3803, 1e-30
        %v3808 = vrcp.pop %v3806
        %v3809 = vmul.f32 %v3796, %v3808
        %v3810 = vrcp.pop %v3807
        %v3811 = vmul.f32 %v3797, %v3810
        %v3812 = vsel %vm3804, 1, 0
        %v3813 = vsel %vm3805, 1, 0
        %vm3814 = vcmp.eq.s32.totalorder %v3812, 1
        %vm3815 = vcmp.eq.s32.totalorder %v3813, 1
        %v3816 = vsel %vm3814, %v3809, 0.0
        %v3817 = vsel %vm3815, %v3811, 0.0
        %vm3818 = vcmask 64512
        %v3820 = vsel %vm3818, %v3816, 0
        %3822 = vmatprep.subr.mxu0 0.0
        %v3823 = vand.u32 %v2871, 4294901760
        %3824 = vmatpush1.msra.mxu0 %v3823
        %3825 = vmatprep.subr.mxu0 0.0
        %3826 = vmatpush1.msra.mxu0 0.0
        %3827 = vmatprep.subr.mxu0 0.0
        %3828 = vmatpush1.msra.mxu0 0.0
        %3829 = vmatprep.subr.mxu0 0.0
        %3830 = vmatpush1.msra.mxu0 0.0
        %3831 = vmatprep.subr.mxu0 0.0
        %3832 = vmatpush1.msra.mxu0 0.0
        %3833 = vmatprep.subr.mxu0 0.0
        %3834 = vmatpush1.msra.mxu0 0.0
        %3835 = vmatprep.subr.mxu0 0.0
        %3836 = vmatpush1.msra.mxu0 0.0
        %3837 = vmatprep.subr.mxu0 0.0
        %3838 = vmatpush1.msra.mxu0 0.0
        %3839 = vmatprep.subr.mxu0 0.0
        %3840 = vmatpush1.msra.mxu0 0.0
        %3841 = vmatprep.subr.mxu0 0.0
        %3842 = vmatpush1.msra.mxu0 0.0
        %3843 = vmatprep.subr.mxu0 0.0
        %3844 = vmatpush1.msra.mxu0 0.0
        %3845 = vmatprep.subr.mxu0 0.0
        %3846 = vmatpush1.msra.mxu0 0.0
        %3847 = vmatprep.subr.mxu0 0.0
        %3848 = vmatpush1.msra.mxu0 0.0
        %3849 = vmatprep.subr.mxu0 0.0
        %3850 = vmatpush1.msra.mxu0 0.0
        %3851 = vmatprep.subr.mxu0 0.0
        %3852 = vmatpush1.msra.mxu0 0.0
        %3853 = vmatprep.subr.mxu0 0.0
        %3854 = vmatpush1.msra.mxu0 0.0
        %3855 = vmatprep.subr.mxu0 0.0
        %3856 = vmatpush1.msra.mxu0 0.0
        %3857 = vmatprep.subr.mxu0 0.0
        %3858 = vmatpush1.msra.mxu0 0.0
        %3859 = vmatprep.subr.mxu0 0.0
        %3860 = vmatpush1.msra.mxu0 0.0
        %3861 = vmatprep.subr.mxu0 0.0
        %3862 = vmatpush1.msra.mxu0 0.0
        %3863 = vmatprep.subr.mxu0 0.0
        %3864 = vmatpush1.msra.mxu0 0.0
        %3865 = vmatprep.subr.mxu0 0.0
        %3866 = vmatpush1.msra.mxu0 0.0
        %3867 = vmatprep.subr.mxu0 0.0
        %3868 = vmatpush1.msra.mxu0 0.0
        %3869 = vmatprep.subr.mxu0 0.0
        %3870 = vmatpush1.msra.mxu0 0.0
        %3871 = vmatprep.subr.mxu0 0.0
        %3872 = vmatpush1.msra.mxu0 0.0
        %3873 = vmatprep.subr.mxu0 0.0
        %3874 = vmatpush1.msra.mxu0 0.0
        %3875 = vmatprep.subr.mxu0 0.0
        %3876 = vmatpush1.msra.mxu0 0.0
        %3877 = vmatprep.subr.mxu0 0.0
        %3878 = vmatpush1.msra.mxu0 0.0
        %3879 = vmatprep.subr.mxu0 0.0
        %3880 = vmatpush1.msra.mxu0 0.0
        %3881 = vmatprep.subr.mxu0 0.0
        %3882 = vmatpush1.msra.mxu0 0.0
        %3883 = vmatprep.subr.mxu0 0.0
        %3884 = vmatpush1.msra.mxu0 0.0
        %3885 = vmatprep.subr.mxu0 0.0
        %3886 = vmatpush1.msra.mxu0 0.0
        %3887 = vmatprep.mubr.f32.mxu0 0.0
        %v3888 = vand.u32 %v3820, 4294901760
        %v3889 = vsub.f32 %v3820, %v3888
        %v3890 = vand.u32 %v3889, 4294901760
        %v3891 = vsub.f32 %v3889, %v3890
        %v3892 = vand.u32 %v3891, 4294901760
        %3893 = vmatmul.mubr.f32.gmra.mrb[0].mxu0 %v3892
        %v3894 = vpop.f32.mrb[0].mxu0
        %v3895 = vadd.f32 0.0, %v3894
        %v3896 = vpop.f32.mrb[0].mxu0
        %3897 = vdwg.mxu0
        %3898 = vmatprep.subr.mxu0 0.0
        %v3899 = vand.u32 %v2871, 4294901760
        %v3900 = vsub.f32 %v2871, %v3899
        %v3901 = vand.u32 %v3900, 4294901760
        %v3902 = vsub.f32 %v3900, %v3901
        %v3903 = vand.u32 %v3902, 4294901760
        %3904 = vmatpush1.msra.mxu0 %v3903
        %3905 = vmatprep.subr.mxu0 0.0
        %3906 = vmatpush1.msra.mxu0 0.0
        %3907 = vmatprep.subr.mxu0 0.0
        %3908 = vmatpush1.msra.mxu0 0.0
        %3909 = vmatprep.subr.mxu0 0.0
        %3910 = vmatpush1.msra.mxu0 0.0
        %3911 = vmatprep.subr.mxu0 0.0
        %3912 = vmatpush1.msra.mxu0 0.0
        %3913 = vmatprep.subr.mxu0 0.0
        %3914 = vmatpush1.msra.mxu0 0.0
        %3915 = vmatprep.subr.mxu0 0.0
        %3916 = vmatpush1.msra.mxu0 0.0
        %3917 = vmatprep.subr.mxu0 0.0
        %3918 = vmatpush1.msra.mxu0 0.0
        %3919 = vmatprep.subr.mxu0 0.0
        %3920 = vmatpush1.msra.mxu0 0.0
        %3921 = vmatprep.subr.mxu0 0.0
        %3922 = vmatpush1.msra.mxu0 0.0
        %3923 = vmatprep.subr.mxu0 0.0
        %3924 = vmatpush1.msra.mxu0 0.0
        %3925 = vmatprep.subr.mxu0 0.0
        %3926 = vmatpush1.msra.mxu0 0.0
        %3927 = vmatprep.subr.mxu0 0.0
        %3928 = vmatpush1.msra.mxu0 0.0
        %3929 = vmatprep.subr.mxu0 0.0
        %3930 = vmatpush1.msra.mxu0 0.0
        %3931 = vmatprep.subr.mxu0 0.0
        %3932 = vmatpush1.msra.mxu0 0.0
        %3933 = vmatprep.subr.mxu0 0.0
        %3934 = vmatpush1.msra.mxu0 0.0
        %3935 = vmatprep.subr.mxu0 0.0
        %3936 = vmatpush1.msra.mxu0 0.0
        %3937 = vmatprep.subr.mxu0 0.0
        %3938 = vmatpush1.msra.mxu0 0.0
        %3939 = vmatprep.subr.mxu0 0.0
        %3940 = vmatpush1.msra.mxu0 0.0
        %3941 = vmatprep.subr.mxu0 0.0
        %3942 = vmatpush1.msra.mxu0 0.0
        %3943 = vmatprep.subr.mxu0 0.0
        %3944 = vmatpush1.msra.mxu0 0.0
        %3945 = vmatprep.subr.mxu0 0.0
        %3946 = vmatpush1.msra.mxu0 0.0
        %3947 = vmatprep.subr.mxu0 0.0
        %3948 = vmatpush1.msra.mxu0 0.0
        %3949 = vmatprep.subr.mxu0 0.0
        %3950 = vmatpush1.msra.mxu0 0.0
        %3951 = vmatprep.subr.mxu0 0.0
        %3952 = vmatpush1.msra.mxu0 0.0
        %3953 = vmatprep.subr.mxu0 0.0
        %3954 = vmatpush1.msra.mxu0 0.0
        %3955 = vmatprep.subr.mxu0 0.0
        %3956 = vmatpush1.msra.mxu0 0.0
        %3957 = vmatprep.subr.mxu0 0.0
        %3958 = vmatpush1.msra.mxu0 0.0
        %3959 = vmatprep.subr.mxu0 0.0
        %3960 = vmatpush1.msra.mxu0 0.0
        %3961 = vmatprep.subr.mxu0 0.0
        %3962 = vmatpush1.msra.mxu0 0.0
        %3963 = vmatprep.subr.mxu0 0.0
        %3964 = vmatpush1.msra.mxu0 0.0
        %3965 = vmatprep.subr.mxu0 0.0
        %3966 = vmatpush1.msra.mxu0 0.0
        %3967 = vmatprep.mubr.f32.mxu0 0.0
        %v3968 = vand.u32 %v3820, 4294901760
        %3969 = vmatmul.mubr.f32.gmra.mrb[0].mxu0 %v3968
        %v3970 = vpop.f32.mrb[0].mxu0
        %v3971 = vadd.f32 %v3895, %v3970
        %v3972 = vpop.f32.mrb[0].mxu0
        %3973 = vdwg.mxu0
        %3974 = vmatprep.subr.mxu0 0.0
        %v3975 = vand.u32 %v2871, 4294901760
        %v3976 = vsub.f32 %v2871, %v3975
        %3977 = vmatpush1.msra.mxu0 %v3976
        %3978 = vmatprep.subr.mxu0 0.0
        %3979 = vmatpush1.msra.mxu0 0.0
        %3980 = vmatprep.subr.mxu0 0.0
        %3981 = vmatpush1.msra.mxu0 0.0
        %3982 = vmatprep.subr.mxu0 0.0
        %3983 = vmatpush1.msra.mxu0 0.0
        %3984 = vmatprep.subr.mxu0 0.0
        %3985 = vmatpush1.msra.mxu0 0.0
        %3986 = vmatprep.subr.mxu0 0.0
        %3987 = vmatpush1.msra.mxu0 0.0
        %3988 = vmatprep.subr.mxu0 0.0
        %3989 = vmatpush1.msra.mxu0 0.0
        %3990 = vmatprep.subr.mxu0 0.0
        %3991 = vmatpush1.msra.mxu0 0.0
        %3992 = vmatprep.subr.mxu0 0.0
        %3993 = vmatpush1.msra.mxu0 0.0
        %3994 = vmatprep.subr.mxu0 0.0
        %3995 = vmatpush1.msra.mxu0 0.0
        %3996 = vmatprep.subr.mxu0 0.0
        %3997 = vmatpush1.msra.mxu0 0.0
        %3998 = vmatprep.subr.mxu0 0.0
        %3999 = vmatpush1.msra.mxu0 0.0
        %4000 = vmatprep.subr.mxu0 0.0
        %4001 = vmatpush1.msra.mxu0 0.0
        %4002 = vmatprep.subr.mxu0 0.0
        %4003 = vmatpush1.msra.mxu0 0.0
        %4004 = vmatprep.subr.mxu0 0.0
        %4005 = vmatpush1.msra.mxu0 0.0
        %4006 = vmatprep.subr.mxu0 0.0
        %4007 = vmatpush1.msra.mxu0 0.0
        %4008 = vmatprep.subr.mxu0 0.0
        %4009 = vmatpush1.msra.mxu0 0.0
        %4010 = vmatprep.subr.mxu0 0.0
        %4011 = vmatpush1.msra.mxu0 0.0
        %4012 = vmatprep.subr.mxu0 0.0
        %4013 = vmatpush1.msra.mxu0 0.0
        %4014 = vmatprep.subr.mxu0 0.0
        %4015 = vmatpush1.msra.mxu0 0.0
        %4016 = vmatprep.subr.mxu0 0.0
        %4017 = vmatpush1.msra.mxu0 0.0
        %4018 = vmatprep.subr.mxu0 0.0
        %4019 = vmatpush1.msra.mxu0 0.0
        %4020 = vmatprep.subr.mxu0 0.0
        %4021 = vmatpush1.msra.mxu0 0.0
        %4022 = vmatprep.subr.mxu0 0.0
        %4023 = vmatpush1.msra.mxu0 0.0
        %4024 = vmatprep.subr.mxu0 0.0
        %4025 = vmatpush1.msra.mxu0 0.0
        %4026 = vmatprep.subr.mxu0 0.0
        %4027 = vmatpush1.msra.mxu0 0.0
        %4028 = vmatprep.subr.mxu0 0.0
        %4029 = vmatpush1.msra.mxu0 0.0
        %4030 = vmatprep.subr.mxu0 0.0
        %4031 = vmatpush1.msra.mxu0 0.0
        %4032 = vmatprep.subr.mxu0 0.0
        %4033 = vmatpush1.msra.mxu0 0.0
        %4034 = vmatprep.subr.mxu0 0.0
        %4035 = vmatpush1.msra.mxu0 0.0
        %4036 = vmatprep.subr.mxu0 0.0
        %4037 = vmatpush1.msra.mxu0 0.0
        %4038 = vmatprep.subr.mxu0 0.0
        %4039 = vmatpush1.msra.mxu0 0.0
        %4040 = vmatprep.mubr.f32.mxu0 0.0
        %v4041 = vand.u32 %v3820, 4294901760
        %v4042 = vsub.f32 %v3820, %v4041
        %4043 = vmatmul.mubr.f32.gmra.mrb[0].mxu0 %v4042
        %v4044 = vpop.f32.mrb[0].mxu0
        %v4045 = vadd.f32 %v3971, %v4044
        %v4046 = vpop.f32.mrb[0].mxu0
        %4047 = vdwg.mxu0
        %4048 = vmatprep.subr.mxu0 0.0
        %v4049 = vand.u32 %v2871, 4294901760
        %4050 = vmatpush1.msra.mxu0 %v4049
        %4051 = vmatprep.subr.mxu0 0.0
        %4052 = vmatpush1.msra.mxu0 0.0
        %4053 = vmatprep.subr.mxu0 0.0
        %4054 = vmatpush1.msra.mxu0 0.0
        %4055 = vmatprep.subr.mxu0 0.0
        %4056 = vmatpush1.msra.mxu0 0.0
        %4057 = vmatprep.subr.mxu0 0.0
        %4058 = vmatpush1.msra.mxu0 0.0
        %4059 = vmatprep.subr.mxu0 0.0
        %4060 = vmatpush1.msra.mxu0 0.0
        %4061 = vmatprep.subr.mxu0 0.0
        %4062 = vmatpush1.msra.mxu0 0.0
        %4063 = vmatprep.subr.mxu0 0.0
        %4064 = vmatpush1.msra.mxu0 0.0
        %4065 = vmatprep.subr.mxu0 0.0
        %4066 = vmatpush1.msra.mxu0 0.0
        %4067 = vmatprep.subr.mxu0 0.0
        %4068 = vmatpush1.msra.mxu0 0.0
        %4069 = vmatprep.subr.mxu0 0.0
        %4070 = vmatpush1.msra.mxu0 0.0
        %4071 = vmatprep.subr.mxu0 0.0
        %4072 = vmatpush1.msra.mxu0 0.0
        %4073 = vmatprep.subr.mxu0 0.0
        %4074 = vmatpush1.msra.mxu0 0.0
        %4075 = vmatprep.subr.mxu0 0.0
        %4076 = vmatpush1.msra.mxu0 0.0
        %4077 = vmatprep.subr.mxu0 0.0
        %4078 = vmatpush1.msra.mxu0 0.0
        %4079 = vmatprep.subr.mxu0 0.0
        %4080 = vmatpush1.msra.mxu0 0.0
        %4081 = vmatprep.subr.mxu0 0.0
        %4082 = vmatpush1.msra.mxu0 0.0
        %4083 = vmatprep.subr.mxu0 0.0
        %4084 = vmatpush1.msra.mxu0 0.0
        %4085 = vmatprep.subr.mxu0 0.0
        %4086 = vmatpush1.msra.mxu0 0.0
        %4087 = vmatprep.subr.mxu0 0.0
        %4088 = vmatpush1.msra.mxu0 0.0
        %4089 = vmatprep.subr.mxu0 0.0
        %4090 = vmatpush1.msra.mxu0 0.0
        %4091 = vmatprep.subr.mxu0 0.0
        %4092 = vmatpush1.msra.mxu0 0.0
        %4093 = vmatprep.subr.mxu0 0.0
        %4094 = vmatpush1.msra.mxu0 0.0
        %4095 = vmatprep.subr.mxu0 0.0
        %4096 = vmatpush1.msra.mxu0 0.0
        %4097 = vmatprep.subr.mxu0 0.0
        %4098 = vmatpush1.msra.mxu0 0.0
        %4099 = vmatprep.subr.mxu0 0.0
        %4100 = vmatpush1.msra.mxu0 0.0
        %4101 = vmatprep.subr.mxu0 0.0
        %4102 = vmatpush1.msra.mxu0 0.0
        %4103 = vmatprep.subr.mxu0 0.0
        %4104 = vmatpush1.msra.mxu0 0.0
        %4105 = vmatprep.subr.mxu0 0.0
        %4106 = vmatpush1.msra.mxu0 0.0
        %4107 = vmatprep.subr.mxu0 0.0
        %4108 = vmatpush1.msra.mxu0 0.0
        %4109 = vmatprep.subr.mxu0 0.0
        %4110 = vmatpush1.msra.mxu0 0.0
        %4111 = vmatprep.subr.mxu0 0.0
        %4112 = vmatpush1.msra.mxu0 0.0
        %4113 = vmatprep.mubr.f32.mxu0 0.0
        %v4114 = vand.u32 %v3820, 4294901760
        %v4115 = vsub.f32 %v3820, %v4114
        %v4116 = vand.u32 %v4115, 4294901760
        %4117 = vmatmul.mubr.f32.gmra.mrb[0].mxu0 %v4116
        %v4118 = vpop.f32.mrb[0].mxu0
        %v4119 = vadd.f32 %v4045, %v4118
        %v4120 = vpop.f32.mrb[0].mxu0
        %4121 = vdwg.mxu0
        %4122 = vmatprep.subr.mxu0 0.0
        %v4123 = vand.u32 %v2871, 4294901760
        %v4124 = vsub.f32 %v2871, %v4123
        %v4125 = vand.u32 %v4124, 4294901760
        %4126 = vmatpush1.msra.mxu0 %v4125
        %4127 = vmatprep.subr.mxu0 0.0
        %4128 = vmatpush1.msra.mxu0 0.0
        %4129 = vmatprep.subr.mxu0 0.0
        %4130 = vmatpush1.msra.mxu0 0.0
        %4131 = vmatprep.subr.mxu0 0.0
        %4132 = vmatpush1.msra.mxu0 0.0
        %4133 = vmatprep.subr.mxu0 0.0
        %4134 = vmatpush1.msra.mxu0 0.0
        %4135 = vmatprep.subr.mxu0 0.0
        %4136 = vmatpush1.msra.mxu0 0.0
        %4137 = vmatprep.subr.mxu0 0.0
        %4138 = vmatpush1.msra.mxu0 0.0
        %4139 = vmatprep.subr.mxu0 0.0
        %4140 = vmatpush1.msra.mxu0 0.0
        %4141 = vmatprep.subr.mxu0 0.0
        %4142 = vmatpush1.msra.mxu0 0.0
        %4143 = vmatprep.subr.mxu0 0.0
        %4144 = vmatpush1.msra.mxu0 0.0
        %4145 = vmatprep.subr.mxu0 0.0
        %4146 = vmatpush1.msra.mxu0 0.0
        %4147 = vmatprep.subr.mxu0 0.0
        %4148 = vmatpush1.msra.mxu0 0.0
        %4149 = vmatprep.subr.mxu0 0.0
        %4150 = vmatpush1.msra.mxu0 0.0
        %4151 = vmatprep.subr.mxu0 0.0
        %4152 = vmatpush1.msra.mxu0 0.0
        %4153 = vmatprep.subr.mxu0 0.0
        %4154 = vmatpush1.msra.mxu0 0.0
        %4155 = vmatprep.subr.mxu0 0.0
        %4156 = vmatpush1.msra.mxu0 0.0
        %4157 = vmatprep.subr.mxu0 0.0
        %4158 = vmatpush1.msra.mxu0 0.0
        %4159 = vmatprep.subr.mxu0 0.0
        %4160 = vmatpush1.msra.mxu0 0.0
        %4161 = vmatprep.subr.mxu0 0.0
        %4162 = vmatpush1.msra.mxu0 0.0
        %4163 = vmatprep.subr.mxu0 0.0
        %4164 = vmatpush1.msra.mxu0 0.0
        %4165 = vmatprep.subr.mxu0 0.0
        %4166 = vmatpush1.msra.mxu0 0.0
        %4167 = vmatprep.subr.mxu0 0.0
        %4168 = vmatpush1.msra.mxu0 0.0
        %4169 = vmatprep.subr.mxu0 0.0
        %4170 = vmatpush1.msra.mxu0 0.0
        %4171 = vmatprep.subr.mxu0 0.0
        %4172 = vmatpush1.msra.mxu0 0.0
        %4173 = vmatprep.subr.mxu0 0.0
        %4174 = vmatpush1.msra.mxu0 0.0
        %4175 = vmatprep.subr.mxu0 0.0
        %4176 = vmatpush1.msra.mxu0 0.0
        %4177 = vmatprep.subr.mxu0 0.0
        %4178 = vmatpush1.msra.mxu0 0.0
        %4179 = vmatprep.subr.mxu0 0.0
        %4180 = vmatpush1.msra.mxu0 0.0
        %4181 = vmatprep.subr.mxu0 0.0
        %4182 = vmatpush1.msra.mxu0 0.0
        %4183 = vmatprep.subr.mxu0 0.0
        %4184 = vmatpush1.msra.mxu0 0.0
        %4185 = vmatprep.subr.mxu0 0.0
        %4186 = vmatpush1.msra.mxu0 0.0
        %4187 = vmatprep.subr.mxu0 0.0
        %4188 = vmatpush1.msra.mxu0 0.0
        %4189 = vmatprep.mubr.f32.mxu0 0.0
        %v4190 = vand.u32 %v3820, 4294901760
        %4191 = vmatmul.mubr.f32.gmra.mrb[0].mxu0 %v4190
        %v4192 = vpop.f32.mrb[0].mxu0
        %v4193 = vadd.f32 %v4119, %v4192
        %v4194 = vpop.f32.mrb[0].mxu0
        %4195 = vdwg.mxu0
        %4196 = vmatprep.subr.mxu0 0.0
        %v4197 = vand.u32 %v2871, 4294901760
        %4198 = vmatpush1.msra.mxu0 %v4197
        %4199 = vmatprep.subr.mxu0 0.0
        %4200 = vmatpush1.msra.mxu0 0.0
        %4201 = vmatprep.subr.mxu0 0.0
        %4202 = vmatpush1.msra.mxu0 0.0
        %4203 = vmatprep.subr.mxu0 0.0
        %4204 = vmatpush1.msra.mxu0 0.0
        %4205 = vmatprep.subr.mxu0 0.0
        %4206 = vmatpush1.msra.mxu0 0.0
        %4207 = vmatprep.subr.mxu0 0.0
        %4208 = vmatpush1.msra.mxu0 0.0
        %4209 = vmatprep.subr.mxu0 0.0
        %4210 = vmatpush1.msra.mxu0 0.0
        %4211 = vmatprep.subr.mxu0 0.0
        %4212 = vmatpush1.msra.mxu0 0.0
        %4213 = vmatprep.subr.mxu0 0.0
        %4214 = vmatpush1.msra.mxu0 0.0
        %4215 = vmatprep.subr.mxu0 0.0
        %4216 = vmatpush1.msra.mxu0 0.0
        %4217 = vmatprep.subr.mxu0 0.0
        %4218 = vmatpush1.msra.mxu0 0.0
        %4219 = vmatprep.subr.mxu0 0.0
        %4220 = vmatpush1.msra.mxu0 0.0
        %4221 = vmatprep.subr.mxu0 0.0
        %4222 = vmatpush1.msra.mxu0 0.0
        %4223 = vmatprep.subr.mxu0 0.0
        %4224 = vmatpush1.msra.mxu0 0.0
        %4225 = vmatprep.subr.mxu0 0.0
        %4226 = vmatpush1.msra.mxu0 0.0
        %4227 = vmatprep.subr.mxu0 0.0
        %4228 = vmatpush1.msra.mxu0 0.0
        %4229 = vmatprep.subr.mxu0 0.0
        %4230 = vmatpush1.msra.mxu0 0.0
        %4231 = vmatprep.subr.mxu0 0.0
        %4232 = vmatpush1.msra.mxu0 0.0
        %4233 = vmatprep.subr.mxu0 0.0
        %4234 = vmatpush1.msra.mxu0 0.0
        %4235 = vmatprep.subr.mxu0 0.0
        %4236 = vmatpush1.msra.mxu0 0.0
        %4237 = vmatprep.subr.mxu0 0.0
        %4238 = vmatpush1.msra.mxu0 0.0
        %4239 = vmatprep.subr.mxu0 0.0
        %4240 = vmatpush1.msra.mxu0 0.0
        %4241 = vmatprep.subr.mxu0 0.0
        %4242 = vmatpush1.msra.mxu0 0.0
        %4243 = vmatprep.subr.mxu0 0.0
        %4244 = vmatpush1.msra.mxu0 0.0
        %4245 = vmatprep.subr.mxu0 0.0
        %4246 = vmatpush1.msra.mxu0 0.0
        %4247 = vmatprep.subr.mxu0 0.0
        %4248 = vmatpush1.msra.mxu0 0.0
        %4249 = vmatprep.subr.mxu0 0.0
        %4250 = vmatpush1.msra.mxu0 0.0
        %4251 = vmatprep.subr.mxu0 0.0
        %4252 = vmatpush1.msra.mxu0 0.0
        %4253 = vmatprep.subr.mxu0 0.0
        %4254 = vmatpush1.msra.mxu0 0.0
        %4255 = vmatprep.subr.mxu0 0.0
        %4256 = vmatpush1.msra.mxu0 0.0
        %4257 = vmatprep.subr.mxu0 0.0
        %4258 = vmatpush1.msra.mxu0 0.0
        %4259 = vmatprep.subr.mxu0 0.0
        %4260 = vmatpush1.msra.mxu0 0.0
        %4261 = vmatprep.mubr.f32.mxu0 0.0
        %v4262 = vand.u32 %v3820, 4294901760
        %4263 = vmatmul.mubr.f32.gmra.mrb[0].mxu0 %v4262
        %v4264 = vpop.f32.mrb[0].mxu0
        %v4265 = vadd.f32 %v4193, %v4264
        %v4266 = vpop.f32.mrb[0].mxu0
        %4267 = vdwg.mxu0
        %v4269 = vsel %vm3818, %v3817, 0
        %4271 = vmatprep.subr.mxu0 0.0
        %v4272 = vand.u32 %v2872, 4294901760
        %4273 = vmatpush1.msra.mxu0 %v4272
        %4274 = vmatprep.subr.mxu0 0.0
        %4275 = vmatpush1.msra.mxu0 0.0
        %4276 = vmatprep.subr.mxu0 0.0
        %4277 = vmatpush1.msra.mxu0 0.0
        %4278 = vmatprep.subr.mxu0 0.0
        %4279 = vmatpush1.msra.mxu0 0.0
        %4280 = vmatprep.subr.mxu0 0.0
        %4281 = vmatpush1.msra.mxu0 0.0
        %4282 = vmatprep.subr.mxu0 0.0
        %4283 = vmatpush1.msra.mxu0 0.0
        %4284 = vmatprep.subr.mxu0 0.0
        %4285 = vmatpush1.msra.mxu0 0.0
        %4286 = vmatprep.subr.mxu0 0.0
        %4287 = vmatpush1.msra.mxu0 0.0
        %4288 = vmatprep.subr.mxu0 0.0
        %4289 = vmatpush1.msra.mxu0 0.0
        %4290 = vmatprep.subr.mxu0 0.0
        %4291 = vmatpush1.msra.mxu0 0.0
        %4292 = vmatprep.subr.mxu0 0.0
        %4293 = vmatpush1.msra.mxu0 0.0
        %4294 = vmatprep.subr.mxu0 0.0
        %4295 = vmatpush1.msra.mxu0 0.0
        %4296 = vmatprep.subr.mxu0 0.0
        %4297 = vmatpush1.msra.mxu0 0.0
        %4298 = vmatprep.subr.mxu0 0.0
        %4299 = vmatpush1.msra.mxu0 0.0
        %4300 = vmatprep.subr.mxu0 0.0
        %4301 = vmatpush1.msra.mxu0 0.0
        %4302 = vmatprep.subr.mxu0 0.0
        %4303 = vmatpush1.msra.mxu0 0.0
        %4304 = vmatprep.subr.mxu0 0.0
        %4305 = vmatpush1.msra.mxu0 0.0
        %4306 = vmatprep.subr.mxu0 0.0
        %4307 = vmatpush1.msra.mxu0 0.0
        %4308 = vmatprep.subr.mxu0 0.0
        %4309 = vmatpush1.msra.mxu0 0.0
        %4310 = vmatprep.subr.mxu0 0.0
        %4311 = vmatpush1.msra.mxu0 0.0
        %4312 = vmatprep.subr.mxu0 0.0
        %4313 = vmatpush1.msra.mxu0 0.0
        %4314 = vmatprep.subr.mxu0 0.0
        %4315 = vmatpush1.msra.mxu0 0.0
        %4316 = vmatprep.subr.mxu0 0.0
        %4317 = vmatpush1.msra.mxu0 0.0
        %4318 = vmatprep.subr.mxu0 0.0
        %4319 = vmatpush1.msra.mxu0 0.0
        %4320 = vmatprep.subr.mxu0 0.0
        %4321 = vmatpush1.msra.mxu0 0.0
        %4322 = vmatprep.subr.mxu0 0.0
        %4323 = vmatpush1.msra.mxu0 0.0
        %4324 = vmatprep.subr.mxu0 0.0
        %4325 = vmatpush1.msra.mxu0 0.0
        %4326 = vmatprep.subr.mxu0 0.0
        %4327 = vmatpush1.msra.mxu0 0.0
        %4328 = vmatprep.subr.mxu0 0.0
        %4329 = vmatpush1.msra.mxu0 0.0
        %4330 = vmatprep.subr.mxu0 0.0
        %4331 = vmatpush1.msra.mxu0 0.0
        %4332 = vmatprep.subr.mxu0 0.0
        %4333 = vmatpush1.msra.mxu0 0.0
        %4334 = vmatprep.subr.mxu0 0.0
        %4335 = vmatpush1.msra.mxu0 0.0
        %4336 = vmatprep.mubr.f32.mxu0 0.0
        %v4337 = vand.u32 %v4269, 4294901760
        %v4338 = vsub.f32 %v4269, %v4337
        %v4339 = vand.u32 %v4338, 4294901760
        %v4340 = vsub.f32 %v4338, %v4339
        %v4341 = vand.u32 %v4340, 4294901760
        %4342 = vmatmul.mubr.f32.gmra.mrb[0].mxu0 %v4341
        %v4343 = vpop.f32.mrb[0].mxu0
        %v4344 = vadd.f32 0.0, %v4343
        %v4345 = vpop.f32.mrb[0].mxu0
        %4346 = vdwg.mxu0
        %4347 = vmatprep.subr.mxu0 0.0
        %v4348 = vand.u32 %v2872, 4294901760
        %v4349 = vsub.f32 %v2872, %v4348
        %v4350 = vand.u32 %v4349, 4294901760
        %v4351 = vsub.f32 %v4349, %v4350
        %v4352 = vand.u32 %v4351, 4294901760
        %4353 = vmatpush1.msra.mxu0 %v4352
        %4354 = vmatprep.subr.mxu0 0.0
        %4355 = vmatpush1.msra.mxu0 0.0
        %4356 = vmatprep.subr.mxu0 0.0
        %4357 = vmatpush1.msra.mxu0 0.0
        %4358 = vmatprep.subr.mxu0 0.0
        %4359 = vmatpush1.msra.mxu0 0.0
        %4360 = vmatprep.subr.mxu0 0.0
        %4361 = vmatpush1.msra.mxu0 0.0
        %4362 = vmatprep.subr.mxu0 0.0
        %4363 = vmatpush1.msra.mxu0 0.0
        %4364 = vmatprep.subr.mxu0 0.0
        %4365 = vmatpush1.msra.mxu0 0.0
        %4366 = vmatprep.subr.mxu0 0.0
        %4367 = vmatpush1.msra.mxu0 0.0
        %4368 = vmatprep.subr.mxu0 0.0
        %4369 = vmatpush1.msra.mxu0 0.0
        %4370 = vmatprep.subr.mxu0 0.0
        %4371 = vmatpush1.msra.mxu0 0.0
        %4372 = vmatprep.subr.mxu0 0.0
        %4373 = vmatpush1.msra.mxu0 0.0
        %4374 = vmatprep.subr.mxu0 0.0
        %4375 = vmatpush1.msra.mxu0 0.0
        %4376 = vmatprep.subr.mxu0 0.0
        %4377 = vmatpush1.msra.mxu0 0.0
        %4378 = vmatprep.subr.mxu0 0.0
        %4379 = vmatpush1.msra.mxu0 0.0
        %4380 = vmatprep.subr.mxu0 0.0
        %4381 = vmatpush1.msra.mxu0 0.0
        %4382 = vmatprep.subr.mxu0 0.0
        %4383 = vmatpush1.msra.mxu0 0.0
        %4384 = vmatprep.subr.mxu0 0.0
        %4385 = vmatpush1.msra.mxu0 0.0
        %4386 = vmatprep.subr.mxu0 0.0
        %4387 = vmatpush1.msra.mxu0 0.0
        %4388 = vmatprep.subr.mxu0 0.0
        %4389 = vmatpush1.msra.mxu0 0.0
        %4390 = vmatprep.subr.mxu0 0.0
        %4391 = vmatpush1.msra.mxu0 0.0
        %4392 = vmatprep.subr.mxu0 0.0
        %4393 = vmatpush1.msra.mxu0 0.0
        %4394 = vmatprep.subr.mxu0 0.0
        %4395 = vmatpush1.msra.mxu0 0.0
        %4396 = vmatprep.subr.mxu0 0.0
        %4397 = vmatpush1.msra.mxu0 0.0
        %4398 = vmatprep.subr.mxu0 0.0
        %4399 = vmatpush1.msra.mxu0 0.0
        %4400 = vmatprep.subr.mxu0 0.0
        %4401 = vmatpush1.msra.mxu0 0.0
        %4402 = vmatprep.subr.mxu0 0.0
        %4403 = vmatpush1.msra.mxu0 0.0
        %4404 = vmatprep.subr.mxu0 0.0
        %4405 = vmatpush1.msra.mxu0 0.0
        %4406 = vmatprep.subr.mxu0 0.0
        %4407 = vmatpush1.msra.mxu0 0.0
        %4408 = vmatprep.subr.mxu0 0.0
        %4409 = vmatpush1.msra.mxu0 0.0
        %4410 = vmatprep.subr.mxu0 0.0
        %4411 = vmatpush1.msra.mxu0 0.0
        %4412 = vmatprep.subr.mxu0 0.0
        %4413 = vmatpush1.msra.mxu0 0.0
        %4414 = vmatprep.subr.mxu0 0.0
        %4415 = vmatpush1.msra.mxu0 0.0
        %4416 = vmatprep.mubr.f32.mxu0 0.0
        %v4417 = vand.u32 %v4269, 4294901760
        %4418 = vmatmul.mubr.f32.gmra.mrb[0].mxu0 %v4417
        %v4419 = vpop.f32.mrb[0].mxu0
        %v4420 = vadd.f32 %v4344, %v4419
        %v4421 = vpop.f32.mrb[0].mxu0
        %4422 = vdwg.mxu0
        %4423 = vmatprep.subr.mxu0 0.0
        %v4424 = vand.u32 %v2872, 4294901760
        %v4425 = vsub.f32 %v2872, %v4424
        %4426 = vmatpush1.msra.mxu0 %v4425
        %4427 = vmatprep.subr.mxu0 0.0
        %4428 = vmatpush1.msra.mxu0 0.0
        %4429 = vmatprep.subr.mxu0 0.0
        %4430 = vmatpush1.msra.mxu0 0.0
        %4431 = vmatprep.subr.mxu0 0.0
        %4432 = vmatpush1.msra.mxu0 0.0
        %4433 = vmatprep.subr.mxu0 0.0
        %4434 = vmatpush1.msra.mxu0 0.0
        %4435 = vmatprep.subr.mxu0 0.0
        %4436 = vmatpush1.msra.mxu0 0.0
        %4437 = vmatprep.subr.mxu0 0.0
        %4438 = vmatpush1.msra.mxu0 0.0
        %4439 = vmatprep.subr.mxu0 0.0
        %4440 = vmatpush1.msra.mxu0 0.0
        %4441 = vmatprep.subr.mxu0 0.0
        %4442 = vmatpush1.msra.mxu0 0.0
        %4443 = vmatprep.subr.mxu0 0.0
        %4444 = vmatpush1.msra.mxu0 0.0
        %4445 = vmatprep.subr.mxu0 0.0
        %4446 = vmatpush1.msra.mxu0 0.0
        %4447 = vmatprep.subr.mxu0 0.0
        %4448 = vmatpush1.msra.mxu0 0.0
        %4449 = vmatprep.subr.mxu0 0.0
        %4450 = vmatpush1.msra.mxu0 0.0
        %4451 = vmatprep.subr.mxu0 0.0
        %4452 = vmatpush1.msra.mxu0 0.0
        %4453 = vmatprep.subr.mxu0 0.0
        %4454 = vmatpush1.msra.mxu0 0.0
        %4455 = vmatprep.subr.mxu0 0.0
        %4456 = vmatpush1.msra.mxu0 0.0
        %4457 = vmatprep.subr.mxu0 0.0
        %4458 = vmatpush1.msra.mxu0 0.0
        %4459 = vmatprep.subr.mxu0 0.0
        %4460 = vmatpush1.msra.mxu0 0.0
        %4461 = vmatprep.subr.mxu0 0.0
        %4462 = vmatpush1.msra.mxu0 0.0
        %4463 = vmatprep.subr.mxu0 0.0
        %4464 = vmatpush1.msra.mxu0 0.0
        %4465 = vmatprep.subr.mxu0 0.0
        %4466 = vmatpush1.msra.mxu0 0.0
        %4467 = vmatprep.subr.mxu0 0.0
        %4468 = vmatpush1.msra.mxu0 0.0
        %4469 = vmatprep.subr.mxu0 0.0
        %4470 = vmatpush1.msra.mxu0 0.0
        %4471 = vmatprep.subr.mxu0 0.0
        %4472 = vmatpush1.msra.mxu0 0.0
        %4473 = vmatprep.subr.mxu0 0.0
        %4474 = vmatpush1.msra.mxu0 0.0
        %4475 = vmatprep.subr.mxu0 0.0
        %4476 = vmatpush1.msra.mxu0 0.0
        %4477 = vmatprep.subr.mxu0 0.0
        %4478 = vmatpush1.msra.mxu0 0.0
        %4479 = vmatprep.subr.mxu0 0.0
        %4480 = vmatpush1.msra.mxu0 0.0
        %4481 = vmatprep.subr.mxu0 0.0
        %4482 = vmatpush1.msra.mxu0 0.0
        %4483 = vmatprep.subr.mxu0 0.0
        %4484 = vmatpush1.msra.mxu0 0.0
        %4485 = vmatprep.subr.mxu0 0.0
        %4486 = vmatpush1.msra.mxu0 0.0
        %4487 = vmatprep.subr.mxu0 0.0
        %4488 = vmatpush1.msra.mxu0 0.0
        %4489 = vmatprep.mubr.f32.mxu0 0.0
        %v4490 = vand.u32 %v4269, 4294901760
        %v4491 = vsub.f32 %v4269, %v4490
        %4492 = vmatmul.mubr.f32.gmra.mrb[0].mxu0 %v4491
        %v4493 = vpop.f32.mrb[0].mxu0
        %v4494 = vadd.f32 %v4420, %v4493
        %v4495 = vpop.f32.mrb[0].mxu0
        %4496 = vdwg.mxu0
        %4497 = vmatprep.subr.mxu0 0.0
        %v4498 = vand.u32 %v2872, 4294901760
        %4499 = vmatpush1.msra.mxu0 %v4498
        %4500 = vmatprep.subr.mxu0 0.0
        %4501 = vmatpush1.msra.mxu0 0.0
        %4502 = vmatprep.subr.mxu0 0.0
        %4503 = vmatpush1.msra.mxu0 0.0
        %4504 = vmatprep.subr.mxu0 0.0
        %4505 = vmatpush1.msra.mxu0 0.0
        %4506 = vmatprep.subr.mxu0 0.0
        %4507 = vmatpush1.msra.mxu0 0.0
        %4508 = vmatprep.subr.mxu0 0.0
        %4509 = vmatpush1.msra.mxu0 0.0
        %4510 = vmatprep.subr.mxu0 0.0
        %4511 = vmatpush1.msra.mxu0 0.0
        %4512 = vmatprep.subr.mxu0 0.0
        %4513 = vmatpush1.msra.mxu0 0.0
        %4514 = vmatprep.subr.mxu0 0.0
        %4515 = vmatpush1.msra.mxu0 0.0
        %4516 = vmatprep.subr.mxu0 0.0
        %4517 = vmatpush1.msra.mxu0 0.0
        %4518 = vmatprep.subr.mxu0 0.0
        %4519 = vmatpush1.msra.mxu0 0.0
        %4520 = vmatprep.subr.mxu0 0.0
        %4521 = vmatpush1.msra.mxu0 0.0
        %4522 = vmatprep.subr.mxu0 0.0
        %4523 = vmatpush1.msra.mxu0 0.0
        %4524 = vmatprep.subr.mxu0 0.0
        %4525 = vmatpush1.msra.mxu0 0.0
        %4526 = vmatprep.subr.mxu0 0.0
        %4527 = vmatpush1.msra.mxu0 0.0
        %4528 = vmatprep.subr.mxu0 0.0
        %4529 = vmatpush1.msra.mxu0 0.0
        %4530 = vmatprep.subr.mxu0 0.0
        %4531 = vmatpush1.msra.mxu0 0.0
        %4532 = vmatprep.subr.mxu0 0.0
        %4533 = vmatpush1.msra.mxu0 0.0
        %4534 = vmatprep.subr.mxu0 0.0
        %4535 = vmatpush1.msra.mxu0 0.0
        %4536 = vmatprep.subr.mxu0 0.0
        %4537 = vmatpush1.msra.mxu0 0.0
        %4538 = vmatprep.subr.mxu0 0.0
        %4539 = vmatpush1.msra.mxu0 0.0
        %4540 = vmatprep.subr.mxu0 0.0
        %4541 = vmatpush1.msra.mxu0 0.0
        %4542 = vmatprep.subr.mxu0 0.0
        %4543 = vmatpush1.msra.mxu0 0.0
        %4544 = vmatprep.subr.mxu0 0.0
        %4545 = vmatpush1.msra.mxu0 0.0
        %4546 = vmatprep.subr.mxu0 0.0
        %4547 = vmatpush1.msra.mxu0 0.0
        %4548 = vmatprep.subr.mxu0 0.0
        %4549 = vmatpush1.msra.mxu0 0.0
        %4550 = vmatprep.subr.mxu0 0.0
        %4551 = vmatpush1.msra.mxu0 0.0
        %4552 = vmatprep.subr.mxu0 0.0
        %4553 = vmatpush1.msra.mxu0 0.0
        %4554 = vmatprep.subr.mxu0 0.0
        %4555 = vmatpush1.msra.mxu0 0.0
        %4556 = vmatprep.subr.mxu0 0.0
        %4557 = vmatpush1.msra.mxu0 0.0
        %4558 = vmatprep.subr.mxu0 0.0
        %4559 = vmatpush1.msra.mxu0 0.0
        %4560 = vmatprep.subr.mxu0 0.0
        %4561 = vmatpush1.msra.mxu0 0.0
        %4562 = vmatprep.mubr.f32.mxu0 0.0
        %v4563 = vand.u32 %v4269, 4294901760
        %v4564 = vsub.f32 %v4269, %v4563
        %v4565 = vand.u32 %v4564, 4294901760
        %4566 = vmatmul.mubr.f32.gmra.mrb[0].mxu0 %v4565
        %v4567 = vpop.f32.mrb[0].mxu0
        %v4568 = vadd.f32 %v4494, %v4567
        %v4569 = vpop.f32.mrb[0].mxu0
        %4570 = vdwg.mxu0
        %4571 = vmatprep.subr.mxu0 0.0
        %v4572 = vand.u32 %v2872, 4294901760
        %v4573 = vsub.f32 %v2872, %v4572
        %v4574 = vand.u32 %v4573, 4294901760
        %4575 = vmatpush1.msra.mxu0 %v4574
        %4576 = vmatprep.subr.mxu0 0.0
        %4577 = vmatpush1.msra.mxu0 0.0
        %4578 = vmatprep.subr.mxu0 0.0
        %4579 = vmatpush1.msra.mxu0 0.0
        %4580 = vmatprep.subr.mxu0 0.0
        %4581 = vmatpush1.msra.mxu0 0.0
        %4582 = vmatprep.subr.mxu0 0.0
        %4583 = vmatpush1.msra.mxu0 0.0
        %4584 = vmatprep.subr.mxu0 0.0
        %4585 = vmatpush1.msra.mxu0 0.0
        %4586 = vmatprep.subr.mxu0 0.0
        %4587 = vmatpush1.msra.mxu0 0.0
        %4588 = vmatprep.subr.mxu0 0.0
        %4589 = vmatpush1.msra.mxu0 0.0
        %4590 = vmatprep.subr.mxu0 0.0
        %4591 = vmatpush1.msra.mxu0 0.0
        %4592 = vmatprep.subr.mxu0 0.0
        %4593 = vmatpush1.msra.mxu0 0.0
        %4594 = vmatprep.subr.mxu0 0.0
        %4595 = vmatpush1.msra.mxu0 0.0
        %4596 = vmatprep.subr.mxu0 0.0
        %4597 = vmatpush1.msra.mxu0 0.0
        %4598 = vmatprep.subr.mxu0 0.0
        %4599 = vmatpush1.msra.mxu0 0.0
        %4600 = vmatprep.subr.mxu0 0.0
        %4601 = vmatpush1.msra.mxu0 0.0
        %4602 = vmatprep.subr.mxu0 0.0
        %4603 = vmatpush1.msra.mxu0 0.0
        %4604 = vmatprep.subr.mxu0 0.0
        %4605 = vmatpush1.msra.mxu0 0.0
        %4606 = vmatprep.subr.mxu0 0.0
        %4607 = vmatpush1.msra.mxu0 0.0
        %4608 = vmatprep.subr.mxu0 0.0
        %4609 = vmatpush1.msra.mxu0 0.0
        %4610 = vmatprep.subr.mxu0 0.0
        %4611 = vmatpush1.msra.mxu0 0.0
        %4612 = vmatprep.subr.mxu0 0.0
        %4613 = vmatpush1.msra.mxu0 0.0
        %4614 = vmatprep.subr.mxu0 0.0
        %4615 = vmatpush1.msra.mxu0 0.0
        %4616 = vmatprep.subr.mxu0 0.0
        %4617 = vmatpush1.msra.mxu0 0.0
        %4618 = vmatprep.subr.mxu0 0.0
        %4619 = vmatpush1.msra.mxu0 0.0
        %4620 = vmatprep.subr.mxu0 0.0
        %4621 = vmatpush1.msra.mxu0 0.0
        %4622 = vmatprep.subr.mxu0 0.0
        %4623 = vmatpush1.msra.mxu0 0.0
        %4624 = vmatprep.subr.mxu0 0.0
        %4625 = vmatpush1.msra.mxu0 0.0
        %4626 = vmatprep.subr.mxu0 0.0
        %4627 = vmatpush1.msra.mxu0 0.0
        %4628 = vmatprep.subr.mxu0 0.0
        %4629 = vmatpush1.msra.mxu0 0.0
        %4630 = vmatprep.subr.mxu0 0.0
        %4631 = vmatpush1.msra.mxu0 0.0
        %4632 = vmatprep.subr.mxu0 0.0
        %4633 = vmatpush1.msra.mxu0 0.0
        %4634 = vmatprep.subr.mxu0 0.0
        %4635 = vmatpush1.msra.mxu0 0.0
        %4636 = vmatprep.subr.mxu0 0.0
        %4637 = vmatpush1.msra.mxu0 0.0
        %4638 = vmatprep.mubr.f32.mxu0 0.0
        %v4639 = vand.u32 %v4269, 4294901760
        %4640 = vmatmul.mubr.f32.gmra.mrb[0].mxu0 %v4639
        %v4641 = vpop.f32.mrb[0].mxu0
        %v4642 = vadd.f32 %v4568, %v4641
        %v4643 = vpop.f32.mrb[0].mxu0
        %4644 = vdwg.mxu0
        %4645 = vmatprep.subr.mxu0 0.0
        %v4646 = vand.u32 %v2872, 4294901760
        %4647 = vmatpush1.msra.mxu0 %v4646
        %4648 = vmatprep.subr.mxu0 0.0
        %4649 = vmatpush1.msra.mxu0 0.0
        %4650 = vmatprep.subr.mxu0 0.0
        %4651 = vmatpush1.msra.mxu0 0.0
        %4652 = vmatprep.subr.mxu0 0.0
        %4653 = vmatpush1.msra.mxu0 0.0
        %4654 = vmatprep.subr.mxu0 0.0
        %4655 = vmatpush1.msra.mxu0 0.0
        %4656 = vmatprep.subr.mxu0 0.0
        %4657 = vmatpush1.msra.mxu0 0.0
        %4658 = vmatprep.subr.mxu0 0.0
        %4659 = vmatpush1.msra.mxu0 0.0
        %4660 = vmatprep.subr.mxu0 0.0
        %4661 = vmatpush1.msra.mxu0 0.0
        %4662 = vmatprep.subr.mxu0 0.0
        %4663 = vmatpush1.msra.mxu0 0.0
        %4664 = vmatprep.subr.mxu0 0.0
        %4665 = vmatpush1.msra.mxu0 0.0
        %4666 = vmatprep.subr.mxu0 0.0
        %4667 = vmatpush1.msra.mxu0 0.0
        %4668 = vmatprep.subr.mxu0 0.0
        %4669 = vmatpush1.msra.mxu0 0.0
        %4670 = vmatprep.subr.mxu0 0.0
        %4671 = vmatpush1.msra.mxu0 0.0
        %4672 = vmatprep.subr.mxu0 0.0
        %4673 = vmatpush1.msra.mxu0 0.0
        %4674 = vmatprep.subr.mxu0 0.0
        %4675 = vmatpush1.msra.mxu0 0.0
        %4676 = vmatprep.subr.mxu0 0.0
        %4677 = vmatpush1.msra.mxu0 0.0
        %4678 = vmatprep.subr.mxu0 0.0
        %4679 = vmatpush1.msra.mxu0 0.0
        %4680 = vmatprep.subr.mxu0 0.0
        %4681 = vmatpush1.msra.mxu0 0.0
        %4682 = vmatprep.subr.mxu0 0.0
        %4683 = vmatpush1.msra.mxu0 0.0
        %4684 = vmatprep.subr.mxu0 0.0
        %4685 = vmatpush1.msra.mxu0 0.0
        %4686 = vmatprep.subr.mxu0 0.0
        %4687 = vmatpush1.msra.mxu0 0.0
        %4688 = vmatprep.subr.mxu0 0.0
        %4689 = vmatpush1.msra.mxu0 0.0
        %4690 = vmatprep.subr.mxu0 0.0
        %4691 = vmatpush1.msra.mxu0 0.0
        %4692 = vmatprep.subr.mxu0 0.0
        %4693 = vmatpush1.msra.mxu0 0.0
        %4694 = vmatprep.subr.mxu0 0.0
        %4695 = vmatpush1.msra.mxu0 0.0
        %4696 = vmatprep.subr.mxu0 0.0
        %4697 = vmatpush1.msra.mxu0 0.0
        %4698 = vmatprep.subr.mxu0 0.0
        %4699 = vmatpush1.msra.mxu0 0.0
        %4700 = vmatprep.subr.mxu0 0.0
        %4701 = vmatpush1.msra.mxu0 0.0
        %4702 = vmatprep.subr.mxu0 0.0
        %4703 = vmatpush1.msra.mxu0 0.0
        %4704 = vmatprep.subr.mxu0 0.0
        %4705 = vmatpush1.msra.mxu0 0.0
        %4706 = vmatprep.subr.mxu0 0.0
        %4707 = vmatpush1.msra.mxu0 0.0
        %4708 = vmatprep.subr.mxu0 0.0
        %4709 = vmatpush1.msra.mxu0 0.0
        %4710 = vmatprep.mubr.f32.mxu0 0.0
        %v4711 = vand.u32 %v4269, 4294901760
        %4712 = vmatmul.mubr.f32.gmra.mrb[0].mxu0 %v4711
        %v4713 = vpop.f32.mrb[0].mxu0
        %v4714 = vadd.f32 %v4642, %v4713
        %v4715 = vpop.f32.mrb[0].mxu0
        %4716 = vdwg.mxu0
        %4717 = vrot.lane.b32.xlu0 %v1784, 112
        %v4718 = vpop.permute.xlu0 %4717
        %4719 = vrot.lane.b32.xlu0 %v2323, 112
        %v4720 = vpop.permute.xlu0 %4719
        %v4721 = vsel %vm736, %v4718, 0
        %v4723 = vsel %vm736, %v4720, 0
        %4725 = vmatprep.subr.mxu0 0.0
        %v4726 = vand.u32 %v4723, 4294901760
        %4727 = vmatpush1.xpose.msra.mxu0 %v4726
        %4728 = vmatprep.subr.mxu0 0.0
        %4729 = vmatpush1.xpose.msra.mxu0 0.0
        %4730 = vmatprep.subr.mxu0 0.0
        %4731 = vmatpush1.xpose.msra.mxu0 0.0
        %4732 = vmatprep.subr.mxu0 0.0
        %4733 = vmatpush1.xpose.msra.mxu0 0.0
        %4734 = vmatprep.subr.mxu0 0.0
        %4735 = vmatpush1.xpose.msra.mxu0 0.0
        %4736 = vmatprep.subr.mxu0 0.0
        %4737 = vmatpush1.xpose.msra.mxu0 0.0
        %4738 = vmatprep.subr.mxu0 0.0
        %4739 = vmatpush1.xpose.msra.mxu0 0.0
        %4740 = vmatprep.subr.mxu0 0.0
        %4741 = vmatpush1.xpose.msra.mxu0 0.0
        %4742 = vmatprep.subr.mxu0 0.0
        %4743 = vmatpush1.xpose.msra.mxu0 0.0
        %4744 = vmatprep.subr.mxu0 0.0
        %4745 = vmatpush1.xpose.msra.mxu0 0.0
        %4746 = vmatprep.subr.mxu0 0.0
        %4747 = vmatpush1.xpose.msra.mxu0 0.0
        %4748 = vmatprep.subr.mxu0 0.0
        %4749 = vmatpush1.xpose.msra.mxu0 0.0
        %4750 = vmatprep.subr.mxu0 0.0
        %4751 = vmatpush1.xpose.msra.mxu0 0.0
        %4752 = vmatprep.subr.mxu0 0.0
        %4753 = vmatpush1.xpose.msra.mxu0 0.0
        %4754 = vmatprep.subr.mxu0 0.0
        %4755 = vmatpush1.xpose.msra.mxu0 0.0
        %4756 = vmatprep.subr.mxu0 0.0
        %4757 = vmatpush1.xpose.msra.mxu0 0.0
        %4758 = vmatprep.subr.mxu0 0.0
        %4759 = vmatpush1.xpose.msra.mxu0 0.0
        %4760 = vmatprep.subr.mxu0 0.0
        %4761 = vmatpush1.xpose.msra.mxu0 0.0
        %4762 = vmatprep.subr.mxu0 0.0
        %4763 = vmatpush1.xpose.msra.mxu0 0.0
        %4764 = vmatprep.subr.mxu0 0.0
        %4765 = vmatpush1.xpose.msra.mxu0 0.0
        %4766 = vmatprep.subr.mxu0 0.0
        %4767 = vmatpush1.xpose.msra.mxu0 0.0
        %4768 = vmatprep.subr.mxu0 0.0
        %4769 = vmatpush1.xpose.msra.mxu0 0.0
        %4770 = vmatprep.subr.mxu0 0.0
        %4771 = vmatpush1.xpose.msra.mxu0 0.0
        %4772 = vmatprep.subr.mxu0 0.0
        %4773 = vmatpush1.xpose.msra.mxu0 0.0
        %4774 = vmatprep.subr.mxu0 0.0
        %4775 = vmatpush1.xpose.msra.mxu0 0.0
        %4776 = vmatprep.subr.mxu0 0.0
        %4777 = vmatpush1.xpose.msra.mxu0 0.0
        %4778 = vmatprep.subr.mxu0 0.0
        %4779 = vmatpush1.xpose.msra.mxu0 0.0
        %4780 = vmatprep.subr.mxu0 0.0
        %4781 = vmatpush1.xpose.msra.mxu0 0.0
        %4782 = vmatprep.subr.mxu0 0.0
        %4783 = vmatpush1.xpose.msra.mxu0 0.0
        %4784 = vmatprep.subr.mxu0 0.0
        %4785 = vmatpush1.xpose.msra.mxu0 0.0
        %4786 = vmatprep.subr.mxu0 0.0
        %4787 = vmatpush1.xpose.msra.mxu0 0.0
        %4788 = vmatprep.subr.mxu0 0.0
        %4789 = vmatpush1.xpose.msra.mxu0 0.0
        %4790 = vmatprep.mubr.f32.mxu0 0.0
        %v4791 = vand.u32 %v4721, 4294901760
        %v4792 = vsub.f32 %v4721, %v4791
        %v4793 = vand.u32 %v4792, 4294901760
        %v4794 = vsub.f32 %v4792, %v4793
        %v4795 = vand.u32 %v4794, 4294901760
        %4796 = vmatmul.mubr.f32.gmra.mrb[0].mxu0 %v4795
        %v4797 = vpop.f32.mrb[0].mxu0
        %v4798 = vadd.f32 0.0, %v4797
        %v4799 = vpop.f32.mrb[0].mxu0
        %4800 = vdwg.mxu0
        %4801 = vmatprep.subr.mxu0 0.0
        %v4802 = vand.u32 %v4723, 4294901760
        %v4803 = vsub.f32 %v4723, %v4802
        %v4804 = vand.u32 %v4803, 4294901760
        %v4805 = vsub.f32 %v4803, %v4804
        %v4806 = vand.u32 %v4805, 4294901760
        %4807 = vmatpush1.xpose.msra.mxu0 %v4806
        %4808 = vmatprep.subr.mxu0 0.0
        %4809 = vmatpush1.xpose.msra.mxu0 0.0
        %4810 = vmatprep.subr.mxu0 0.0
        %4811 = vmatpush1.xpose.msra.mxu0 0.0
        %4812 = vmatprep.subr.mxu0 0.0
        %4813 = vmatpush1.xpose.msra.mxu0 0.0
        %4814 = vmatprep.subr.mxu0 0.0
        %4815 = vmatpush1.xpose.msra.mxu0 0.0
        %4816 = vmatprep.subr.mxu0 0.0
        %4817 = vmatpush1.xpose.msra.mxu0 0.0
        %4818 = vmatprep.subr.mxu0 0.0
        %4819 = vmatpush1.xpose.msra.mxu0 0.0
        %4820 = vmatprep.subr.mxu0 0.0
        %4821 = vmatpush1.xpose.msra.mxu0 0.0
        %4822 = vmatprep.subr.mxu0 0.0
        %4823 = vmatpush1.xpose.msra.mxu0 0.0
        %4824 = vmatprep.subr.mxu0 0.0
        %4825 = vmatpush1.xpose.msra.mxu0 0.0
        %4826 = vmatprep.subr.mxu0 0.0
        %4827 = vmatpush1.xpose.msra.mxu0 0.0
        %4828 = vmatprep.subr.mxu0 0.0
        %4829 = vmatpush1.xpose.msra.mxu0 0.0
        %4830 = vmatprep.subr.mxu0 0.0
        %4831 = vmatpush1.xpose.msra.mxu0 0.0
        %4832 = vmatprep.subr.mxu0 0.0
        %4833 = vmatpush1.xpose.msra.mxu0 0.0
        %4834 = vmatprep.subr.mxu0 0.0
        %4835 = vmatpush1.xpose.msra.mxu0 0.0
        %4836 = vmatprep.subr.mxu0 0.0
        %4837 = vmatpush1.xpose.msra.mxu0 0.0
        %4838 = vmatprep.subr.mxu0 0.0
        %4839 = vmatpush1.xpose.msra.mxu0 0.0
        %4840 = vmatprep.subr.mxu0 0.0
        %4841 = vmatpush1.xpose.msra.mxu0 0.0
        %4842 = vmatprep.subr.mxu0 0.0
        %4843 = vmatpush1.xpose.msra.mxu0 0.0
        %4844 = vmatprep.subr.mxu0 0.0
        %4845 = vmatpush1.xpose.msra.mxu0 0.0
        %4846 = vmatprep.subr.mxu0 0.0
        %4847 = vmatpush1.xpose.msra.mxu0 0.0
        %4848 = vmatprep.subr.mxu0 0.0
        %4849 = vmatpush1.xpose.msra.mxu0 0.0
        %4850 = vmatprep.subr.mxu0 0.0
        %4851 = vmatpush1.xpose.msra.mxu0 0.0
        %4852 = vmatprep.subr.mxu0 0.0
        %4853 = vmatpush1.xpose.msra.mxu0 0.0
        %4854 = vmatprep.subr.mxu0 0.0
        %4855 = vmatpush1.xpose.msra.mxu0 0.0
        %4856 = vmatprep.subr.mxu0 0.0
        %4857 = vmatpush1.xpose.msra.mxu0 0.0
        %4858 = vmatprep.subr.mxu0 0.0
        %4859 = vmatpush1.xpose.msra.mxu0 0.0
        %4860 = vmatprep.subr.mxu0 0.0
        %4861 = vmatpush1.xpose.msra.mxu0 0.0
        %4862 = vmatprep.subr.mxu0 0.0
        %4863 = vmatpush1.xpose.msra.mxu0 0.0
        %4864 = vmatprep.subr.mxu0 0.0
        %4865 = vmatpush1.xpose.msra.mxu0 0.0
        %4866 = vmatprep.subr.mxu0 0.0
        %4867 = vmatpush1.xpose.msra.mxu0 0.0
        %4868 = vmatprep.subr.mxu0 0.0
        %4869 = vmatpush1.xpose.msra.mxu0 0.0
        %4870 = vmatprep.mubr.f32.mxu0 0.0
        %v4871 = vand.u32 %v4721, 4294901760
        %4872 = vmatmul.mubr.f32.gmra.mrb[0].mxu0 %v4871
        %v4873 = vpop.f32.mrb[0].mxu0
        %v4874 = vadd.f32 %v4798, %v4873
        %v4875 = vpop.f32.mrb[0].mxu0
        %4876 = vdwg.mxu0
        %4877 = vmatprep.subr.mxu0 0.0
        %v4878 = vand.u32 %v4723, 4294901760
        %v4879 = vsub.f32 %v4723, %v4878
        %4880 = vmatpush1.xpose.msra.mxu0 %v4879
        %4881 = vmatprep.subr.mxu0 0.0
        %4882 = vmatpush1.xpose.msra.mxu0 0.0
        %4883 = vmatprep.subr.mxu0 0.0
        %4884 = vmatpush1.xpose.msra.mxu0 0.0
        %4885 = vmatprep.subr.mxu0 0.0
        %4886 = vmatpush1.xpose.msra.mxu0 0.0
        %4887 = vmatprep.subr.mxu0 0.0
        %4888 = vmatpush1.xpose.msra.mxu0 0.0
        %4889 = vmatprep.subr.mxu0 0.0
        %4890 = vmatpush1.xpose.msra.mxu0 0.0
        %4891 = vmatprep.subr.mxu0 0.0
        %4892 = vmatpush1.xpose.msra.mxu0 0.0
        %4893 = vmatprep.subr.mxu0 0.0
        %4894 = vmatpush1.xpose.msra.mxu0 0.0
        %4895 = vmatprep.subr.mxu0 0.0
        %4896 = vmatpush1.xpose.msra.mxu0 0.0
        %4897 = vmatprep.subr.mxu0 0.0
        %4898 = vmatpush1.xpose.msra.mxu0 0.0
        %4899 = vmatprep.subr.mxu0 0.0
        %4900 = vmatpush1.xpose.msra.mxu0 0.0
        %4901 = vmatprep.subr.mxu0 0.0
        %4902 = vmatpush1.xpose.msra.mxu0 0.0
        %4903 = vmatprep.subr.mxu0 0.0
        %4904 = vmatpush1.xpose.msra.mxu0 0.0
        %4905 = vmatprep.subr.mxu0 0.0
        %4906 = vmatpush1.xpose.msra.mxu0 0.0
        %4907 = vmatprep.subr.mxu0 0.0
        %4908 = vmatpush1.xpose.msra.mxu0 0.0
        %4909 = vmatprep.subr.mxu0 0.0
        %4910 = vmatpush1.xpose.msra.mxu0 0.0
        %4911 = vmatprep.subr.mxu0 0.0
        %4912 = vmatpush1.xpose.msra.mxu0 0.0
        %4913 = vmatprep.subr.mxu0 0.0
        %4914 = vmatpush1.xpose.msra.mxu0 0.0
        %4915 = vmatprep.subr.mxu0 0.0
        %4916 = vmatpush1.xpose.msra.mxu0 0.0
        %4917 = vmatprep.subr.mxu0 0.0
        %4918 = vmatpush1.xpose.msra.mxu0 0.0
        %4919 = vmatprep.subr.mxu0 0.0
        %4920 = vmatpush1.xpose.msra.mxu0 0.0
        %4921 = vmatprep.subr.mxu0 0.0
        %4922 = vmatpush1.xpose.msra.mxu0 0.0
        %4923 = vmatprep.subr.mxu0 0.0
        %4924 = vmatpush1.xpose.msra.mxu0 0.0
        %4925 = vmatprep.subr.mxu0 0.0
        %4926 = vmatpush1.xpose.msra.mxu0 0.0
        %4927 = vmatprep.subr.mxu0 0.0
        %4928 = vmatpush1.xpose.msra.mxu0 0.0
        %4929 = vmatprep.subr.mxu0 0.0
        %4930 = vmatpush1.xpose.msra.mxu0 0.0
        %4931 = vmatprep.subr.mxu0 0.0
        %4932 = vmatpush1.xpose.msra.mxu0 0.0
        %4933 = vmatprep.subr.mxu0 0.0
        %4934 = vmatpush1.xpose.msra.mxu0 0.0
        %4935 = vmatprep.subr.mxu0 0.0
        %4936 = vmatpush1.xpose.msra.mxu0 0.0
        %4937 = vmatprep.subr.mxu0 0.0
        %4938 = vmatpush1.xpose.msra.mxu0 0.0
        %4939 = vmatprep.subr.mxu0 0.0
        %4940 = vmatpush1.xpose.msra.mxu0 0.0
        %4941 = vmatprep.subr.mxu0 0.0
        %4942 = vmatpush1.xpose.msra.mxu0 0.0
        %4943 = vmatprep.mubr.f32.mxu0 0.0
        %v4944 = vand.u32 %v4721, 4294901760
        %v4945 = vsub.f32 %v4721, %v4944
        %4946 = vmatmul.mubr.f32.gmra.mrb[0].mxu0 %v4945
        %v4947 = vpop.f32.mrb[0].mxu0
        %v4948 = vadd.f32 %v4874, %v4947
        %v4949 = vpop.f32.mrb[0].mxu0
        %4950 = vdwg.mxu0
        %4951 = vmatprep.subr.mxu0 0.0
        %v4952 = vand.u32 %v4723, 4294901760
        %4953 = vmatpush1.xpose.msra.mxu0 %v4952
        %4954 = vmatprep.subr.mxu0 0.0
        %4955 = vmatpush1.xpose.msra.mxu0 0.0
        %4956 = vmatprep.subr.mxu0 0.0
        %4957 = vmatpush1.xpose.msra.mxu0 0.0
        %4958 = vmatprep.subr.mxu0 0.0
        %4959 = vmatpush1.xpose.msra.mxu0 0.0
        %4960 = vmatprep.subr.mxu0 0.0
        %4961 = vmatpush1.xpose.msra.mxu0 0.0
        %4962 = vmatprep.subr.mxu0 0.0
        %4963 = vmatpush1.xpose.msra.mxu0 0.0
        %4964 = vmatprep.subr.mxu0 0.0
        %4965 = vmatpush1.xpose.msra.mxu0 0.0
        %4966 = vmatprep.subr.mxu0 0.0
        %4967 = vmatpush1.xpose.msra.mxu0 0.0
        %4968 = vmatprep.subr.mxu0 0.0
        %4969 = vmatpush1.xpose.msra.mxu0 0.0
        %4970 = vmatprep.subr.mxu0 0.0
        %4971 = vmatpush1.xpose.msra.mxu0 0.0
        %4972 = vmatprep.subr.mxu0 0.0
        %4973 = vmatpush1.xpose.msra.mxu0 0.0
        %4974 = vmatprep.subr.mxu0 0.0
        %4975 = vmatpush1.xpose.msra.mxu0 0.0
        %4976 = vmatprep.subr.mxu0 0.0
        %4977 = vmatpush1.xpose.msra.mxu0 0.0
        %4978 = vmatprep.subr.mxu0 0.0
        %4979 = vmatpush1.xpose.msra.mxu0 0.0
        %4980 = vmatprep.subr.mxu0 0.0
        %4981 = vmatpush1.xpose.msra.mxu0 0.0
        %4982 = vmatprep.subr.mxu0 0.0
        %4983 = vmatpush1.xpose.msra.mxu0 0.0
        %4984 = vmatprep.subr.mxu0 0.0
        %4985 = vmatpush1.xpose.msra.mxu0 0.0
        %4986 = vmatprep.subr.mxu0 0.0
        %4987 = vmatpush1.xpose.msra.mxu0 0.0
        %4988 = vmatprep.subr.mxu0 0.0
        %4989 = vmatpush1.xpose.msra.mxu0 0.0
        %4990 = vmatprep.subr.mxu0 0.0
        %4991 = vmatpush1.xpose.msra.mxu0 0.0
        %4992 = vmatprep.subr.mxu0 0.0
        %4993 = vmatpush1.xpose.msra.mxu0 0.0
        %4994 = vmatprep.subr.mxu0 0.0
        %4995 = vmatpush1.xpose.msra.mxu0 0.0
        %4996 = vmatprep.subr.mxu0 0.0
        %4997 = vmatpush1.xpose.msra.mxu0 0.0
        %4998 = vmatprep.subr.mxu0 0.0
        %4999 = vmatpush1.xpose.msra.mxu0 0.0
        %5000 = vmatprep.subr.mxu0 0.0
        %5001 = vmatpush1.xpose.msra.mxu0 0.0
        %5002 = vmatprep.subr.mxu0 0.0
        %5003 = vmatpush1.xpose.msra.mxu0 0.0
        %5004 = vmatprep.subr.mxu0 0.0
        %5005 = vmatpush1.xpose.msra.mxu0 0.0
        %5006 = vmatprep.subr.mxu0 0.0
        %5007 = vmatpush1.xpose.msra.mxu0 0.0
        %5008 = vmatprep.subr.mxu0 0.0
        %5009 = vmatpush1.xpose.msra.mxu0 0.0
        %5010 = vmatprep.subr.mxu0 0.0
        %5011 = vmatpush1.xpose.msra.mxu0 0.0
        %5012 = vmatprep.subr.mxu0 0.0
        %5013 = vmatpush1.xpose.msra.mxu0 0.0
        %5014 = vmatprep.subr.mxu0 0.0
        %5015 = vmatpush1.xpose.msra.mxu0 0.0
        %5016 = vmatprep.mubr.f32.mxu0 0.0
        %v5017 = vand.u32 %v4721, 4294901760
        %v5018 = vsub.f32 %v4721, %v5017
        %v5019 = vand.u32 %v5018, 4294901760
        %5020 = vmatmul.mubr.f32.gmra.mrb[0].mxu0 %v5019
        %v5021 = vpop.f32.mrb[0].mxu0
        %v5022 = vadd.f32 %v4948, %v5021
        %v5023 = vpop.f32.mrb[0].mxu0
        %5024 = vdwg.mxu0
        %5025 = vmatprep.subr.mxu0 0.0
        %v5026 = vand.u32 %v4723, 4294901760
        %v5027 = vsub.f32 %v4723, %v5026
        %v5028 = vand.u32 %v5027, 4294901760
        %5029 = vmatpush1.xpose.msra.mxu0 %v5028
        %5030 = vmatprep.subr.mxu0 0.0
        %5031 = vmatpush1.xpose.msra.mxu0 0.0
        %5032 = vmatprep.subr.mxu0 0.0
        %5033 = vmatpush1.xpose.msra.mxu0 0.0
        %5034 = vmatprep.subr.mxu0 0.0
        %5035 = vmatpush1.xpose.msra.mxu0 0.0
        %5036 = vmatprep.subr.mxu0 0.0
        %5037 = vmatpush1.xpose.msra.mxu0 0.0
        %5038 = vmatprep.subr.mxu0 0.0
        %5039 = vmatpush1.xpose.msra.mxu0 0.0
        %5040 = vmatprep.subr.mxu0 0.0
        %5041 = vmatpush1.xpose.msra.mxu0 0.0
        %5042 = vmatprep.subr.mxu0 0.0
        %5043 = vmatpush1.xpose.msra.mxu0 0.0
        %5044 = vmatprep.subr.mxu0 0.0
        %5045 = vmatpush1.xpose.msra.mxu0 0.0
        %5046 = vmatprep.subr.mxu0 0.0
        %5047 = vmatpush1.xpose.msra.mxu0 0.0
        %5048 = vmatprep.subr.mxu0 0.0
        %5049 = vmatpush1.xpose.msra.mxu0 0.0
        %5050 = vmatprep.subr.mxu0 0.0
        %5051 = vmatpush1.xpose.msra.mxu0 0.0
        %5052 = vmatprep.subr.mxu0 0.0
        %5053 = vmatpush1.xpose.msra.mxu0 0.0
        %5054 = vmatprep.subr.mxu0 0.0
        %5055 = vmatpush1.xpose.msra.mxu0 0.0
        %5056 = vmatprep.subr.mxu0 0.0
        %5057 = vmatpush1.xpose.msra.mxu0 0.0
        %5058 = vmatprep.subr.mxu0 0.0
        %5059 = vmatpush1.xpose.msra.mxu0 0.0
        %5060 = vmatprep.subr.mxu0 0.0
        %5061 = vmatpush1.xpose.msra.mxu0 0.0
        %5062 = vmatprep.subr.mxu0 0.0
        %5063 = vmatpush1.xpose.msra.mxu0 0.0
        %5064 = vmatprep.subr.mxu0 0.0
        %5065 = vmatpush1.xpose.msra.mxu0 0.0
        %5066 = vmatprep.subr.mxu0 0.0
        %5067 = vmatpush1.xpose.msra.mxu0 0.0
        %5068 = vmatprep.subr.mxu0 0.0
        %5069 = vmatpush1.xpose.msra.mxu0 0.0
        %5070 = vmatprep.subr.mxu0 0.0
        %5071 = vmatpush1.xpose.msra.mxu0 0.0
        %5072 = vmatprep.subr.mxu0 0.0
        %5073 = vmatpush1.xpose.msra.mxu0 0.0
        %5074 = vmatprep.subr.mxu0 0.0
        %5075 = vmatpush1.xpose.msra.mxu0 0.0
        %5076 = vmatprep.subr.mxu0 0.0
        %5077 = vmatpush1.xpose.msra.mxu0 0.0
        %5078 = vmatprep.subr.mxu0 0.0
        %5079 = vmatpush1.xpose.msra.mxu0 0.0
        %5080 = vmatprep.subr.mxu0 0.0
        %5081 = vmatpush1.xpose.msra.mxu0 0.0
        %5082 = vmatprep.subr.mxu0 0.0
        %5083 = vmatpush1.xpose.msra.mxu0 0.0
        %5084 = vmatprep.subr.mxu0 0.0
        %5085 = vmatpush1.xpose.msra.mxu0 0.0
        %5086 = vmatprep.subr.mxu0 0.0
        %5087 = vmatpush1.xpose.msra.mxu0 0.0
        %5088 = vmatprep.subr.mxu0 0.0
        %5089 = vmatpush1.xpose.msra.mxu0 0.0
        %5090 = vmatprep.subr.mxu0 0.0
        %5091 = vmatpush1.xpose.msra.mxu0 0.0
        %5092 = vmatprep.mubr.f32.mxu0 0.0
        %v5093 = vand.u32 %v4721, 4294901760
        %5094 = vmatmul.mubr.f32.gmra.mrb[0].mxu0 %v5093
        %v5095 = vpop.f32.mrb[0].mxu0
        %v5096 = vadd.f32 %v5022, %v5095
        %v5097 = vpop.f32.mrb[0].mxu0
        %5098 = vdwg.mxu0
        %5099 = vmatprep.subr.mxu0 0.0
        %v5100 = vand.u32 %v4723, 4294901760
        %5101 = vmatpush1.xpose.msra.mxu0 %v5100
        %5102 = vmatprep.subr.mxu0 0.0
        %5103 = vmatpush1.xpose.msra.mxu0 0.0
        %5104 = vmatprep.subr.mxu0 0.0
        %5105 = vmatpush1.xpose.msra.mxu0 0.0
        %5106 = vmatprep.subr.mxu0 0.0
        %5107 = vmatpush1.xpose.msra.mxu0 0.0
        %5108 = vmatprep.subr.mxu0 0.0
        %5109 = vmatpush1.xpose.msra.mxu0 0.0
        %5110 = vmatprep.subr.mxu0 0.0
        %5111 = vmatpush1.xpose.msra.mxu0 0.0
        %5112 = vmatprep.subr.mxu0 0.0
        %5113 = vmatpush1.xpose.msra.mxu0 0.0
        %5114 = vmatprep.subr.mxu0 0.0
        %5115 = vmatpush1.xpose.msra.mxu0 0.0
        %5116 = vmatprep.subr.mxu0 0.0
        %5117 = vmatpush1.xpose.msra.mxu0 0.0
        %5118 = vmatprep.subr.mxu0 0.0
        %5119 = vmatpush1.xpose.msra.mxu0 0.0
        %5120 = vmatprep.subr.mxu0 0.0
        %5121 = vmatpush1.xpose.msra.mxu0 0.0
        %5122 = vmatprep.subr.mxu0 0.0
        %5123 = vmatpush1.xpose.msra.mxu0 0.0
        %5124 = vmatprep.subr.mxu0 0.0
        %5125 = vmatpush1.xpose.msra.mxu0 0.0
        %5126 = vmatprep.subr.mxu0 0.0
        %5127 = vmatpush1.xpose.msra.mxu0 0.0
        %5128 = vmatprep.subr.mxu0 0.0
        %5129 = vmatpush1.xpose.msra.mxu0 0.0
        %5130 = vmatprep.subr.mxu0 0.0
        %5131 = vmatpush1.xpose.msra.mxu0 0.0
        %5132 = vmatprep.subr.mxu0 0.0
        %5133 = vmatpush1.xpose.msra.mxu0 0.0
        %5134 = vmatprep.subr.mxu0 0.0
        %5135 = vmatpush1.xpose.msra.mxu0 0.0
        %5136 = vmatprep.subr.mxu0 0.0
        %5137 = vmatpush1.xpose.msra.mxu0 0.0
        %5138 = vmatprep.subr.mxu0 0.0
        %5139 = vmatpush1.xpose.msra.mxu0 0.0
        %5140 = vmatprep.subr.mxu0 0.0
        %5141 = vmatpush1.xpose.msra.mxu0 0.0
        %5142 = vmatprep.subr.mxu0 0.0
        %5143 = vmatpush1.xpose.msra.mxu0 0.0
        %5144 = vmatprep.subr.mxu0 0.0
        %5145 = vmatpush1.xpose.msra.mxu0 0.0
        %5146 = vmatprep.subr.mxu0 0.0
        %5147 = vmatpush1.xpose.msra.mxu0 0.0
        %5148 = vmatprep.subr.mxu0 0.0
        %5149 = vmatpush1.xpose.msra.mxu0 0.0
        %5150 = vmatprep.subr.mxu0 0.0
        %5151 = vmatpush1.xpose.msra.mxu0 0.0
        %5152 = vmatprep.subr.mxu0 0.0
        %5153 = vmatpush1.xpose.msra.mxu0 0.0
        %5154 = vmatprep.subr.mxu0 0.0
        %5155 = vmatpush1.xpose.msra.mxu0 0.0
        %5156 = vmatprep.subr.mxu0 0.0
        %5157 = vmatpush1.xpose.msra.mxu0 0.0
        %5158 = vmatprep.subr.mxu0 0.0
        %5159 = vmatpush1.xpose.msra.mxu0 0.0
        %5160 = vmatprep.subr.mxu0 0.0
        %5161 = vmatpush1.xpose.msra.mxu0 0.0
        %5162 = vmatprep.subr.mxu0 0.0
        %5163 = vmatpush1.xpose.msra.mxu0 0.0
        %5164 = vmatprep.mubr.f32.mxu0 0.0
        %v5165 = vand.u32 %v4721, 4294901760
        %5166 = vmatmul.mubr.f32.gmra.mrb[0].mxu0 %v5165
        %v5167 = vpop.f32.mrb[0].mxu0
        %v5168 = vadd.f32 %v5096, %v5167
        %v5169 = vpop.f32.mrb[0].mxu0
        %5170 = vdwg.mxu0
        %5171 = vrot.lane.b32.xlu0 %v1790, 112
        %v5172 = vpop.permute.xlu0 %5171
        %5173 = vrot.lane.b32.xlu0 %v2329, 112
        %v5174 = vpop.permute.xlu0 %5173
        %v5175 = vsel %vm736, %v5172, 0
        %v5177 = vsel %vm736, %v5174, 0
        %5179 = vmatprep.subr.mxu0 0.0
        %v5180 = vand.u32 %v5177, 4294901760
        %5181 = vmatpush1.xpose.msra.mxu0 %v5180
        %5182 = vmatprep.subr.mxu0 0.0
        %5183 = vmatpush1.xpose.msra.mxu0 0.0
        %5184 = vmatprep.subr.mxu0 0.0
        %5185 = vmatpush1.xpose.msra.mxu0 0.0
        %5186 = vmatprep.subr.mxu0 0.0
        %5187 = vmatpush1.xpose.msra.mxu0 0.0
        %5188 = vmatprep.subr.mxu0 0.0
        %5189 = vmatpush1.xpose.msra.mxu0 0.0
        %5190 = vmatprep.subr.mxu0 0.0
        %5191 = vmatpush1.xpose.msra.mxu0 0.0
        %5192 = vmatprep.subr.mxu0 0.0
        %5193 = vmatpush1.xpose.msra.mxu0 0.0
        %5194 = vmatprep.subr.mxu0 0.0
        %5195 = vmatpush1.xpose.msra.mxu0 0.0
        %5196 = vmatprep.subr.mxu0 0.0
        %5197 = vmatpush1.xpose.msra.mxu0 0.0
        %5198 = vmatprep.subr.mxu0 0.0
        %5199 = vmatpush1.xpose.msra.mxu0 0.0
        %5200 = vmatprep.subr.mxu0 0.0
        %5201 = vmatpush1.xpose.msra.mxu0 0.0
        %5202 = vmatprep.subr.mxu0 0.0
        %5203 = vmatpush1.xpose.msra.mxu0 0.0
        %5204 = vmatprep.subr.mxu0 0.0
        %5205 = vmatpush1.xpose.msra.mxu0 0.0
        %5206 = vmatprep.subr.mxu0 0.0
        %5207 = vmatpush1.xpose.msra.mxu0 0.0
        %5208 = vmatprep.subr.mxu0 0.0
        %5209 = vmatpush1.xpose.msra.mxu0 0.0
        %5210 = vmatprep.subr.mxu0 0.0
        %5211 = vmatpush1.xpose.msra.mxu0 0.0
        %5212 = vmatprep.subr.mxu0 0.0
        %5213 = vmatpush1.xpose.msra.mxu0 0.0
        %5214 = vmatprep.subr.mxu0 0.0
        %5215 = vmatpush1.xpose.msra.mxu0 0.0
        %5216 = vmatprep.subr.mxu0 0.0
        %5217 = vmatpush1.xpose.msra.mxu0 0.0
        %5218 = vmatprep.subr.mxu0 0.0
        %5219 = vmatpush1.xpose.msra.mxu0 0.0
        %5220 = vmatprep.subr.mxu0 0.0
        %5221 = vmatpush1.xpose.msra.mxu0 0.0
        %5222 = vmatprep.subr.mxu0 0.0
        %5223 = vmatpush1.xpose.msra.mxu0 0.0
        %5224 = vmatprep.subr.mxu0 0.0
        %5225 = vmatpush1.xpose.msra.mxu0 0.0
        %5226 = vmatprep.subr.mxu0 0.0
        %5227 = vmatpush1.xpose.msra.mxu0 0.0
        %5228 = vmatprep.subr.mxu0 0.0
        %5229 = vmatpush1.xpose.msra.mxu0 0.0
        %5230 = vmatprep.subr.mxu0 0.0
        %5231 = vmatpush1.xpose.msra.mxu0 0.0
        %5232 = vmatprep.subr.mxu0 0.0
        %5233 = vmatpush1.xpose.msra.mxu0 0.0
        %5234 = vmatprep.subr.mxu0 0.0
        %5235 = vmatpush1.xpose.msra.mxu0 0.0
        %5236 = vmatprep.subr.mxu0 0.0
        %5237 = vmatpush1.xpose.msra.mxu0 0.0
        %5238 = vmatprep.subr.mxu0 0.0
        %5239 = vmatpush1.xpose.msra.mxu0 0.0
        %5240 = vmatprep.subr.mxu0 0.0
        %5241 = vmatpush1.xpose.msra.mxu0 0.0
        %5242 = vmatprep.subr.mxu0 0.0
        %5243 = vmatpush1.xpose.msra.mxu0 0.0
        %5244 = vmatprep.mubr.f32.mxu0 0.0
        %v5245 = vand.u32 %v5175, 4294901760
        %v5246 = vsub.f32 %v5175, %v5245
        %v5247 = vand.u32 %v5246, 4294901760
        %v5248 = vsub.f32 %v5246, %v5247
        %v5249 = vand.u32 %v5248, 4294901760
        %5250 = vmatmul.mubr.f32.gmra.mrb[0].mxu0 %v5249
        %v5251 = vpop.f32.mrb[0].mxu0
        %v5252 = vadd.f32 0.0, %v5251
        %v5253 = vpop.f32.mrb[0].mxu0
        %5254 = vdwg.mxu0
        %5255 = vmatprep.subr.mxu0 0.0
        %v5256 = vand.u32 %v5177, 4294901760
        %v5257 = vsub.f32 %v5177, %v5256
        %v5258 = vand.u32 %v5257, 4294901760
        %v5259 = vsub.f32 %v5257, %v5258
        %v5260 = vand.u32 %v5259, 4294901760
        %5261 = vmatpush1.xpose.msra.mxu0 %v5260
        %5262 = vmatprep.subr.mxu0 0.0
        %5263 = vmatpush1.xpose.msra.mxu0 0.0
        %5264 = vmatprep.subr.mxu0 0.0
        %5265 = vmatpush1.xpose.msra.mxu0 0.0
        %5266 = vmatprep.subr.mxu0 0.0
        %5267 = vmatpush1.xpose.msra.mxu0 0.0
        %5268 = vmatprep.subr.mxu0 0.0
        %5269 = vmatpush1.xpose.msra.mxu0 0.0
        %5270 = vmatprep.subr.mxu0 0.0
        %5271 = vmatpush1.xpose.msra.mxu0 0.0
        %5272 = vmatprep.subr.mxu0 0.0
        %5273 = vmatpush1.xpose.msra.mxu0 0.0
        %5274 = vmatprep.subr.mxu0 0.0
        %5275 = vmatpush1.xpose.msra.mxu0 0.0
        %5276 = vmatprep.subr.mxu0 0.0
        %5277 = vmatpush1.xpose.msra.mxu0 0.0
        %5278 = vmatprep.subr.mxu0 0.0
        %5279 = vmatpush1.xpose.msra.mxu0 0.0
        %5280 = vmatprep.subr.mxu0 0.0
        %5281 = vmatpush1.xpose.msra.mxu0 0.0
        %5282 = vmatprep.subr.mxu0 0.0
        %5283 = vmatpush1.xpose.msra.mxu0 0.0
        %5284 = vmatprep.subr.mxu0 0.0
        %5285 = vmatpush1.xpose.msra.mxu0 0.0
        %5286 = vmatprep.subr.mxu0 0.0
        %5287 = vmatpush1.xpose.msra.mxu0 0.0
        %5288 = vmatprep.subr.mxu0 0.0
        %5289 = vmatpush1.xpose.msra.mxu0 0.0
        %5290 = vmatprep.subr.mxu0 0.0
        %5291 = vmatpush1.xpose.msra.mxu0 0.0
        %5292 = vmatprep.subr.mxu0 0.0
        %5293 = vmatpush1.xpose.msra.mxu0 0.0
        %5294 = vmatprep.subr.mxu0 0.0
        %5295 = vmatpush1.xpose.msra.mxu0 0.0
        %5296 = vmatprep.subr.mxu0 0.0
        %5297 = vmatpush1.xpose.msra.mxu0 0.0
        %5298 = vmatprep.subr.mxu0 0.0
        %5299 = vmatpush1.xpose.msra.mxu0 0.0
        %5300 = vmatprep.subr.mxu0 0.0
        %5301 = vmatpush1.xpose.msra.mxu0 0.0
        %5302 = vmatprep.subr.mxu0 0.0
        %5303 = vmatpush1.xpose.msra.mxu0 0.0
        %5304 = vmatprep.subr.mxu0 0.0
        %5305 = vmatpush1.xpose.msra.mxu0 0.0
        %5306 = vmatprep.subr.mxu0 0.0
        %5307 = vmatpush1.xpose.msra.mxu0 0.0
        %5308 = vmatprep.subr.mxu0 0.0
        %5309 = vmatpush1.xpose.msra.mxu0 0.0
        %5310 = vmatprep.subr.mxu0 0.0
        %5311 = vmatpush1.xpose.msra.mxu0 0.0
        %5312 = vmatprep.subr.mxu0 0.0
        %5313 = vmatpush1.xpose.msra.mxu0 0.0
        %5314 = vmatprep.subr.mxu0 0.0
        %5315 = vmatpush1.xpose.msra.mxu0 0.0
        %5316 = vmatprep.subr.mxu0 0.0
        %5317 = vmatpush1.xpose.msra.mxu0 0.0
        %5318 = vmatprep.subr.mxu0 0.0
        %5319 = vmatpush1.xpose.msra.mxu0 0.0
        %5320 = vmatprep.subr.mxu0 0.0
        %5321 = vmatpush1.xpose.msra.mxu0 0.0
        %5322 = vmatprep.subr.mxu0 0.0
        %5323 = vmatpush1.xpose.msra.mxu0 0.0
        %5324 = vmatprep.mubr.f32.mxu0 0.0
        %v5325 = vand.u32 %v5175, 4294901760
        %5326 = vmatmul.mubr.f32.gmra.mrb[0].mxu0 %v5325
        %v5327 = vpop.f32.mrb[0].mxu0
        %v5328 = vadd.f32 %v5252, %v5327
        %v5329 = vpop.f32.mrb[0].mxu0
        %5330 = vdwg.mxu0
        %5331 = vmatprep.subr.mxu0 0.0
        %v5332 = vand.u32 %v5177, 4294901760
        %v5333 = vsub.f32 %v5177, %v5332
        %5334 = vmatpush1.xpose.msra.mxu0 %v5333
        %5335 = vmatprep.subr.mxu0 0.0
        %5336 = vmatpush1.xpose.msra.mxu0 0.0
        %5337 = vmatprep.subr.mxu0 0.0
        %5338 = vmatpush1.xpose.msra.mxu0 0.0
        %5339 = vmatprep.subr.mxu0 0.0
        %5340 = vmatpush1.xpose.msra.mxu0 0.0
        %5341 = vmatprep.subr.mxu0 0.0
        %5342 = vmatpush1.xpose.msra.mxu0 0.0
        %5343 = vmatprep.subr.mxu0 0.0
        %5344 = vmatpush1.xpose.msra.mxu0 0.0
        %5345 = vmatprep.subr.mxu0 0.0
        %5346 = vmatpush1.xpose.msra.mxu0 0.0
        %5347 = vmatprep.subr.mxu0 0.0
        %5348 = vmatpush1.xpose.msra.mxu0 0.0
        %5349 = vmatprep.subr.mxu0 0.0
        %5350 = vmatpush1.xpose.msra.mxu0 0.0
        %5351 = vmatprep.subr.mxu0 0.0
        %5352 = vmatpush1.xpose.msra.mxu0 0.0
        %5353 = vmatprep.subr.mxu0 0.0
        %5354 = vmatpush1.xpose.msra.mxu0 0.0
        %5355 = vmatprep.subr.mxu0 0.0
        %5356 = vmatpush1.xpose.msra.mxu0 0.0
        %5357 = vmatprep.subr.mxu0 0.0
        %5358 = vmatpush1.xpose.msra.mxu0 0.0
        %5359 = vmatprep.subr.mxu0 0.0
        %5360 = vmatpush1.xpose.msra.mxu0 0.0
        %5361 = vmatprep.subr.mxu0 0.0
        %5362 = vmatpush1.xpose.msra.mxu0 0.0
        %5363 = vmatprep.subr.mxu0 0.0
        %5364 = vmatpush1.xpose.msra.mxu0 0.0
        %5365 = vmatprep.subr.mxu0 0.0
        %5366 = vmatpush1.xpose.msra.mxu0 0.0
        %5367 = vmatprep.subr.mxu0 0.0
        %5368 = vmatpush1.xpose.msra.mxu0 0.0
        %5369 = vmatprep.subr.mxu0 0.0
        %5370 = vmatpush1.xpose.msra.mxu0 0.0
        %5371 = vmatprep.subr.mxu0 0.0
        %5372 = vmatpush1.xpose.msra.mxu0 0.0
        %5373 = vmatprep.subr.mxu0 0.0
        %5374 = vmatpush1.xpose.msra.mxu0 0.0
        %5375 = vmatprep.subr.mxu0 0.0
        %5376 = vmatpush1.xpose.msra.mxu0 0.0
        %5377 = vmatprep.subr.mxu0 0.0
        %5378 = vmatpush1.xpose.msra.mxu0 0.0
        %5379 = vmatprep.subr.mxu0 0.0
        %5380 = vmatpush1.xpose.msra.mxu0 0.0
        %5381 = vmatprep.subr.mxu0 0.0
        %5382 = vmatpush1.xpose.msra.mxu0 0.0
        %5383 = vmatprep.subr.mxu0 0.0
        %5384 = vmatpush1.xpose.msra.mxu0 0.0
        %5385 = vmatprep.subr.mxu0 0.0
        %5386 = vmatpush1.xpose.msra.mxu0 0.0
        %5387 = vmatprep.subr.mxu0 0.0
        %5388 = vmatpush1.xpose.msra.mxu0 0.0
        %5389 = vmatprep.subr.mxu0 0.0
        %5390 = vmatpush1.xpose.msra.mxu0 0.0
        %5391 = vmatprep.subr.mxu0 0.0
        %5392 = vmatpush1.xpose.msra.mxu0 0.0
        %5393 = vmatprep.subr.mxu0 0.0
        %5394 = vmatpush1.xpose.msra.mxu0 0.0
        %5395 = vmatprep.subr.mxu0 0.0
        %5396 = vmatpush1.xpose.msra.mxu0 0.0
        %5397 = vmatprep.mubr.f32.mxu0 0.0
        %v5398 = vand.u32 %v5175, 4294901760
        %v5399 = vsub.f32 %v5175, %v5398
        %5400 = vmatmul.mubr.f32.gmra.mrb[0].mxu0 %v5399
        %v5401 = vpop.f32.mrb[0].mxu0
        %v5402 = vadd.f32 %v5328, %v5401
        %v5403 = vpop.f32.mrb[0].mxu0
        %5404 = vdwg.mxu0
        %5405 = vmatprep.subr.mxu0 0.0
        %v5406 = vand.u32 %v5177, 4294901760
        %5407 = vmatpush1.xpose.msra.mxu0 %v5406
        %5408 = vmatprep.subr.mxu0 0.0
        %5409 = vmatpush1.xpose.msra.mxu0 0.0
        %5410 = vmatprep.subr.mxu0 0.0
        %5411 = vmatpush1.xpose.msra.mxu0 0.0
        %5412 = vmatprep.subr.mxu0 0.0
        %5413 = vmatpush1.xpose.msra.mxu0 0.0
        %5414 = vmatprep.subr.mxu0 0.0
        %5415 = vmatpush1.xpose.msra.mxu0 0.0
        %5416 = vmatprep.subr.mxu0 0.0
        %5417 = vmatpush1.xpose.msra.mxu0 0.0
        %5418 = vmatprep.subr.mxu0 0.0
        %5419 = vmatpush1.xpose.msra.mxu0 0.0
        %5420 = vmatprep.subr.mxu0 0.0
        %5421 = vmatpush1.xpose.msra.mxu0 0.0
        %5422 = vmatprep.subr.mxu0 0.0
        %5423 = vmatpush1.xpose.msra.mxu0 0.0
        %5424 = vmatprep.subr.mxu0 0.0
        %5425 = vmatpush1.xpose.msra.mxu0 0.0
        %5426 = vmatprep.subr.mxu0 0.0
        %5427 = vmatpush1.xpose.msra.mxu0 0.0
        %5428 = vmatprep.subr.mxu0 0.0
        %5429 = vmatpush1.xpose.msra.mxu0 0.0
        %5430 = vmatprep.subr.mxu0 0.0
        %5431 = vmatpush1.xpose.msra.mxu0 0.0
        %5432 = vmatprep.subr.mxu0 0.0
        %5433 = vmatpush1.xpose.msra.mxu0 0.0
        %5434 = vmatprep.subr.mxu0 0.0
        %5435 = vmatpush1.xpose.msra.mxu0 0.0
        %5436 = vmatprep.subr.mxu0 0.0
        %5437 = vmatpush1.xpose.msra.mxu0 0.0
        %5438 = vmatprep.subr.mxu0 0.0
        %5439 = vmatpush1.xpose.msra.mxu0 0.0
        %5440 = vmatprep.subr.mxu0 0.0
        %5441 = vmatpush1.xpose.msra.mxu0 0.0
        %5442 = vmatprep.subr.mxu0 0.0
        %5443 = vmatpush1.xpose.msra.mxu0 0.0
        %5444 = vmatprep.subr.mxu0 0.0
        %5445 = vmatpush1.xpose.msra.mxu0 0.0
        %5446 = vmatprep.subr.mxu0 0.0
        %5447 = vmatpush1.xpose.msra.mxu0 0.0
        %5448 = vmatprep.subr.mxu0 0.0
        %5449 = vmatpush1.xpose.msra.mxu0 0.0
        %5450 = vmatprep.subr.mxu0 0.0
        %5451 = vmatpush1.xpose.msra.mxu0 0.0
        %5452 = vmatprep.subr.mxu0 0.0
        %5453 = vmatpush1.xpose.msra.mxu0 0.0
        %5454 = vmatprep.subr.mxu0 0.0
        %5455 = vmatpush1.xpose.msra.mxu0 0.0
        %5456 = vmatprep.subr.mxu0 0.0
        %5457 = vmatpush1.xpose.msra.mxu0 0.0
        %5458 = vmatprep.subr.mxu0 0.0
        %5459 = vmatpush1.xpose.msra.mxu0 0.0
        %5460 = vmatprep.subr.mxu0 0.0
        %5461 = vmatpush1.xpose.msra.mxu0 0.0
        %5462 = vmatprep.subr.mxu0 0.0
        %5463 = vmatpush1.xpose.msra.mxu0 0.0
        %5464 = vmatprep.subr.mxu0 0.0
        %5465 = vmatpush1.xpose.msra.mxu0 0.0
        %5466 = vmatprep.subr.mxu0 0.0
        %5467 = vmatpush1.xpose.msra.mxu0 0.0
        %5468 = vmatprep.subr.mxu0 0.0
        %5469 = vmatpush1.xpose.msra.mxu0 0.0
        %5470 = vmatprep.mubr.f32.mxu0 0.0
        %v5471 = vand.u32 %v5175, 4294901760
        %v5472 = vsub.f32 %v5175, %v5471
        %v5473 = vand.u32 %v5472, 4294901760
        %5474 = vmatmul.mubr.f32.gmra.mrb[0].mxu0 %v5473
        %v5475 = vpop.f32.mrb[0].mxu0
        %v5476 = vadd.f32 %v5402, %v5475
        %v5477 = vpop.f32.mrb[0].mxu0
        %5478 = vdwg.mxu0
        %5479 = vmatprep.subr.mxu0 0.0
        %v5480 = vand.u32 %v5177, 4294901760
        %v5481 = vsub.f32 %v5177, %v5480
        %v5482 = vand.u32 %v5481, 4294901760
        %5483 = vmatpush1.xpose.msra.mxu0 %v5482
        %5484 = vmatprep.subr.mxu0 0.0
        %5485 = vmatpush1.xpose.msra.mxu0 0.0
        %5486 = vmatprep.subr.mxu0 0.0
        %5487 = vmatpush1.xpose.msra.mxu0 0.0
        %5488 = vmatprep.subr.mxu0 0.0
        %5489 = vmatpush1.xpose.msra.mxu0 0.0
        %5490 = vmatprep.subr.mxu0 0.0
        %5491 = vmatpush1.xpose.msra.mxu0 0.0
        %5492 = vmatprep.subr.mxu0 0.0
        %5493 = vmatpush1.xpose.msra.mxu0 0.0
        %5494 = vmatprep.subr.mxu0 0.0
        %5495 = vmatpush1.xpose.msra.mxu0 0.0
        %5496 = vmatprep.subr.mxu0 0.0
        %5497 = vmatpush1.xpose.msra.mxu0 0.0
        %5498 = vmatprep.subr.mxu0 0.0
        %5499 = vmatpush1.xpose.msra.mxu0 0.0
        %5500 = vmatprep.subr.mxu0 0.0
        %5501 = vmatpush1.xpose.msra.mxu0 0.0
        %5502 = vmatprep.subr.mxu0 0.0
        %5503 = vmatpush1.xpose.msra.mxu0 0.0
        %5504 = vmatprep.subr.mxu0 0.0
        %5505 = vmatpush1.xpose.msra.mxu0 0.0
        %5506 = vmatprep.subr.mxu0 0.0
        %5507 = vmatpush1.xpose.msra.mxu0 0.0
        %5508 = vmatprep.subr.mxu0 0.0
        %5509 = vmatpush1.xpose.msra.mxu0 0.0
        %5510 = vmatprep.subr.mxu0 0.0
        %5511 = vmatpush1.xpose.msra.mxu0 0.0
        %5512 = vmatprep.subr.mxu0 0.0
        %5513 = vmatpush1.xpose.msra.mxu0 0.0
        %5514 = vmatprep.subr.mxu0 0.0
        %5515 = vmatpush1.xpose.msra.mxu0 0.0
        %5516 = vmatprep.subr.mxu0 0.0
        %5517 = vmatpush1.xpose.msra.mxu0 0.0
        %5518 = vmatprep.subr.mxu0 0.0
        %5519 = vmatpush1.xpose.msra.mxu0 0.0
        %5520 = vmatprep.subr.mxu0 0.0
        %5521 = vmatpush1.xpose.msra.mxu0 0.0
        %5522 = vmatprep.subr.mxu0 0.0
        %5523 = vmatpush1.xpose.msra.mxu0 0.0
        %5524 = vmatprep.subr.mxu0 0.0
        %5525 = vmatpush1.xpose.msra.mxu0 0.0
        %5526 = vmatprep.subr.mxu0 0.0
        %5527 = vmatpush1.xpose.msra.mxu0 0.0
        %5528 = vmatprep.subr.mxu0 0.0
        %5529 = vmatpush1.xpose.msra.mxu0 0.0
        %5530 = vmatprep.subr.mxu0 0.0
        %5531 = vmatpush1.xpose.msra.mxu0 0.0
        %5532 = vmatprep.subr.mxu0 0.0
        %5533 = vmatpush1.xpose.msra.mxu0 0.0
        %5534 = vmatprep.subr.mxu0 0.0
        %5535 = vmatpush1.xpose.msra.mxu0 0.0
        %5536 = vmatprep.subr.mxu0 0.0
        %5537 = vmatpush1.xpose.msra.mxu0 0.0
        %5538 = vmatprep.subr.mxu0 0.0
        %5539 = vmatpush1.xpose.msra.mxu0 0.0
        %5540 = vmatprep.subr.mxu0 0.0
        %5541 = vmatpush1.xpose.msra.mxu0 0.0
        %5542 = vmatprep.subr.mxu0 0.0
        %5543 = vmatpush1.xpose.msra.mxu0 0.0
        %5544 = vmatprep.subr.mxu0 0.0
        %5545 = vmatpush1.xpose.msra.mxu0 0.0
        %5546 = vmatprep.mubr.f32.mxu0 0.0
        %v5547 = vand.u32 %v5175, 4294901760
        %5548 = vmatmul.mubr.f32.gmra.mrb[0].mxu0 %v5547
        %v5549 = vpop.f32.mrb[0].mxu0
        %v5550 = vadd.f32 %v5476, %v5549
        %v5551 = vpop.f32.mrb[0].mxu0
        %5552 = vdwg.mxu0
        %5553 = vmatprep.subr.mxu0 0.0
        %v5554 = vand.u32 %v5177, 4294901760
        %5555 = vmatpush1.xpose.msra.mxu0 %v5554
        %5556 = vmatprep.subr.mxu0 0.0
        %5557 = vmatpush1.xpose.msra.mxu0 0.0
        %5558 = vmatprep.subr.mxu0 0.0
        %5559 = vmatpush1.xpose.msra.mxu0 0.0
        %5560 = vmatprep.subr.mxu0 0.0
        %5561 = vmatpush1.xpose.msra.mxu0 0.0
        %5562 = vmatprep.subr.mxu0 0.0
        %5563 = vmatpush1.xpose.msra.mxu0 0.0
        %5564 = vmatprep.subr.mxu0 0.0
        %5565 = vmatpush1.xpose.msra.mxu0 0.0
        %5566 = vmatprep.subr.mxu0 0.0
        %5567 = vmatpush1.xpose.msra.mxu0 0.0
        %5568 = vmatprep.subr.mxu0 0.0
        %5569 = vmatpush1.xpose.msra.mxu0 0.0
        %5570 = vmatprep.subr.mxu0 0.0
        %5571 = vmatpush1.xpose.msra.mxu0 0.0
        %5572 = vmatprep.subr.mxu0 0.0
        %5573 = vmatpush1.xpose.msra.mxu0 0.0
        %5574 = vmatprep.subr.mxu0 0.0
        %5575 = vmatpush1.xpose.msra.mxu0 0.0
        %5576 = vmatprep.subr.mxu0 0.0
        %5577 = vmatpush1.xpose.msra.mxu0 0.0
        %5578 = vmatprep.subr.mxu0 0.0
        %5579 = vmatpush1.xpose.msra.mxu0 0.0
        %5580 = vmatprep.subr.mxu0 0.0
        %5581 = vmatpush1.xpose.msra.mxu0 0.0
        %5582 = vmatprep.subr.mxu0 0.0
        %5583 = vmatpush1.xpose.msra.mxu0 0.0
        %5584 = vmatprep.subr.mxu0 0.0
        %5585 = vmatpush1.xpose.msra.mxu0 0.0
        %5586 = vmatprep.subr.mxu0 0.0
        %5587 = vmatpush1.xpose.msra.mxu0 0.0
        %5588 = vmatprep.subr.mxu0 0.0
        %5589 = vmatpush1.xpose.msra.mxu0 0.0
        %5590 = vmatprep.subr.mxu0 0.0
        %5591 = vmatpush1.xpose.msra.mxu0 0.0
        %5592 = vmatprep.subr.mxu0 0.0
        %5593 = vmatpush1.xpose.msra.mxu0 0.0
        %5594 = vmatprep.subr.mxu0 0.0
        %5595 = vmatpush1.xpose.msra.mxu0 0.0
        %5596 = vmatprep.subr.mxu0 0.0
        %5597 = vmatpush1.xpose.msra.mxu0 0.0
        %5598 = vmatprep.subr.mxu0 0.0
        %5599 = vmatpush1.xpose.msra.mxu0 0.0
        %5600 = vmatprep.subr.mxu0 0.0
        %5601 = vmatpush1.xpose.msra.mxu0 0.0
        %5602 = vmatprep.subr.mxu0 0.0
        %5603 = vmatpush1.xpose.msra.mxu0 0.0
        %5604 = vmatprep.subr.mxu0 0.0
        %5605 = vmatpush1.xpose.msra.mxu0 0.0
        %5606 = vmatprep.subr.mxu0 0.0
        %5607 = vmatpush1.xpose.msra.mxu0 0.0
        %5608 = vmatprep.subr.mxu0 0.0
        %5609 = vmatpush1.xpose.msra.mxu0 0.0
        %5610 = vmatprep.subr.mxu0 0.0
        %5611 = vmatpush1.xpose.msra.mxu0 0.0
        %5612 = vmatprep.subr.mxu0 0.0
        %5613 = vmatpush1.xpose.msra.mxu0 0.0
        %5614 = vmatprep.subr.mxu0 0.0
        %5615 = vmatpush1.xpose.msra.mxu0 0.0
        %5616 = vmatprep.subr.mxu0 0.0
        %5617 = vmatpush1.xpose.msra.mxu0 0.0
        %5618 = vmatprep.mubr.f32.mxu0 0.0
        %v5619 = vand.u32 %v5175, 4294901760
        %5620 = vmatmul.mubr.f32.gmra.mrb[0].mxu0 %v5619
        %v5621 = vpop.f32.mrb[0].mxu0
        %v5622 = vadd.f32 %v5550, %v5621
        %v5623 = vpop.f32.mrb[0].mxu0
        %5624 = vdwg.mxu0
        %v5625 = vsel %vm2875, -1e+30, %v5168
        %v5626 = vsel %vm2876, -1e+30, %v5622
        %v5627 = vsel %vm3783, %v5625, -inf
        %5628 = vmax.xlane.f32.xlu0 %v5627
        %v5629 = vpop.xlane.xlu0 %5628
        %v5630 = vsel %vm3783, %v5626, -inf
        %5631 = vmax.xlane.f32.xlu0 %v5630
        %v5632 = vpop.xlane.xlu0 %5631
        %v5633 = vsub.f32 %v5625, %v5629
        %v5634 = vsub.f32 %v5626, %v5632
        %v5635 = vmul.f32 %v5633, 1.442695
        %v5636 = vpow.pop %v5635
        %v5637 = vmul.f32 %v5634, 1.442695
        %v5638 = vpow.pop %v5637
        %v5639 = vsel %vm2875, 0.0, %v5636
        %v5640 = vsel %vm2876, 0.0, %v5638
        %v5641 = vsel %vm3783, %v5639, 0.0
        %5642 = vadd.xlane.f32.xlu0 %v5641
        %v5643 = vpop.xlane.xlu0 %5642
        %v5644 = vsel %vm3783, %v5640, 0.0
        %5645 = vadd.xlane.f32.xlu0 %v5644
        %v5646 = vpop.xlane.xlu0 %5645
        %vm5647 = vcmp.gt.f32.partialorder %v5643, 0.0
        %vm5648 = vcmp.gt.f32.partialorder %v5646, 0.0
        %v5649 = vmax.f32 %v5643, 1e-30
        %v5650 = vmax.f32 %v5646, 1e-30
        %v5651 = vrcp.pop %v5649
        %v5652 = vmul.f32 %v5639, %v5651
        %v5653 = vrcp.pop %v5650
        %v5654 = vmul.f32 %v5640, %v5653
        %v5655 = vsel %vm5647, 1, 0
        %v5656 = vsel %vm5648, 1, 0
        %vm5657 = vcmp.eq.s32.totalorder %v5655, 1
        %vm5658 = vcmp.eq.s32.totalorder %v5656, 1
        %v5659 = vsel %vm5657, %v5652, 0.0
        %v5660 = vsel %vm5658, %v5654, 0.0
        %5662 = vrot.lane.b32.xlu0 %v2871, 112
        %v5663 = vpop.permute.xlu0 %5662
        %v5666 = vsel %vm3818, %v5659, 0
        %5668 = vmatprep.subr.mxu0 0.0
        %v5669 = vand.u32 %v5663, 4294901760
        %5670 = vmatpush1.msra.mxu0 %v5669
        %5671 = vmatprep.subr.mxu0 0.0
        %5672 = vmatpush1.msra.mxu0 0.0
        %5673 = vmatprep.subr.mxu0 0.0
        %5674 = vmatpush1.msra.mxu0 0.0
        %5675 = vmatprep.subr.mxu0 0.0
        %5676 = vmatpush1.msra.mxu0 0.0
        %5677 = vmatprep.subr.mxu0 0.0
        %5678 = vmatpush1.msra.mxu0 0.0
        %5679 = vmatprep.subr.mxu0 0.0
        %5680 = vmatpush1.msra.mxu0 0.0
        %5681 = vmatprep.subr.mxu0 0.0
        %5682 = vmatpush1.msra.mxu0 0.0
        %5683 = vmatprep.subr.mxu0 0.0
        %5684 = vmatpush1.msra.mxu0 0.0
        %5685 = vmatprep.subr.mxu0 0.0
        %5686 = vmatpush1.msra.mxu0 0.0
        %5687 = vmatprep.subr.mxu0 0.0
        %5688 = vmatpush1.msra.mxu0 0.0
        %5689 = vmatprep.subr.mxu0 0.0
        %5690 = vmatpush1.msra.mxu0 0.0
        %5691 = vmatprep.subr.mxu0 0.0
        %5692 = vmatpush1.msra.mxu0 0.0
        %5693 = vmatprep.subr.mxu0 0.0
        %5694 = vmatpush1.msra.mxu0 0.0
        %5695 = vmatprep.subr.mxu0 0.0
        %5696 = vmatpush1.msra.mxu0 0.0
        %5697 = vmatprep.subr.mxu0 0.0
        %5698 = vmatpush1.msra.mxu0 0.0
        %5699 = vmatprep.subr.mxu0 0.0
        %5700 = vmatpush1.msra.mxu0 0.0
        %5701 = vmatprep.subr.mxu0 0.0
        %5702 = vmatpush1.msra.mxu0 0.0
        %5703 = vmatprep.subr.mxu0 0.0
        %5704 = vmatpush1.msra.mxu0 0.0
        %5705 = vmatprep.subr.mxu0 0.0
        %5706 = vmatpush1.msra.mxu0 0.0
        %5707 = vmatprep.subr.mxu0 0.0
        %5708 = vmatpush1.msra.mxu0 0.0
        %5709 = vmatprep.subr.mxu0 0.0
        %5710 = vmatpush1.msra.mxu0 0.0
        %5711 = vmatprep.subr.mxu0 0.0
        %5712 = vmatpush1.msra.mxu0 0.0
        %5713 = vmatprep.subr.mxu0 0.0
        %5714 = vmatpush1.msra.mxu0 0.0
        %5715 = vmatprep.subr.mxu0 0.0
        %5716 = vmatpush1.msra.mxu0 0.0
        %5717 = vmatprep.subr.mxu0 0.0
        %5718 = vmatpush1.msra.mxu0 0.0
        %5719 = vmatprep.subr.mxu0 0.0
        %5720 = vmatpush1.msra.mxu0 0.0
        %5721 = vmatprep.subr.mxu0 0.0
        %5722 = vmatpush1.msra.mxu0 0.0
        %5723 = vmatprep.subr.mxu0 0.0
        %5724 = vmatpush1.msra.mxu0 0.0
        %5725 = vmatprep.subr.mxu0 0.0
        %5726 = vmatpush1.msra.mxu0 0.0
        %5727 = vmatprep.subr.mxu0 0.0
        %5728 = vmatpush1.msra.mxu0 0.0
        %5729 = vmatprep.subr.mxu0 0.0
        %5730 = vmatpush1.msra.mxu0 0.0
        %5731 = vmatprep.subr.mxu0 0.0
        %5732 = vmatpush1.msra.mxu0 0.0
        %5733 = vmatprep.mubr.f32.mxu0 0.0
        %v5734 = vand.u32 %v5666, 4294901760
        %v5735 = vsub.f32 %v5666, %v5734
        %v5736 = vand.u32 %v5735, 4294901760
        %v5737 = vsub.f32 %v5735, %v5736
        %v5738 = vand.u32 %v5737, 4294901760
        %5739 = vmatmul.mubr.f32.gmra.mrb[0].mxu0 %v5738
        %v5740 = vpop.f32.mrb[0].mxu0
        %v5741 = vadd.f32 0.0, %v5740
        %v5742 = vpop.f32.mrb[0].mxu0
        %5743 = vdwg.mxu0
        %5744 = vmatprep.subr.mxu0 0.0
        %v5745 = vand.u32 %v5663, 4294901760
        %v5746 = vsub.f32 %v5663, %v5745
        %v5747 = vand.u32 %v5746, 4294901760
        %v5748 = vsub.f32 %v5746, %v5747
        %v5749 = vand.u32 %v5748, 4294901760
        %5750 = vmatpush1.msra.mxu0 %v5749
        %5751 = vmatprep.subr.mxu0 0.0
        %5752 = vmatpush1.msra.mxu0 0.0
        %5753 = vmatprep.subr.mxu0 0.0
        %5754 = vmatpush1.msra.mxu0 0.0
        %5755 = vmatprep.subr.mxu0 0.0
        %5756 = vmatpush1.msra.mxu0 0.0
        %5757 = vmatprep.subr.mxu0 0.0
        %5758 = vmatpush1.msra.mxu0 0.0
        %5759 = vmatprep.subr.mxu0 0.0
        %5760 = vmatpush1.msra.mxu0 0.0
        %5761 = vmatprep.subr.mxu0 0.0
        %5762 = vmatpush1.msra.mxu0 0.0
        %5763 = vmatprep.subr.mxu0 0.0
        %5764 = vmatpush1.msra.mxu0 0.0
        %5765 = vmatprep.subr.mxu0 0.0
        %5766 = vmatpush1.msra.mxu0 0.0
        %5767 = vmatprep.subr.mxu0 0.0
        %5768 = vmatpush1.msra.mxu0 0.0
        %5769 = vmatprep.subr.mxu0 0.0
        %5770 = vmatpush1.msra.mxu0 0.0
        %5771 = vmatprep.subr.mxu0 0.0
        %5772 = vmatpush1.msra.mxu0 0.0
        %5773 = vmatprep.subr.mxu0 0.0
        %5774 = vmatpush1.msra.mxu0 0.0
        %5775 = vmatprep.subr.mxu0 0.0
        %5776 = vmatpush1.msra.mxu0 0.0
        %5777 = vmatprep.subr.mxu0 0.0
        %5778 = vmatpush1.msra.mxu0 0.0
        %5779 = vmatprep.subr.mxu0 0.0
        %5780 = vmatpush1.msra.mxu0 0.0
        %5781 = vmatprep.subr.mxu0 0.0
        %5782 = vmatpush1.msra.mxu0 0.0
        %5783 = vmatprep.subr.mxu0 0.0
        %5784 = vmatpush1.msra.mxu0 0.0
        %5785 = vmatprep.subr.mxu0 0.0
        %5786 = vmatpush1.msra.mxu0 0.0
        %5787 = vmatprep.subr.mxu0 0.0
        %5788 = vmatpush1.msra.mxu0 0.0
        %5789 = vmatprep.subr.mxu0 0.0
        %5790 = vmatpush1.msra.mxu0 0.0
        %5791 = vmatprep.subr.mxu0 0.0
        %5792 = vmatpush1.msra.mxu0 0.0
        %5793 = vmatprep.subr.mxu0 0.0
        %5794 = vmatpush1.msra.mxu0 0.0
        %5795 = vmatprep.subr.mxu0 0.0
        %5796 = vmatpush1.msra.mxu0 0.0
        %5797 = vmatprep.subr.mxu0 0.0
        %5798 = vmatpush1.msra.mxu0 0.0
        %5799 = vmatprep.subr.mxu0 0.0
        %5800 = vmatpush1.msra.mxu0 0.0
        %5801 = vmatprep.subr.mxu0 0.0
        %5802 = vmatpush1.msra.mxu0 0.0
        %5803 = vmatprep.subr.mxu0 0.0
        %5804 = vmatpush1.msra.mxu0 0.0
        %5805 = vmatprep.subr.mxu0 0.0
        %5806 = vmatpush1.msra.mxu0 0.0
        %5807 = vmatprep.subr.mxu0 0.0
        %5808 = vmatpush1.msra.mxu0 0.0
        %5809 = vmatprep.subr.mxu0 0.0
        %5810 = vmatpush1.msra.mxu0 0.0
        %5811 = vmatprep.subr.mxu0 0.0
        %5812 = vmatpush1.msra.mxu0 0.0
        %5813 = vmatprep.mubr.f32.mxu0 0.0
        %v5814 = vand.u32 %v5666, 4294901760
        %5815 = vmatmul.mubr.f32.gmra.mrb[0].mxu0 %v5814
        %v5816 = vpop.f32.mrb[0].mxu0
        %v5817 = vadd.f32 %v5741, %v5816
        %v5818 = vpop.f32.mrb[0].mxu0
        %5819 = vdwg.mxu0
        %5820 = vmatprep.subr.mxu0 0.0
        %v5821 = vand.u32 %v5663, 4294901760
        %v5822 = vsub.f32 %v5663, %v5821
        %5823 = vmatpush1.msra.mxu0 %v5822
        %5824 = vmatprep.subr.mxu0 0.0
        %5825 = vmatpush1.msra.mxu0 0.0
        %5826 = vmatprep.subr.mxu0 0.0
        %5827 = vmatpush1.msra.mxu0 0.0
        %5828 = vmatprep.subr.mxu0 0.0
        %5829 = vmatpush1.msra.mxu0 0.0
        %5830 = vmatprep.subr.mxu0 0.0
        %5831 = vmatpush1.msra.mxu0 0.0
        %5832 = vmatprep.subr.mxu0 0.0
        %5833 = vmatpush1.msra.mxu0 0.0
        %5834 = vmatprep.subr.mxu0 0.0
        %5835 = vmatpush1.msra.mxu0 0.0
        %5836 = vmatprep.subr.mxu0 0.0
        %5837 = vmatpush1.msra.mxu0 0.0
        %5838 = vmatprep.subr.mxu0 0.0
        %5839 = vmatpush1.msra.mxu0 0.0
        %5840 = vmatprep.subr.mxu0 0.0
        %5841 = vmatpush1.msra.mxu0 0.0
        %5842 = vmatprep.subr.mxu0 0.0
        %5843 = vmatpush1.msra.mxu0 0.0
        %5844 = vmatprep.subr.mxu0 0.0
        %5845 = vmatpush1.msra.mxu0 0.0
        %5846 = vmatprep.subr.mxu0 0.0
        %5847 = vmatpush1.msra.mxu0 0.0
        %5848 = vmatprep.subr.mxu0 0.0
        %5849 = vmatpush1.msra.mxu0 0.0
        %5850 = vmatprep.subr.mxu0 0.0
        %5851 = vmatpush1.msra.mxu0 0.0
        %5852 = vmatprep.subr.mxu0 0.0
        %5853 = vmatpush1.msra.mxu0 0.0
        %5854 = vmatprep.subr.mxu0 0.0
        %5855 = vmatpush1.msra.mxu0 0.0
        %5856 = vmatprep.subr.mxu0 0.0
        %5857 = vmatpush1.msra.mxu0 0.0
        %5858 = vmatprep.subr.mxu0 0.0
        %5859 = vmatpush1.msra.mxu0 0.0
        %5860 = vmatprep.subr.mxu0 0.0
        %5861 = vmatpush1.msra.mxu0 0.0
        %5862 = vmatprep.subr.mxu0 0.0
        %5863 = vmatpush1.msra.mxu0 0.0
        %5864 = vmatprep.subr.mxu0 0.0
        %5865 = vmatpush1.msra.mxu0 0.0
        %5866 = vmatprep.subr.mxu0 0.0
        %5867 = vmatpush1.msra.mxu0 0.0
        %5868 = vmatprep.subr.mxu0 0.0
        %5869 = vmatpush1.msra.mxu0 0.0
        %5870 = vmatprep.subr.mxu0 0.0
        %5871 = vmatpush1.msra.mxu0 0.0
        %5872 = vmatprep.subr.mxu0 0.0
        %5873 = vmatpush1.msra.mxu0 0.0
        %5874 = vmatprep.subr.mxu0 0.0
        %5875 = vmatpush1.msra.mxu0 0.0
        %5876 = vmatprep.subr.mxu0 0.0
        %5877 = vmatpush1.msra.mxu0 0.0
        %5878 = vmatprep.subr.mxu0 0.0
        %5879 = vmatpush1.msra.mxu0 0.0
        %5880 = vmatprep.subr.mxu0 0.0
        %5881 = vmatpush1.msra.mxu0 0.0
        %5882 = vmatprep.subr.mxu0 0.0
        %5883 = vmatpush1.msra.mxu0 0.0
        %5884 = vmatprep.subr.mxu0 0.0
        %5885 = vmatpush1.msra.mxu0 0.0
        %5886 = vmatprep.mubr.f32.mxu0 0.0
        %v5887 = vand.u32 %v5666, 4294901760
        %v5888 = vsub.f32 %v5666, %v5887
        %5889 = vmatmul.mubr.f32.gmra.mrb[0].mxu0 %v5888
        %v5890 = vpop.f32.mrb[0].mxu0
        %v5891 = vadd.f32 %v5817, %v5890
        %v5892 = vpop.f32.mrb[0].mxu0
        %5893 = vdwg.mxu0
        %5894 = vmatprep.subr.mxu0 0.0
        %v5895 = vand.u32 %v5663, 4294901760
        %5896 = vmatpush1.msra.mxu0 %v5895
        %5897 = vmatprep.subr.mxu0 0.0
        %5898 = vmatpush1.msra.mxu0 0.0
        %5899 = vmatprep.subr.mxu0 0.0
        %5900 = vmatpush1.msra.mxu0 0.0
        %5901 = vmatprep.subr.mxu0 0.0
        %5902 = vmatpush1.msra.mxu0 0.0
        %5903 = vmatprep.subr.mxu0 0.0
        %5904 = vmatpush1.msra.mxu0 0.0
        %5905 = vmatprep.subr.mxu0 0.0
        %5906 = vmatpush1.msra.mxu0 0.0
        %5907 = vmatprep.subr.mxu0 0.0
        %5908 = vmatpush1.msra.mxu0 0.0
        %5909 = vmatprep.subr.mxu0 0.0
        %5910 = vmatpush1.msra.mxu0 0.0
        %5911 = vmatprep.subr.mxu0 0.0
        %5912 = vmatpush1.msra.mxu0 0.0
        %5913 = vmatprep.subr.mxu0 0.0
        %5914 = vmatpush1.msra.mxu0 0.0
        %5915 = vmatprep.subr.mxu0 0.0
        %5916 = vmatpush1.msra.mxu0 0.0
        %5917 = vmatprep.subr.mxu0 0.0
        %5918 = vmatpush1.msra.mxu0 0.0
        %5919 = vmatprep.subr.mxu0 0.0
        %5920 = vmatpush1.msra.mxu0 0.0
        %5921 = vmatprep.subr.mxu0 0.0
        %5922 = vmatpush1.msra.mxu0 0.0
        %5923 = vmatprep.subr.mxu0 0.0
        %5924 = vmatpush1.msra.mxu0 0.0
        %5925 = vmatprep.subr.mxu0 0.0
        %5926 = vmatpush1.msra.mxu0 0.0
        %5927 = vmatprep.subr.mxu0 0.0
        %5928 = vmatpush1.msra.mxu0 0.0
        %5929 = vmatprep.subr.mxu0 0.0
        %5930 = vmatpush1.msra.mxu0 0.0
        %5931 = vmatprep.subr.mxu0 0.0
        %5932 = vmatpush1.msra.mxu0 0.0
        %5933 = vmatprep.subr.mxu0 0.0
        %5934 = vmatpush1.msra.mxu0 0.0
        %5935 = vmatprep.subr.mxu0 0.0
        %5936 = vmatpush1.msra.mxu0 0.0
        %5937 = vmatprep.subr.mxu0 0.0
        %5938 = vmatpush1.msra.mxu0 0.0
        %5939 = vmatprep.subr.mxu0 0.0
        %5940 = vmatpush1.msra.mxu0 0.0
        %5941 = vmatprep.subr.mxu0 0.0
        %5942 = vmatpush1.msra.mxu0 0.0
        %5943 = vmatprep.subr.mxu0 0.0
        %5944 = vmatpush1.msra.mxu0 0.0
        %5945 = vmatprep.subr.mxu0 0.0
        %5946 = vmatpush1.msra.mxu0 0.0
        %5947 = vmatprep.subr.mxu0 0.0
        %5948 = vmatpush1.msra.mxu0 0.0
        %5949 = vmatprep.subr.mxu0 0.0
        %5950 = vmatpush1.msra.mxu0 0.0
        %5951 = vmatprep.subr.mxu0 0.0
        %5952 = vmatpush1.msra.mxu0 0.0
        %5953 = vmatprep.subr.mxu0 0.0
        %5954 = vmatpush1.msra.mxu0 0.0
        %5955 = vmatprep.subr.mxu0 0.0
        %5956 = vmatpush1.msra.mxu0 0.0
        %5957 = vmatprep.subr.mxu0 0.0
        %5958 = vmatpush1.msra.mxu0 0.0
        %5959 = vmatprep.mubr.f32.mxu0 0.0
        %v5960 = vand.u32 %v5666, 4294901760
        %v5961 = vsub.f32 %v5666, %v5960
        %v5962 = vand.u32 %v5961, 4294901760
        %5963 = vmatmul.mubr.f32.gmra.mrb[0].mxu0 %v5962
        %v5964 = vpop.f32.mrb[0].mxu0
        %v5965 = vadd.f32 %v5891, %v5964
        %v5966 = vpop.f32.mrb[0].mxu0
        %5967 = vdwg.mxu0
        %5968 = vmatprep.subr.mxu0 0.0
        %v5969 = vand.u32 %v5663, 4294901760
        %v5970 = vsub.f32 %v5663, %v5969
        %v5971 = vand.u32 %v5970, 4294901760
        %5972 = vmatpush1.msra.mxu0 %v5971
        %5973 = vmatprep.subr.mxu0 0.0
        %5974 = vmatpush1.msra.mxu0 0.0
        %5975 = vmatprep.subr.mxu0 0.0
        %5976 = vmatpush1.msra.mxu0 0.0
        %5977 = vmatprep.subr.mxu0 0.0
        %5978 = vmatpush1.msra.mxu0 0.0
        %5979 = vmatprep.subr.mxu0 0.0
        %5980 = vmatpush1.msra.mxu0 0.0
        %5981 = vmatprep.subr.mxu0 0.0
        %5982 = vmatpush1.msra.mxu0 0.0
        %5983 = vmatprep.subr.mxu0 0.0
        %5984 = vmatpush1.msra.mxu0 0.0
        %5985 = vmatprep.subr.mxu0 0.0
        %5986 = vmatpush1.msra.mxu0 0.0
        %5987 = vmatprep.subr.mxu0 0.0
        %5988 = vmatpush1.msra.mxu0 0.0
        %5989 = vmatprep.subr.mxu0 0.0
        %5990 = vmatpush1.msra.mxu0 0.0
        %5991 = vmatprep.subr.mxu0 0.0
        %5992 = vmatpush1.msra.mxu0 0.0
        %5993 = vmatprep.subr.mxu0 0.0
        %5994 = vmatpush1.msra.mxu0 0.0
        %5995 = vmatprep.subr.mxu0 0.0
        %5996 = vmatpush1.msra.mxu0 0.0
        %5997 = vmatprep.subr.mxu0 0.0
        %5998 = vmatpush1.msra.mxu0 0.0
        %5999 = vmatprep.subr.mxu0 0.0
        %6000 = vmatpush1.msra.mxu0 0.0
        %6001 = vmatprep.subr.mxu0 0.0
        %6002 = vmatpush1.msra.mxu0 0.0
        %6003 = vmatprep.subr.mxu0 0.0
        %6004 = vmatpush1.msra.mxu0 0.0
        %6005 = vmatprep.subr.mxu0 0.0
        %6006 = vmatpush1.msra.mxu0 0.0
        %6007 = vmatprep.subr.mxu0 0.0
        %6008 = vmatpush1.msra.mxu0 0.0
        %6009 = vmatprep.subr.mxu0 0.0
        %6010 = vmatpush1.msra.mxu0 0.0
        %6011 = vmatprep.subr.mxu0 0.0
        %6012 = vmatpush1.msra.mxu0 0.0
        %6013 = vmatprep.subr.mxu0 0.0
        %6014 = vmatpush1.msra.mxu0 0.0
        %6015 = vmatprep.subr.mxu0 0.0
        %6016 = vmatpush1.msra.mxu0 0.0
        %6017 = vmatprep.subr.mxu0 0.0
        %6018 = vmatpush1.msra.mxu0 0.0
        %6019 = vmatprep.subr.mxu0 0.0
        %6020 = vmatpush1.msra.mxu0 0.0
        %6021 = vmatprep.subr.mxu0 0.0
        %6022 = vmatpush1.msra.mxu0 0.0
        %6023 = vmatprep.subr.mxu0 0.0
        %6024 = vmatpush1.msra.mxu0 0.0
        %6025 = vmatprep.subr.mxu0 0.0
        %6026 = vmatpush1.msra.mxu0 0.0
        %6027 = vmatprep.subr.mxu0 0.0
        %6028 = vmatpush1.msra.mxu0 0.0
        %6029 = vmatprep.subr.mxu0 0.0
        %6030 = vmatpush1.msra.mxu0 0.0
        %6031 = vmatprep.subr.mxu0 0.0
        %6032 = vmatpush1.msra.mxu0 0.0
        %6033 = vmatprep.subr.mxu0 0.0
        %6034 = vmatpush1.msra.mxu0 0.0
        %6035 = vmatprep.mubr.f32.mxu0 0.0
        %v6036 = vand.u32 %v5666, 4294901760
        %6037 = vmatmul.mubr.f32.gmra.mrb[0].mxu0 %v6036
        %v6038 = vpop.f32.mrb[0].mxu0
        %v6039 = vadd.f32 %v5965, %v6038
        %v6040 = vpop.f32.mrb[0].mxu0
        %6041 = vdwg.mxu0
        %6042 = vmatprep.subr.mxu0 0.0
        %v6043 = vand.u32 %v5663, 4294901760
        %6044 = vmatpush1.msra.mxu0 %v6043
        %6045 = vmatprep.subr.mxu0 0.0
        %6046 = vmatpush1.msra.mxu0 0.0
        %6047 = vmatprep.subr.mxu0 0.0
        %6048 = vmatpush1.msra.mxu0 0.0
        %6049 = vmatprep.subr.mxu0 0.0
        %6050 = vmatpush1.msra.mxu0 0.0
        %6051 = vmatprep.subr.mxu0 0.0
        %6052 = vmatpush1.msra.mxu0 0.0
        %6053 = vmatprep.subr.mxu0 0.0
        %6054 = vmatpush1.msra.mxu0 0.0
        %6055 = vmatprep.subr.mxu0 0.0
        %6056 = vmatpush1.msra.mxu0 0.0
        %6057 = vmatprep.subr.mxu0 0.0
        %6058 = vmatpush1.msra.mxu0 0.0
        %6059 = vmatprep.subr.mxu0 0.0
        %6060 = vmatpush1.msra.mxu0 0.0
        %6061 = vmatprep.subr.mxu0 0.0
        %6062 = vmatpush1.msra.mxu0 0.0
        %6063 = vmatprep.subr.mxu0 0.0
        %6064 = vmatpush1.msra.mxu0 0.0
        %6065 = vmatprep.subr.mxu0 0.0
        %6066 = vmatpush1.msra.mxu0 0.0
        %6067 = vmatprep.subr.mxu0 0.0
        %6068 = vmatpush1.msra.mxu0 0.0
        %6069 = vmatprep.subr.mxu0 0.0
        %6070 = vmatpush1.msra.mxu0 0.0
        %6071 = vmatprep.subr.mxu0 0.0
        %6072 = vmatpush1.msra.mxu0 0.0
        %6073 = vmatprep.subr.mxu0 0.0
        %6074 = vmatpush1.msra.mxu0 0.0
        %6075 = vmatprep.subr.mxu0 0.0
        %6076 = vmatpush1.msra.mxu0 0.0
        %6077 = vmatprep.subr.mxu0 0.0
        %6078 = vmatpush1.msra.mxu0 0.0
        %6079 = vmatprep.subr.mxu0 0.0
        %6080 = vmatpush1.msra.mxu0 0.0
        %6081 = vmatprep.subr.mxu0 0.0
        %6082 = vmatpush1.msra.mxu0 0.0
        %6083 = vmatprep.subr.mxu0 0.0
        %6084 = vmatpush1.msra.mxu0 0.0
        %6085 = vmatprep.subr.mxu0 0.0
        %6086 = vmatpush1.msra.mxu0 0.0
        %6087 = vmatprep.subr.mxu0 0.0
        %6088 = vmatpush1.msra.mxu0 0.0
        %6089 = vmatprep.subr.mxu0 0.0
        %6090 = vmatpush1.msra.mxu0 0.0
        %6091 = vmatprep.subr.mxu0 0.0
        %6092 = vmatpush1.msra.mxu0 0.0
        %6093 = vmatprep.subr.mxu0 0.0
        %6094 = vmatpush1.msra.mxu0 0.0
        %6095 = vmatprep.subr.mxu0 0.0
        %6096 = vmatpush1.msra.mxu0 0.0
        %6097 = vmatprep.subr.mxu0 0.0
        %6098 = vmatpush1.msra.mxu0 0.0
        %6099 = vmatprep.subr.mxu0 0.0
        %6100 = vmatpush1.msra.mxu0 0.0
        %6101 = vmatprep.subr.mxu0 0.0
        %6102 = vmatpush1.msra.mxu0 0.0
        %6103 = vmatprep.subr.mxu0 0.0
        %6104 = vmatpush1.msra.mxu0 0.0
        %6105 = vmatprep.subr.mxu0 0.0
        %6106 = vmatpush1.msra.mxu0 0.0
        %6107 = vmatprep.mubr.f32.mxu0 0.0
        %v6108 = vand.u32 %v5666, 4294901760
        %6109 = vmatmul.mubr.f32.gmra.mrb[0].mxu0 %v6108
        %v6110 = vpop.f32.mrb[0].mxu0
        %v6111 = vadd.f32 %v6039, %v6110
        %v6112 = vpop.f32.mrb[0].mxu0
        %6113 = vdwg.mxu0
        %6115 = vrot.lane.b32.xlu0 %v2872, 112
        %v6116 = vpop.permute.xlu0 %6115
        %v6119 = vsel %vm3818, %v5660, 0
        %6121 = vmatprep.subr.mxu0 0.0
        %v6122 = vand.u32 %v6116, 4294901760
        %6123 = vmatpush1.msra.mxu0 %v6122
        %6124 = vmatprep.subr.mxu0 0.0
        %6125 = vmatpush1.msra.mxu0 0.0
        %6126 = vmatprep.subr.mxu0 0.0
        %6127 = vmatpush1.msra.mxu0 0.0
        %6128 = vmatprep.subr.mxu0 0.0
        %6129 = vmatpush1.msra.mxu0 0.0
        %6130 = vmatprep.subr.mxu0 0.0
        %6131 = vmatpush1.msra.mxu0 0.0
        %6132 = vmatprep.subr.mxu0 0.0
        %6133 = vmatpush1.msra.mxu0 0.0
        %6134 = vmatprep.subr.mxu0 0.0
        %6135 = vmatpush1.msra.mxu0 0.0
        %6136 = vmatprep.subr.mxu0 0.0
        %6137 = vmatpush1.msra.mxu0 0.0
        %6138 = vmatprep.subr.mxu0 0.0
        %6139 = vmatpush1.msra.mxu0 0.0
        %6140 = vmatprep.subr.mxu0 0.0
        %6141 = vmatpush1.msra.mxu0 0.0
        %6142 = vmatprep.subr.mxu0 0.0
        %6143 = vmatpush1.msra.mxu0 0.0
        %6144 = vmatprep.subr.mxu0 0.0
        %6145 = vmatpush1.msra.mxu0 0.0
        %6146 = vmatprep.subr.mxu0 0.0
        %6147 = vmatpush1.msra.mxu0 0.0
        %6148 = vmatprep.subr.mxu0 0.0
        %6149 = vmatpush1.msra.mxu0 0.0
        %6150 = vmatprep.subr.mxu0 0.0
        %6151 = vmatpush1.msra.mxu0 0.0
        %6152 = vmatprep.subr.mxu0 0.0
        %6153 = vmatpush1.msra.mxu0 0.0
        %6154 = vmatprep.subr.mxu0 0.0
        %6155 = vmatpush1.msra.mxu0 0.0
        %6156 = vmatprep.subr.mxu0 0.0
        %6157 = vmatpush1.msra.mxu0 0.0
        %6158 = vmatprep.subr.mxu0 0.0
        %6159 = vmatpush1.msra.mxu0 0.0
        %6160 = vmatprep.subr.mxu0 0.0
        %6161 = vmatpush1.msra.mxu0 0.0
        %6162 = vmatprep.subr.mxu0 0.0
        %6163 = vmatpush1.msra.mxu0 0.0
        %6164 = vmatprep.subr.mxu0 0.0
        %6165 = vmatpush1.msra.mxu0 0.0
        %6166 = vmatprep.subr.mxu0 0.0
        %6167 = vmatpush1.msra.mxu0 0.0
        %6168 = vmatprep.subr.mxu0 0.0
        %6169 = vmatpush1.msra.mxu0 0.0
        %6170 = vmatprep.subr.mxu0 0.0
        %6171 = vmatpush1.msra.mxu0 0.0
        %6172 = vmatprep.subr.mxu0 0.0
        %6173 = vmatpush1.msra.mxu0 0.0
        %6174 = vmatprep.subr.mxu0 0.0
        %6175 = vmatpush1.msra.mxu0 0.0
        %6176 = vmatprep.subr.mxu0 0.0
        %6177 = vmatpush1.msra.mxu0 0.0
        %6178 = vmatprep.subr.mxu0 0.0
        %6179 = vmatpush1.msra.mxu0 0.0
        %6180 = vmatprep.subr.mxu0 0.0
        %6181 = vmatpush1.msra.mxu0 0.0
        %6182 = vmatprep.subr.mxu0 0.0
        %6183 = vmatpush1.msra.mxu0 0.0
        %6184 = vmatprep.subr.mxu0 0.0
        %6185 = vmatpush1.msra.mxu0 0.0
        %6186 = vmatprep.mubr.f32.mxu0 0.0
        %v6187 = vand.u32 %v6119, 4294901760
        %v6188 = vsub.f32 %v6119, %v6187
        %v6189 = vand.u32 %v6188, 4294901760
        %v6190 = vsub.f32 %v6188, %v6189
        %v6191 = vand.u32 %v6190, 4294901760
        %6192 = vmatmul.mubr.f32.gmra.mrb[0].mxu0 %v6191
        %v6193 = vpop.f32.mrb[0].mxu0
        %v6194 = vadd.f32 0.0, %v6193
        %v6195 = vpop.f32.mrb[0].mxu0
        %6196 = vdwg.mxu0
        %6197 = vmatprep.subr.mxu0 0.0
        %v6198 = vand.u32 %v6116, 4294901760
        %v6199 = vsub.f32 %v6116, %v6198
        %v6200 = vand.u32 %v6199, 4294901760
        %v6201 = vsub.f32 %v6199, %v6200
        %v6202 = vand.u32 %v6201, 4294901760
        %6203 = vmatpush1.msra.mxu0 %v6202
        %6204 = vmatprep.subr.mxu0 0.0
        %6205 = vmatpush1.msra.mxu0 0.0
        %6206 = vmatprep.subr.mxu0 0.0
        %6207 = vmatpush1.msra.mxu0 0.0
        %6208 = vmatprep.subr.mxu0 0.0
        %6209 = vmatpush1.msra.mxu0 0.0
        %6210 = vmatprep.subr.mxu0 0.0
        %6211 = vmatpush1.msra.mxu0 0.0
        %6212 = vmatprep.subr.mxu0 0.0
        %6213 = vmatpush1.msra.mxu0 0.0
        %6214 = vmatprep.subr.mxu0 0.0
        %6215 = vmatpush1.msra.mxu0 0.0
        %6216 = vmatprep.subr.mxu0 0.0
        %6217 = vmatpush1.msra.mxu0 0.0
        %6218 = vmatprep.subr.mxu0 0.0
        %6219 = vmatpush1.msra.mxu0 0.0
        %6220 = vmatprep.subr.mxu0 0.0
        %6221 = vmatpush1.msra.mxu0 0.0
        %6222 = vmatprep.subr.mxu0 0.0
        %6223 = vmatpush1.msra.mxu0 0.0
        %6224 = vmatprep.subr.mxu0 0.0
        %6225 = vmatpush1.msra.mxu0 0.0
        %6226 = vmatprep.subr.mxu0 0.0
        %6227 = vmatpush1.msra.mxu0 0.0
        %6228 = vmatprep.subr.mxu0 0.0
        %6229 = vmatpush1.msra.mxu0 0.0
        %6230 = vmatprep.subr.mxu0 0.0
        %6231 = vmatpush1.msra.mxu0 0.0
        %6232 = vmatprep.subr.mxu0 0.0
        %6233 = vmatpush1.msra.mxu0 0.0
        %6234 = vmatprep.subr.mxu0 0.0
        %6235 = vmatpush1.msra.mxu0 0.0
        %6236 = vmatprep.subr.mxu0 0.0
        %6237 = vmatpush1.msra.mxu0 0.0
        %6238 = vmatprep.subr.mxu0 0.0
        %6239 = vmatpush1.msra.mxu0 0.0
        %6240 = vmatprep.subr.mxu0 0.0
        %6241 = vmatpush1.msra.mxu0 0.0
        %6242 = vmatprep.subr.mxu0 0.0
        %6243 = vmatpush1.msra.mxu0 0.0
        %6244 = vmatprep.subr.mxu0 0.0
        %6245 = vmatpush1.msra.mxu0 0.0
        %6246 = vmatprep.subr.mxu0 0.0
        %6247 = vmatpush1.msra.mxu0 0.0
        %6248 = vmatprep.subr.mxu0 0.0
        %6249 = vmatpush1.msra.mxu0 0.0
        %6250 = vmatprep.subr.mxu0 0.0
        %6251 = vmatpush1.msra.mxu0 0.0
        %6252 = vmatprep.subr.mxu0 0.0
        %6253 = vmatpush1.msra.mxu0 0.0
        %6254 = vmatprep.subr.mxu0 0.0
        %6255 = vmatpush1.msra.mxu0 0.0
        %6256 = vmatprep.subr.mxu0 0.0
        %6257 = vmatpush1.msra.mxu0 0.0
        %6258 = vmatprep.subr.mxu0 0.0
        %6259 = vmatpush1.msra.mxu0 0.0
        %6260 = vmatprep.subr.mxu0 0.0
        %6261 = vmatpush1.msra.mxu0 0.0
        %6262 = vmatprep.subr.mxu0 0.0
        %6263 = vmatpush1.msra.mxu0 0.0
        %6264 = vmatprep.subr.mxu0 0.0
        %6265 = vmatpush1.msra.mxu0 0.0
        %6266 = vmatprep.mubr.f32.mxu0 0.0
        %v6267 = vand.u32 %v6119, 4294901760
        %6268 = vmatmul.mubr.f32.gmra.mrb[0].mxu0 %v6267
        %v6269 = vpop.f32.mrb[0].mxu0
        %v6270 = vadd.f32 %v6194, %v6269
        %v6271 = vpop.f32.mrb[0].mxu0
        %6272 = vdwg.mxu0
        %6273 = vmatprep.subr.mxu0 0.0
        %v6274 = vand.u32 %v6116, 4294901760
        %v6275 = vsub.f32 %v6116, %v6274
        %6276 = vmatpush1.msra.mxu0 %v6275
        %6277 = vmatprep.subr.mxu0 0.0
        %6278 = vmatpush1.msra.mxu0 0.0
        %6279 = vmatprep.subr.mxu0 0.0
        %6280 = vmatpush1.msra.mxu0 0.0
        %6281 = vmatprep.subr.mxu0 0.0
        %6282 = vmatpush1.msra.mxu0 0.0
        %6283 = vmatprep.subr.mxu0 0.0
        %6284 = vmatpush1.msra.mxu0 0.0
        %6285 = vmatprep.subr.mxu0 0.0
        %6286 = vmatpush1.msra.mxu0 0.0
        %6287 = vmatprep.subr.mxu0 0.0
        %6288 = vmatpush1.msra.mxu0 0.0
        %6289 = vmatprep.subr.mxu0 0.0
        %6290 = vmatpush1.msra.mxu0 0.0
        %6291 = vmatprep.subr.mxu0 0.0
        %6292 = vmatpush1.msra.mxu0 0.0
        %6293 = vmatprep.subr.mxu0 0.0
        %6294 = vmatpush1.msra.mxu0 0.0
        %6295 = vmatprep.subr.mxu0 0.0
        %6296 = vmatpush1.msra.mxu0 0.0
        %6297 = vmatprep.subr.mxu0 0.0
        %6298 = vmatpush1.msra.mxu0 0.0
        %6299 = vmatprep.subr.mxu0 0.0
        %6300 = vmatpush1.msra.mxu0 0.0
        %6301 = vmatprep.subr.mxu0 0.0
        %6302 = vmatpush1.msra.mxu0 0.0
        %6303 = vmatprep.subr.mxu0 0.0
        %6304 = vmatpush1.msra.mxu0 0.0
        %6305 = vmatprep.subr.mxu0 0.0
        %6306 = vmatpush1.msra.mxu0 0.0
        %6307 = vmatprep.subr.mxu0 0.0
        %6308 = vmatpush1.msra.mxu0 0.0
        %6309 = vmatprep.subr.mxu0 0.0
        %6310 = vmatpush1.msra.mxu0 0.0
        %6311 = vmatprep.subr.mxu0 0.0
        %6312 = vmatpush1.msra.mxu0 0.0
        %6313 = vmatprep.subr.mxu0 0.0
        %6314 = vmatpush1.msra.mxu0 0.0
        %6315 = vmatprep.subr.mxu0 0.0
        %6316 = vmatpush1.msra.mxu0 0.0
        %6317 = vmatprep.subr.mxu0 0.0
        %6318 = vmatpush1.msra.mxu0 0.0
        %6319 = vmatprep.subr.mxu0 0.0
        %6320 = vmatpush1.msra.mxu0 0.0
        %6321 = vmatprep.subr.mxu0 0.0
        %6322 = vmatpush1.msra.mxu0 0.0
        %6323 = vmatprep.subr.mxu0 0.0
        %6324 = vmatpush1.msra.mxu0 0.0
        %6325 = vmatprep.subr.mxu0 0.0
        %6326 = vmatpush1.msra.mxu0 0.0
        %6327 = vmatprep.subr.mxu0 0.0
        %6328 = vmatpush1.msra.mxu0 0.0
        %6329 = vmatprep.subr.mxu0 0.0
        %6330 = vmatpush1.msra.mxu0 0.0
        %6331 = vmatprep.subr.mxu0 0.0
        %6332 = vmatpush1.msra.mxu0 0.0
        %6333 = vmatprep.subr.mxu0 0.0
        %6334 = vmatpush1.msra.mxu0 0.0
        %6335 = vmatprep.subr.mxu0 0.0
        %6336 = vmatpush1.msra.mxu0 0.0
        %6337 = vmatprep.subr.mxu0 0.0
        %6338 = vmatpush1.msra.mxu0 0.0
        %6339 = vmatprep.mubr.f32.mxu0 0.0
        %v6340 = vand.u32 %v6119, 4294901760
        %v6341 = vsub.f32 %v6119, %v6340
        %6342 = vmatmul.mubr.f32.gmra.mrb[0].mxu0 %v6341
        %v6343 = vpop.f32.mrb[0].mxu0
        %v6344 = vadd.f32 %v6270, %v6343
        %v6345 = vpop.f32.mrb[0].mxu0
        %6346 = vdwg.mxu0
        %6347 = vmatprep.subr.mxu0 0.0
        %v6348 = vand.u32 %v6116, 4294901760
        %6349 = vmatpush1.msra.mxu0 %v6348
        %6350 = vmatprep.subr.mxu0 0.0
        %6351 = vmatpush1.msra.mxu0 0.0
        %6352 = vmatprep.subr.mxu0 0.0
        %6353 = vmatpush1.msra.mxu0 0.0
        %6354 = vmatprep.subr.mxu0 0.0
        %6355 = vmatpush1.msra.mxu0 0.0
        %6356 = vmatprep.subr.mxu0 0.0
        %6357 = vmatpush1.msra.mxu0 0.0
        %6358 = vmatprep.subr.mxu0 0.0
        %6359 = vmatpush1.msra.mxu0 0.0
        %6360 = vmatprep.subr.mxu0 0.0
        %6361 = vmatpush1.msra.mxu0 0.0
        %6362 = vmatprep.subr.mxu0 0.0
        %6363 = vmatpush1.msra.mxu0 0.0
        %6364 = vmatprep.subr.mxu0 0.0
        %6365 = vmatpush1.msra.mxu0 0.0
        %6366 = vmatprep.subr.mxu0 0.0
        %6367 = vmatpush1.msra.mxu0 0.0
        %6368 = vmatprep.subr.mxu0 0.0
        %6369 = vmatpush1.msra.mxu0 0.0
        %6370 = vmatprep.subr.mxu0 0.0
        %6371 = vmatpush1.msra.mxu0 0.0
        %6372 = vmatprep.subr.mxu0 0.0
        %6373 = vmatpush1.msra.mxu0 0.0
        %6374 = vmatprep.subr.mxu0 0.0
        %6375 = vmatpush1.msra.mxu0 0.0
        %6376 = vmatprep.subr.mxu0 0.0
        %6377 = vmatpush1.msra.mxu0 0.0
        %6378 = vmatprep.subr.mxu0 0.0
        %6379 = vmatpush1.msra.mxu0 0.0
        %6380 = vmatprep.subr.mxu0 0.0
        %6381 = vmatpush1.msra.mxu0 0.0
        %6382 = vmatprep.subr.mxu0 0.0
        %6383 = vmatpush1.msra.mxu0 0.0
        %6384 = vmatprep.subr.mxu0 0.0
        %6385 = vmatpush1.msra.mxu0 0.0
        %6386 = vmatprep.subr.mxu0 0.0
        %6387 = vmatpush1.msra.mxu0 0.0
        %6388 = vmatprep.subr.mxu0 0.0
        %6389 = vmatpush1.msra.mxu0 0.0
        %6390 = vmatprep.subr.mxu0 0.0
        %6391 = vmatpush1.msra.mxu0 0.0
        %6392 = vmatprep.subr.mxu0 0.0
        %6393 = vmatpush1.msra.mxu0 0.0
        %6394 = vmatprep.subr.mxu0 0.0
        %6395 = vmatpush1.msra.mxu0 0.0
        %6396 = vmatprep.subr.mxu0 0.0
        %6397 = vmatpush1.msra.mxu0 0.0
        %6398 = vmatprep.subr.mxu0 0.0
        %6399 = vmatpush1.msra.mxu0 0.0
        %6400 = vmatprep.subr.mxu0 0.0
        %6401 = vmatpush1.msra.mxu0 0.0
        %6402 = vmatprep.subr.mxu0 0.0
        %6403 = vmatpush1.msra.mxu0 0.0
        %6404 = vmatprep.subr.mxu0 0.0
        %6405 = vmatpush1.msra.mxu0 0.0
        %6406 = vmatprep.subr.mxu0 0.0
        %6407 = vmatpush1.msra.mxu0 0.0
        %6408 = vmatprep.subr.mxu0 0.0
        %6409 = vmatpush1.msra.mxu0 0.0
        %6410 = vmatprep.subr.mxu0 0.0
        %6411 = vmatpush1.msra.mxu0 0.0
        %6412 = vmatprep.mubr.f32.mxu0 0.0
        %v6413 = vand.u32 %v6119, 4294901760
        %v6414 = vsub.f32 %v6119, %v6413
        %v6415 = vand.u32 %v6414, 4294901760
        %6416 = vmatmul.mubr.f32.gmra.mrb[0].mxu0 %v6415
        %v6417 = vpop.f32.mrb[0].mxu0
        %v6418 = vadd.f32 %v6344, %v6417
        %v6419 = vpop.f32.mrb[0].mxu0
        %6420 = vdwg.mxu0
        %6421 = vmatprep.subr.mxu0 0.0
        %v6422 = vand.u32 %v6116, 4294901760
        %v6423 = vsub.f32 %v6116, %v6422
        %v6424 = vand.u32 %v6423, 4294901760
        %6425 = vmatpush1.msra.mxu0 %v6424
        %6426 = vmatprep.subr.mxu0 0.0
        %6427 = vmatpush1.msra.mxu0 0.0
        %6428 = vmatprep.subr.mxu0 0.0
        %6429 = vmatpush1.msra.mxu0 0.0
        %6430 = vmatprep.subr.mxu0 0.0
        %6431 = vmatpush1.msra.mxu0 0.0
        %6432 = vmatprep.subr.mxu0 0.0
        %6433 = vmatpush1.msra.mxu0 0.0
        %6434 = vmatprep.subr.mxu0 0.0
        %6435 = vmatpush1.msra.mxu0 0.0
        %6436 = vmatprep.subr.mxu0 0.0
        %6437 = vmatpush1.msra.mxu0 0.0
        %6438 = vmatprep.subr.mxu0 0.0
        %6439 = vmatpush1.msra.mxu0 0.0
        %6440 = vmatprep.subr.mxu0 0.0
        %6441 = vmatpush1.msra.mxu0 0.0
        %6442 = vmatprep.subr.mxu0 0.0
        %6443 = vmatpush1.msra.mxu0 0.0
        %6444 = vmatprep.subr.mxu0 0.0
        %6445 = vmatpush1.msra.mxu0 0.0
        %6446 = vmatprep.subr.mxu0 0.0
        %6447 = vmatpush1.msra.mxu0 0.0
        %6448 = vmatprep.subr.mxu0 0.0
        %6449 = vmatpush1.msra.mxu0 0.0
        %6450 = vmatprep.subr.mxu0 0.0
        %6451 = vmatpush1.msra.mxu0 0.0
        %6452 = vmatprep.subr.mxu0 0.0
        %6453 = vmatpush1.msra.mxu0 0.0
        %6454 = vmatprep.subr.mxu0 0.0
        %6455 = vmatpush1.msra.mxu0 0.0
        %6456 = vmatprep.subr.mxu0 0.0
        %6457 = vmatpush1.msra.mxu0 0.0
        %6458 = vmatprep.subr.mxu0 0.0
        %6459 = vmatpush1.msra.mxu0 0.0
        %6460 = vmatprep.subr.mxu0 0.0
        %6461 = vmatpush1.msra.mxu0 0.0
        %6462 = vmatprep.subr.mxu0 0.0
        %6463 = vmatpush1.msra.mxu0 0.0
        %6464 = vmatprep.subr.mxu0 0.0
        %6465 = vmatpush1.msra.mxu0 0.0
        %6466 = vmatprep.subr.mxu0 0.0
        %6467 = vmatpush1.msra.mxu0 0.0
        %6468 = vmatprep.subr.mxu0 0.0
        %6469 = vmatpush1.msra.mxu0 0.0
        %6470 = vmatprep.subr.mxu0 0.0
        %6471 = vmatpush1.msra.mxu0 0.0
        %6472 = vmatprep.subr.mxu0 0.0
        %6473 = vmatpush1.msra.mxu0 0.0
        %6474 = vmatprep.subr.mxu0 0.0
        %6475 = vmatpush1.msra.mxu0 0.0
        %6476 = vmatprep.subr.mxu0 0.0
        %6477 = vmatpush1.msra.mxu0 0.0
        %6478 = vmatprep.subr.mxu0 0.0
        %6479 = vmatpush1.msra.mxu0 0.0
        %6480 = vmatprep.subr.mxu0 0.0
        %6481 = vmatpush1.msra.mxu0 0.0
        %6482 = vmatprep.subr.mxu0 0.0
        %6483 = vmatpush1.msra.mxu0 0.0
        %6484 = vmatprep.subr.mxu0 0.0
        %6485 = vmatpush1.msra.mxu0 0.0
        %6486 = vmatprep.subr.mxu0 0.0
        %6487 = vmatpush1.msra.mxu0 0.0
        %6488 = vmatprep.mubr.f32.mxu0 0.0
        %v6489 = vand.u32 %v6119, 4294901760
        %6490 = vmatmul.mubr.f32.gmra.mrb[0].mxu0 %v6489
        %v6491 = vpop.f32.mrb[0].mxu0
        %v6492 = vadd.f32 %v6418, %v6491
        %v6493 = vpop.f32.mrb[0].mxu0
        %6494 = vdwg.mxu0
        %6495 = vmatprep.subr.mxu0 0.0
        %v6496 = vand.u32 %v6116, 4294901760
        %6497 = vmatpush1.msra.mxu0 %v6496
        %6498 = vmatprep.subr.mxu0 0.0
        %6499 = vmatpush1.msra.mxu0 0.0
        %6500 = vmatprep.subr.mxu0 0.0
        %6501 = vmatpush1.msra.mxu0 0.0
        %6502 = vmatprep.subr.mxu0 0.0
        %6503 = vmatpush1.msra.mxu0 0.0
        %6504 = vmatprep.subr.mxu0 0.0
        %6505 = vmatpush1.msra.mxu0 0.0
        %6506 = vmatprep.subr.mxu0 0.0
        %6507 = vmatpush1.msra.mxu0 0.0
        %6508 = vmatprep.subr.mxu0 0.0
        %6509 = vmatpush1.msra.mxu0 0.0
        %6510 = vmatprep.subr.mxu0 0.0
        %6511 = vmatpush1.msra.mxu0 0.0
        %6512 = vmatprep.subr.mxu0 0.0
        %6513 = vmatpush1.msra.mxu0 0.0
        %6514 = vmatprep.subr.mxu0 0.0
        %6515 = vmatpush1.msra.mxu0 0.0
        %6516 = vmatprep.subr.mxu0 0.0
        %6517 = vmatpush1.msra.mxu0 0.0
        %6518 = vmatprep.subr.mxu0 0.0
        %6519 = vmatpush1.msra.mxu0 0.0
        %6520 = vmatprep.subr.mxu0 0.0
        %6521 = vmatpush1.msra.mxu0 0.0
        %6522 = vmatprep.subr.mxu0 0.0
        %6523 = vmatpush1.msra.mxu0 0.0
        %6524 = vmatprep.subr.mxu0 0.0
        %6525 = vmatpush1.msra.mxu0 0.0
        %6526 = vmatprep.subr.mxu0 0.0
        %6527 = vmatpush1.msra.mxu0 0.0
        %6528 = vmatprep.subr.mxu0 0.0
        %6529 = vmatpush1.msra.mxu0 0.0
        %6530 = vmatprep.subr.mxu0 0.0
        %6531 = vmatpush1.msra.mxu0 0.0
        %6532 = vmatprep.subr.mxu0 0.0
        %6533 = vmatpush1.msra.mxu0 0.0
        %6534 = vmatprep.subr.mxu0 0.0
        %6535 = vmatpush1.msra.mxu0 0.0
        %6536 = vmatprep.subr.mxu0 0.0
        %6537 = vmatpush1.msra.mxu0 0.0
        %6538 = vmatprep.subr.mxu0 0.0
        %6539 = vmatpush1.msra.mxu0 0.0
        %6540 = vmatprep.subr.mxu0 0.0
        %6541 = vmatpush1.msra.mxu0 0.0
        %6542 = vmatprep.subr.mxu0 0.0
        %6543 = vmatpush1.msra.mxu0 0.0
        %6544 = vmatprep.subr.mxu0 0.0
        %6545 = vmatpush1.msra.mxu0 0.0
        %6546 = vmatprep.subr.mxu0 0.0
        %6547 = vmatpush1.msra.mxu0 0.0
        %6548 = vmatprep.subr.mxu0 0.0
        %6549 = vmatpush1.msra.mxu0 0.0
        %6550 = vmatprep.subr.mxu0 0.0
        %6551 = vmatpush1.msra.mxu0 0.0
        %6552 = vmatprep.subr.mxu0 0.0
        %6553 = vmatpush1.msra.mxu0 0.0
        %6554 = vmatprep.subr.mxu0 0.0
        %6555 = vmatpush1.msra.mxu0 0.0
        %6556 = vmatprep.subr.mxu0 0.0
        %6557 = vmatpush1.msra.mxu0 0.0
        %6558 = vmatprep.subr.mxu0 0.0
        %6559 = vmatpush1.msra.mxu0 0.0
        %6560 = vmatprep.mubr.f32.mxu0 0.0
        %v6561 = vand.u32 %v6119, 4294901760
        %6562 = vmatmul.mubr.f32.gmra.mrb[0].mxu0 %v6561
        %v6563 = vpop.f32.mrb[0].mxu0
        %v6564 = vadd.f32 %v6492, %v6563
        %v6565 = vpop.f32.mrb[0].mxu0
        %6566 = vdwg.mxu0
        %6569 = vrot.lane.b32.xlu0 %v6111, 16
        %v6570 = vpop.permute.xlu0 %6569
        %6571 = vrot.lane.b32.xlu0 %v6564, 16
        %v6572 = vpop.permute.xlu0 %6571
        %v6575 = vsel %vm736, %v4265, %v6570
        %v6576 = vsel %vm736, %v4714, %v6572
        %v6577 = vld [vmem:[%s713] sm:$0xff]
        %vm6578 = vcmp.ne.f32.partialorder %v6577, 0.0
        %v6579 = vsel %vm6578, 1, 0
        %6580 = vset.pattern.permute.xlu0 0
        %6581 = vperm.xlu0 %6580, %v6579
        %v6582 = vpop.permute.xlu0 %6581
        %vm6583 = vcmp.eq.s32.totalorder %v6582, 1
        %v6586 = vcombine.low %v6575, %v6576
        %v6588 = vsel %vm6583, 0.0, %v6586
        %v6589 = vld [vmem:[#allocation2] sm:$0xff]
        %v6590 = vld [vmem:[%s12] sm:$0xff]
        %v6591 = vld [vmem:[%s12 + $0x8] sm:$0xff]
        %v6592 = vld [vmem:[%s12 + $0x10] sm:$0xff]
        %v6593 = vld [vmem:[%s12 + $0x18] sm:$0xff]
        %v6594 = vld [vmem:[#allocation10] sm:$0x1]
        %v6596 = vlaneseq
        %v6597 = vshrl.u32 %v6596, 7
        %v6598 = vsub.s32 0, %v6597
        %v6599 = vrot.slane %v6594, %v6598
        %v6602 = vsel %vm1258, %v6588, 0
        %6604 = vmatprep.subr.mxu0 0.0
        %v6605 = vand.u32 %v6590, 4294901760
        %6606 = vmatpush1.msra.mxu0 %v6605
        %6607 = vmatprep.subr.mxu0 0.0
        %v6608 = vand.u32 %v6591, 4294901760
        %6609 = vmatpush1.msra.mxu0 %v6608
        %6610 = vmatprep.subr.mxu0 0.0
        %v6611 = vand.u32 %v6592, 4294901760
        %6612 = vmatpush1.msra.mxu0 %v6611
        %6613 = vmatprep.subr.mxu0 0.0
        %v6614 = vand.u32 %v6593, 4294901760
        %6615 = vmatpush1.msra.mxu0 %v6614
        %6616 = vmatprep.subr.mxu0 0.0
        %6617 = vmatpush1.msra.mxu0 0.0
        %6618 = vmatprep.subr.mxu0 0.0
        %6619 = vmatpush1.msra.mxu0 0.0
        %6620 = vmatprep.subr.mxu0 0.0
        %6621 = vmatpush1.msra.mxu0 0.0
        %6622 = vmatprep.subr.mxu0 0.0
        %6623 = vmatpush1.msra.mxu0 0.0
        %6624 = vmatprep.subr.mxu0 0.0
        %6625 = vmatpush1.msra.mxu0 0.0
        %6626 = vmatprep.subr.mxu0 0.0
        %6627 = vmatpush1.msra.mxu0 0.0
        %6628 = vmatprep.subr.mxu0 0.0
        %6629 = vmatpush1.msra.mxu0 0.0
        %6630 = vmatprep.subr.mxu0 0.0
        %6631 = vmatpush1.msra.mxu0 0.0
        %6632 = vmatprep.subr.mxu0 0.0
        %6633 = vmatpush1.msra.mxu0 0.0
        %6634 = vmatprep.subr.mxu0 0.0
        %6635 = vmatpush1.msra.mxu0 0.0
        %6636 = vmatprep.subr.mxu0 0.0
        %6637 = vmatpush1.msra.mxu0 0.0
        %6638 = vmatprep.subr.mxu0 0.0
        %6639 = vmatpush1.msra.mxu0 0.0
        %6640 = vmatprep.subr.mxu0 0.0
        %6641 = vmatpush1.msra.mxu0 0.0
        %6642 = vmatprep.subr.mxu0 0.0
        %6643 = vmatpush1.msra.mxu0 0.0
        %6644 = vmatprep.subr.mxu0 0.0
        %6645 = vmatpush1.msra.mxu0 0.0
        %6646 = vmatprep.subr.mxu0 0.0
        %6647 = vmatpush1.msra.mxu0 0.0
        %6648 = vmatprep.subr.mxu0 0.0
        %6649 = vmatpush1.msra.mxu0 0.0
        %6650 = vmatprep.subr.mxu0 0.0
        %6651 = vmatpush1.msra.mxu0 0.0
        %6652 = vmatprep.subr.mxu0 0.0
        %6653 = vmatpush1.msra.mxu0 0.0
        %6654 = vmatprep.subr.mxu0 0.0
        %6655 = vmatpush1.msra.mxu0 0.0
        %6656 = vmatprep.subr.mxu0 0.0
        %6657 = vmatpush1.msra.mxu0 0.0
        %6658 = vmatprep.subr.mxu0 0.0
        %6659 = vmatpush1.msra.mxu0 0.0
        %6660 = vmatprep.subr.mxu0 0.0
        %6661 = vmatpush1.msra.mxu0 0.0
        %6662 = vmatprep.subr.mxu0 0.0
        %6663 = vmatpush1.msra.mxu0 0.0
        %6664 = vmatprep.subr.mxu0 0.0
        %6665 = vmatpush1.msra.mxu0 0.0
        %6666 = vmatprep.subr.mxu0 0.0
        %6667 = vmatpush1.msra.mxu0 0.0
        %6668 = vmatprep.subr.mxu0 0.0
        %6669 = vmatpush1.msra.mxu0 0.0
        %6670 = vmatprep.subr.mxu0 0.0
        %6671 = vmatpush1.msra.mxu0 0.0
        %6672 = vmatprep.mubr.f32.mxu0 0.0
        %v6673 = vand.u32 %v6602, 4294901760
        %v6674 = vsub.f32 %v6602, %v6673
        %v6675 = vand.u32 %v6674, 4294901760
        %v6676 = vsub.f32 %v6674, %v6675
        %v6677 = vand.u32 %v6676, 4294901760
        %6678 = vmatmul.mubr.f32.gmra.mrb[0].mxu0 %v6677
        %v6679 = vpop.f32.mrb[0].mxu0
        %v6680 = vadd.f32 %v6599, %v6679
        %v6681 = vpop.f32.mrb[0].mxu0
        %6682 = vdwg.mxu0
        %6683 = vmatprep.subr.mxu0 0.0
        %v6684 = vand.u32 %v6590, 4294901760
        %v6685 = vsub.f32 %v6590, %v6684
        %v6686 = vand.u32 %v6685, 4294901760
        %v6687 = vsub.f32 %v6685, %v6686
        %v6688 = vand.u32 %v6687, 4294901760
        %6689 = vmatpush1.msra.mxu0 %v6688
        %6690 = vmatprep.subr.mxu0 0.0
        %v6691 = vand.u32 %v6591, 4294901760
        %v6692 = vsub.f32 %v6591, %v6691
        %v6693 = vand.u32 %v6692, 4294901760
        %v6694 = vsub.f32 %v6692, %v6693
        %v6695 = vand.u32 %v6694, 4294901760
        %6696 = vmatpush1.msra.mxu0 %v6695
        %6697 = vmatprep.subr.mxu0 0.0
        %v6698 = vand.u32 %v6592, 4294901760
        %v6699 = vsub.f32 %v6592, %v6698
        %v6700 = vand.u32 %v6699, 4294901760
        %v6701 = vsub.f32 %v6699, %v6700
        %v6702 = vand.u32 %v6701, 4294901760
        %6703 = vmatpush1.msra.mxu0 %v6702
        %6704 = vmatprep.subr.mxu0 0.0
        %v6705 = vand.u32 %v6593, 4294901760
        %v6706 = vsub.f32 %v6593, %v6705
        %v6707 = vand.u32 %v6706, 4294901760
        %v6708 = vsub.f32 %v6706, %v6707
        %v6709 = vand.u32 %v6708, 4294901760
        %6710 = vmatpush1.msra.mxu0 %v6709
        %6711 = vmatprep.subr.mxu0 0.0
        %6712 = vmatpush1.msra.mxu0 0.0
        %6713 = vmatprep.subr.mxu0 0.0
        %6714 = vmatpush1.msra.mxu0 0.0
        %6715 = vmatprep.subr.mxu0 0.0
        %6716 = vmatpush1.msra.mxu0 0.0
        %6717 = vmatprep.subr.mxu0 0.0
        %6718 = vmatpush1.msra.mxu0 0.0
        %6719 = vmatprep.subr.mxu0 0.0
        %6720 = vmatpush1.msra.mxu0 0.0
        %6721 = vmatprep.subr.mxu0 0.0
        %6722 = vmatpush1.msra.mxu0 0.0
        %6723 = vmatprep.subr.mxu0 0.0
        %6724 = vmatpush1.msra.mxu0 0.0
        %6725 = vmatprep.subr.mxu0 0.0
        %6726 = vmatpush1.msra.mxu0 0.0
        %6727 = vmatprep.subr.mxu0 0.0
        %6728 = vmatpush1.msra.mxu0 0.0
        %6729 = vmatprep.subr.mxu0 0.0
        %6730 = vmatpush1.msra.mxu0 0.0
        %6731 = vmatprep.subr.mxu0 0.0
        %6732 = vmatpush1.msra.mxu0 0.0
        %6733 = vmatprep.subr.mxu0 0.0
        %6734 = vmatpush1.msra.mxu0 0.0
        %6735 = vmatprep.subr.mxu0 0.0
        %6736 = vmatpush1.msra.mxu0 0.0
        %6737 = vmatprep.subr.mxu0 0.0
        %6738 = vmatpush1.msra.mxu0 0.0
        %6739 = vmatprep.subr.mxu0 0.0
        %6740 = vmatpush1.msra.mxu0 0.0
        %6741 = vmatprep.subr.mxu0 0.0
        %6742 = vmatpush1.msra.mxu0 0.0
        %6743 = vmatprep.subr.mxu0 0.0
        %6744 = vmatpush1.msra.mxu0 0.0
        %6745 = vmatprep.subr.mxu0 0.0
        %6746 = vmatpush1.msra.mxu0 0.0
        %6747 = vmatprep.subr.mxu0 0.0
        %6748 = vmatpush1.msra.mxu0 0.0
        %6749 = vmatprep.subr.mxu0 0.0
        %6750 = vmatpush1.msra.mxu0 0.0
        %6751 = vmatprep.subr.mxu0 0.0
        %6752 = vmatpush1.msra.mxu0 0.0
        %6753 = vmatprep.subr.mxu0 0.0
        %6754 = vmatpush1.msra.mxu0 0.0
        %6755 = vmatprep.subr.mxu0 0.0
        %6756 = vmatpush1.msra.mxu0 0.0
        %6757 = vmatprep.subr.mxu0 0.0
        %6758 = vmatpush1.msra.mxu0 0.0
        %6759 = vmatprep.subr.mxu0 0.0
        %6760 = vmatpush1.msra.mxu0 0.0
        %6761 = vmatprep.subr.mxu0 0.0
        %6762 = vmatpush1.msra.mxu0 0.0
        %6763 = vmatprep.subr.mxu0 0.0
        %6764 = vmatpush1.msra.mxu0 0.0
        %6765 = vmatprep.subr.mxu0 0.0
        %6766 = vmatpush1.msra.mxu0 0.0
        %6767 = vmatprep.mubr.f32.mxu0 0.0
        %v6768 = vand.u32 %v6602, 4294901760
        %6769 = vmatmul.mubr.f32.gmra.mrb[0].mxu0 %v6768
        %v6770 = vpop.f32.mrb[0].mxu0
        %v6771 = vadd.f32 %v6680, %v6770
        %v6772 = vpop.f32.mrb[0].mxu0
        %6773 = vdwg.mxu0
        %6774 = vmatprep.subr.mxu0 0.0
        %v6775 = vand.u32 %v6590, 4294901760
        %v6776 = vsub.f32 %v6590, %v6775
        %6777 = vmatpush1.msra.mxu0 %v6776
        %6778 = vmatprep.subr.mxu0 0.0
        %v6779 = vand.u32 %v6591, 4294901760
        %v6780 = vsub.f32 %v6591, %v6779
        %6781 = vmatpush1.msra.mxu0 %v6780
        %6782 = vmatprep.subr.mxu0 0.0
        %v6783 = vand.u32 %v6592, 4294901760
        %v6784 = vsub.f32 %v6592, %v6783
        %6785 = vmatpush1.msra.mxu0 %v6784
        %6786 = vmatprep.subr.mxu0 0.0
        %v6787 = vand.u32 %v6593, 4294901760
        %v6788 = vsub.f32 %v6593, %v6787
        %6789 = vmatpush1.msra.mxu0 %v6788
        %6790 = vmatprep.subr.mxu0 0.0
        %6791 = vmatpush1.msra.mxu0 0.0
        %6792 = vmatprep.subr.mxu0 0.0
        %6793 = vmatpush1.msra.mxu0 0.0
        %6794 = vmatprep.subr.mxu0 0.0
        %6795 = vmatpush1.msra.mxu0 0.0
        %6796 = vmatprep.subr.mxu0 0.0
        %6797 = vmatpush1.msra.mxu0 0.0
        %6798 = vmatprep.subr.mxu0 0.0
        %6799 = vmatpush1.msra.mxu0 0.0
        %6800 = vmatprep.subr.mxu0 0.0
        %6801 = vmatpush1.msra.mxu0 0.0
        %6802 = vmatprep.subr.mxu0 0.0
        %6803 = vmatpush1.msra.mxu0 0.0
        %6804 = vmatprep.subr.mxu0 0.0
        %6805 = vmatpush1.msra.mxu0 0.0
        %6806 = vmatprep.subr.mxu0 0.0
        %6807 = vmatpush1.msra.mxu0 0.0
        %6808 = vmatprep.subr.mxu0 0.0
        %6809 = vmatpush1.msra.mxu0 0.0
        %6810 = vmatprep.subr.mxu0 0.0
        %6811 = vmatpush1.msra.mxu0 0.0
        %6812 = vmatprep.subr.mxu0 0.0
        %6813 = vmatpush1.msra.mxu0 0.0
        %6814 = vmatprep.subr.mxu0 0.0
        %6815 = vmatpush1.msra.mxu0 0.0
        %6816 = vmatprep.subr.mxu0 0.0
        %6817 = vmatpush1.msra.mxu0 0.0
        %6818 = vmatprep.subr.mxu0 0.0
        %6819 = vmatpush1.msra.mxu0 0.0
        %6820 = vmatprep.subr.mxu0 0.0
        %6821 = vmatpush1.msra.mxu0 0.0
        %6822 = vmatprep.subr.mxu0 0.0
        %6823 = vmatpush1.msra.mxu0 0.0
        %6824 = vmatprep.subr.mxu0 0.0
        %6825 = vmatpush1.msra.mxu0 0.0
        %6826 = vmatprep.subr.mxu0 0.0
        %6827 = vmatpush1.msra.mxu0 0.0
        %6828 = vmatprep.subr.mxu0 0.0
        %6829 = vmatpush1.msra.mxu0 0.0
        %6830 = vmatprep.subr.mxu0 0.0
        %6831 = vmatpush1.msra.mxu0 0.0
        %6832 = vmatprep.subr.mxu0 0.0
        %6833 = vmatpush1.msra.mxu0 0.0
        %6834 = vmatprep.subr.mxu0 0.0
        %6835 = vmatpush1.msra.mxu0 0.0
        %6836 = vmatprep.subr.mxu0 0.0
        %6837 = vmatpush1.msra.mxu0 0.0
        %6838 = vmatprep.subr.mxu0 0.0
        %6839 = vmatpush1.msra.mxu0 0.0
        %6840 = vmatprep.subr.mxu0 0.0
        %6841 = vmatpush1.msra.mxu0 0.0
        %6842 = vmatprep.subr.mxu0 0.0
        %6843 = vmatpush1.msra.mxu0 0.0
        %6844 = vmatprep.subr.mxu0 0.0
        %6845 = vmatpush1.msra.mxu0 0.0
        %6846 = vmatprep.mubr.f32.mxu0 0.0
        %v6847 = vand.u32 %v6602, 4294901760
        %v6848 = vsub.f32 %v6602, %v6847
        %6849 = vmatmul.mubr.f32.gmra.mrb[0].mxu0 %v6848
        %v6850 = vpop.f32.mrb[0].mxu0
        %v6851 = vadd.f32 %v6771, %v6850
        %v6852 = vpop.f32.mrb[0].mxu0
        %6853 = vdwg.mxu0
        %6854 = vmatprep.subr.mxu0 0.0
        %v6855 = vand.u32 %v6590, 4294901760
        %6856 = vmatpush1.msra.mxu0 %v6855
        %6857 = vmatprep.subr.mxu0 0.0
        %v6858 = vand.u32 %v6591, 4294901760
        %6859 = vmatpush1.msra.mxu0 %v6858
        %6860 = vmatprep.subr.mxu0 0.0
        %v6861 = vand.u32 %v6592, 4294901760
        %6862 = vmatpush1.msra.mxu0 %v6861
        %6863 = vmatprep.subr.mxu0 0.0
        %v6864 = vand.u32 %v6593, 4294901760
        %6865 = vmatpush1.msra.mxu0 %v6864
        %6866 = vmatprep.subr.mxu0 0.0
        %6867 = vmatpush1.msra.mxu0 0.0
        %6868 = vmatprep.subr.mxu0 0.0
        %6869 = vmatpush1.msra.mxu0 0.0
        %6870 = vmatprep.subr.mxu0 0.0
        %6871 = vmatpush1.msra.mxu0 0.0
        %6872 = vmatprep.subr.mxu0 0.0
        %6873 = vmatpush1.msra.mxu0 0.0
        %6874 = vmatprep.subr.mxu0 0.0
        %6875 = vmatpush1.msra.mxu0 0.0
        %6876 = vmatprep.subr.mxu0 0.0
        %6877 = vmatpush1.msra.mxu0 0.0
        %6878 = vmatprep.subr.mxu0 0.0
        %6879 = vmatpush1.msra.mxu0 0.0
        %6880 = vmatprep.subr.mxu0 0.0
        %6881 = vmatpush1.msra.mxu0 0.0
        %6882 = vmatprep.subr.mxu0 0.0
        %6883 = vmatpush1.msra.mxu0 0.0
        %6884 = vmatprep.subr.mxu0 0.0
        %6885 = vmatpush1.msra.mxu0 0.0
        %6886 = vmatprep.subr.mxu0 0.0
        %6887 = vmatpush1.msra.mxu0 0.0
        %6888 = vmatprep.subr.mxu0 0.0
        %6889 = vmatpush1.msra.mxu0 0.0
        %6890 = vmatprep.subr.mxu0 0.0
        %6891 = vmatpush1.msra.mxu0 0.0
        %6892 = vmatprep.subr.mxu0 0.0
        %6893 = vmatpush1.msra.mxu0 0.0
        %6894 = vmatprep.subr.mxu0 0.0
        %6895 = vmatpush1.msra.mxu0 0.0
        %6896 = vmatprep.subr.mxu0 0.0
        %6897 = vmatpush1.msra.mxu0 0.0
        %6898 = vmatprep.subr.mxu0 0.0
        %6899 = vmatpush1.msra.mxu0 0.0
        %6900 = vmatprep.subr.mxu0 0.0
        %6901 = vmatpush1.msra.mxu0 0.0
        %6902 = vmatprep.subr.mxu0 0.0
        %6903 = vmatpush1.msra.mxu0 0.0
        %6904 = vmatprep.subr.mxu0 0.0
        %6905 = vmatpush1.msra.mxu0 0.0
        %6906 = vmatprep.subr.mxu0 0.0
        %6907 = vmatpush1.msra.mxu0 0.0
        %6908 = vmatprep.subr.mxu0 0.0
        %6909 = vmatpush1.msra.mxu0 0.0
        %6910 = vmatprep.subr.mxu0 0.0
        %6911 = vmatpush1.msra.mxu0 0.0
        %6912 = vmatprep.subr.mxu0 0.0
        %6913 = vmatpush1.msra.mxu0 0.0
        %6914 = vmatprep.subr.mxu0 0.0
        %6915 = vmatpush1.msra.mxu0 0.0
        %6916 = vmatprep.subr.mxu0 0.0
        %6917 = vmatpush1.msra.mxu0 0.0
        %6918 = vmatprep.subr.mxu0 0.0
        %6919 = vmatpush1.msra.mxu0 0.0
        %6920 = vmatprep.subr.mxu0 0.0
        %6921 = vmatpush1.msra.mxu0 0.0
        %6922 = vmatprep.mubr.f32.mxu0 0.0
        %v6923 = vand.u32 %v6602, 4294901760
        %v6924 = vsub.f32 %v6602, %v6923
        %v6925 = vand.u32 %v6924, 4294901760
        %6926 = vmatmul.mubr.f32.gmra.mrb[0].mxu0 %v6925
        %v6927 = vpop.f32.mrb[0].mxu0
        %v6928 = vadd.f32 %v6851, %v6927
        %v6929 = vpop.f32.mrb[0].mxu0
        %6930 = vdwg.mxu0
        %6931 = vmatprep.subr.mxu0 0.0
        %v6932 = vand.u32 %v6590, 4294901760
        %v6933 = vsub.f32 %v6590, %v6932
        %v6934 = vand.u32 %v6933, 4294901760
        %6935 = vmatpush1.msra.mxu0 %v6934
        %6936 = vmatprep.subr.mxu0 0.0
        %v6937 = vand.u32 %v6591, 4294901760
        %v6938 = vsub.f32 %v6591, %v6937
        %v6939 = vand.u32 %v6938, 4294901760
        %6940 = vmatpush1.msra.mxu0 %v6939
        %6941 = vmatprep.subr.mxu0 0.0
        %v6942 = vand.u32 %v6592, 4294901760
        %v6943 = vsub.f32 %v6592, %v6942
        %v6944 = vand.u32 %v6943, 4294901760
        %6945 = vmatpush1.msra.mxu0 %v6944
        %6946 = vmatprep.subr.mxu0 0.0
        %v6947 = vand.u32 %v6593, 4294901760
        %v6948 = vsub.f32 %v6593, %v6947
        %v6949 = vand.u32 %v6948, 4294901760
        %6950 = vmatpush1.msra.mxu0 %v6949
        %6951 = vmatprep.subr.mxu0 0.0
        %6952 = vmatpush1.msra.mxu0 0.0
        %6953 = vmatprep.subr.mxu0 0.0
        %6954 = vmatpush1.msra.mxu0 0.0
        %6955 = vmatprep.subr.mxu0 0.0
        %6956 = vmatpush1.msra.mxu0 0.0
        %6957 = vmatprep.subr.mxu0 0.0
        %6958 = vmatpush1.msra.mxu0 0.0
        %6959 = vmatprep.subr.mxu0 0.0
        %6960 = vmatpush1.msra.mxu0 0.0
        %6961 = vmatprep.subr.mxu0 0.0
        %6962 = vmatpush1.msra.mxu0 0.0
        %6963 = vmatprep.subr.mxu0 0.0
        %6964 = vmatpush1.msra.mxu0 0.0
        %6965 = vmatprep.subr.mxu0 0.0
        %6966 = vmatpush1.msra.mxu0 0.0
        %6967 = vmatprep.subr.mxu0 0.0
        %6968 = vmatpush1.msra.mxu0 0.0
        %6969 = vmatprep.subr.mxu0 0.0
        %6970 = vmatpush1.msra.mxu0 0.0
        %6971 = vmatprep.subr.mxu0 0.0
        %6972 = vmatpush1.msra.mxu0 0.0
        %6973 = vmatprep.subr.mxu0 0.0
        %6974 = vmatpush1.msra.mxu0 0.0
        %6975 = vmatprep.subr.mxu0 0.0
        %6976 = vmatpush1.msra.mxu0 0.0
        %6977 = vmatprep.subr.mxu0 0.0
        %6978 = vmatpush1.msra.mxu0 0.0
        %6979 = vmatprep.subr.mxu0 0.0
        %6980 = vmatpush1.msra.mxu0 0.0
        %6981 = vmatprep.subr.mxu0 0.0
        %6982 = vmatpush1.msra.mxu0 0.0
        %6983 = vmatprep.subr.mxu0 0.0
        %6984 = vmatpush1.msra.mxu0 0.0
        %6985 = vmatprep.subr.mxu0 0.0
        %6986 = vmatpush1.msra.mxu0 0.0
        %6987 = vmatprep.subr.mxu0 0.0
        %6988 = vmatpush1.msra.mxu0 0.0
        %6989 = vmatprep.subr.mxu0 0.0
        %6990 = vmatpush1.msra.mxu0 0.0
        %6991 = vmatprep.subr.mxu0 0.0
        %6992 = vmatpush1.msra.mxu0 0.0
        %6993 = vmatprep.subr.mxu0 0.0
        %6994 = vmatpush1.msra.mxu0 0.0
        %6995 = vmatprep.subr.mxu0 0.0
        %6996 = vmatpush1.msra.mxu0 0.0
        %6997 = vmatprep.subr.mxu0 0.0
        %6998 = vmatpush1.msra.mxu0 0.0
        %6999 = vmatprep.subr.mxu0 0.0
        %7000 = vmatpush1.msra.mxu0 0.0
        %7001 = vmatprep.subr.mxu0 0.0
        %7002 = vmatpush1.msra.mxu0 0.0
        %7003 = vmatprep.subr.mxu0 0.0
        %7004 = vmatpush1.msra.mxu0 0.0
        %7005 = vmatprep.subr.mxu0 0.0
        %7006 = vmatpush1.msra.mxu0 0.0
        %7007 = vmatprep.mubr.f32.mxu0 0.0
        %v7008 = vand.u32 %v6602, 4294901760
        %7009 = vmatmul.mubr.f32.gmra.mrb[0].mxu0 %v7008
        %v7010 = vpop.f32.mrb[0].mxu0
        %v7011 = vadd.f32 %v6928, %v7010
        %v7012 = vpop.f32.mrb[0].mxu0
        %7013 = vdwg.mxu0
        %7014 = vmatprep.subr.mxu0 0.0
        %v7015 = vand.u32 %v6590, 4294901760
        %7016 = vmatpush1.msra.mxu0 %v7015
        %7017 = vmatprep.subr.mxu0 0.0
        %v7018 = vand.u32 %v6591, 4294901760
        %7019 = vmatpush1.msra.mxu0 %v7018
        %7020 = vmatprep.subr.mxu0 0.0
        %v7021 = vand.u32 %v6592, 4294901760
        %7022 = vmatpush1.msra.mxu0 %v7021
        %7023 = vmatprep.subr.mxu0 0.0
        %v7024 = vand.u32 %v6593, 4294901760
        %7025 = vmatpush1.msra.mxu0 %v7024
        %7026 = vmatprep.subr.mxu0 0.0
        %7027 = vmatpush1.msra.mxu0 0.0
        %7028 = vmatprep.subr.mxu0 0.0
        %7029 = vmatpush1.msra.mxu0 0.0
        %7030 = vmatprep.subr.mxu0 0.0
        %7031 = vmatpush1.msra.mxu0 0.0
        %7032 = vmatprep.subr.mxu0 0.0
        %7033 = vmatpush1.msra.mxu0 0.0
        %7034 = vmatprep.subr.mxu0 0.0
        %7035 = vmatpush1.msra.mxu0 0.0
        %7036 = vmatprep.subr.mxu0 0.0
        %7037 = vmatpush1.msra.mxu0 0.0
        %7038 = vmatprep.subr.mxu0 0.0
        %7039 = vmatpush1.msra.mxu0 0.0
        %7040 = vmatprep.subr.mxu0 0.0
        %7041 = vmatpush1.msra.mxu0 0.0
        %7042 = vmatprep.subr.mxu0 0.0
        %7043 = vmatpush1.msra.mxu0 0.0
        %7044 = vmatprep.subr.mxu0 0.0
        %7045 = vmatpush1.msra.mxu0 0.0
        %7046 = vmatprep.subr.mxu0 0.0
        %7047 = vmatpush1.msra.mxu0 0.0
        %7048 = vmatprep.subr.mxu0 0.0
        %7049 = vmatpush1.msra.mxu0 0.0
        %7050 = vmatprep.subr.mxu0 0.0
        %7051 = vmatpush1.msra.mxu0 0.0
        %7052 = vmatprep.subr.mxu0 0.0
        %7053 = vmatpush1.msra.mxu0 0.0
        %7054 = vmatprep.subr.mxu0 0.0
        %7055 = vmatpush1.msra.mxu0 0.0
        %7056 = vmatprep.subr.mxu0 0.0
        %7057 = vmatpush1.msra.mxu0 0.0
        %7058 = vmatprep.subr.mxu0 0.0
        %7059 = vmatpush1.msra.mxu0 0.0
        %7060 = vmatprep.subr.mxu0 0.0
        %7061 = vmatpush1.msra.mxu0 0.0
        %7062 = vmatprep.subr.mxu0 0.0
        %7063 = vmatpush1.msra.mxu0 0.0
        %7064 = vmatprep.subr.mxu0 0.0
        %7065 = vmatpush1.msra.mxu0 0.0
        %7066 = vmatprep.subr.mxu0 0.0
        %7067 = vmatpush1.msra.mxu0 0.0
        %7068 = vmatprep.subr.mxu0 0.0
        %7069 = vmatpush1.msra.mxu0 0.0
        %7070 = vmatprep.subr.mxu0 0.0
        %7071 = vmatpush1.msra.mxu0 0.0
        %7072 = vmatprep.subr.mxu0 0.0
        %7073 = vmatpush1.msra.mxu0 0.0
        %7074 = vmatprep.subr.mxu0 0.0
        %7075 = vmatpush1.msra.mxu0 0.0
        %7076 = vmatprep.subr.mxu0 0.0
        %7077 = vmatpush1.msra.mxu0 0.0
        %7078 = vmatprep.subr.mxu0 0.0
        %7079 = vmatpush1.msra.mxu0 0.0
        %7080 = vmatprep.subr.mxu0 0.0
        %7081 = vmatpush1.msra.mxu0 0.0
        %7082 = vmatprep.mubr.f32.mxu0 0.0
        %v7083 = vand.u32 %v6602, 4294901760
        %7084 = vmatmul.mubr.f32.gmra.mrb[0].mxu0 %v7083
        %v7085 = vpop.f32.mrb[0].mxu0
        %v7086 = vadd.f32 %v7011, %v7085
        %v7087 = vpop.f32.mrb[0].mxu0
        %7088 = vdwg.mxu0
        %s7089 = scalar_lea.vmem %s12, 32
        %v7090 = vld [vmem:[%s7089] sm:$0xff]
        %v7091 = vld [vmem:[%s7089 + $0x8] sm:$0xff]
        %v7092 = vld [vmem:[%s7089 + $0x10] sm:$0xff]
        %v7093 = vld [vmem:[%s7089 + $0x18] sm:$0xff]
        %s7094 = scalar_lea.vmem [#allocation10], 1
        %v7095 = vld [vmem:[%s7094] sm:$0x1]
        %v7097 = vlaneseq
        %v7098 = vshrl.u32 %v7097, 7
        %v7099 = vsub.s32 0, %v7098
        %v7100 = vrot.slane %v7095, %v7099
        %7102 = vmatprep.subr.mxu0 0.0
        %v7103 = vand.u32 %v7090, 4294901760
        %7104 = vmatpush1.msra.mxu0 %v7103
        %7105 = vmatprep.subr.mxu0 0.0
        %v7106 = vand.u32 %v7091, 4294901760
        %7107 = vmatpush1.msra.mxu0 %v7106
        %7108 = vmatprep.subr.mxu0 0.0
        %v7109 = vand.u32 %v7092, 4294901760
        %7110 = vmatpush1.msra.mxu0 %v7109
        %7111 = vmatprep.subr.mxu0 0.0
        %v7112 = vand.u32 %v7093, 4294901760
        %7113 = vmatpush1.msra.mxu0 %v7112
        %7114 = vmatprep.subr.mxu0 0.0
        %7115 = vmatpush1.msra.mxu0 0.0
        %7116 = vmatprep.subr.mxu0 0.0
        %7117 = vmatpush1.msra.mxu0 0.0
        %7118 = vmatprep.subr.mxu0 0.0
        %7119 = vmatpush1.msra.mxu0 0.0
        %7120 = vmatprep.subr.mxu0 0.0
        %7121 = vmatpush1.msra.mxu0 0.0
        %7122 = vmatprep.subr.mxu0 0.0
        %7123 = vmatpush1.msra.mxu0 0.0
        %7124 = vmatprep.subr.mxu0 0.0
        %7125 = vmatpush1.msra.mxu0 0.0
        %7126 = vmatprep.subr.mxu0 0.0
        %7127 = vmatpush1.msra.mxu0 0.0
        %7128 = vmatprep.subr.mxu0 0.0
        %7129 = vmatpush1.msra.mxu0 0.0
        %7130 = vmatprep.subr.mxu0 0.0
        %7131 = vmatpush1.msra.mxu0 0.0
        %7132 = vmatprep.subr.mxu0 0.0
        %7133 = vmatpush1.msra.mxu0 0.0
        %7134 = vmatprep.subr.mxu0 0.0
        %7135 = vmatpush1.msra.mxu0 0.0
        %7136 = vmatprep.subr.mxu0 0.0
        %7137 = vmatpush1.msra.mxu0 0.0
        %7138 = vmatprep.subr.mxu0 0.0
        %7139 = vmatpush1.msra.mxu0 0.0
        %7140 = vmatprep.subr.mxu0 0.0
        %7141 = vmatpush1.msra.mxu0 0.0
        %7142 = vmatprep.subr.mxu0 0.0
        %7143 = vmatpush1.msra.mxu0 0.0
        %7144 = vmatprep.subr.mxu0 0.0
        %7145 = vmatpush1.msra.mxu0 0.0
        %7146 = vmatprep.subr.mxu0 0.0
        %7147 = vmatpush1.msra.mxu0 0.0
        %7148 = vmatprep.subr.mxu0 0.0
        %7149 = vmatpush1.msra.mxu0 0.0
        %7150 = vmatprep.subr.mxu0 0.0
        %7151 = vmatpush1.msra.mxu0 0.0
        %7152 = vmatprep.subr.mxu0 0.0
        %7153 = vmatpush1.msra.mxu0 0.0
        %7154 = vmatprep.subr.mxu0 0.0
        %7155 = vmatpush1.msra.mxu0 0.0
        %7156 = vmatprep.subr.mxu0 0.0
        %7157 = vmatpush1.msra.mxu0 0.0
        %7158 = vmatprep.subr.mxu0 0.0
        %7159 = vmatpush1.msra.mxu0 0.0
        %7160 = vmatprep.subr.mxu0 0.0
        %7161 = vmatpush1.msra.mxu0 0.0
        %7162 = vmatprep.subr.mxu0 0.0
        %7163 = vmatpush1.msra.mxu0 0.0
        %7164 = vmatprep.subr.mxu0 0.0
        %7165 = vmatpush1.msra.mxu0 0.0
        %7166 = vmatprep.subr.mxu0 0.0
        %7167 = vmatpush1.msra.mxu0 0.0
        %7168 = vmatprep.subr.mxu0 0.0
        %7169 = vmatpush1.msra.mxu0 0.0
        %7170 = vmatprep.mubr.f32.mxu0 0.0
        %v7171 = vand.u32 %v6602, 4294901760
        %v7172 = vsub.f32 %v6602, %v7171
        %v7173 = vand.u32 %v7172, 4294901760
        %v7174 = vsub.f32 %v7172, %v7173
        %v7175 = vand.u32 %v7174, 4294901760
        %7176 = vmatmul.mubr.f32.gmra.mrb[0].mxu0 %v7175
        %v7177 = vpop.f32.mrb[0].mxu0
        %v7178 = vadd.f32 %v7100, %v7177
        %v7179 = vpop.f32.mrb[0].mxu0
        %7180 = vdwg.mxu0
        %7181 = vmatprep.subr.mxu0 0.0
        %v7182 = vand.u32 %v7090, 4294901760
        %v7183 = vsub.f32 %v7090, %v7182
        %v7184 = vand.u32 %v7183, 4294901760
        %v7185 = vsub.f32 %v7183, %v7184
        %v7186 = vand.u32 %v7185, 4294901760
        %7187 = vmatpush1.msra.mxu0 %v7186
        %7188 = vmatprep.subr.mxu0 0.0
        %v7189 = vand.u32 %v7091, 4294901760
        %v7190 = vsub.f32 %v7091, %v7189
        %v7191 = vand.u32 %v7190, 4294901760
        %v7192 = vsub.f32 %v7190, %v7191
        %v7193 = vand.u32 %v7192, 4294901760
        %7194 = vmatpush1.msra.mxu0 %v7193
        %7195 = vmatprep.subr.mxu0 0.0
        %v7196 = vand.u32 %v7092, 4294901760
        %v7197 = vsub.f32 %v7092, %v7196
        %v7198 = vand.u32 %v7197, 4294901760
        %v7199 = vsub.f32 %v7197, %v7198
        %v7200 = vand.u32 %v7199, 4294901760
        %7201 = vmatpush1.msra.mxu0 %v7200
        %7202 = vmatprep.subr.mxu0 0.0
        %v7203 = vand.u32 %v7093, 4294901760
        %v7204 = vsub.f32 %v7093, %v7203
        %v7205 = vand.u32 %v7204, 4294901760
        %v7206 = vsub.f32 %v7204, %v7205
        %v7207 = vand.u32 %v7206, 4294901760
        %7208 = vmatpush1.msra.mxu0 %v7207
        %7209 = vmatprep.subr.mxu0 0.0
        %7210 = vmatpush1.msra.mxu0 0.0
        %7211 = vmatprep.subr.mxu0 0.0
        %7212 = vmatpush1.msra.mxu0 0.0
        %7213 = vmatprep.subr.mxu0 0.0
        %7214 = vmatpush1.msra.mxu0 0.0
        %7215 = vmatprep.subr.mxu0 0.0
        %7216 = vmatpush1.msra.mxu0 0.0
        %7217 = vmatprep.subr.mxu0 0.0
        %7218 = vmatpush1.msra.mxu0 0.0
        %7219 = vmatprep.subr.mxu0 0.0
        %7220 = vmatpush1.msra.mxu0 0.0
        %7221 = vmatprep.subr.mxu0 0.0
        %7222 = vmatpush1.msra.mxu0 0.0
        %7223 = vmatprep.subr.mxu0 0.0
        %7224 = vmatpush1.msra.mxu0 0.0
        %7225 = vmatprep.subr.mxu0 0.0
        %7226 = vmatpush1.msra.mxu0 0.0
        %7227 = vmatprep.subr.mxu0 0.0
        %7228 = vmatpush1.msra.mxu0 0.0
        %7229 = vmatprep.subr.mxu0 0.0
        %7230 = vmatpush1.msra.mxu0 0.0
        %7231 = vmatprep.subr.mxu0 0.0
        %7232 = vmatpush1.msra.mxu0 0.0
        %7233 = vmatprep.subr.mxu0 0.0
        %7234 = vmatpush1.msra.mxu0 0.0
        %7235 = vmatprep.subr.mxu0 0.0
        %7236 = vmatpush1.msra.mxu0 0.0
        %7237 = vmatprep.subr.mxu0 0.0
        %7238 = vmatpush1.msra.mxu0 0.0
        %7239 = vmatprep.subr.mxu0 0.0
        %7240 = vmatpush1.msra.mxu0 0.0
        %7241 = vmatprep.subr.mxu0 0.0
        %7242 = vmatpush1.msra.mxu0 0.0
        %7243 = vmatprep.subr.mxu0 0.0
        %7244 = vmatpush1.msra.mxu0 0.0
        %7245 = vmatprep.subr.mxu0 0.0
        %7246 = vmatpush1.msra.mxu0 0.0
        %7247 = vmatprep.subr.mxu0 0.0
        %7248 = vmatpush1.msra.mxu0 0.0
        %7249 = vmatprep.subr.mxu0 0.0
        %7250 = vmatpush1.msra.mxu0 0.0
        %7251 = vmatprep.subr.mxu0 0.0
        %7252 = vmatpush1.msra.mxu0 0.0
        %7253 = vmatprep.subr.mxu0 0.0
        %7254 = vmatpush1.msra.mxu0 0.0
        %7255 = vmatprep.subr.mxu0 0.0
        %7256 = vmatpush1.msra.mxu0 0.0
        %7257 = vmatprep.subr.mxu0 0.0
        %7258 = vmatpush1.msra.mxu0 0.0
        %7259 = vmatprep.subr.mxu0 0.0
        %7260 = vmatpush1.msra.mxu0 0.0
        %7261 = vmatprep.subr.mxu0 0.0
        %7262 = vmatpush1.msra.mxu0 0.0
        %7263 = vmatprep.subr.mxu0 0.0
        %7264 = vmatpush1.msra.mxu0 0.0
        %7265 = vmatprep.mubr.f32.mxu0 0.0
        %v7266 = vand.u32 %v6602, 4294901760
        %7267 = vmatmul.mubr.f32.gmra.mrb[0].mxu0 %v7266
        %v7268 = vpop.f32.mrb[0].mxu0
        %v7269 = vadd.f32 %v7178, %v7268
        %v7270 = vpop.f32.mrb[0].mxu0
        %7271 = vdwg.mxu0
        %7272 = vmatprep.subr.mxu0 0.0
        %v7273 = vand.u32 %v7090, 4294901760
        %v7274 = vsub.f32 %v7090, %v7273
        %7275 = vmatpush1.msra.mxu0 %v7274
        %7276 = vmatprep.subr.mxu0 0.0
        %v7277 = vand.u32 %v7091, 4294901760
        %v7278 = vsub.f32 %v7091, %v7277
        %7279 = vmatpush1.msra.mxu0 %v7278
        %7280 = vmatprep.subr.mxu0 0.0
        %v7281 = vand.u32 %v7092, 4294901760
        %v7282 = vsub.f32 %v7092, %v7281
        %7283 = vmatpush1.msra.mxu0 %v7282
        %7284 = vmatprep.subr.mxu0 0.0
        %v7285 = vand.u32 %v7093, 4294901760
        %v7286 = vsub.f32 %v7093, %v7285
        %7287 = vmatpush1.msra.mxu0 %v7286
        %7288 = vmatprep.subr.mxu0 0.0
        %7289 = vmatpush1.msra.mxu0 0.0
        %7290 = vmatprep.subr.mxu0 0.0
        %7291 = vmatpush1.msra.mxu0 0.0
        %7292 = vmatprep.subr.mxu0 0.0
        %7293 = vmatpush1.msra.mxu0 0.0
        %7294 = vmatprep.subr.mxu0 0.0
        %7295 = vmatpush1.msra.mxu0 0.0
        %7296 = vmatprep.subr.mxu0 0.0
        %7297 = vmatpush1.msra.mxu0 0.0
        %7298 = vmatprep.subr.mxu0 0.0
        %7299 = vmatpush1.msra.mxu0 0.0
        %7300 = vmatprep.subr.mxu0 0.0
        %7301 = vmatpush1.msra.mxu0 0.0
        %7302 = vmatprep.subr.mxu0 0.0
        %7303 = vmatpush1.msra.mxu0 0.0
        %7304 = vmatprep.subr.mxu0 0.0
        %7305 = vmatpush1.msra.mxu0 0.0
        %7306 = vmatprep.subr.mxu0 0.0
        %7307 = vmatpush1.msra.mxu0 0.0
        %7308 = vmatprep.subr.mxu0 0.0
        %7309 = vmatpush1.msra.mxu0 0.0
        %7310 = vmatprep.subr.mxu0 0.0
        %7311 = vmatpush1.msra.mxu0 0.0
        %7312 = vmatprep.subr.mxu0 0.0
        %7313 = vmatpush1.msra.mxu0 0.0
        %7314 = vmatprep.subr.mxu0 0.0
        %7315 = vmatpush1.msra.mxu0 0.0
        %7316 = vmatprep.subr.mxu0 0.0
        %7317 = vmatpush1.msra.mxu0 0.0
        %7318 = vmatprep.subr.mxu0 0.0
        %7319 = vmatpush1.msra.mxu0 0.0
        %7320 = vmatprep.subr.mxu0 0.0
        %7321 = vmatpush1.msra.mxu0 0.0
        %7322 = vmatprep.subr.mxu0 0.0
        %7323 = vmatpush1.msra.mxu0 0.0
        %7324 = vmatprep.subr.mxu0 0.0
        %7325 = vmatpush1.msra.mxu0 0.0
        %7326 = vmatprep.subr.mxu0 0.0
        %7327 = vmatpush1.msra.mxu0 0.0
        %7328 = vmatprep.subr.mxu0 0.0
        %7329 = vmatpush1.msra.mxu0 0.0
        %7330 = vmatprep.subr.mxu0 0.0
        %7331 = vmatpush1.msra.mxu0 0.0
        %7332 = vmatprep.subr.mxu0 0.0
        %7333 = vmatpush1.msra.mxu0 0.0
        %7334 = vmatprep.subr.mxu0 0.0
        %7335 = vmatpush1.msra.mxu0 0.0
        %7336 = vmatprep.subr.mxu0 0.0
        %7337 = vmatpush1.msra.mxu0 0.0
        %7338 = vmatprep.subr.mxu0 0.0
        %7339 = vmatpush1.msra.mxu0 0.0
        %7340 = vmatprep.subr.mxu0 0.0
        %7341 = vmatpush1.msra.mxu0 0.0
        %7342 = vmatprep.subr.mxu0 0.0
        %7343 = vmatpush1.msra.mxu0 0.0
        %7344 = vmatprep.mubr.f32.mxu0 0.0
        %v7345 = vand.u32 %v6602, 4294901760
        %v7346 = vsub.f32 %v6602, %v7345
        %7347 = vmatmul.mubr.f32.gmra.mrb[0].mxu0 %v7346
        %v7348 = vpop.f32.mrb[0].mxu0
        %v7349 = vadd.f32 %v7269, %v7348
        %v7350 = vpop.f32.mrb[0].mxu0
        %7351 = vdwg.mxu0
        %7352 = vmatprep.subr.mxu0 0.0
        %v7353 = vand.u32 %v7090, 4294901760
        %7354 = vmatpush1.msra.mxu0 %v7353
        %7355 = vmatprep.subr.mxu0 0.0
        %v7356 = vand.u32 %v7091, 4294901760
        %7357 = vmatpush1.msra.mxu0 %v7356
        %7358 = vmatprep.subr.mxu0 0.0
        %v7359 = vand.u32 %v7092, 4294901760
        %7360 = vmatpush1.msra.mxu0 %v7359
        %7361 = vmatprep.subr.mxu0 0.0
        %v7362 = vand.u32 %v7093, 4294901760
        %7363 = vmatpush1.msra.mxu0 %v7362
        %7364 = vmatprep.subr.mxu0 0.0
        %7365 = vmatpush1.msra.mxu0 0.0
        %7366 = vmatprep.subr.mxu0 0.0
        %7367 = vmatpush1.msra.mxu0 0.0
        %7368 = vmatprep.subr.mxu0 0.0
        %7369 = vmatpush1.msra.mxu0 0.0
        %7370 = vmatprep.subr.mxu0 0.0
        %7371 = vmatpush1.msra.mxu0 0.0
        %7372 = vmatprep.subr.mxu0 0.0
        %7373 = vmatpush1.msra.mxu0 0.0
        %7374 = vmatprep.subr.mxu0 0.0
        %7375 = vmatpush1.msra.mxu0 0.0
        %7376 = vmatprep.subr.mxu0 0.0
        %7377 = vmatpush1.msra.mxu0 0.0
        %7378 = vmatprep.subr.mxu0 0.0
        %7379 = vmatpush1.msra.mxu0 0.0
        %7380 = vmatprep.subr.mxu0 0.0
        %7381 = vmatpush1.msra.mxu0 0.0
        %7382 = vmatprep.subr.mxu0 0.0
        %7383 = vmatpush1.msra.mxu0 0.0
        %7384 = vmatprep.subr.mxu0 0.0
        %7385 = vmatpush1.msra.mxu0 0.0
        %7386 = vmatprep.subr.mxu0 0.0
        %7387 = vmatpush1.msra.mxu0 0.0
        %7388 = vmatprep.subr.mxu0 0.0
        %7389 = vmatpush1.msra.mxu0 0.0
        %7390 = vmatprep.subr.mxu0 0.0
        %7391 = vmatpush1.msra.mxu0 0.0
        %7392 = vmatprep.subr.mxu0 0.0
        %7393 = vmatpush1.msra.mxu0 0.0
        %7394 = vmatprep.subr.mxu0 0.0
        %7395 = vmatpush1.msra.mxu0 0.0
        %7396 = vmatprep.subr.mxu0 0.0
        %7397 = vmatpush1.msra.mxu0 0.0
        %7398 = vmatprep.subr.mxu0 0.0
        %7399 = vmatpush1.msra.mxu0 0.0
        %7400 = vmatprep.subr.mxu0 0.0
        %7401 = vmatpush1.msra.mxu0 0.0
        %7402 = vmatprep.subr.mxu0 0.0
        %7403 = vmatpush1.msra.mxu0 0.0
        %7404 = vmatprep.subr.mxu0 0.0
        %7405 = vmatpush1.msra.mxu0 0.0
        %7406 = vmatprep.subr.mxu0 0.0
        %7407 = vmatpush1.msra.mxu0 0.0
        %7408 = vmatprep.subr.mxu0 0.0
        %7409 = vmatpush1.msra.mxu0 0.0
        %7410 = vmatprep.subr.mxu0 0.0
        %7411 = vmatpush1.msra.mxu0 0.0
        %7412 = vmatprep.subr.mxu0 0.0
        %7413 = vmatpush1.msra.mxu0 0.0
        %7414 = vmatprep.subr.mxu0 0.0
        %7415 = vmatpush1.msra.mxu0 0.0
        %7416 = vmatprep.subr.mxu0 0.0
        %7417 = vmatpush1.msra.mxu0 0.0
        %7418 = vmatprep.subr.mxu0 0.0
        %7419 = vmatpush1.msra.mxu0 0.0
        %7420 = vmatprep.mubr.f32.mxu0 0.0
        %v7421 = vand.u32 %v6602, 4294901760
        %v7422 = vsub.f32 %v6602, %v7421
        %v7423 = vand.u32 %v7422, 4294901760
        %7424 = vmatmul.mubr.f32.gmra.mrb[0].mxu0 %v7423
        %v7425 = vpop.f32.mrb[0].mxu0
        %v7426 = vadd.f32 %v7349, %v7425
        %v7427 = vpop.f32.mrb[0].mxu0
        %7428 = vdwg.mxu0
        %7429 = vmatprep.subr.mxu0 0.0
        %v7430 = vand.u32 %v7090, 4294901760
        %v7431 = vsub.f32 %v7090, %v7430
        %v7432 = vand.u32 %v7431, 4294901760
        %7433 = vmatpush1.msra.mxu0 %v7432
        %7434 = vmatprep.subr.mxu0 0.0
        %v7435 = vand.u32 %v7091, 4294901760
        %v7436 = vsub.f32 %v7091, %v7435
        %v7437 = vand.u32 %v7436, 4294901760
        %7438 = vmatpush1.msra.mxu0 %v7437
        %7439 = vmatprep.subr.mxu0 0.0
        %v7440 = vand.u32 %v7092, 4294901760
        %v7441 = vsub.f32 %v7092, %v7440
        %v7442 = vand.u32 %v7441, 4294901760
        %7443 = vmatpush1.msra.mxu0 %v7442
        %7444 = vmatprep.subr.mxu0 0.0
        %v7445 = vand.u32 %v7093, 4294901760
        %v7446 = vsub.f32 %v7093, %v7445
        %v7447 = vand.u32 %v7446, 4294901760
        %7448 = vmatpush1.msra.mxu0 %v7447
        %7449 = vmatprep.subr.mxu0 0.0
        %7450 = vmatpush1.msra.mxu0 0.0
        %7451 = vmatprep.subr.mxu0 0.0
        %7452 = vmatpush1.msra.mxu0 0.0
        %7453 = vmatprep.subr.mxu0 0.0
        %7454 = vmatpush1.msra.mxu0 0.0
        %7455 = vmatprep.subr.mxu0 0.0
        %7456 = vmatpush1.msra.mxu0 0.0
        %7457 = vmatprep.subr.mxu0 0.0
        %7458 = vmatpush1.msra.mxu0 0.0
        %7459 = vmatprep.subr.mxu0 0.0
        %7460 = vmatpush1.msra.mxu0 0.0
        %7461 = vmatprep.subr.mxu0 0.0
        %7462 = vmatpush1.msra.mxu0 0.0
        %7463 = vmatprep.subr.mxu0 0.0
        %7464 = vmatpush1.msra.mxu0 0.0
        %7465 = vmatprep.subr.mxu0 0.0
        %7466 = vmatpush1.msra.mxu0 0.0
        %7467 = vmatprep.subr.mxu0 0.0
        %7468 = vmatpush1.msra.mxu0 0.0
        %7469 = vmatprep.subr.mxu0 0.0
        %7470 = vmatpush1.msra.mxu0 0.0
        %7471 = vmatprep.subr.mxu0 0.0
        %7472 = vmatpush1.msra.mxu0 0.0
        %7473 = vmatprep.subr.mxu0 0.0
        %7474 = vmatpush1.msra.mxu0 0.0
        %7475 = vmatprep.subr.mxu0 0.0
        %7476 = vmatpush1.msra.mxu0 0.0
        %7477 = vmatprep.subr.mxu0 0.0
        %7478 = vmatpush1.msra.mxu0 0.0
        %7479 = vmatprep.subr.mxu0 0.0
        %7480 = vmatpush1.msra.mxu0 0.0
        %7481 = vmatprep.subr.mxu0 0.0
        %7482 = vmatpush1.msra.mxu0 0.0
        %7483 = vmatprep.subr.mxu0 0.0
        %7484 = vmatpush1.msra.mxu0 0.0
        %7485 = vmatprep.subr.mxu0 0.0
        %7486 = vmatpush1.msra.mxu0 0.0
        %7487 = vmatprep.subr.mxu0 0.0
        %7488 = vmatpush1.msra.mxu0 0.0
        %7489 = vmatprep.subr.mxu0 0.0
        %7490 = vmatpush1.msra.mxu0 0.0
        %7491 = vmatprep.subr.mxu0 0.0
        %7492 = vmatpush1.msra.mxu0 0.0
        %7493 = vmatprep.subr.mxu0 0.0
        %7494 = vmatpush1.msra.mxu0 0.0
        %7495 = vmatprep.subr.mxu0 0.0
        %7496 = vmatpush1.msra.mxu0 0.0
        %7497 = vmatprep.subr.mxu0 0.0
        %7498 = vmatpush1.msra.mxu0 0.0
        %7499 = vmatprep.subr.mxu0 0.0
        %7500 = vmatpush1.msra.mxu0 0.0
        %7501 = vmatprep.subr.mxu0 0.0
        %7502 = vmatpush1.msra.mxu0 0.0
        %7503 = vmatprep.subr.mxu0 0.0
        %7504 = vmatpush1.msra.mxu0 0.0
        %7505 = vmatprep.mubr.f32.mxu0 0.0
        %v7506 = vand.u32 %v6602, 4294901760
        %7507 = vmatmul.mubr.f32.gmra.mrb[0].mxu0 %v7506
        %v7508 = vpop.f32.mrb[0].mxu0
        %v7509 = vadd.f32 %v7426, %v7508
        %v7510 = vpop.f32.mrb[0].mxu0
        %7511 = vdwg.mxu0
        %7512 = vmatprep.subr.mxu0 0.0
        %v7513 = vand.u32 %v7090, 4294901760
        %7514 = vmatpush1.msra.mxu0 %v7513
        %7515 = vmatprep.subr.mxu0 0.0
        %v7516 = vand.u32 %v7091, 4294901760
        %7517 = vmatpush1.msra.mxu0 %v7516
        %7518 = vmatprep.subr.mxu0 0.0
        %v7519 = vand.u32 %v7092, 4294901760
        %7520 = vmatpush1.msra.mxu0 %v7519
        %7521 = vmatprep.subr.mxu0 0.0
        %v7522 = vand.u32 %v7093, 4294901760
        %7523 = vmatpush1.msra.mxu0 %v7522
        %7524 = vmatprep.subr.mxu0 0.0
        %7525 = vmatpush1.msra.mxu0 0.0
        %7526 = vmatprep.subr.mxu0 0.0
        %7527 = vmatpush1.msra.mxu0 0.0
        %7528 = vmatprep.subr.mxu0 0.0
        %7529 = vmatpush1.msra.mxu0 0.0
        %7530 = vmatprep.subr.mxu0 0.0
        %7531 = vmatpush1.msra.mxu0 0.0
        %7532 = vmatprep.subr.mxu0 0.0
        %7533 = vmatpush1.msra.mxu0 0.0
        %7534 = vmatprep.subr.mxu0 0.0
        %7535 = vmatpush1.msra.mxu0 0.0
        %7536 = vmatprep.subr.mxu0 0.0
        %7537 = vmatpush1.msra.mxu0 0.0
        %7538 = vmatprep.subr.mxu0 0.0
        %7539 = vmatpush1.msra.mxu0 0.0
        %7540 = vmatprep.subr.mxu0 0.0
        %7541 = vmatpush1.msra.mxu0 0.0
        %7542 = vmatprep.subr.mxu0 0.0
        %7543 = vmatpush1.msra.mxu0 0.0
        %7544 = vmatprep.subr.mxu0 0.0
        %7545 = vmatpush1.msra.mxu0 0.0
        %7546 = vmatprep.subr.mxu0 0.0
        %7547 = vmatpush1.msra.mxu0 0.0
        %7548 = vmatprep.subr.mxu0 0.0
        %7549 = vmatpush1.msra.mxu0 0.0
        %7550 = vmatprep.subr.mxu0 0.0
        %7551 = vmatpush1.msra.mxu0 0.0
        %7552 = vmatprep.subr.mxu0 0.0
        %7553 = vmatpush1.msra.mxu0 0.0
        %7554 = vmatprep.subr.mxu0 0.0
        %7555 = vmatpush1.msra.mxu0 0.0
        %7556 = vmatprep.subr.mxu0 0.0
        %7557 = vmatpush1.msra.mxu0 0.0
        %7558 = vmatprep.subr.mxu0 0.0
        %7559 = vmatpush1.msra.mxu0 0.0
        %7560 = vmatprep.subr.mxu0 0.0
        %7561 = vmatpush1.msra.mxu0 0.0
        %7562 = vmatprep.subr.mxu0 0.0
        %7563 = vmatpush1.msra.mxu0 0.0
        %7564 = vmatprep.subr.mxu0 0.0
        %7565 = vmatpush1.msra.mxu0 0.0
        %7566 = vmatprep.subr.mxu0 0.0
        %7567 = vmatpush1.msra.mxu0 0.0
        %7568 = vmatprep.subr.mxu0 0.0
        %7569 = vmatpush1.msra.mxu0 0.0
        %7570 = vmatprep.subr.mxu0 0.0
        %7571 = vmatpush1.msra.mxu0 0.0
        %7572 = vmatprep.subr.mxu0 0.0
        %7573 = vmatpush1.msra.mxu0 0.0
        %7574 = vmatprep.subr.mxu0 0.0
        %7575 = vmatpush1.msra.mxu0 0.0
        %7576 = vmatprep.subr.mxu0 0.0
        %7577 = vmatpush1.msra.mxu0 0.0
        %7578 = vmatprep.subr.mxu0 0.0
        %7579 = vmatpush1.msra.mxu0 0.0
        %7580 = vmatprep.mubr.f32.mxu0 0.0
        %v7581 = vand.u32 %v6602, 4294901760
        %7582 = vmatmul.mubr.f32.gmra.mrb[0].mxu0 %v7581
        %v7583 = vpop.f32.mrb[0].mxu0
        %v7584 = vadd.f32 %v7509, %v7583
        %v7585 = vpop.f32.mrb[0].mxu0
        %7586 = vdwg.mxu0
        %s7587 = scalar_lea.vmem %s12, 64
        %v7588 = vld [vmem:[%s7587] sm:$0xff]
        %v7589 = vld [vmem:[%s7587 + $0x8] sm:$0xff]
        %v7590 = vld [vmem:[%s7587 + $0x10] sm:$0xff]
        %v7591 = vld [vmem:[%s7587 + $0x18] sm:$0xff]
        %s7592 = scalar_lea.vmem [#allocation10], 2
        %v7593 = vld [vmem:[%s7592] sm:$0x1]
        %v7595 = vlaneseq
        %v7596 = vshrl.u32 %v7595, 7
        %v7597 = vsub.s32 0, %v7596
        %v7598 = vrot.slane %v7593, %v7597
        %7600 = vmatprep.subr.mxu0 0.0
        %v7601 = vand.u32 %v7588, 4294901760
        %7602 = vmatpush1.msra.mxu0 %v7601
        %7603 = vmatprep.subr.mxu0 0.0
        %v7604 = vand.u32 %v7589, 4294901760
        %7605 = vmatpush1.msra.mxu0 %v7604
        %7606 = vmatprep.subr.mxu0 0.0
        %v7607 = vand.u32 %v7590, 4294901760
        %7608 = vmatpush1.msra.mxu0 %v7607
        %7609 = vmatprep.subr.mxu0 0.0
        %v7610 = vand.u32 %v7591, 4294901760
        %7611 = vmatpush1.msra.mxu0 %v7610
        %7612 = vmatprep.subr.mxu0 0.0
        %7613 = vmatpush1.msra.mxu0 0.0
        %7614 = vmatprep.subr.mxu0 0.0
        %7615 = vmatpush1.msra.mxu0 0.0
        %7616 = vmatprep.subr.mxu0 0.0
        %7617 = vmatpush1.msra.mxu0 0.0
        %7618 = vmatprep.subr.mxu0 0.0
        %7619 = vmatpush1.msra.mxu0 0.0
        %7620 = vmatprep.subr.mxu0 0.0
        %7621 = vmatpush1.msra.mxu0 0.0
        %7622 = vmatprep.subr.mxu0 0.0
        %7623 = vmatpush1.msra.mxu0 0.0
        %7624 = vmatprep.subr.mxu0 0.0
        %7625 = vmatpush1.msra.mxu0 0.0
        %7626 = vmatprep.subr.mxu0 0.0
        %7627 = vmatpush1.msra.mxu0 0.0
        %7628 = vmatprep.subr.mxu0 0.0
        %7629 = vmatpush1.msra.mxu0 0.0
        %7630 = vmatprep.subr.mxu0 0.0
        %7631 = vmatpush1.msra.mxu0 0.0
        %7632 = vmatprep.subr.mxu0 0.0
        %7633 = vmatpush1.msra.mxu0 0.0
        %7634 = vmatprep.subr.mxu0 0.0
        %7635 = vmatpush1.msra.mxu0 0.0
        %7636 = vmatprep.subr.mxu0 0.0
        %7637 = vmatpush1.msra.mxu0 0.0
        %7638 = vmatprep.subr.mxu0 0.0
        %7639 = vmatpush1.msra.mxu0 0.0
        %7640 = vmatprep.subr.mxu0 0.0
        %7641 = vmatpush1.msra.mxu0 0.0
        %7642 = vmatprep.subr.mxu0 0.0
        %7643 = vmatpush1.msra.mxu0 0.0
        %7644 = vmatprep.subr.mxu0 0.0
        %7645 = vmatpush1.msra.mxu0 0.0
        %7646 = vmatprep.subr.mxu0 0.0
        %7647 = vmatpush1.msra.mxu0 0.0
        %7648 = vmatprep.subr.mxu0 0.0
        %7649 = vmatpush1.msra.mxu0 0.0
        %7650 = vmatprep.subr.mxu0 0.0
        %7651 = vmatpush1.msra.mxu0 0.0
        %7652 = vmatprep.subr.mxu0 0.0
        %7653 = vmatpush1.msra.mxu0 0.0
        %7654 = vmatprep.subr.mxu0 0.0
        %7655 = vmatpush1.msra.mxu0 0.0
        %7656 = vmatprep.subr.mxu0 0.0
        %7657 = vmatpush1.msra.mxu0 0.0
        %7658 = vmatprep.subr.mxu0 0.0
        %7659 = vmatpush1.msra.mxu0 0.0
        %7660 = vmatprep.subr.mxu0 0.0
        %7661 = vmatpush1.msra.mxu0 0.0
        %7662 = vmatprep.subr.mxu0 0.0
        %7663 = vmatpush1.msra.mxu0 0.0
        %7664 = vmatprep.subr.mxu0 0.0
        %7665 = vmatpush1.msra.mxu0 0.0
        %7666 = vmatprep.subr.mxu0 0.0
        %7667 = vmatpush1.msra.mxu0 0.0
        %7668 = vmatprep.mubr.f32.mxu0 0.0
        %v7669 = vand.u32 %v6602, 4294901760
        %v7670 = vsub.f32 %v6602, %v7669
        %v7671 = vand.u32 %v7670, 4294901760
        %v7672 = vsub.f32 %v7670, %v7671
        %v7673 = vand.u32 %v7672, 4294901760
        %7674 = vmatmul.mubr.f32.gmra.mrb[0].mxu0 %v7673
        %v7675 = vpop.f32.mrb[0].mxu0
        %v7676 = vadd.f32 %v7598, %v7675
        %v7677 = vpop.f32.mrb[0].mxu0
        %7678 = vdwg.mxu0
        %7679 = vmatprep.subr.mxu0 0.0
        %v7680 = vand.u32 %v7588, 4294901760
        %v7681 = vsub.f32 %v7588, %v7680
        %v7682 = vand.u32 %v7681, 4294901760
        %v7683 = vsub.f32 %v7681, %v7682
        %v7684 = vand.u32 %v7683, 4294901760
        %7685 = vmatpush1.msra.mxu0 %v7684
        %7686 = vmatprep.subr.mxu0 0.0
        %v7687 = vand.u32 %v7589, 4294901760
        %v7688 = vsub.f32 %v7589, %v7687
        %v7689 = vand.u32 %v7688, 4294901760
        %v7690 = vsub.f32 %v7688, %v7689
        %v7691 = vand.u32 %v7690, 4294901760
        %7692 = vmatpush1.msra.mxu0 %v7691
        %7693 = vmatprep.subr.mxu0 0.0
        %v7694 = vand.u32 %v7590, 4294901760
        %v7695 = vsub.f32 %v7590, %v7694
        %v7696 = vand.u32 %v7695, 4294901760
        %v7697 = vsub.f32 %v7695, %v7696
        %v7698 = vand.u32 %v7697, 4294901760
        %7699 = vmatpush1.msra.mxu0 %v7698
        %7700 = vmatprep.subr.mxu0 0.0
        %v7701 = vand.u32 %v7591, 4294901760
        %v7702 = vsub.f32 %v7591, %v7701
        %v7703 = vand.u32 %v7702, 4294901760
        %v7704 = vsub.f32 %v7702, %v7703
        %v7705 = vand.u32 %v7704, 4294901760
        %7706 = vmatpush1.msra.mxu0 %v7705
        %7707 = vmatprep.subr.mxu0 0.0
        %7708 = vmatpush1.msra.mxu0 0.0
        %7709 = vmatprep.subr.mxu0 0.0
        %7710 = vmatpush1.msra.mxu0 0.0
        %7711 = vmatprep.subr.mxu0 0.0
        %7712 = vmatpush1.msra.mxu0 0.0
        %7713 = vmatprep.subr.mxu0 0.0
        %7714 = vmatpush1.msra.mxu0 0.0
        %7715 = vmatprep.subr.mxu0 0.0
        %7716 = vmatpush1.msra.mxu0 0.0
        %7717 = vmatprep.subr.mxu0 0.0
        %7718 = vmatpush1.msra.mxu0 0.0
        %7719 = vmatprep.subr.mxu0 0.0
        %7720 = vmatpush1.msra.mxu0 0.0
        %7721 = vmatprep.subr.mxu0 0.0
        %7722 = vmatpush1.msra.mxu0 0.0
        %7723 = vmatprep.subr.mxu0 0.0
        %7724 = vmatpush1.msra.mxu0 0.0
        %7725 = vmatprep.subr.mxu0 0.0
        %7726 = vmatpush1.msra.mxu0 0.0
        %7727 = vmatprep.subr.mxu0 0.0
        %7728 = vmatpush1.msra.mxu0 0.0
        %7729 = vmatprep.subr.mxu0 0.0
        %7730 = vmatpush1.msra.mxu0 0.0
        %7731 = vmatprep.subr.mxu0 0.0
        %7732 = vmatpush1.msra.mxu0 0.0
        %7733 = vmatprep.subr.mxu0 0.0
        %7734 = vmatpush1.msra.mxu0 0.0
        %7735 = vmatprep.subr.mxu0 0.0
        %7736 = vmatpush1.msra.mxu0 0.0
        %7737 = vmatprep.subr.mxu0 0.0
        %7738 = vmatpush1.msra.mxu0 0.0
        %7739 = vmatprep.subr.mxu0 0.0
        %7740 = vmatpush1.msra.mxu0 0.0
        %7741 = vmatprep.subr.mxu0 0.0
        %7742 = vmatpush1.msra.mxu0 0.0
        %7743 = vmatprep.subr.mxu0 0.0
        %7744 = vmatpush1.msra.mxu0 0.0
        %7745 = vmatprep.subr.mxu0 0.0
        %7746 = vmatpush1.msra.mxu0 0.0
        %7747 = vmatprep.subr.mxu0 0.0
        %7748 = vmatpush1.msra.mxu0 0.0
        %7749 = vmatprep.subr.mxu0 0.0
        %7750 = vmatpush1.msra.mxu0 0.0
        %7751 = vmatprep.subr.mxu0 0.0
        %7752 = vmatpush1.msra.mxu0 0.0
        %7753 = vmatprep.subr.mxu0 0.0
        %7754 = vmatpush1.msra.mxu0 0.0
        %7755 = vmatprep.subr.mxu0 0.0
        %7756 = vmatpush1.msra.mxu0 0.0
        %7757 = vmatprep.subr.mxu0 0.0
        %7758 = vmatpush1.msra.mxu0 0.0
        %7759 = vmatprep.subr.mxu0 0.0
        %7760 = vmatpush1.msra.mxu0 0.0
        %7761 = vmatprep.subr.mxu0 0.0
        %7762 = vmatpush1.msra.mxu0 0.0
        %7763 = vmatprep.mubr.f32.mxu0 0.0
        %v7764 = vand.u32 %v6602, 4294901760
        %7765 = vmatmul.mubr.f32.gmra.mrb[0].mxu0 %v7764
        %v7766 = vpop.f32.mrb[0].mxu0
        %v7767 = vadd.f32 %v7676, %v7766
        %v7768 = vpop.f32.mrb[0].mxu0
        %7769 = vdwg.mxu0
        %7770 = vmatprep.subr.mxu0 0.0
        %v7771 = vand.u32 %v7588, 4294901760
        %v7772 = vsub.f32 %v7588, %v7771
        %7773 = vmatpush1.msra.mxu0 %v7772
        %7774 = vmatprep.subr.mxu0 0.0
        %v7775 = vand.u32 %v7589, 4294901760
        %v7776 = vsub.f32 %v7589, %v7775
        %7777 = vmatpush1.msra.mxu0 %v7776
        %7778 = vmatprep.subr.mxu0 0.0
        %v7779 = vand.u32 %v7590, 4294901760
        %v7780 = vsub.f32 %v7590, %v7779
        %7781 = vmatpush1.msra.mxu0 %v7780
        %7782 = vmatprep.subr.mxu0 0.0
        %v7783 = vand.u32 %v7591, 4294901760
        %v7784 = vsub.f32 %v7591, %v7783
        %7785 = vmatpush1.msra.mxu0 %v7784
        %7786 = vmatprep.subr.mxu0 0.0
        %7787 = vmatpush1.msra.mxu0 0.0
        %7788 = vmatprep.subr.mxu0 0.0
        %7789 = vmatpush1.msra.mxu0 0.0
        %7790 = vmatprep.subr.mxu0 0.0
        %7791 = vmatpush1.msra.mxu0 0.0
        %7792 = vmatprep.subr.mxu0 0.0
        %7793 = vmatpush1.msra.mxu0 0.0
        %7794 = vmatprep.subr.mxu0 0.0
        %7795 = vmatpush1.msra.mxu0 0.0
        %7796 = vmatprep.subr.mxu0 0.0
        %7797 = vmatpush1.msra.mxu0 0.0
        %7798 = vmatprep.subr.mxu0 0.0
        %7799 = vmatpush1.msra.mxu0 0.0
        %7800 = vmatprep.subr.mxu0 0.0
        %7801 = vmatpush1.msra.mxu0 0.0
        %7802 = vmatprep.subr.mxu0 0.0
        %7803 = vmatpush1.msra.mxu0 0.0
        %7804 = vmatprep.subr.mxu0 0.0
        %7805 = vmatpush1.msra.mxu0 0.0
        %7806 = vmatprep.subr.mxu0 0.0
        %7807 = vmatpush1.msra.mxu0 0.0
        %7808 = vmatprep.subr.mxu0 0.0
        %7809 = vmatpush1.msra.mxu0 0.0
        %7810 = vmatprep.subr.mxu0 0.0
        %7811 = vmatpush1.msra.mxu0 0.0
        %7812 = vmatprep.subr.mxu0 0.0
        %7813 = vmatpush1.msra.mxu0 0.0
        %7814 = vmatprep.subr.mxu0 0.0
        %7815 = vmatpush1.msra.mxu0 0.0
        %7816 = vmatprep.subr.mxu0 0.0
        %7817 = vmatpush1.msra.mxu0 0.0
        %7818 = vmatprep.subr.mxu0 0.0
        %7819 = vmatpush1.msra.mxu0 0.0
        %7820 = vmatprep.subr.mxu0 0.0
        %7821 = vmatpush1.msra.mxu0 0.0
        %7822 = vmatprep.subr.mxu0 0.0
        %7823 = vmatpush1.msra.mxu0 0.0
        %7824 = vmatprep.subr.mxu0 0.0
        %7825 = vmatpush1.msra.mxu0 0.0
        %7826 = vmatprep.subr.mxu0 0.0
        %7827 = vmatpush1.msra.mxu0 0.0
        %7828 = vmatprep.subr.mxu0 0.0
        %7829 = vmatpush1.msra.mxu0 0.0
        %7830 = vmatprep.subr.mxu0 0.0
        %7831 = vmatpush1.msra.mxu0 0.0
        %7832 = vmatprep.subr.mxu0 0.0
        %7833 = vmatpush1.msra.mxu0 0.0
        %7834 = vmatprep.subr.mxu0 0.0
        %7835 = vmatpush1.msra.mxu0 0.0
        %7836 = vmatprep.subr.mxu0 0.0
        %7837 = vmatpush1.msra.mxu0 0.0
        %7838 = vmatprep.subr.mxu0 0.0
        %7839 = vmatpush1.msra.mxu0 0.0
        %7840 = vmatprep.subr.mxu0 0.0
        %7841 = vmatpush1.msra.mxu0 0.0
        %7842 = vmatprep.mubr.f32.mxu0 0.0
        %v7843 = vand.u32 %v6602, 4294901760
        %v7844 = vsub.f32 %v6602, %v7843
        %7845 = vmatmul.mubr.f32.gmra.mrb[0].mxu0 %v7844
        %v7846 = vpop.f32.mrb[0].mxu0
        %v7847 = vadd.f32 %v7767, %v7846
        %v7848 = vpop.f32.mrb[0].mxu0
        %7849 = vdwg.mxu0
        %7850 = vmatprep.subr.mxu0 0.0
        %v7851 = vand.u32 %v7588, 4294901760
        %7852 = vmatpush1.msra.mxu0 %v7851
        %7853 = vmatprep.subr.mxu0 0.0
        %v7854 = vand.u32 %v7589, 4294901760
        %7855 = vmatpush1.msra.mxu0 %v7854
        %7856 = vmatprep.subr.mxu0 0.0
        %v7857 = vand.u32 %v7590, 4294901760
        %7858 = vmatpush1.msra.mxu0 %v7857
        %7859 = vmatprep.subr.mxu0 0.0
        %v7860 = vand.u32 %v7591, 4294901760
        %7861 = vmatpush1.msra.mxu0 %v7860
        %7862 = vmatprep.subr.mxu0 0.0
        %7863 = vmatpush1.msra.mxu0 0.0
        %7864 = vmatprep.subr.mxu0 0.0
        %7865 = vmatpush1.msra.mxu0 0.0
        %7866 = vmatprep.subr.mxu0 0.0
        %7867 = vmatpush1.msra.mxu0 0.0
        %7868 = vmatprep.subr.mxu0 0.0
        %7869 = vmatpush1.msra.mxu0 0.0
        %7870 = vmatprep.subr.mxu0 0.0
        %7871 = vmatpush1.msra.mxu0 0.0
        %7872 = vmatprep.subr.mxu0 0.0
        %7873 = vmatpush1.msra.mxu0 0.0
        %7874 = vmatprep.subr.mxu0 0.0
        %7875 = vmatpush1.msra.mxu0 0.0
        %7876 = vmatprep.subr.mxu0 0.0
        %7877 = vmatpush1.msra.mxu0 0.0
        %7878 = vmatprep.subr.mxu0 0.0
        %7879 = vmatpush1.msra.mxu0 0.0
        %7880 = vmatprep.subr.mxu0 0.0
        %7881 = vmatpush1.msra.mxu0 0.0
        %7882 = vmatprep.subr.mxu0 0.0
        %7883 = vmatpush1.msra.mxu0 0.0
        %7884 = vmatprep.subr.mxu0 0.0
        %7885 = vmatpush1.msra.mxu0 0.0
        %7886 = vmatprep.subr.mxu0 0.0
        %7887 = vmatpush1.msra.mxu0 0.0
        %7888 = vmatprep.subr.mxu0 0.0
        %7889 = vmatpush1.msra.mxu0 0.0
        %7890 = vmatprep.subr.mxu0 0.0
        %7891 = vmatpush1.msra.mxu0 0.0
        %7892 = vmatprep.subr.mxu0 0.0
        %7893 = vmatpush1.msra.mxu0 0.0
        %7894 = vmatprep.subr.mxu0 0.0
        %7895 = vmatpush1.msra.mxu0 0.0
        %7896 = vmatprep.subr.mxu0 0.0
        %7897 = vmatpush1.msra.mxu0 0.0
        %7898 = vmatprep.subr.mxu0 0.0
        %7899 = vmatpush1.msra.mxu0 0.0
        %7900 = vmatprep.subr.mxu0 0.0
        %7901 = vmatpush1.msra.mxu0 0.0
        %7902 = vmatprep.subr.mxu0 0.0
        %7903 = vmatpush1.msra.mxu0 0.0
        %7904 = vmatprep.subr.mxu0 0.0
        %7905 = vmatpush1.msra.mxu0 0.0
        %7906 = vmatprep.subr.mxu0 0.0
        %7907 = vmatpush1.msra.mxu0 0.0
        %7908 = vmatprep.subr.mxu0 0.0
        %7909 = vmatpush1.msra.mxu0 0.0
        %7910 = vmatprep.subr.mxu0 0.0
        %7911 = vmatpush1.msra.mxu0 0.0
        %7912 = vmatprep.subr.mxu0 0.0
        %7913 = vmatpush1.msra.mxu0 0.0
        %7914 = vmatprep.subr.mxu0 0.0
        %7915 = vmatpush1.msra.mxu0 0.0
        %7916 = vmatprep.subr.mxu0 0.0
        %7917 = vmatpush1.msra.mxu0 0.0
        %7918 = vmatprep.mubr.f32.mxu0 0.0
        %v7919 = vand.u32 %v6602, 4294901760
        %v7920 = vsub.f32 %v6602, %v7919
        %v7921 = vand.u32 %v7920, 4294901760
        %7922 = vmatmul.mubr.f32.gmra.mrb[0].mxu0 %v7921
        %v7923 = vpop.f32.mrb[0].mxu0
        %v7924 = vadd.f32 %v7847, %v7923
        %v7925 = vpop.f32.mrb[0].mxu0
        %7926 = vdwg.mxu0
        %7927 = vmatprep.subr.mxu0 0.0
        %v7928 = vand.u32 %v7588, 4294901760
        %v7929 = vsub.f32 %v7588, %v7928
        %v7930 = vand.u32 %v7929, 4294901760
        %7931 = vmatpush1.msra.mxu0 %v7930
        %7932 = vmatprep.subr.mxu0 0.0
        %v7933 = vand.u32 %v7589, 4294901760
        %v7934 = vsub.f32 %v7589, %v7933
        %v7935 = vand.u32 %v7934, 4294901760
        %7936 = vmatpush1.msra.mxu0 %v7935
        %7937 = vmatprep.subr.mxu0 0.0
        %v7938 = vand.u32 %v7590, 4294901760
        %v7939 = vsub.f32 %v7590, %v7938
        %v7940 = vand.u32 %v7939, 4294901760
        %7941 = vmatpush1.msra.mxu0 %v7940
        %7942 = vmatprep.subr.mxu0 0.0
        %v7943 = vand.u32 %v7591, 4294901760
        %v7944 = vsub.f32 %v7591, %v7943
        %v7945 = vand.u32 %v7944, 4294901760
        %7946 = vmatpush1.msra.mxu0 %v7945
        %7947 = vmatprep.subr.mxu0 0.0
        %7948 = vmatpush1.msra.mxu0 0.0
        %7949 = vmatprep.subr.mxu0 0.0
        %7950 = vmatpush1.msra.mxu0 0.0
        %7951 = vmatprep.subr.mxu0 0.0
        %7952 = vmatpush1.msra.mxu0 0.0
        %7953 = vmatprep.subr.mxu0 0.0
        %7954 = vmatpush1.msra.mxu0 0.0
        %7955 = vmatprep.subr.mxu0 0.0
        %7956 = vmatpush1.msra.mxu0 0.0
        %7957 = vmatprep.subr.mxu0 0.0
        %7958 = vmatpush1.msra.mxu0 0.0
        %7959 = vmatprep.subr.mxu0 0.0
        %7960 = vmatpush1.msra.mxu0 0.0
        %7961 = vmatprep.subr.mxu0 0.0
        %7962 = vmatpush1.msra.mxu0 0.0
        %7963 = vmatprep.subr.mxu0 0.0
        %7964 = vmatpush1.msra.mxu0 0.0
        %7965 = vmatprep.subr.mxu0 0.0
        %7966 = vmatpush1.msra.mxu0 0.0
        %7967 = vmatprep.subr.mxu0 0.0
        %7968 = vmatpush1.msra.mxu0 0.0
        %7969 = vmatprep.subr.mxu0 0.0
        %7970 = vmatpush1.msra.mxu0 0.0
        %7971 = vmatprep.subr.mxu0 0.0
        %7972 = vmatpush1.msra.mxu0 0.0
        %7973 = vmatprep.subr.mxu0 0.0
        %7974 = vmatpush1.msra.mxu0 0.0
        %7975 = vmatprep.subr.mxu0 0.0
        %7976 = vmatpush1.msra.mxu0 0.0
        %7977 = vmatprep.subr.mxu0 0.0
        %7978 = vmatpush1.msra.mxu0 0.0
        %7979 = vmatprep.subr.mxu0 0.0
        %7980 = vmatpush1.msra.mxu0 0.0
        %7981 = vmatprep.subr.mxu0 0.0
        %7982 = vmatpush1.msra.mxu0 0.0
        %7983 = vmatprep.subr.mxu0 0.0
        %7984 = vmatpush1.msra.mxu0 0.0
        %7985 = vmatprep.subr.mxu0 0.0
        %7986 = vmatpush1.msra.mxu0 0.0
        %7987 = vmatprep.subr.mxu0 0.0
        %7988 = vmatpush1.msra.mxu0 0.0
        %7989 = vmatprep.subr.mxu0 0.0
        %7990 = vmatpush1.msra.mxu0 0.0
        %7991 = vmatprep.subr.mxu0 0.0
        %7992 = vmatpush1.msra.mxu0 0.0
        %7993 = vmatprep.subr.mxu0 0.0
        %7994 = vmatpush1.msra.mxu0 0.0
        %7995 = vmatprep.subr.mxu0 0.0
        %7996 = vmatpush1.msra.mxu0 0.0
        %7997 = vmatprep.subr.mxu0 0.0
        %7998 = vmatpush1.msra.mxu0 0.0
        %7999 = vmatprep.subr.mxu0 0.0
        %8000 = vmatpush1.msra.mxu0 0.0
        %8001 = vmatprep.subr.mxu0 0.0
        %8002 = vmatpush1.msra.mxu0 0.0
        %8003 = vmatprep.mubr.f32.mxu0 0.0
        %v8004 = vand.u32 %v6602, 4294901760
        %8005 = vmatmul.mubr.f32.gmra.mrb[0].mxu0 %v8004
        %v8006 = vpop.f32.mrb[0].mxu0
        %v8007 = vadd.f32 %v7924, %v8006
        %v8008 = vpop.f32.mrb[0].mxu0
        %8009 = vdwg.mxu0
        %8010 = vmatprep.subr.mxu0 0.0
        %v8011 = vand.u32 %v7588, 4294901760
        %8012 = vmatpush1.msra.mxu0 %v8011
        %8013 = vmatprep.subr.mxu0 0.0
        %v8014 = vand.u32 %v7589, 4294901760
        %8015 = vmatpush1.msra.mxu0 %v8014
        %8016 = vmatprep.subr.mxu0 0.0
        %v8017 = vand.u32 %v7590, 4294901760
        %8018 = vmatpush1.msra.mxu0 %v8017
        %8019 = vmatprep.subr.mxu0 0.0
        %v8020 = vand.u32 %v7591, 4294901760
        %8021 = vmatpush1.msra.mxu0 %v8020
        %8022 = vmatprep.subr.mxu0 0.0
        %8023 = vmatpush1.msra.mxu0 0.0
        %8024 = vmatprep.subr.mxu0 0.0
        %8025 = vmatpush1.msra.mxu0 0.0
        %8026 = vmatprep.subr.mxu0 0.0
        %8027 = vmatpush1.msra.mxu0 0.0
        %8028 = vmatprep.subr.mxu0 0.0
        %8029 = vmatpush1.msra.mxu0 0.0
        %8030 = vmatprep.subr.mxu0 0.0
        %8031 = vmatpush1.msra.mxu0 0.0
        %8032 = vmatprep.subr.mxu0 0.0
        %8033 = vmatpush1.msra.mxu0 0.0
        %8034 = vmatprep.subr.mxu0 0.0
        %8035 = vmatpush1.msra.mxu0 0.0
        %8036 = vmatprep.subr.mxu0 0.0
        %8037 = vmatpush1.msra.mxu0 0.0
        %8038 = vmatprep.subr.mxu0 0.0
        %8039 = vmatpush1.msra.mxu0 0.0
        %8040 = vmatprep.subr.mxu0 0.0
        %8041 = vmatpush1.msra.mxu0 0.0
        %8042 = vmatprep.subr.mxu0 0.0
        %8043 = vmatpush1.msra.mxu0 0.0
        %8044 = vmatprep.subr.mxu0 0.0
        %8045 = vmatpush1.msra.mxu0 0.0
        %8046 = vmatprep.subr.mxu0 0.0
        %8047 = vmatpush1.msra.mxu0 0.0
        %8048 = vmatprep.subr.mxu0 0.0
        %8049 = vmatpush1.msra.mxu0 0.0
        %8050 = vmatprep.subr.mxu0 0.0
        %8051 = vmatpush1.msra.mxu0 0.0
        %8052 = vmatprep.subr.mxu0 0.0
        %8053 = vmatpush1.msra.mxu0 0.0
        %8054 = vmatprep.subr.mxu0 0.0
        %8055 = vmatpush1.msra.mxu0 0.0
        %8056 = vmatprep.subr.mxu0 0.0
        %8057 = vmatpush1.msra.mxu0 0.0
        %8058 = vmatprep.subr.mxu0 0.0
        %8059 = vmatpush1.msra.mxu0 0.0
        %8060 = vmatprep.subr.mxu0 0.0
        %8061 = vmatpush1.msra.mxu0 0.0
        %8062 = vmatprep.subr.mxu0 0.0
        %8063 = vmatpush1.msra.mxu0 0.0
        %8064 = vmatprep.subr.mxu0 0.0
        %8065 = vmatpush1.msra.mxu0 0.0
        %8066 = vmatprep.subr.mxu0 0.0
        %8067 = vmatpush1.msra.mxu0 0.0
        %8068 = vmatprep.subr.mxu0 0.0
        %8069 = vmatpush1.msra.mxu0 0.0
        %8070 = vmatprep.subr.mxu0 0.0
        %8071 = vmatpush1.msra.mxu0 0.0
        %8072 = vmatprep.subr.mxu0 0.0
        %8073 = vmatpush1.msra.mxu0 0.0
        %8074 = vmatprep.subr.mxu0 0.0
        %8075 = vmatpush1.msra.mxu0 0.0
        %8076 = vmatprep.subr.mxu0 0.0
        %8077 = vmatpush1.msra.mxu0 0.0
        %8078 = vmatprep.mubr.f32.mxu0 0.0
        %v8079 = vand.u32 %v6602, 4294901760
        %8080 = vmatmul.mubr.f32.gmra.mrb[0].mxu0 %v8079
        %v8081 = vpop.f32.mrb[0].mxu0
        %v8082 = vadd.f32 %v8007, %v8081
        %v8083 = vpop.f32.mrb[0].mxu0
        %8084 = vdwg.mxu0
        %v8085 = vld [vmem:[%s14] sm:$0xff]
        %v8086 = vld [vmem:[%s14 + $0x8] sm:$0xff]
        %v8087 = vld [vmem:[%s14 + $0x10] sm:$0xff]
        %v8088 = vld [vmem:[%s14 + $0x18] sm:$0xff]
        %v8089 = vld [vmem:[#allocation11] sm:$0x1]
        %v8091 = vlaneseq
        %v8092 = vshrl.u32 %v8091, 7
        %v8093 = vsub.s32 0, %v8092
        %v8094 = vrot.slane %v8089, %v8093
        %v8097 = vsel %vm1258, %v6589, 0
        %8099 = vmatprep.subr.mxu0 0.0
        %v8100 = vand.u32 %v8085, 4294901760
        %8101 = vmatpush1.msra.mxu0 %v8100
        %8102 = vmatprep.subr.mxu0 0.0
        %v8103 = vand.u32 %v8086, 4294901760
        %8104 = vmatpush1.msra.mxu0 %v8103
        %8105 = vmatprep.subr.mxu0 0.0
        %v8106 = vand.u32 %v8087, 4294901760
        %8107 = vmatpush1.msra.mxu0 %v8106
        %8108 = vmatprep.subr.mxu0 0.0
        %v8109 = vand.u32 %v8088, 4294901760
        %8110 = vmatpush1.msra.mxu0 %v8109
        %8111 = vmatprep.subr.mxu0 0.0
        %8112 = vmatpush1.msra.mxu0 0.0
        %8113 = vmatprep.subr.mxu0 0.0
        %8114 = vmatpush1.msra.mxu0 0.0
        %8115 = vmatprep.subr.mxu0 0.0
        %8116 = vmatpush1.msra.mxu0 0.0
        %8117 = vmatprep.subr.mxu0 0.0
        %8118 = vmatpush1.msra.mxu0 0.0
        %8119 = vmatprep.subr.mxu0 0.0
        %8120 = vmatpush1.msra.mxu0 0.0
        %8121 = vmatprep.subr.mxu0 0.0
        %8122 = vmatpush1.msra.mxu0 0.0
        %8123 = vmatprep.subr.mxu0 0.0
        %8124 = vmatpush1.msra.mxu0 0.0
        %8125 = vmatprep.subr.mxu0 0.0
        %8126 = vmatpush1.msra.mxu0 0.0
        %8127 = vmatprep.subr.mxu0 0.0
        %8128 = vmatpush1.msra.mxu0 0.0
        %8129 = vmatprep.subr.mxu0 0.0
        %8130 = vmatpush1.msra.mxu0 0.0
        %8131 = vmatprep.subr.mxu0 0.0
        %8132 = vmatpush1.msra.mxu0 0.0
        %8133 = vmatprep.subr.mxu0 0.0
        %8134 = vmatpush1.msra.mxu0 0.0
        %8135 = vmatprep.subr.mxu0 0.0
        %8136 = vmatpush1.msra.mxu0 0.0
        %8137 = vmatprep.subr.mxu0 0.0
        %8138 = vmatpush1.msra.mxu0 0.0
        %8139 = vmatprep.subr.mxu0 0.0
        %8140 = vmatpush1.msra.mxu0 0.0
        %8141 = vmatprep.subr.mxu0 0.0
        %8142 = vmatpush1.msra.mxu0 0.0
        %8143 = vmatprep.subr.mxu0 0.0
        %8144 = vmatpush1.msra.mxu0 0.0
        %8145 = vmatprep.subr.mxu0 0.0
        %8146 = vmatpush1.msra.mxu0 0.0
        %8147 = vmatprep.subr.mxu0 0.0
        %8148 = vmatpush1.msra.mxu0 0.0
        %8149 = vmatprep.subr.mxu0 0.0
        %8150 = vmatpush1.msra.mxu0 0.0
        %8151 = vmatprep.subr.mxu0 0.0
        %8152 = vmatpush1.msra.mxu0 0.0
        %8153 = vmatprep.subr.mxu0 0.0
        %8154 = vmatpush1.msra.mxu0 0.0
        %8155 = vmatprep.subr.mxu0 0.0
        %8156 = vmatpush1.msra.mxu0 0.0
        %8157 = vmatprep.subr.mxu0 0.0
        %8158 = vmatpush1.msra.mxu0 0.0
        %8159 = vmatprep.subr.mxu0 0.0
        %8160 = vmatpush1.msra.mxu0 0.0
        %8161 = vmatprep.subr.mxu0 0.0
        %8162 = vmatpush1.msra.mxu0 0.0
        %8163 = vmatprep.subr.mxu0 0.0
        %8164 = vmatpush1.msra.mxu0 0.0
        %8165 = vmatprep.subr.mxu0 0.0
        %8166 = vmatpush1.msra.mxu0 0.0
        %8167 = vmatprep.mubr.f32.mxu0 0.0
        %v8168 = vand.u32 %v8097, 4294901760
        %v8169 = vsub.f32 %v8097, %v8168
        %v8170 = vand.u32 %v8169, 4294901760
        %v8171 = vsub.f32 %v8169, %v8170
        %v8172 = vand.u32 %v8171, 4294901760
        %8173 = vmatmul.mubr.f32.gmra.mrb[0].mxu0 %v8172
        %v8174 = vpop.f32.mrb[0].mxu0
        %v8175 = vadd.f32 %v8094, %v8174
        %v8176 = vpop.f32.mrb[0].mxu0
        %8177 = vdwg.mxu0
        %8178 = vmatprep.subr.mxu0 0.0
        %v8179 = vand.u32 %v8085, 4294901760
        %v8180 = vsub.f32 %v8085, %v8179
        %v8181 = vand.u32 %v8180, 4294901760
        %v8182 = vsub.f32 %v8180, %v8181
        %v8183 = vand.u32 %v8182, 4294901760
        %8184 = vmatpush1.msra.mxu0 %v8183
        %8185 = vmatprep.subr.mxu0 0.0
        %v8186 = vand.u32 %v8086, 4294901760
        %v8187 = vsub.f32 %v8086, %v8186
        %v8188 = vand.u32 %v8187, 4294901760
        %v8189 = vsub.f32 %v8187, %v8188
        %v8190 = vand.u32 %v8189, 4294901760
        %8191 = vmatpush1.msra.mxu0 %v8190
        %8192 = vmatprep.subr.mxu0 0.0
        %v8193 = vand.u32 %v8087, 4294901760
        %v8194 = vsub.f32 %v8087, %v8193
        %v8195 = vand.u32 %v8194, 4294901760
        %v8196 = vsub.f32 %v8194, %v8195
        %v8197 = vand.u32 %v8196, 4294901760
        %8198 = vmatpush1.msra.mxu0 %v8197
        %8199 = vmatprep.subr.mxu0 0.0
        %v8200 = vand.u32 %v8088, 4294901760
        %v8201 = vsub.f32 %v8088, %v8200
        %v8202 = vand.u32 %v8201, 4294901760
        %v8203 = vsub.f32 %v8201, %v8202
        %v8204 = vand.u32 %v8203, 4294901760
        %8205 = vmatpush1.msra.mxu0 %v8204
        %8206 = vmatprep.subr.mxu0 0.0
        %8207 = vmatpush1.msra.mxu0 0.0
        %8208 = vmatprep.subr.mxu0 0.0
        %8209 = vmatpush1.msra.mxu0 0.0
        %8210 = vmatprep.subr.mxu0 0.0
        %8211 = vmatpush1.msra.mxu0 0.0
        %8212 = vmatprep.subr.mxu0 0.0
        %8213 = vmatpush1.msra.mxu0 0.0
        %8214 = vmatprep.subr.mxu0 0.0
        %8215 = vmatpush1.msra.mxu0 0.0
        %8216 = vmatprep.subr.mxu0 0.0
        %8217 = vmatpush1.msra.mxu0 0.0
        %8218 = vmatprep.subr.mxu0 0.0
        %8219 = vmatpush1.msra.mxu0 0.0
        %8220 = vmatprep.subr.mxu0 0.0
        %8221 = vmatpush1.msra.mxu0 0.0
        %8222 = vmatprep.subr.mxu0 0.0
        %8223 = vmatpush1.msra.mxu0 0.0
        %8224 = vmatprep.subr.mxu0 0.0
        %8225 = vmatpush1.msra.mxu0 0.0
        %8226 = vmatprep.subr.mxu0 0.0
        %8227 = vmatpush1.msra.mxu0 0.0
        %8228 = vmatprep.subr.mxu0 0.0
        %8229 = vmatpush1.msra.mxu0 0.0
        %8230 = vmatprep.subr.mxu0 0.0
        %8231 = vmatpush1.msra.mxu0 0.0
        %8232 = vmatprep.subr.mxu0 0.0
        %8233 = vmatpush1.msra.mxu0 0.0
        %8234 = vmatprep.subr.mxu0 0.0
        %8235 = vmatpush1.msra.mxu0 0.0
        %8236 = vmatprep.subr.mxu0 0.0
        %8237 = vmatpush1.msra.mxu0 0.0
        %8238 = vmatprep.subr.mxu0 0.0
        %8239 = vmatpush1.msra.mxu0 0.0
        %8240 = vmatprep.subr.mxu0 0.0
        %8241 = vmatpush1.msra.mxu0 0.0
        %8242 = vmatprep.subr.mxu0 0.0
        %8243 = vmatpush1.msra.mxu0 0.0
        %8244 = vmatprep.subr.mxu0 0.0
        %8245 = vmatpush1.msra.mxu0 0.0
        %8246 = vmatprep.subr.mxu0 0.0
        %8247 = vmatpush1.msra.mxu0 0.0
        %8248 = vmatprep.subr.mxu0 0.0
        %8249 = vmatpush1.msra.mxu0 0.0
        %8250 = vmatprep.subr.mxu0 0.0
        %8251 = vmatpush1.msra.mxu0 0.0
        %8252 = vmatprep.subr.mxu0 0.0
        %8253 = vmatpush1.msra.mxu0 0.0
        %8254 = vmatprep.subr.mxu0 0.0
        %8255 = vmatpush1.msra.mxu0 0.0
        %8256 = vmatprep.subr.mxu0 0.0
        %8257 = vmatpush1.msra.mxu0 0.0
        %8258 = vmatprep.subr.mxu0 0.0
        %8259 = vmatpush1.msra.mxu0 0.0
        %8260 = vmatprep.subr.mxu0 0.0
        %8261 = vmatpush1.msra.mxu0 0.0
        %8262 = vmatprep.mubr.f32.mxu0 0.0
        %v8263 = vand.u32 %v8097, 4294901760
        %8264 = vmatmul.mubr.f32.gmra.mrb[0].mxu0 %v8263
        %v8265 = vpop.f32.mrb[0].mxu0
        %v8266 = vadd.f32 %v8175, %v8265
        %v8267 = vpop.f32.mrb[0].mxu0
        %8268 = vdwg.mxu0
        %8269 = vmatprep.subr.mxu0 0.0
        %v8270 = vand.u32 %v8085, 4294901760
        %v8271 = vsub.f32 %v8085, %v8270
        %8272 = vmatpush1.msra.mxu0 %v8271
        %8273 = vmatprep.subr.mxu0 0.0
        %v8274 = vand.u32 %v8086, 4294901760
        %v8275 = vsub.f32 %v8086, %v8274
        %8276 = vmatpush1.msra.mxu0 %v8275
        %8277 = vmatprep.subr.mxu0 0.0
        %v8278 = vand.u32 %v8087, 4294901760
        %v8279 = vsub.f32 %v8087, %v8278
        %8280 = vmatpush1.msra.mxu0 %v8279
        %8281 = vmatprep.subr.mxu0 0.0
        %v8282 = vand.u32 %v8088, 4294901760
        %v8283 = vsub.f32 %v8088, %v8282
        %8284 = vmatpush1.msra.mxu0 %v8283
        %8285 = vmatprep.subr.mxu0 0.0
        %8286 = vmatpush1.msra.mxu0 0.0
        %8287 = vmatprep.subr.mxu0 0.0
        %8288 = vmatpush1.msra.mxu0 0.0
        %8289 = vmatprep.subr.mxu0 0.0
        %8290 = vmatpush1.msra.mxu0 0.0
        %8291 = vmatprep.subr.mxu0 0.0
        %8292 = vmatpush1.msra.mxu0 0.0
        %8293 = vmatprep.subr.mxu0 0.0
        %8294 = vmatpush1.msra.mxu0 0.0
        %8295 = vmatprep.subr.mxu0 0.0
        %8296 = vmatpush1.msra.mxu0 0.0
        %8297 = vmatprep.subr.mxu0 0.0
        %8298 = vmatpush1.msra.mxu0 0.0
        %8299 = vmatprep.subr.mxu0 0.0
        %8300 = vmatpush1.msra.mxu0 0.0
        %8301 = vmatprep.subr.mxu0 0.0
        %8302 = vmatpush1.msra.mxu0 0.0
        %8303 = vmatprep.subr.mxu0 0.0
        %8304 = vmatpush1.msra.mxu0 0.0
        %8305 = vmatprep.subr.mxu0 0.0
        %8306 = vmatpush1.msra.mxu0 0.0
        %8307 = vmatprep.subr.mxu0 0.0
        %8308 = vmatpush1.msra.mxu0 0.0
        %8309 = vmatprep.subr.mxu0 0.0
        %8310 = vmatpush1.msra.mxu0 0.0
        %8311 = vmatprep.subr.mxu0 0.0
        %8312 = vmatpush1.msra.mxu0 0.0
        %8313 = vmatprep.subr.mxu0 0.0
        %8314 = vmatpush1.msra.mxu0 0.0
        %8315 = vmatprep.subr.mxu0 0.0
        %8316 = vmatpush1.msra.mxu0 0.0
        %8317 = vmatprep.subr.mxu0 0.0
        %8318 = vmatpush1.msra.mxu0 0.0
        %8319 = vmatprep.subr.mxu0 0.0
        %8320 = vmatpush1.msra.mxu0 0.0
        %8321 = vmatprep.subr.mxu0 0.0
        %8322 = vmatpush1.msra.mxu0 0.0
        %8323 = vmatprep.subr.mxu0 0.0
        %8324 = vmatpush1.msra.mxu0 0.0
        %8325 = vmatprep.subr.mxu0 0.0
        %8326 = vmatpush1.msra.mxu0 0.0
        %8327 = vmatprep.subr.mxu0 0.0
        %8328 = vmatpush1.msra.mxu0 0.0
        %8329 = vmatprep.subr.mxu0 0.0
        %8330 = vmatpush1.msra.mxu0 0.0
        %8331 = vmatprep.subr.mxu0 0.0
        %8332 = vmatpush1.msra.mxu0 0.0
        %8333 = vmatprep.subr.mxu0 0.0
        %8334 = vmatpush1.msra.mxu0 0.0
        %8335 = vmatprep.subr.mxu0 0.0
        %8336 = vmatpush1.msra.mxu0 0.0
        %8337 = vmatprep.subr.mxu0 0.0
        %8338 = vmatpush1.msra.mxu0 0.0
        %8339 = vmatprep.subr.mxu0 0.0
        %8340 = vmatpush1.msra.mxu0 0.0
        %8341 = vmatprep.mubr.f32.mxu0 0.0
        %v8342 = vand.u32 %v8097, 4294901760
        %v8343 = vsub.f32 %v8097, %v8342
        %8344 = vmatmul.mubr.f32.gmra.mrb[0].mxu0 %v8343
        %v8345 = vpop.f32.mrb[0].mxu0
        %v8346 = vadd.f32 %v8266, %v8345
        %v8347 = vpop.f32.mrb[0].mxu0
        %8348 = vdwg.mxu0
        %8349 = vmatprep.subr.mxu0 0.0
        %v8350 = vand.u32 %v8085, 4294901760
        %8351 = vmatpush1.msra.mxu0 %v8350
        %8352 = vmatprep.subr.mxu0 0.0
        %v8353 = vand.u32 %v8086, 4294901760
        %8354 = vmatpush1.msra.mxu0 %v8353
        %8355 = vmatprep.subr.mxu0 0.0
        %v8356 = vand.u32 %v8087, 4294901760
        %8357 = vmatpush1.msra.mxu0 %v8356
        %8358 = vmatprep.subr.mxu0 0.0
        %v8359 = vand.u32 %v8088, 4294901760
        %8360 = vmatpush1.msra.mxu0 %v8359
        %8361 = vmatprep.subr.mxu0 0.0
        %8362 = vmatpush1.msra.mxu0 0.0
        %8363 = vmatprep.subr.mxu0 0.0
        %8364 = vmatpush1.msra.mxu0 0.0
        %8365 = vmatprep.subr.mxu0 0.0
        %8366 = vmatpush1.msra.mxu0 0.0
        %8367 = vmatprep.subr.mxu0 0.0
        %8368 = vmatpush1.msra.mxu0 0.0
        %8369 = vmatprep.subr.mxu0 0.0
        %8370 = vmatpush1.msra.mxu0 0.0
        %8371 = vmatprep.subr.mxu0 0.0
        %8372 = vmatpush1.msra.mxu0 0.0
        %8373 = vmatprep.subr.mxu0 0.0
        %8374 = vmatpush1.msra.mxu0 0.0
        %8375 = vmatprep.subr.mxu0 0.0
        %8376 = vmatpush1.msra.mxu0 0.0
        %8377 = vmatprep.subr.mxu0 0.0
        %8378 = vmatpush1.msra.mxu0 0.0
        %8379 = vmatprep.subr.mxu0 0.0
        %8380 = vmatpush1.msra.mxu0 0.0
        %8381 = vmatprep.subr.mxu0 0.0
        %8382 = vmatpush1.msra.mxu0 0.0
        %8383 = vmatprep.subr.mxu0 0.0
        %8384 = vmatpush1.msra.mxu0 0.0
        %8385 = vmatprep.subr.mxu0 0.0
        %8386 = vmatpush1.msra.mxu0 0.0
        %8387 = vmatprep.subr.mxu0 0.0
        %8388 = vmatpush1.msra.mxu0 0.0
        %8389 = vmatprep.subr.mxu0 0.0
        %8390 = vmatpush1.msra.mxu0 0.0
        %8391 = vmatprep.subr.mxu0 0.0
        %8392 = vmatpush1.msra.mxu0 0.0
        %8393 = vmatprep.subr.mxu0 0.0
        %8394 = vmatpush1.msra.mxu0 0.0
        %8395 = vmatprep.subr.mxu0 0.0
        %8396 = vmatpush1.msra.mxu0 0.0
        %8397 = vmatprep.subr.mxu0 0.0
        %8398 = vmatpush1.msra.mxu0 0.0
        %8399 = vmatprep.subr.mxu0 0.0
        %8400 = vmatpush1.msra.mxu0 0.0
        %8401 = vmatprep.subr.mxu0 0.0
        %8402 = vmatpush1.msra.mxu0 0.0
        %8403 = vmatprep.subr.mxu0 0.0
        %8404 = vmatpush1.msra.mxu0 0.0
        %8405 = vmatprep.subr.mxu0 0.0
        %8406 = vmatpush1.msra.mxu0 0.0
        %8407 = vmatprep.subr.mxu0 0.0
        %8408 = vmatpush1.msra.mxu0 0.0
        %8409 = vmatprep.subr.mxu0 0.0
        %8410 = vmatpush1.msra.mxu0 0.0
        %8411 = vmatprep.subr.mxu0 0.0
        %8412 = vmatpush1.msra.mxu0 0.0
        %8413 = vmatprep.subr.mxu0 0.0
        %8414 = vmatpush1.msra.mxu0 0.0
        %8415 = vmatprep.subr.mxu0 0.0
        %8416 = vmatpush1.msra.mxu0 0.0
        %8417 = vmatprep.mubr.f32.mxu0 0.0
        %v8418 = vand.u32 %v8097, 4294901760
        %v8419 = vsub.f32 %v8097, %v8418
        %v8420 = vand.u32 %v8419, 4294901760
        %8421 = vmatmul.mubr.f32.gmra.mrb[0].mxu0 %v8420
        %v8422 = vpop.f32.mrb[0].mxu0
        %v8423 = vadd.f32 %v8346, %v8422
        %v8424 = vpop.f32.mrb[0].mxu0
        %8425 = vdwg.mxu0
        %8426 = vmatprep.subr.mxu0 0.0
        %v8427 = vand.u32 %v8085, 4294901760
        %v8428 = vsub.f32 %v8085, %v8427
        %v8429 = vand.u32 %v8428, 4294901760
        %8430 = vmatpush1.msra.mxu0 %v8429
        %8431 = vmatprep.subr.mxu0 0.0
        %v8432 = vand.u32 %v8086, 4294901760
        %v8433 = vsub.f32 %v8086, %v8432
        %v8434 = vand.u32 %v8433, 4294901760
        %8435 = vmatpush1.msra.mxu0 %v8434
        %8436 = vmatprep.subr.mxu0 0.0
        %v8437 = vand.u32 %v8087, 4294901760
        %v8438 = vsub.f32 %v8087, %v8437
        %v8439 = vand.u32 %v8438, 4294901760
        %8440 = vmatpush1.msra.mxu0 %v8439
        %8441 = vmatprep.subr.mxu0 0.0
        %v8442 = vand.u32 %v8088, 4294901760
        %v8443 = vsub.f32 %v8088, %v8442
        %v8444 = vand.u32 %v8443, 4294901760
        %8445 = vmatpush1.msra.mxu0 %v8444
        %8446 = vmatprep.subr.mxu0 0.0
        %8447 = vmatpush1.msra.mxu0 0.0
        %8448 = vmatprep.subr.mxu0 0.0
        %8449 = vmatpush1.msra.mxu0 0.0
        %8450 = vmatprep.subr.mxu0 0.0
        %8451 = vmatpush1.msra.mxu0 0.0
        %8452 = vmatprep.subr.mxu0 0.0
        %8453 = vmatpush1.msra.mxu0 0.0
        %8454 = vmatprep.subr.mxu0 0.0
        %8455 = vmatpush1.msra.mxu0 0.0
        %8456 = vmatprep.subr.mxu0 0.0
        %8457 = vmatpush1.msra.mxu0 0.0
        %8458 = vmatprep.subr.mxu0 0.0
        %8459 = vmatpush1.msra.mxu0 0.0
        %8460 = vmatprep.subr.mxu0 0.0
        %8461 = vmatpush1.msra.mxu0 0.0
        %8462 = vmatprep.subr.mxu0 0.0
        %8463 = vmatpush1.msra.mxu0 0.0
        %8464 = vmatprep.subr.mxu0 0.0
        %8465 = vmatpush1.msra.mxu0 0.0
        %8466 = vmatprep.subr.mxu0 0.0
        %8467 = vmatpush1.msra.mxu0 0.0
        %8468 = vmatprep.subr.mxu0 0.0
        %8469 = vmatpush1.msra.mxu0 0.0
        %8470 = vmatprep.subr.mxu0 0.0
        %8471 = vmatpush1.msra.mxu0 0.0
        %8472 = vmatprep.subr.mxu0 0.0
        %8473 = vmatpush1.msra.mxu0 0.0
        %8474 = vmatprep.subr.mxu0 0.0
        %8475 = vmatpush1.msra.mxu0 0.0
        %8476 = vmatprep.subr.mxu0 0.0
        %8477 = vmatpush1.msra.mxu0 0.0
        %8478 = vmatprep.subr.mxu0 0.0
        %8479 = vmatpush1.msra.mxu0 0.0
        %8480 = vmatprep.subr.mxu0 0.0
        %8481 = vmatpush1.msra.mxu0 0.0
        %8482 = vmatprep.subr.mxu0 0.0
        %8483 = vmatpush1.msra.mxu0 0.0
        %8484 = vmatprep.subr.mxu0 0.0
        %8485 = vmatpush1.msra.mxu0 0.0
        %8486 = vmatprep.subr.mxu0 0.0
        %8487 = vmatpush1.msra.mxu0 0.0
        %8488 = vmatprep.subr.mxu0 0.0
        %8489 = vmatpush1.msra.mxu0 0.0
        %8490 = vmatprep.subr.mxu0 0.0
        %8491 = vmatpush1.msra.mxu0 0.0
        %8492 = vmatprep.subr.mxu0 0.0
        %8493 = vmatpush1.msra.mxu0 0.0
        %8494 = vmatprep.subr.mxu0 0.0
        %8495 = vmatpush1.msra.mxu0 0.0
        %8496 = vmatprep.subr.mxu0 0.0
        %8497 = vmatpush1.msra.mxu0 0.0
        %8498 = vmatprep.subr.mxu0 0.0
        %8499 = vmatpush1.msra.mxu0 0.0
        %8500 = vmatprep.subr.mxu0 0.0
        %8501 = vmatpush1.msra.mxu0 0.0
        %8502 = vmatprep.mubr.f32.mxu0 0.0
        %v8503 = vand.u32 %v8097, 4294901760
        %8504 = vmatmul.mubr.f32.gmra.mrb[0].mxu0 %v8503
        %v8505 = vpop.f32.mrb[0].mxu0
        %v8506 = vadd.f32 %v8423, %v8505
        %v8507 = vpop.f32.mrb[0].mxu0
        %8508 = vdwg.mxu0
        %8509 = vmatprep.subr.mxu0 0.0
        %v8510 = vand.u32 %v8085, 4294901760
        %8511 = vmatpush1.msra.mxu0 %v8510
        %8512 = vmatprep.subr.mxu0 0.0
        %v8513 = vand.u32 %v8086, 4294901760
        %8514 = vmatpush1.msra.mxu0 %v8513
        %8515 = vmatprep.subr.mxu0 0.0
        %v8516 = vand.u32 %v8087, 4294901760
        %8517 = vmatpush1.msra.mxu0 %v8516
        %8518 = vmatprep.subr.mxu0 0.0
        %v8519 = vand.u32 %v8088, 4294901760
        %8520 = vmatpush1.msra.mxu0 %v8519
        %8521 = vmatprep.subr.mxu0 0.0
        %8522 = vmatpush1.msra.mxu0 0.0
        %8523 = vmatprep.subr.mxu0 0.0
        %8524 = vmatpush1.msra.mxu0 0.0
        %8525 = vmatprep.subr.mxu0 0.0
        %8526 = vmatpush1.msra.mxu0 0.0
        %8527 = vmatprep.subr.mxu0 0.0
        %8528 = vmatpush1.msra.mxu0 0.0
        %8529 = vmatprep.subr.mxu0 0.0
        %8530 = vmatpush1.msra.mxu0 0.0
        %8531 = vmatprep.subr.mxu0 0.0
        %8532 = vmatpush1.msra.mxu0 0.0
        %8533 = vmatprep.subr.mxu0 0.0
        %8534 = vmatpush1.msra.mxu0 0.0
        %8535 = vmatprep.subr.mxu0 0.0
        %8536 = vmatpush1.msra.mxu0 0.0
        %8537 = vmatprep.subr.mxu0 0.0
        %8538 = vmatpush1.msra.mxu0 0.0
        %8539 = vmatprep.subr.mxu0 0.0
        %8540 = vmatpush1.msra.mxu0 0.0
        %8541 = vmatprep.subr.mxu0 0.0
        %8542 = vmatpush1.msra.mxu0 0.0
        %8543 = vmatprep.subr.mxu0 0.0
        %8544 = vmatpush1.msra.mxu0 0.0
        %8545 = vmatprep.subr.mxu0 0.0
        %8546 = vmatpush1.msra.mxu0 0.0
        %8547 = vmatprep.subr.mxu0 0.0
        %8548 = vmatpush1.msra.mxu0 0.0
        %8549 = vmatprep.subr.mxu0 0.0
        %8550 = vmatpush1.msra.mxu0 0.0
        %8551 = vmatprep.subr.mxu0 0.0
        %8552 = vmatpush1.msra.mxu0 0.0
        %8553 = vmatprep.subr.mxu0 0.0
        %8554 = vmatpush1.msra.mxu0 0.0
        %8555 = vmatprep.subr.mxu0 0.0
        %8556 = vmatpush1.msra.mxu0 0.0
        %8557 = vmatprep.subr.mxu0 0.0
        %8558 = vmatpush1.msra.mxu0 0.0
        %8559 = vmatprep.subr.mxu0 0.0
        %8560 = vmatpush1.msra.mxu0 0.0
        %8561 = vmatprep.subr.mxu0 0.0
        %8562 = vmatpush1.msra.mxu0 0.0
        %8563 = vmatprep.subr.mxu0 0.0
        %8564 = vmatpush1.msra.mxu0 0.0
        %8565 = vmatprep.subr.mxu0 0.0
        %8566 = vmatpush1.msra.mxu0 0.0
        %8567 = vmatprep.subr.mxu0 0.0
        %8568 = vmatpush1.msra.mxu0 0.0
        %8569 = vmatprep.subr.mxu0 0.0
        %8570 = vmatpush1.msra.mxu0 0.0
        %8571 = vmatprep.subr.mxu0 0.0
        %8572 = vmatpush1.msra.mxu0 0.0
        %8573 = vmatprep.subr.mxu0 0.0
        %8574 = vmatpush1.msra.mxu0 0.0
        %8575 = vmatprep.subr.mxu0 0.0
        %8576 = vmatpush1.msra.mxu0 0.0
        %8577 = vmatprep.mubr.f32.mxu0 0.0
        %v8578 = vand.u32 %v8097, 4294901760
        %8579 = vmatmul.mubr.f32.gmra.mrb[0].mxu0 %v8578
        %v8580 = vpop.f32.mrb[0].mxu0
        %v8581 = vadd.f32 %v8506, %v8580
        %v8582 = vpop.f32.mrb[0].mxu0
        %8583 = vdwg.mxu0
        %s8584 = scalar_lea.vmem %s14, 32
        %v8585 = vld [vmem:[%s8584] sm:$0xff]
        %v8586 = vld [vmem:[%s8584 + $0x8] sm:$0xff]
        %v8587 = vld [vmem:[%s8584 + $0x10] sm:$0xff]
        %v8588 = vld [vmem:[%s8584 + $0x18] sm:$0xff]
        %s8589 = scalar_lea.vmem [#allocation11], 1
        %v8590 = vld [vmem:[%s8589] sm:$0x1]
        %v8592 = vlaneseq
        %v8593 = vshrl.u32 %v8592, 7
        %v8594 = vsub.s32 0, %v8593
        %v8595 = vrot.slane %v8590, %v8594
        %8597 = vmatprep.subr.mxu0 0.0
        %v8598 = vand.u32 %v8585, 4294901760
        %8599 = vmatpush1.msra.mxu0 %v8598
        %8600 = vmatprep.subr.mxu0 0.0
        %v8601 = vand.u32 %v8586, 4294901760
        %8602 = vmatpush1.msra.mxu0 %v8601
        %8603 = vmatprep.subr.mxu0 0.0
        %v8604 = vand.u32 %v8587, 4294901760
        %8605 = vmatpush1.msra.mxu0 %v8604
        %8606 = vmatprep.subr.mxu0 0.0
        %v8607 = vand.u32 %v8588, 4294901760
        %8608 = vmatpush1.msra.mxu0 %v8607
        %8609 = vmatprep.subr.mxu0 0.0
        %8610 = vmatpush1.msra.mxu0 0.0
        %8611 = vmatprep.subr.mxu0 0.0
        %8612 = vmatpush1.msra.mxu0 0.0
        %8613 = vmatprep.subr.mxu0 0.0
        %8614 = vmatpush1.msra.mxu0 0.0
        %8615 = vmatprep.subr.mxu0 0.0
        %8616 = vmatpush1.msra.mxu0 0.0
        %8617 = vmatprep.subr.mxu0 0.0
        %8618 = vmatpush1.msra.mxu0 0.0
        %8619 = vmatprep.subr.mxu0 0.0
        %8620 = vmatpush1.msra.mxu0 0.0
        %8621 = vmatprep.subr.mxu0 0.0
        %8622 = vmatpush1.msra.mxu0 0.0
        %8623 = vmatprep.subr.mxu0 0.0
        %8624 = vmatpush1.msra.mxu0 0.0
        %8625 = vmatprep.subr.mxu0 0.0
        %8626 = vmatpush1.msra.mxu0 0.0
        %8627 = vmatprep.subr.mxu0 0.0
        %8628 = vmatpush1.msra.mxu0 0.0
        %8629 = vmatprep.subr.mxu0 0.0
        %8630 = vmatpush1.msra.mxu0 0.0
        %8631 = vmatprep.subr.mxu0 0.0
        %8632 = vmatpush1.msra.mxu0 0.0
        %8633 = vmatprep.subr.mxu0 0.0
        %8634 = vmatpush1.msra.mxu0 0.0
        %8635 = vmatprep.subr.mxu0 0.0
        %8636 = vmatpush1.msra.mxu0 0.0
        %8637 = vmatprep.subr.mxu0 0.0
        %8638 = vmatpush1.msra.mxu0 0.0
        %8639 = vmatprep.subr.mxu0 0.0
        %8640 = vmatpush1.msra.mxu0 0.0
        %8641 = vmatprep.subr.mxu0 0.0
        %8642 = vmatpush1.msra.mxu0 0.0
        %8643 = vmatprep.subr.mxu0 0.0
        %8644 = vmatpush1.msra.mxu0 0.0
        %8645 = vmatprep.subr.mxu0 0.0
        %8646 = vmatpush1.msra.mxu0 0.0
        %8647 = vmatprep.subr.mxu0 0.0
        %8648 = vmatpush1.msra.mxu0 0.0
        %8649 = vmatprep.subr.mxu0 0.0
        %8650 = vmatpush1.msra.mxu0 0.0
        %8651 = vmatprep.subr.mxu0 0.0
        %8652 = vmatpush1.msra.mxu0 0.0
        %8653 = vmatprep.subr.mxu0 0.0
        %8654 = vmatpush1.msra.mxu0 0.0
        %8655 = vmatprep.subr.mxu0 0.0
        %8656 = vmatpush1.msra.mxu0 0.0
        %8657 = vmatprep.subr.mxu0 0.0
        %8658 = vmatpush1.msra.mxu0 0.0
        %8659 = vmatprep.subr.mxu0 0.0
        %8660 = vmatpush1.msra.mxu0 0.0
        %8661 = vmatprep.subr.mxu0 0.0
        %8662 = vmatpush1.msra.mxu0 0.0
        %8663 = vmatprep.subr.mxu0 0.0
        %8664 = vmatpush1.msra.mxu0 0.0
        %8665 = vmatprep.mubr.f32.mxu0 0.0
        %v8666 = vand.u32 %v8097, 4294901760
        %v8667 = vsub.f32 %v8097, %v8666
        %v8668 = vand.u32 %v8667, 4294901760
        %v8669 = vsub.f32 %v8667, %v8668
        %v8670 = vand.u32 %v8669, 4294901760
        %8671 = vmatmul.mubr.f32.gmra.mrb[0].mxu0 %v8670
        %v8672 = vpop.f32.mrb[0].mxu0
        %v8673 = vadd.f32 %v8595, %v8672
        %v8674 = vpop.f32.mrb[0].mxu0
        %8675 = vdwg.mxu0
        %8676 = vmatprep.subr.mxu0 0.0
        %v8677 = vand.u32 %v8585, 4294901760
        %v8678 = vsub.f32 %v8585, %v8677
        %v8679 = vand.u32 %v8678, 4294901760
        %v8680 = vsub.f32 %v8678, %v8679
        %v8681 = vand.u32 %v8680, 4294901760
        %8682 = vmatpush1.msra.mxu0 %v8681
        %8683 = vmatprep.subr.mxu0 0.0
        %v8684 = vand.u32 %v8586, 4294901760
        %v8685 = vsub.f32 %v8586, %v8684
        %v8686 = vand.u32 %v8685, 4294901760
        %v8687 = vsub.f32 %v8685, %v8686
        %v8688 = vand.u32 %v8687, 4294901760
        %8689 = vmatpush1.msra.mxu0 %v8688
        %8690 = vmatprep.subr.mxu0 0.0
        %v8691 = vand.u32 %v8587, 4294901760
        %v8692 = vsub.f32 %v8587, %v8691
        %v8693 = vand.u32 %v8692, 4294901760
        %v8694 = vsub.f32 %v8692, %v8693
        %v8695 = vand.u32 %v8694, 4294901760
        %8696 = vmatpush1.msra.mxu0 %v8695
        %8697 = vmatprep.subr.mxu0 0.0
        %v8698 = vand.u32 %v8588, 4294901760
        %v8699 = vsub.f32 %v8588, %v8698
        %v8700 = vand.u32 %v8699, 4294901760
        %v8701 = vsub.f32 %v8699, %v8700
        %v8702 = vand.u32 %v8701, 4294901760
        %8703 = vmatpush1.msra.mxu0 %v8702
        %8704 = vmatprep.subr.mxu0 0.0
        %8705 = vmatpush1.msra.mxu0 0.0
        %8706 = vmatprep.subr.mxu0 0.0
        %8707 = vmatpush1.msra.mxu0 0.0
        %8708 = vmatprep.subr.mxu0 0.0
        %8709 = vmatpush1.msra.mxu0 0.0
        %8710 = vmatprep.subr.mxu0 0.0
        %8711 = vmatpush1.msra.mxu0 0.0
        %8712 = vmatprep.subr.mxu0 0.0
        %8713 = vmatpush1.msra.mxu0 0.0
        %8714 = vmatprep.subr.mxu0 0.0
        %8715 = vmatpush1.msra.mxu0 0.0
        %8716 = vmatprep.subr.mxu0 0.0
        %8717 = vmatpush1.msra.mxu0 0.0
        %8718 = vmatprep.subr.mxu0 0.0
        %8719 = vmatpush1.msra.mxu0 0.0
        %8720 = vmatprep.subr.mxu0 0.0
        %8721 = vmatpush1.msra.mxu0 0.0
        %8722 = vmatprep.subr.mxu0 0.0
        %8723 = vmatpush1.msra.mxu0 0.0
        %8724 = vmatprep.subr.mxu0 0.0
        %8725 = vmatpush1.msra.mxu0 0.0
        %8726 = vmatprep.subr.mxu0 0.0
        %8727 = vmatpush1.msra.mxu0 0.0
        %8728 = vmatprep.subr.mxu0 0.0
        %8729 = vmatpush1.msra.mxu0 0.0
        %8730 = vmatprep.subr.mxu0 0.0
        %8731 = vmatpush1.msra.mxu0 0.0
        %8732 = vmatprep.subr.mxu0 0.0
        %8733 = vmatpush1.msra.mxu0 0.0
        %8734 = vmatprep.subr.mxu0 0.0
        %8735 = vmatpush1.msra.mxu0 0.0
        %8736 = vmatprep.subr.mxu0 0.0
        %8737 = vmatpush1.msra.mxu0 0.0
        %8738 = vmatprep.subr.mxu0 0.0
        %8739 = vmatpush1.msra.mxu0 0.0
        %8740 = vmatprep.subr.mxu0 0.0
        %8741 = vmatpush1.msra.mxu0 0.0
        %8742 = vmatprep.subr.mxu0 0.0
        %8743 = vmatpush1.msra.mxu0 0.0
        %8744 = vmatprep.subr.mxu0 0.0
        %8745 = vmatpush1.msra.mxu0 0.0
        %8746 = vmatprep.subr.mxu0 0.0
        %8747 = vmatpush1.msra.mxu0 0.0
        %8748 = vmatprep.subr.mxu0 0.0
        %8749 = vmatpush1.msra.mxu0 0.0
        %8750 = vmatprep.subr.mxu0 0.0
        %8751 = vmatpush1.msra.mxu0 0.0
        %8752 = vmatprep.subr.mxu0 0.0
        %8753 = vmatpush1.msra.mxu0 0.0
        %8754 = vmatprep.subr.mxu0 0.0
        %8755 = vmatpush1.msra.mxu0 0.0
        %8756 = vmatprep.subr.mxu0 0.0
        %8757 = vmatpush1.msra.mxu0 0.0
        %8758 = vmatprep.subr.mxu0 0.0
        %8759 = vmatpush1.msra.mxu0 0.0
        %8760 = vmatprep.mubr.f32.mxu0 0.0
        %v8761 = vand.u32 %v8097, 4294901760
        %8762 = vmatmul.mubr.f32.gmra.mrb[0].mxu0 %v8761
        %v8763 = vpop.f32.mrb[0].mxu0
        %v8764 = vadd.f32 %v8673, %v8763
        %v8765 = vpop.f32.mrb[0].mxu0
        %8766 = vdwg.mxu0
        %8767 = vmatprep.subr.mxu0 0.0
        %v8768 = vand.u32 %v8585, 4294901760
        %v8769 = vsub.f32 %v8585, %v8768
        %8770 = vmatpush1.msra.mxu0 %v8769
        %8771 = vmatprep.subr.mxu0 0.0
        %v8772 = vand.u32 %v8586, 4294901760
        %v8773 = vsub.f32 %v8586, %v8772
        %8774 = vmatpush1.msra.mxu0 %v8773
        %8775 = vmatprep.subr.mxu0 0.0
        %v8776 = vand.u32 %v8587, 4294901760
        %v8777 = vsub.f32 %v8587, %v8776
        %8778 = vmatpush1.msra.mxu0 %v8777
        %8779 = vmatprep.subr.mxu0 0.0
        %v8780 = vand.u32 %v8588, 4294901760
        %v8781 = vsub.f32 %v8588, %v8780
        %8782 = vmatpush1.msra.mxu0 %v8781
        %8783 = vmatprep.subr.mxu0 0.0
        %8784 = vmatpush1.msra.mxu0 0.0
        %8785 = vmatprep.subr.mxu0 0.0
        %8786 = vmatpush1.msra.mxu0 0.0
        %8787 = vmatprep.subr.mxu0 0.0
        %8788 = vmatpush1.msra.mxu0 0.0
        %8789 = vmatprep.subr.mxu0 0.0
        %8790 = vmatpush1.msra.mxu0 0.0
        %8791 = vmatprep.subr.mxu0 0.0
        %8792 = vmatpush1.msra.mxu0 0.0
        %8793 = vmatprep.subr.mxu0 0.0
        %8794 = vmatpush1.msra.mxu0 0.0
        %8795 = vmatprep.subr.mxu0 0.0
        %8796 = vmatpush1.msra.mxu0 0.0
        %8797 = vmatprep.subr.mxu0 0.0
        %8798 = vmatpush1.msra.mxu0 0.0
        %8799 = vmatprep.subr.mxu0 0.0
        %8800 = vmatpush1.msra.mxu0 0.0
        %8801 = vmatprep.subr.mxu0 0.0
        %8802 = vmatpush1.msra.mxu0 0.0
        %8803 = vmatprep.subr.mxu0 0.0
        %8804 = vmatpush1.msra.mxu0 0.0
        %8805 = vmatprep.subr.mxu0 0.0
        %8806 = vmatpush1.msra.mxu0 0.0
        %8807 = vmatprep.subr.mxu0 0.0
        %8808 = vmatpush1.msra.mxu0 0.0
        %8809 = vmatprep.subr.mxu0 0.0
        %8810 = vmatpush1.msra.mxu0 0.0
        %8811 = vmatprep.subr.mxu0 0.0
        %8812 = vmatpush1.msra.mxu0 0.0
        %8813 = vmatprep.subr.mxu0 0.0
        %8814 = vmatpush1.msra.mxu0 0.0
        %8815 = vmatprep.subr.mxu0 0.0
        %8816 = vmatpush1.msra.mxu0 0.0
        %8817 = vmatprep.subr.mxu0 0.0
        %8818 = vmatpush1.msra.mxu0 0.0
        %8819 = vmatprep.subr.mxu0 0.0
        %8820 = vmatpush1.msra.mxu0 0.0
        %8821 = vmatprep.subr.mxu0 0.0
        %8822 = vmatpush1.msra.mxu0 0.0
        %8823 = vmatprep.subr.mxu0 0.0
        %8824 = vmatpush1.msra.mxu0 0.0
        %8825 = vmatprep.subr.mxu0 0.0
        %8826 = vmatpush1.msra.mxu0 0.0
        %8827 = vmatprep.subr.mxu0 0.0
        %8828 = vmatpush1.msra.mxu0 0.0
        %8829 = vmatprep.subr.mxu0 0.0
        %8830 = vmatpush1.msra.mxu0 0.0
        %8831 = vmatprep.subr.mxu0 0.0
        %8832 = vmatpush1.msra.mxu0 0.0
        %8833 = vmatprep.subr.mxu0 0.0
        %8834 = vmatpush1.msra.mxu0 0.0
        %8835 = vmatprep.subr.mxu0 0.0
        %8836 = vmatpush1.msra.mxu0 0.0
        %8837 = vmatprep.subr.mxu0 0.0
        %8838 = vmatpush1.msra.mxu0 0.0
        %8839 = vmatprep.mubr.f32.mxu0 0.0
        %v8840 = vand.u32 %v8097, 4294901760
        %v8841 = vsub.f32 %v8097, %v8840
        %8842 = vmatmul.mubr.f32.gmra.mrb[0].mxu0 %v8841
        %v8843 = vpop.f32.mrb[0].mxu0
        %v8844 = vadd.f32 %v8764, %v8843
        %v8845 = vpop.f32.mrb[0].mxu0
        %8846 = vdwg.mxu0
        %8847 = vmatprep.subr.mxu0 0.0
        %v8848 = vand.u32 %v8585, 4294901760
        %8849 = vmatpush1.msra.mxu0 %v8848
        %8850 = vmatprep.subr.mxu0 0.0
        %v8851 = vand.u32 %v8586, 4294901760
        %8852 = vmatpush1.msra.mxu0 %v8851
        %8853 = vmatprep.subr.mxu0 0.0
        %v8854 = vand.u32 %v8587, 4294901760
        %8855 = vmatpush1.msra.mxu0 %v8854
        %8856 = vmatprep.subr.mxu0 0.0
        %v8857 = vand.u32 %v8588, 4294901760
        %8858 = vmatpush1.msra.mxu0 %v8857
        %8859 = vmatprep.subr.mxu0 0.0
        %8860 = vmatpush1.msra.mxu0 0.0
        %8861 = vmatprep.subr.mxu0 0.0
        %8862 = vmatpush1.msra.mxu0 0.0
        %8863 = vmatprep.subr.mxu0 0.0
        %8864 = vmatpush1.msra.mxu0 0.0
        %8865 = vmatprep.subr.mxu0 0.0
        %8866 = vmatpush1.msra.mxu0 0.0
        %8867 = vmatprep.subr.mxu0 0.0
        %8868 = vmatpush1.msra.mxu0 0.0
        %8869 = vmatprep.subr.mxu0 0.0
        %8870 = vmatpush1.msra.mxu0 0.0
        %8871 = vmatprep.subr.mxu0 0.0
        %8872 = vmatpush1.msra.mxu0 0.0
        %8873 = vmatprep.subr.mxu0 0.0
        %8874 = vmatpush1.msra.mxu0 0.0
        %8875 = vmatprep.subr.mxu0 0.0
        %8876 = vmatpush1.msra.mxu0 0.0
        %8877 = vmatprep.subr.mxu0 0.0
        %8878 = vmatpush1.msra.mxu0 0.0
        %8879 = vmatprep.subr.mxu0 0.0
        %8880 = vmatpush1.msra.mxu0 0.0
        %8881 = vmatprep.subr.mxu0 0.0
        %8882 = vmatpush1.msra.mxu0 0.0
        %8883 = vmatprep.subr.mxu0 0.0
        %8884 = vmatpush1.msra.mxu0 0.0
        %8885 = vmatprep.subr.mxu0 0.0
        %8886 = vmatpush1.msra.mxu0 0.0
        %8887 = vmatprep.subr.mxu0 0.0
        %8888 = vmatpush1.msra.mxu0 0.0
        %8889 = vmatprep.subr.mxu0 0.0
        %8890 = vmatpush1.msra.mxu0 0.0
        %8891 = vmatprep.subr.mxu0 0.0
        %8892 = vmatpush1.msra.mxu0 0.0
        %8893 = vmatprep.subr.mxu0 0.0
        %8894 = vmatpush1.msra.mxu0 0.0
        %8895 = vmatprep.subr.mxu0 0.0
        %8896 = vmatpush1.msra.mxu0 0.0
        %8897 = vmatprep.subr.mxu0 0.0
        %8898 = vmatpush1.msra.mxu0 0.0
        %8899 = vmatprep.subr.mxu0 0.0
        %8900 = vmatpush1.msra.mxu0 0.0
        %8901 = vmatprep.subr.mxu0 0.0
        %8902 = vmatpush1.msra.mxu0 0.0
        %8903 = vmatprep.subr.mxu0 0.0
        %8904 = vmatpush1.msra.mxu0 0.0
        %8905 = vmatprep.subr.mxu0 0.0
        %8906 = vmatpush1.msra.mxu0 0.0
        %8907 = vmatprep.subr.mxu0 0.0
        %8908 = vmatpush1.msra.mxu0 0.0
        %8909 = vmatprep.subr.mxu0 0.0
        %8910 = vmatpush1.msra.mxu0 0.0
        %8911 = vmatprep.subr.mxu0 0.0
        %8912 = vmatpush1.msra.mxu0 0.0
        %8913 = vmatprep.subr.mxu0 0.0
        %8914 = vmatpush1.msra.mxu0 0.0
        %8915 = vmatprep.mubr.f32.mxu0 0.0
        %v8916 = vand.u32 %v8097, 4294901760
        %v8917 = vsub.f32 %v8097, %v8916
        %v8918 = vand.u32 %v8917, 4294901760
        %8919 = vmatmul.mubr.f32.gmra.mrb[0].mxu0 %v8918
        %v8920 = vpop.f32.mrb[0].mxu0
        %v8921 = vadd.f32 %v8844, %v8920
        %v8922 = vpop.f32.mrb[0].mxu0
        %8923 = vdwg.mxu0
        %8924 = vmatprep.subr.mxu0 0.0
        %v8925 = vand.u32 %v8585, 4294901760
        %v8926 = vsub.f32 %v8585, %v8925
        %v8927 = vand.u32 %v8926, 4294901760
        %8928 = vmatpush1.msra.mxu0 %v8927
        %8929 = vmatprep.subr.mxu0 0.0
        %v8930 = vand.u32 %v8586, 4294901760
        %v8931 = vsub.f32 %v8586, %v8930
        %v8932 = vand.u32 %v8931, 4294901760
        %8933 = vmatpush1.msra.mxu0 %v8932
        %8934 = vmatprep.subr.mxu0 0.0
        %v8935 = vand.u32 %v8587, 4294901760
        %v8936 = vsub.f32 %v8587, %v8935
        %v8937 = vand.u32 %v8936, 4294901760
        %8938 = vmatpush1.msra.mxu0 %v8937
        %8939 = vmatprep.subr.mxu0 0.0
        %v8940 = vand.u32 %v8588, 4294901760
        %v8941 = vsub.f32 %v8588, %v8940
        %v8942 = vand.u32 %v8941, 4294901760
        %8943 = vmatpush1.msra.mxu0 %v8942
        %8944 = vmatprep.subr.mxu0 0.0
        %8945 = vmatpush1.msra.mxu0 0.0
        %8946 = vmatprep.subr.mxu0 0.0
        %8947 = vmatpush1.msra.mxu0 0.0
        %8948 = vmatprep.subr.mxu0 0.0
        %8949 = vmatpush1.msra.mxu0 0.0
        %8950 = vmatprep.subr.mxu0 0.0
        %8951 = vmatpush1.msra.mxu0 0.0
        %8952 = vmatprep.subr.mxu0 0.0
        %8953 = vmatpush1.msra.mxu0 0.0
        %8954 = vmatprep.subr.mxu0 0.0
        %8955 = vmatpush1.msra.mxu0 0.0
        %8956 = vmatprep.subr.mxu0 0.0
        %8957 = vmatpush1.msra.mxu0 0.0
        %8958 = vmatprep.subr.mxu0 0.0
        %8959 = vmatpush1.msra.mxu0 0.0
        %8960 = vmatprep.subr.mxu0 0.0
        %8961 = vmatpush1.msra.mxu0 0.0
        %8962 = vmatprep.subr.mxu0 0.0
        %8963 = vmatpush1.msra.mxu0 0.0
        %8964 = vmatprep.subr.mxu0 0.0
        %8965 = vmatpush1.msra.mxu0 0.0
        %8966 = vmatprep.subr.mxu0 0.0
        %8967 = vmatpush1.msra.mxu0 0.0
        %8968 = vmatprep.subr.mxu0 0.0
        %8969 = vmatpush1.msra.mxu0 0.0
        %8970 = vmatprep.subr.mxu0 0.0
        %8971 = vmatpush1.msra.mxu0 0.0
        %8972 = vmatprep.subr.mxu0 0.0
        %8973 = vmatpush1.msra.mxu0 0.0
        %8974 = vmatprep.subr.mxu0 0.0
        %8975 = vmatpush1.msra.mxu0 0.0
        %8976 = vmatprep.subr.mxu0 0.0
        %8977 = vmatpush1.msra.mxu0 0.0
        %8978 = vmatprep.subr.mxu0 0.0
        %8979 = vmatpush1.msra.mxu0 0.0
        %8980 = vmatprep.subr.mxu0 0.0
        %8981 = vmatpush1.msra.mxu0 0.0
        %8982 = vmatprep.subr.mxu0 0.0
        %8983 = vmatpush1.msra.mxu0 0.0
        %8984 = vmatprep.subr.mxu0 0.0
        %8985 = vmatpush1.msra.mxu0 0.0
        %8986 = vmatprep.subr.mxu0 0.0
        %8987 = vmatpush1.msra.mxu0 0.0
        %8988 = vmatprep.subr.mxu0 0.0
        %8989 = vmatpush1.msra.mxu0 0.0
        %8990 = vmatprep.subr.mxu0 0.0
        %8991 = vmatpush1.msra.mxu0 0.0
        %8992 = vmatprep.subr.mxu0 0.0
        %8993 = vmatpush1.msra.mxu0 0.0
        %8994 = vmatprep.subr.mxu0 0.0
        %8995 = vmatpush1.msra.mxu0 0.0
        %8996 = vmatprep.subr.mxu0 0.0
        %8997 = vmatpush1.msra.mxu0 0.0
        %8998 = vmatprep.subr.mxu0 0.0
        %8999 = vmatpush1.msra.mxu0 0.0
        %9000 = vmatprep.mubr.f32.mxu0 0.0
        %v9001 = vand.u32 %v8097, 4294901760
        %9002 = vmatmul.mubr.f32.gmra.mrb[0].mxu0 %v9001
        %v9003 = vpop.f32.mrb[0].mxu0
        %v9004 = vadd.f32 %v8921, %v9003
        %v9005 = vpop.f32.mrb[0].mxu0
        %9006 = vdwg.mxu0
        %9007 = vmatprep.subr.mxu0 0.0
        %v9008 = vand.u32 %v8585, 4294901760
        %9009 = vmatpush1.msra.mxu0 %v9008
        %9010 = vmatprep.subr.mxu0 0.0
        %v9011 = vand.u32 %v8586, 4294901760
        %9012 = vmatpush1.msra.mxu0 %v9011
        %9013 = vmatprep.subr.mxu0 0.0
        %v9014 = vand.u32 %v8587, 4294901760
        %9015 = vmatpush1.msra.mxu0 %v9014
        %9016 = vmatprep.subr.mxu0 0.0
        %v9017 = vand.u32 %v8588, 4294901760
        %9018 = vmatpush1.msra.mxu0 %v9017
        %9019 = vmatprep.subr.mxu0 0.0
        %9020 = vmatpush1.msra.mxu0 0.0
        %9021 = vmatprep.subr.mxu0 0.0
        %9022 = vmatpush1.msra.mxu0 0.0
        %9023 = vmatprep.subr.mxu0 0.0
        %9024 = vmatpush1.msra.mxu0 0.0
        %9025 = vmatprep.subr.mxu0 0.0
        %9026 = vmatpush1.msra.mxu0 0.0
        %9027 = vmatprep.subr.mxu0 0.0
        %9028 = vmatpush1.msra.mxu0 0.0
        %9029 = vmatprep.subr.mxu0 0.0
        %9030 = vmatpush1.msra.mxu0 0.0
        %9031 = vmatprep.subr.mxu0 0.0
        %9032 = vmatpush1.msra.mxu0 0.0
        %9033 = vmatprep.subr.mxu0 0.0
        %9034 = vmatpush1.msra.mxu0 0.0
        %9035 = vmatprep.subr.mxu0 0.0
        %9036 = vmatpush1.msra.mxu0 0.0
        %9037 = vmatprep.subr.mxu0 0.0
        %9038 = vmatpush1.msra.mxu0 0.0
        %9039 = vmatprep.subr.mxu0 0.0
        %9040 = vmatpush1.msra.mxu0 0.0
        %9041 = vmatprep.subr.mxu0 0.0
        %9042 = vmatpush1.msra.mxu0 0.0
        %9043 = vmatprep.subr.mxu0 0.0
        %9044 = vmatpush1.msra.mxu0 0.0
        %9045 = vmatprep.subr.mxu0 0.0
        %9046 = vmatpush1.msra.mxu0 0.0
        %9047 = vmatprep.subr.mxu0 0.0
        %9048 = vmatpush1.msra.mxu0 0.0
        %9049 = vmatprep.subr.mxu0 0.0
        %9050 = vmatpush1.msra.mxu0 0.0
        %9051 = vmatprep.subr.mxu0 0.0
        %9052 = vmatpush1.msra.mxu0 0.0
        %9053 = vmatprep.subr.mxu0 0.0
        %9054 = vmatpush1.msra.mxu0 0.0
        %9055 = vmatprep.subr.mxu0 0.0
        %9056 = vmatpush1.msra.mxu0 0.0
        %9057 = vmatprep.subr.mxu0 0.0
        %9058 = vmatpush1.msra.mxu0 0.0
        %9059 = vmatprep.subr.mxu0 0.0
        %9060 = vmatpush1.msra.mxu0 0.0
        %9061 = vmatprep.subr.mxu0 0.0
        %9062 = vmatpush1.msra.mxu0 0.0
        %9063 = vmatprep.subr.mxu0 0.0
        %9064 = vmatpush1.msra.mxu0 0.0
        %9065 = vmatprep.subr.mxu0 0.0
        %9066 = vmatpush1.msra.mxu0 0.0
        %9067 = vmatprep.subr.mxu0 0.0
        %9068 = vmatpush1.msra.mxu0 0.0
        %9069 = vmatprep.subr.mxu0 0.0
        %9070 = vmatpush1.msra.mxu0 0.0
        %9071 = vmatprep.subr.mxu0 0.0
        %9072 = vmatpush1.msra.mxu0 0.0
        %9073 = vmatprep.subr.mxu0 0.0
        %9074 = vmatpush1.msra.mxu0 0.0
        %9075 = vmatprep.mubr.f32.mxu0 0.0
        %v9076 = vand.u32 %v8097, 4294901760
        %9077 = vmatmul.mubr.f32.gmra.mrb[0].mxu0 %v9076
        %v9078 = vpop.f32.mrb[0].mxu0
        %v9079 = vadd.f32 %v9004, %v9078
        %v9080 = vpop.f32.mrb[0].mxu0
        %9081 = vdwg.mxu0
        %s9082 = scalar_lea.vmem %s14, 64
        %v9083 = vld [vmem:[%s9082] sm:$0xff]
        %v9084 = vld [vmem:[%s9082 + $0x8] sm:$0xff]
        %v9085 = vld [vmem:[%s9082 + $0x10] sm:$0xff]
        %v9086 = vld [vmem:[%s9082 + $0x18] sm:$0xff]
        %s9087 = scalar_lea.vmem [#allocation11], 2
        %v9088 = vld [vmem:[%s9087] sm:$0x1]
        %v9090 = vlaneseq
        %v9091 = vshrl.u32 %v9090, 7
        %v9092 = vsub.s32 0, %v9091
        %v9093 = vrot.slane %v9088, %v9092
        %9095 = vmatprep.subr.mxu0 0.0
        %v9096 = vand.u32 %v9083, 4294901760
        %9097 = vmatpush1.msra.mxu0 %v9096
        %9098 = vmatprep.subr.mxu0 0.0
        %v9099 = vand.u32 %v9084, 4294901760
        %9100 = vmatpush1.msra.mxu0 %v9099
        %9101 = vmatprep.subr.mxu0 0.0
        %v9102 = vand.u32 %v9085, 4294901760
        %9103 = vmatpush1.msra.mxu0 %v9102
        %9104 = vmatprep.subr.mxu0 0.0
        %v9105 = vand.u32 %v9086, 4294901760
        %9106 = vmatpush1.msra.mxu0 %v9105
        %9107 = vmatprep.subr.mxu0 0.0
        %9108 = vmatpush1.msra.mxu0 0.0
        %9109 = vmatprep.subr.mxu0 0.0
        %9110 = vmatpush1.msra.mxu0 0.0
        %9111 = vmatprep.subr.mxu0 0.0
        %9112 = vmatpush1.msra.mxu0 0.0
        %9113 = vmatprep.subr.mxu0 0.0
        %9114 = vmatpush1.msra.mxu0 0.0
        %9115 = vmatprep.subr.mxu0 0.0
        %9116 = vmatpush1.msra.mxu0 0.0
        %9117 = vmatprep.subr.mxu0 0.0
        %9118 = vmatpush1.msra.mxu0 0.0
        %9119 = vmatprep.subr.mxu0 0.0
        %9120 = vmatpush1.msra.mxu0 0.0
        %9121 = vmatprep.subr.mxu0 0.0
        %9122 = vmatpush1.msra.mxu0 0.0
        %9123 = vmatprep.subr.mxu0 0.0
        %9124 = vmatpush1.msra.mxu0 0.0
        %9125 = vmatprep.subr.mxu0 0.0
        %9126 = vmatpush1.msra.mxu0 0.0
        %9127 = vmatprep.subr.mxu0 0.0
        %9128 = vmatpush1.msra.mxu0 0.0
        %9129 = vmatprep.subr.mxu0 0.0
        %9130 = vmatpush1.msra.mxu0 0.0
        %9131 = vmatprep.subr.mxu0 0.0
        %9132 = vmatpush1.msra.mxu0 0.0
        %9133 = vmatprep.subr.mxu0 0.0
        %9134 = vmatpush1.msra.mxu0 0.0
        %9135 = vmatprep.subr.mxu0 0.0
        %9136 = vmatpush1.msra.mxu0 0.0
        %9137 = vmatprep.subr.mxu0 0.0
        %9138 = vmatpush1.msra.mxu0 0.0
        %9139 = vmatprep.subr.mxu0 0.0
        %9140 = vmatpush1.msra.mxu0 0.0
        %9141 = vmatprep.subr.mxu0 0.0
        %9142 = vmatpush1.msra.mxu0 0.0
        %9143 = vmatprep.subr.mxu0 0.0
        %9144 = vmatpush1.msra.mxu0 0.0
        %9145 = vmatprep.subr.mxu0 0.0
        %9146 = vmatpush1.msra.mxu0 0.0
        %9147 = vmatprep.subr.mxu0 0.0
        %9148 = vmatpush1.msra.mxu0 0.0
        %9149 = vmatprep.subr.mxu0 0.0
        %9150 = vmatpush1.msra.mxu0 0.0
        %9151 = vmatprep.subr.mxu0 0.0
        %9152 = vmatpush1.msra.mxu0 0.0
        %9153 = vmatprep.subr.mxu0 0.0
        %9154 = vmatpush1.msra.mxu0 0.0
        %9155 = vmatprep.subr.mxu0 0.0
        %9156 = vmatpush1.msra.mxu0 0.0
        %9157 = vmatprep.subr.mxu0 0.0
        %9158 = vmatpush1.msra.mxu0 0.0
        %9159 = vmatprep.subr.mxu0 0.0
        %9160 = vmatpush1.msra.mxu0 0.0
        %9161 = vmatprep.subr.mxu0 0.0
        %9162 = vmatpush1.msra.mxu0 0.0
        %9163 = vmatprep.mubr.f32.mxu0 0.0
        %v9164 = vand.u32 %v8097, 4294901760
        %v9165 = vsub.f32 %v8097, %v9164
        %v9166 = vand.u32 %v9165, 4294901760
        %v9167 = vsub.f32 %v9165, %v9166
        %v9168 = vand.u32 %v9167, 4294901760
        %9169 = vmatmul.mubr.f32.gmra.mrb[0].mxu0 %v9168
        %v9170 = vpop.f32.mrb[0].mxu0
        %v9171 = vadd.f32 %v9093, %v9170
        %v9172 = vpop.f32.mrb[0].mxu0
        %9173 = vdwg.mxu0
        %9174 = vmatprep.subr.mxu0 0.0
        %v9175 = vand.u32 %v9083, 4294901760
        %v9176 = vsub.f32 %v9083, %v9175
        %v9177 = vand.u32 %v9176, 4294901760
        %v9178 = vsub.f32 %v9176, %v9177
        %v9179 = vand.u32 %v9178, 4294901760
        %9180 = vmatpush1.msra.mxu0 %v9179
        %9181 = vmatprep.subr.mxu0 0.0
        %v9182 = vand.u32 %v9084, 4294901760
        %v9183 = vsub.f32 %v9084, %v9182
        %v9184 = vand.u32 %v9183, 4294901760
        %v9185 = vsub.f32 %v9183, %v9184
        %v9186 = vand.u32 %v9185, 4294901760
        %9187 = vmatpush1.msra.mxu0 %v9186
        %9188 = vmatprep.subr.mxu0 0.0
        %v9189 = vand.u32 %v9085, 4294901760
        %v9190 = vsub.f32 %v9085, %v9189
        %v9191 = vand.u32 %v9190, 4294901760
        %v9192 = vsub.f32 %v9190, %v9191
        %v9193 = vand.u32 %v9192, 4294901760
        %9194 = vmatpush1.msra.mxu0 %v9193
        %9195 = vmatprep.subr.mxu0 0.0
        %v9196 = vand.u32 %v9086, 4294901760
        %v9197 = vsub.f32 %v9086, %v9196
        %v9198 = vand.u32 %v9197, 4294901760
        %v9199 = vsub.f32 %v9197, %v9198
        %v9200 = vand.u32 %v9199, 4294901760
        %9201 = vmatpush1.msra.mxu0 %v9200
        %9202 = vmatprep.subr.mxu0 0.0
        %9203 = vmatpush1.msra.mxu0 0.0
        %9204 = vmatprep.subr.mxu0 0.0
        %9205 = vmatpush1.msra.mxu0 0.0
        %9206 = vmatprep.subr.mxu0 0.0
        %9207 = vmatpush1.msra.mxu0 0.0
        %9208 = vmatprep.subr.mxu0 0.0
        %9209 = vmatpush1.msra.mxu0 0.0
        %9210 = vmatprep.subr.mxu0 0.0
        %9211 = vmatpush1.msra.mxu0 0.0
        %9212 = vmatprep.subr.mxu0 0.0
        %9213 = vmatpush1.msra.mxu0 0.0
        %9214 = vmatprep.subr.mxu0 0.0
        %9215 = vmatpush1.msra.mxu0 0.0
        %9216 = vmatprep.subr.mxu0 0.0
        %9217 = vmatpush1.msra.mxu0 0.0
        %9218 = vmatprep.subr.mxu0 0.0
        %9219 = vmatpush1.msra.mxu0 0.0
        %9220 = vmatprep.subr.mxu0 0.0
        %9221 = vmatpush1.msra.mxu0 0.0
        %9222 = vmatprep.subr.mxu0 0.0
        %9223 = vmatpush1.msra.mxu0 0.0
        %9224 = vmatprep.subr.mxu0 0.0
        %9225 = vmatpush1.msra.mxu0 0.0
        %9226 = vmatprep.subr.mxu0 0.0
        %9227 = vmatpush1.msra.mxu0 0.0
        %9228 = vmatprep.subr.mxu0 0.0
        %9229 = vmatpush1.msra.mxu0 0.0
        %9230 = vmatprep.subr.mxu0 0.0
        %9231 = vmatpush1.msra.mxu0 0.0
        %9232 = vmatprep.subr.mxu0 0.0
        %9233 = vmatpush1.msra.mxu0 0.0
        %9234 = vmatprep.subr.mxu0 0.0
        %9235 = vmatpush1.msra.mxu0 0.0
        %9236 = vmatprep.subr.mxu0 0.0
        %9237 = vmatpush1.msra.mxu0 0.0
        %9238 = vmatprep.subr.mxu0 0.0
        %9239 = vmatpush1.msra.mxu0 0.0
        %9240 = vmatprep.subr.mxu0 0.0
        %9241 = vmatpush1.msra.mxu0 0.0
        %9242 = vmatprep.subr.mxu0 0.0
        %9243 = vmatpush1.msra.mxu0 0.0
        %9244 = vmatprep.subr.mxu0 0.0
        %9245 = vmatpush1.msra.mxu0 0.0
        %9246 = vmatprep.subr.mxu0 0.0
        %9247 = vmatpush1.msra.mxu0 0.0
        %9248 = vmatprep.subr.mxu0 0.0
        %9249 = vmatpush1.msra.mxu0 0.0
        %9250 = vmatprep.subr.mxu0 0.0
        %9251 = vmatpush1.msra.mxu0 0.0
        %9252 = vmatprep.subr.mxu0 0.0
        %9253 = vmatpush1.msra.mxu0 0.0
        %9254 = vmatprep.subr.mxu0 0.0
        %9255 = vmatpush1.msra.mxu0 0.0
        %9256 = vmatprep.subr.mxu0 0.0
        %9257 = vmatpush1.msra.mxu0 0.0
        %9258 = vmatprep.mubr.f32.mxu0 0.0
        %v9259 = vand.u32 %v8097, 4294901760
        %9260 = vmatmul.mubr.f32.gmra.mrb[0].mxu0 %v9259
        %v9261 = vpop.f32.mrb[0].mxu0
        %v9262 = vadd.f32 %v9171, %v9261
        %v9263 = vpop.f32.mrb[0].mxu0
        %9264 = vdwg.mxu0
        %9265 = vmatprep.subr.mxu0 0.0
        %v9266 = vand.u32 %v9083, 4294901760
        %v9267 = vsub.f32 %v9083, %v9266
        %9268 = vmatpush1.msra.mxu0 %v9267
        %9269 = vmatprep.subr.mxu0 0.0
        %v9270 = vand.u32 %v9084, 4294901760
        %v9271 = vsub.f32 %v9084, %v9270
        %9272 = vmatpush1.msra.mxu0 %v9271
        %9273 = vmatprep.subr.mxu0 0.0
        %v9274 = vand.u32 %v9085, 4294901760
        %v9275 = vsub.f32 %v9085, %v9274
        %9276 = vmatpush1.msra.mxu0 %v9275
        %9277 = vmatprep.subr.mxu0 0.0
        %v9278 = vand.u32 %v9086, 4294901760
        %v9279 = vsub.f32 %v9086, %v9278
        %9280 = vmatpush1.msra.mxu0 %v9279
        %9281 = vmatprep.subr.mxu0 0.0
        %9282 = vmatpush1.msra.mxu0 0.0
        %9283 = vmatprep.subr.mxu0 0.0
        %9284 = vmatpush1.msra.mxu0 0.0
        %9285 = vmatprep.subr.mxu0 0.0
        %9286 = vmatpush1.msra.mxu0 0.0
        %9287 = vmatprep.subr.mxu0 0.0
        %9288 = vmatpush1.msra.mxu0 0.0
        %9289 = vmatprep.subr.mxu0 0.0
        %9290 = vmatpush1.msra.mxu0 0.0
        %9291 = vmatprep.subr.mxu0 0.0
        %9292 = vmatpush1.msra.mxu0 0.0
        %9293 = vmatprep.subr.mxu0 0.0
        %9294 = vmatpush1.msra.mxu0 0.0
        %9295 = vmatprep.subr.mxu0 0.0
        %9296 = vmatpush1.msra.mxu0 0.0
        %9297 = vmatprep.subr.mxu0 0.0
        %9298 = vmatpush1.msra.mxu0 0.0
        %9299 = vmatprep.subr.mxu0 0.0
        %9300 = vmatpush1.msra.mxu0 0.0
        %9301 = vmatprep.subr.mxu0 0.0
        %9302 = vmatpush1.msra.mxu0 0.0
        %9303 = vmatprep.subr.mxu0 0.0
        %9304 = vmatpush1.msra.mxu0 0.0
        %9305 = vmatprep.subr.mxu0 0.0
        %9306 = vmatpush1.msra.mxu0 0.0
        %9307 = vmatprep.subr.mxu0 0.0
        %9308 = vmatpush1.msra.mxu0 0.0
        %9309 = vmatprep.subr.mxu0 0.0
        %9310 = vmatpush1.msra.mxu0 0.0
        %9311 = vmatprep.subr.mxu0 0.0
        %9312 = vmatpush1.msra.mxu0 0.0
        %9313 = vmatprep.subr.mxu0 0.0
        %9314 = vmatpush1.msra.mxu0 0.0
        %9315 = vmatprep.subr.mxu0 0.0
        %9316 = vmatpush1.msra.mxu0 0.0
        %9317 = vmatprep.subr.mxu0 0.0
        %9318 = vmatpush1.msra.mxu0 0.0
        %9319 = vmatprep.subr.mxu0 0.0
        %9320 = vmatpush1.msra.mxu0 0.0
        %9321 = vmatprep.subr.mxu0 0.0
        %9322 = vmatpush1.msra.mxu0 0.0
        %9323 = vmatprep.subr.mxu0 0.0
        %9324 = vmatpush1.msra.mxu0 0.0
        %9325 = vmatprep.subr.mxu0 0.0
        %9326 = vmatpush1.msra.mxu0 0.0
        %9327 = vmatprep.subr.mxu0 0.0
        %9328 = vmatpush1.msra.mxu0 0.0
        %9329 = vmatprep.subr.mxu0 0.0
        %9330 = vmatpush1.msra.mxu0 0.0
        %9331 = vmatprep.subr.mxu0 0.0
        %9332 = vmatpush1.msra.mxu0 0.0
        %9333 = vmatprep.subr.mxu0 0.0
        %9334 = vmatpush1.msra.mxu0 0.0
        %9335 = vmatprep.subr.mxu0 0.0
        %9336 = vmatpush1.msra.mxu0 0.0
        %9337 = vmatprep.mubr.f32.mxu0 0.0
        %v9338 = vand.u32 %v8097, 4294901760
        %v9339 = vsub.f32 %v8097, %v9338
        %9340 = vmatmul.mubr.f32.gmra.mrb[0].mxu0 %v9339
        %v9341 = vpop.f32.mrb[0].mxu0
        %v9342 = vadd.f32 %v9262, %v9341
        %v9343 = vpop.f32.mrb[0].mxu0
        %9344 = vdwg.mxu0
        %9345 = vmatprep.subr.mxu0 0.0
        %v9346 = vand.u32 %v9083, 4294901760
        %9347 = vmatpush1.msra.mxu0 %v9346
        %9348 = vmatprep.subr.mxu0 0.0
        %v9349 = vand.u32 %v9084, 4294901760
        %9350 = vmatpush1.msra.mxu0 %v9349
        %9351 = vmatprep.subr.mxu0 0.0
        %v9352 = vand.u32 %v9085, 4294901760
        %9353 = vmatpush1.msra.mxu0 %v9352
        %9354 = vmatprep.subr.mxu0 0.0
        %v9355 = vand.u32 %v9086, 4294901760
        %9356 = vmatpush1.msra.mxu0 %v9355
        %9357 = vmatprep.subr.mxu0 0.0
        %9358 = vmatpush1.msra.mxu0 0.0
        %9359 = vmatprep.subr.mxu0 0.0
        %9360 = vmatpush1.msra.mxu0 0.0
        %9361 = vmatprep.subr.mxu0 0.0
        %9362 = vmatpush1.msra.mxu0 0.0
        %9363 = vmatprep.subr.mxu0 0.0
        %9364 = vmatpush1.msra.mxu0 0.0
        %9365 = vmatprep.subr.mxu0 0.0
        %9366 = vmatpush1.msra.mxu0 0.0
        %9367 = vmatprep.subr.mxu0 0.0
        %9368 = vmatpush1.msra.mxu0 0.0
        %9369 = vmatprep.subr.mxu0 0.0
        %9370 = vmatpush1.msra.mxu0 0.0
        %9371 = vmatprep.subr.mxu0 0.0
        %9372 = vmatpush1.msra.mxu0 0.0
        %9373 = vmatprep.subr.mxu0 0.0
        %9374 = vmatpush1.msra.mxu0 0.0
        %9375 = vmatprep.subr.mxu0 0.0
        %9376 = vmatpush1.msra.mxu0 0.0
        %9377 = vmatprep.subr.mxu0 0.0
        %9378 = vmatpush1.msra.mxu0 0.0
        %9379 = vmatprep.subr.mxu0 0.0
        %9380 = vmatpush1.msra.mxu0 0.0
        %9381 = vmatprep.subr.mxu0 0.0
        %9382 = vmatpush1.msra.mxu0 0.0
        %9383 = vmatprep.subr.mxu0 0.0
        %9384 = vmatpush1.msra.mxu0 0.0
        %9385 = vmatprep.subr.mxu0 0.0
        %9386 = vmatpush1.msra.mxu0 0.0
        %9387 = vmatprep.subr.mxu0 0.0
        %9388 = vmatpush1.msra.mxu0 0.0
        %9389 = vmatprep.subr.mxu0 0.0
        %9390 = vmatpush1.msra.mxu0 0.0
        %9391 = vmatprep.subr.mxu0 0.0
        %9392 = vmatpush1.msra.mxu0 0.0
        %9393 = vmatprep.subr.mxu0 0.0
        %9394 = vmatpush1.msra.mxu0 0.0
        %9395 = vmatprep.subr.mxu0 0.0
        %9396 = vmatpush1.msra.mxu0 0.0
        %9397 = vmatprep.subr.mxu0 0.0
        %9398 = vmatpush1.msra.mxu0 0.0
        %9399 = vmatprep.subr.mxu0 0.0
        %9400 = vmatpush1.msra.mxu0 0.0
        %9401 = vmatprep.subr.mxu0 0.0
        %9402 = vmatpush1.msra.mxu0 0.0
        %9403 = vmatprep.subr.mxu0 0.0
        %9404 = vmatpush1.msra.mxu0 0.0
        %9405 = vmatprep.subr.mxu0 0.0
        %9406 = vmatpush1.msra.mxu0 0.0
        %9407 = vmatprep.subr.mxu0 0.0
        %9408 = vmatpush1.msra.mxu0 0.0
        %9409 = vmatprep.subr.mxu0 0.0
        %9410 = vmatpush1.msra.mxu0 0.0
        %9411 = vmatprep.subr.mxu0 0.0
        %9412 = vmatpush1.msra.mxu0 0.0
        %9413 = vmatprep.mubr.f32.mxu0 0.0
        %v9414 = vand.u32 %v8097, 4294901760
        %v9415 = vsub.f32 %v8097, %v9414
        %v9416 = vand.u32 %v9415, 4294901760
        %9417 = vmatmul.mubr.f32.gmra.mrb[0].mxu0 %v9416
        %v9418 = vpop.f32.mrb[0].mxu0
        %v9419 = vadd.f32 %v9342, %v9418
        %v9420 = vpop.f32.mrb[0].mxu0
        %9421 = vdwg.mxu0
        %9422 = vmatprep.subr.mxu0 0.0
        %v9423 = vand.u32 %v9083, 4294901760
        %v9424 = vsub.f32 %v9083, %v9423
        %v9425 = vand.u32 %v9424, 4294901760
        %9426 = vmatpush1.msra.mxu0 %v9425
        %9427 = vmatprep.subr.mxu0 0.0
        %v9428 = vand.u32 %v9084, 4294901760
        %v9429 = vsub.f32 %v9084, %v9428
        %v9430 = vand.u32 %v9429, 4294901760
        %9431 = vmatpush1.msra.mxu0 %v9430
        %9432 = vmatprep.subr.mxu0 0.0
        %v9433 = vand.u32 %v9085, 4294901760
        %v9434 = vsub.f32 %v9085, %v9433
        %v9435 = vand.u32 %v9434, 4294901760
        %9436 = vmatpush1.msra.mxu0 %v9435
        %9437 = vmatprep.subr.mxu0 0.0
        %v9438 = vand.u32 %v9086, 4294901760
        %v9439 = vsub.f32 %v9086, %v9438
        %v9440 = vand.u32 %v9439, 4294901760
        %9441 = vmatpush1.msra.mxu0 %v9440
        %9442 = vmatprep.subr.mxu0 0.0
        %9443 = vmatpush1.msra.mxu0 0.0
        %9444 = vmatprep.subr.mxu0 0.0
        %9445 = vmatpush1.msra.mxu0 0.0
        %9446 = vmatprep.subr.mxu0 0.0
        %9447 = vmatpush1.msra.mxu0 0.0
        %9448 = vmatprep.subr.mxu0 0.0
        %9449 = vmatpush1.msra.mxu0 0.0
        %9450 = vmatprep.subr.mxu0 0.0
        %9451 = vmatpush1.msra.mxu0 0.0
        %9452 = vmatprep.subr.mxu0 0.0
        %9453 = vmatpush1.msra.mxu0 0.0
        %9454 = vmatprep.subr.mxu0 0.0
        %9455 = vmatpush1.msra.mxu0 0.0
        %9456 = vmatprep.subr.mxu0 0.0
        %9457 = vmatpush1.msra.mxu0 0.0
        %9458 = vmatprep.subr.mxu0 0.0
        %9459 = vmatpush1.msra.mxu0 0.0
        %9460 = vmatprep.subr.mxu0 0.0
        %9461 = vmatpush1.msra.mxu0 0.0
        %9462 = vmatprep.subr.mxu0 0.0
        %9463 = vmatpush1.msra.mxu0 0.0
        %9464 = vmatprep.subr.mxu0 0.0
        %9465 = vmatpush1.msra.mxu0 0.0
        %9466 = vmatprep.subr.mxu0 0.0
        %9467 = vmatpush1.msra.mxu0 0.0
        %9468 = vmatprep.subr.mxu0 0.0
        %9469 = vmatpush1.msra.mxu0 0.0
        %9470 = vmatprep.subr.mxu0 0.0
        %9471 = vmatpush1.msra.mxu0 0.0
        %9472 = vmatprep.subr.mxu0 0.0
        %9473 = vmatpush1.msra.mxu0 0.0
        %9474 = vmatprep.subr.mxu0 0.0
        %9475 = vmatpush1.msra.mxu0 0.0
        %9476 = vmatprep.subr.mxu0 0.0
        %9477 = vmatpush1.msra.mxu0 0.0
        %9478 = vmatprep.subr.mxu0 0.0
        %9479 = vmatpush1.msra.mxu0 0.0
        %9480 = vmatprep.subr.mxu0 0.0
        %9481 = vmatpush1.msra.mxu0 0.0
        %9482 = vmatprep.subr.mxu0 0.0
        %9483 = vmatpush1.msra.mxu0 0.0
        %9484 = vmatprep.subr.mxu0 0.0
        %9485 = vmatpush1.msra.mxu0 0.0
        %9486 = vmatprep.subr.mxu0 0.0
        %9487 = vmatpush1.msra.mxu0 0.0
        %9488 = vmatprep.subr.mxu0 0.0
        %9489 = vmatpush1.msra.mxu0 0.0
        %9490 = vmatprep.subr.mxu0 0.0
        %9491 = vmatpush1.msra.mxu0 0.0
        %9492 = vmatprep.subr.mxu0 0.0
        %9493 = vmatpush1.msra.mxu0 0.0
        %9494 = vmatprep.subr.mxu0 0.0
        %9495 = vmatpush1.msra.mxu0 0.0
        %9496 = vmatprep.subr.mxu0 0.0
        %9497 = vmatpush1.msra.mxu0 0.0
        %9498 = vmatprep.mubr.f32.mxu0 0.0
        %v9499 = vand.u32 %v8097, 4294901760
        %9500 = vmatmul.mubr.f32.gmra.mrb[0].mxu0 %v9499
        %v9501 = vpop.f32.mrb[0].mxu0
        %v9502 = vadd.f32 %v9419, %v9501
        %v9503 = vpop.f32.mrb[0].mxu0
        %9504 = vdwg.mxu0
        %9505 = vmatprep.subr.mxu0 0.0
        %v9506 = vand.u32 %v9083, 4294901760
        %9507 = vmatpush1.msra.mxu0 %v9506
        %9508 = vmatprep.subr.mxu0 0.0
        %v9509 = vand.u32 %v9084, 4294901760
        %9510 = vmatpush1.msra.mxu0 %v9509
        %9511 = vmatprep.subr.mxu0 0.0
        %v9512 = vand.u32 %v9085, 4294901760
        %9513 = vmatpush1.msra.mxu0 %v9512
        %9514 = vmatprep.subr.mxu0 0.0
        %v9515 = vand.u32 %v9086, 4294901760
        %9516 = vmatpush1.msra.mxu0 %v9515
        %9517 = vmatprep.subr.mxu0 0.0
        %9518 = vmatpush1.msra.mxu0 0.0
        %9519 = vmatprep.subr.mxu0 0.0
        %9520 = vmatpush1.msra.mxu0 0.0
        %9521 = vmatprep.subr.mxu0 0.0
        %9522 = vmatpush1.msra.mxu0 0.0
        %9523 = vmatprep.subr.mxu0 0.0
        %9524 = vmatpush1.msra.mxu0 0.0
        %9525 = vmatprep.subr.mxu0 0.0
        %9526 = vmatpush1.msra.mxu0 0.0
        %9527 = vmatprep.subr.mxu0 0.0
        %9528 = vmatpush1.msra.mxu0 0.0
        %9529 = vmatprep.subr.mxu0 0.0
        %9530 = vmatpush1.msra.mxu0 0.0
        %9531 = vmatprep.subr.mxu0 0.0
        %9532 = vmatpush1.msra.mxu0 0.0
        %9533 = vmatprep.subr.mxu0 0.0
        %9534 = vmatpush1.msra.mxu0 0.0
        %9535 = vmatprep.subr.mxu0 0.0
        %9536 = vmatpush1.msra.mxu0 0.0
        %9537 = vmatprep.subr.mxu0 0.0
        %9538 = vmatpush1.msra.mxu0 0.0
        %9539 = vmatprep.subr.mxu0 0.0
        %9540 = vmatpush1.msra.mxu0 0.0
        %9541 = vmatprep.subr.mxu0 0.0
        %9542 = vmatpush1.msra.mxu0 0.0
        %9543 = vmatprep.subr.mxu0 0.0
        %9544 = vmatpush1.msra.mxu0 0.0
        %9545 = vmatprep.subr.mxu0 0.0
        %9546 = vmatpush1.msra.mxu0 0.0
        %9547 = vmatprep.subr.mxu0 0.0
        %9548 = vmatpush1.msra.mxu0 0.0
        %9549 = vmatprep.subr.mxu0 0.0
        %9550 = vmatpush1.msra.mxu0 0.0
        %9551 = vmatprep.subr.mxu0 0.0
        %9552 = vmatpush1.msra.mxu0 0.0
        %9553 = vmatprep.subr.mxu0 0.0
        %9554 = vmatpush1.msra.mxu0 0.0
        %9555 = vmatprep.subr.mxu0 0.0
        %9556 = vmatpush1.msra.mxu0 0.0
        %9557 = vmatprep.subr.mxu0 0.0
        %9558 = vmatpush1.msra.mxu0 0.0
        %9559 = vmatprep.subr.mxu0 0.0
        %9560 = vmatpush1.msra.mxu0 0.0
        %9561 = vmatprep.subr.mxu0 0.0
        %9562 = vmatpush1.msra.mxu0 0.0
        %9563 = vmatprep.subr.mxu0 0.0
        %9564 = vmatpush1.msra.mxu0 0.0
        %9565 = vmatprep.subr.mxu0 0.0
        %9566 = vmatpush1.msra.mxu0 0.0
        %9567 = vmatprep.subr.mxu0 0.0
        %9568 = vmatpush1.msra.mxu0 0.0
        %9569 = vmatprep.subr.mxu0 0.0
        %9570 = vmatpush1.msra.mxu0 0.0
        %9571 = vmatprep.subr.mxu0 0.0
        %9572 = vmatpush1.msra.mxu0 0.0
        %9573 = vmatprep.mubr.f32.mxu0 0.0
        %v9574 = vand.u32 %v8097, 4294901760
        %9575 = vmatmul.mubr.f32.gmra.mrb[0].mxu0 %v9574
        %v9576 = vpop.f32.mrb[0].mxu0
        %v9577 = vadd.f32 %v9502, %v9576
        %v9578 = vpop.f32.mrb[0].mxu0
        %9579 = vdwg.mxu0
        %v9580 = vadd.f32 %v7086, %v8581
        %v9581 = vxor.u32 %v9580, 2147483648
        %v9582 = vmul.f32 %v9581, 1.442695
        %v9583 = vpow.pop %v9582
        %v9584 = vadd.f32 %v9583, 1.0
        %v9585 = vrcp.pop %v9584
        %v9586 = vmul.f32 1.0, %v9585
        %v9587 = vadd.f32 %v7584, %v9079
        %v9588 = vxor.u32 %v9587, 2147483648
        %v9589 = vmul.f32 %v9588, 1.442695
        %v9590 = vpow.pop %v9589
        %v9591 = vadd.f32 %v9590, 1.0
        %v9592 = vrcp.pop %v9591
        %v9593 = vmul.f32 1.0, %v9592
        %v9594 = vmul.f32 %v9586, %v9577
        %v9595 = vadd.f32 %v8082, %v9594
        %v9596 = vtanh.pop %v9595
        %v9597 = vsub.f32 1.0, %v9593
        %v9598 = vmul.f32 %v9597, %v9596
        %v9599 = vmul.f32 %v9593, %v6589
        %v9600 = vadd.f32 %v9598, %v9599
        %9601 = vst.msk [vmem:[#allocation2] sm:$0xff] %vm1258, %v9600
        %v9602 = vld [vmem:[#allocation13] sm:$0xff]
        %v9603 = vld [vmem:[#allocation13 + $0x8] sm:$0xff]
        %v9604 = vld [vmem:[#allocation13 + $0x10] sm:$0xff]
        %v9605 = vld [vmem:[#allocation13 + $0x18] sm:$0xff]
        %v9606 = vld [vmem:[#allocation14] sm:$0x1]
        %v9608 = vlaneseq
        %v9609 = vshrl.u32 %v9608, 7
        %v9610 = vsub.s32 0, %v9609
        %v9611 = vrot.slane %v9606, %v9610
        %v9614 = vsel %vm1258, %v9600, 0
        %9616 = vmatprep.subr.mxu0 0.0
        %v9617 = vand.u32 %v9602, 4294901760
        %9618 = vmatpush1.msra.mxu0 %v9617
        %9619 = vmatprep.subr.mxu0 0.0
        %v9620 = vand.u32 %v9603, 4294901760
        %9621 = vmatpush1.msra.mxu0 %v9620
        %9622 = vmatprep.subr.mxu0 0.0
        %v9623 = vand.u32 %v9604, 4294901760
        %9624 = vmatpush1.msra.mxu0 %v9623
        %9625 = vmatprep.subr.mxu0 0.0
        %v9626 = vand.u32 %v9605, 4294901760
        %9627 = vmatpush1.msra.mxu0 %v9626
        %9628 = vmatprep.subr.mxu0 0.0
        %9629 = vmatpush1.msra.mxu0 0.0
        %9630 = vmatprep.subr.mxu0 0.0
        %9631 = vmatpush1.msra.mxu0 0.0
        %9632 = vmatprep.subr.mxu0 0.0
        %9633 = vmatpush1.msra.mxu0 0.0
        %9634 = vmatprep.subr.mxu0 0.0
        %9635 = vmatpush1.msra.mxu0 0.0
        %9636 = vmatprep.subr.mxu0 0.0
        %9637 = vmatpush1.msra.mxu0 0.0
        %9638 = vmatprep.subr.mxu0 0.0
        %9639 = vmatpush1.msra.mxu0 0.0
        %9640 = vmatprep.subr.mxu0 0.0
        %9641 = vmatpush1.msra.mxu0 0.0
        %9642 = vmatprep.subr.mxu0 0.0
        %9643 = vmatpush1.msra.mxu0 0.0
        %9644 = vmatprep.subr.mxu0 0.0
        %9645 = vmatpush1.msra.mxu0 0.0
        %9646 = vmatprep.subr.mxu0 0.0
        %9647 = vmatpush1.msra.mxu0 0.0
        %9648 = vmatprep.subr.mxu0 0.0
        %9649 = vmatpush1.msra.mxu0 0.0
        %9650 = vmatprep.subr.mxu0 0.0
        %9651 = vmatpush1.msra.mxu0 0.0
        %9652 = vmatprep.subr.mxu0 0.0
        %9653 = vmatpush1.msra.mxu0 0.0
        %9654 = vmatprep.subr.mxu0 0.0
        %9655 = vmatpush1.msra.mxu0 0.0
        %9656 = vmatprep.subr.mxu0 0.0
        %9657 = vmatpush1.msra.mxu0 0.0
        %9658 = vmatprep.subr.mxu0 0.0
        %9659 = vmatpush1.msra.mxu0 0.0
        %9660 = vmatprep.subr.mxu0 0.0
        %9661 = vmatpush1.msra.mxu0 0.0
        %9662 = vmatprep.subr.mxu0 0.0
        %9663 = vmatpush1.msra.mxu0 0.0
        %9664 = vmatprep.subr.mxu0 0.0
        %9665 = vmatpush1.msra.mxu0 0.0
        %9666 = vmatprep.subr.mxu0 0.0
        %9667 = vmatpush1.msra.mxu0 0.0
        %9668 = vmatprep.subr.mxu0 0.0
        %9669 = vmatpush1.msra.mxu0 0.0
        %9670 = vmatprep.subr.mxu0 0.0
        %9671 = vmatpush1.msra.mxu0 0.0
        %9672 = vmatprep.subr.mxu0 0.0
        %9673 = vmatpush1.msra.mxu0 0.0
        %9674 = vmatprep.subr.mxu0 0.0
        %9675 = vmatpush1.msra.mxu0 0.0
        %9676 = vmatprep.subr.mxu0 0.0
        %9677 = vmatpush1.msra.mxu0 0.0
        %9678 = vmatprep.subr.mxu0 0.0
        %9679 = vmatpush1.msra.mxu0 0.0
        %9680 = vmatprep.subr.mxu0 0.0
        %9681 = vmatpush1.msra.mxu0 0.0
        %9682 = vmatprep.subr.mxu0 0.0
        %9683 = vmatpush1.msra.mxu0 0.0
        %9684 = vmatprep.mubr.f32.mxu0 0.0
        %v9685 = vand.u32 %v9614, 4294901760
        %v9686 = vsub.f32 %v9614, %v9685
        %v9687 = vand.u32 %v9686, 4294901760
        %v9688 = vsub.f32 %v9686, %v9687
        %v9689 = vand.u32 %v9688, 4294901760
        %9690 = vmatmul.mubr.f32.gmra.mrb[0].mxu0 %v9689
        %v9691 = vpop.f32.mrb[0].mxu0
        %v9692 = vadd.f32 %v9611, %v9691
        %v9693 = vpop.f32.mrb[0].mxu0
        %9694 = vdwg.mxu0
        %9695 = vmatprep.subr.mxu0 0.0
        %v9696 = vand.u32 %v9602, 4294901760
        %v9697 = vsub.f32 %v9602, %v9696
        %v9698 = vand.u32 %v9697, 4294901760
        %v9699 = vsub.f32 %v9697, %v9698
        %v9700 = vand.u32 %v9699, 4294901760
        %9701 = vmatpush1.msra.mxu0 %v9700
        %9702 = vmatprep.subr.mxu0 0.0
        %v9703 = vand.u32 %v9603, 4294901760
        %v9704 = vsub.f32 %v9603, %v9703
        %v9705 = vand.u32 %v9704, 4294901760
        %v9706 = vsub.f32 %v9704, %v9705
        %v9707 = vand.u32 %v9706, 4294901760
        %9708 = vmatpush1.msra.mxu0 %v9707
        %9709 = vmatprep.subr.mxu0 0.0
        %v9710 = vand.u32 %v9604, 4294901760
        %v9711 = vsub.f32 %v9604, %v9710
        %v9712 = vand.u32 %v9711, 4294901760
        %v9713 = vsub.f32 %v9711, %v9712
        %v9714 = vand.u32 %v9713, 4294901760
        %9715 = vmatpush1.msra.mxu0 %v9714
        %9716 = vmatprep.subr.mxu0 0.0
        %v9717 = vand.u32 %v9605, 4294901760
        %v9718 = vsub.f32 %v9605, %v9717
        %v9719 = vand.u32 %v9718, 4294901760
        %v9720 = vsub.f32 %v9718, %v9719
        %v9721 = vand.u32 %v9720, 4294901760
        %9722 = vmatpush1.msra.mxu0 %v9721
        %9723 = vmatprep.subr.mxu0 0.0
        %9724 = vmatpush1.msra.mxu0 0.0
        %9725 = vmatprep.subr.mxu0 0.0
        %9726 = vmatpush1.msra.mxu0 0.0
        %9727 = vmatprep.subr.mxu0 0.0
        %9728 = vmatpush1.msra.mxu0 0.0
        %9729 = vmatprep.subr.mxu0 0.0
        %9730 = vmatpush1.msra.mxu0 0.0
        %9731 = vmatprep.subr.mxu0 0.0
        %9732 = vmatpush1.msra.mxu0 0.0
        %9733 = vmatprep.subr.mxu0 0.0
        %9734 = vmatpush1.msra.mxu0 0.0
        %9735 = vmatprep.subr.mxu0 0.0
        %9736 = vmatpush1.msra.mxu0 0.0
        %9737 = vmatprep.subr.mxu0 0.0
        %9738 = vmatpush1.msra.mxu0 0.0
        %9739 = vmatprep.subr.mxu0 0.0
        %9740 = vmatpush1.msra.mxu0 0.0
        %9741 = vmatprep.subr.mxu0 0.0
        %9742 = vmatpush1.msra.mxu0 0.0
        %9743 = vmatprep.subr.mxu0 0.0
        %9744 = vmatpush1.msra.mxu0 0.0
        %9745 = vmatprep.subr.mxu0 0.0
        %9746 = vmatpush1.msra.mxu0 0.0
        %9747 = vmatprep.subr.mxu0 0.0
        %9748 = vmatpush1.msra.mxu0 0.0
        %9749 = vmatprep.subr.mxu0 0.0
        %9750 = vmatpush1.msra.mxu0 0.0
        %9751 = vmatprep.subr.mxu0 0.0
        %9752 = vmatpush1.msra.mxu0 0.0
        %9753 = vmatprep.subr.mxu0 0.0
        %9754 = vmatpush1.msra.mxu0 0.0
        %9755 = vmatprep.subr.mxu0 0.0
        %9756 = vmatpush1.msra.mxu0 0.0
        %9757 = vmatprep.subr.mxu0 0.0
        %9758 = vmatpush1.msra.mxu0 0.0
        %9759 = vmatprep.subr.mxu0 0.0
        %9760 = vmatpush1.msra.mxu0 0.0
        %9761 = vmatprep.subr.mxu0 0.0
        %9762 = vmatpush1.msra.mxu0 0.0
        %9763 = vmatprep.subr.mxu0 0.0
        %9764 = vmatpush1.msra.mxu0 0.0
        %9765 = vmatprep.subr.mxu0 0.0
        %9766 = vmatpush1.msra.mxu0 0.0
        %9767 = vmatprep.subr.mxu0 0.0
        %9768 = vmatpush1.msra.mxu0 0.0
        %9769 = vmatprep.subr.mxu0 0.0
        %9770 = vmatpush1.msra.mxu0 0.0
        %9771 = vmatprep.subr.mxu0 0.0
        %9772 = vmatpush1.msra.mxu0 0.0
        %9773 = vmatprep.subr.mxu0 0.0
        %9774 = vmatpush1.msra.mxu0 0.0
        %9775 = vmatprep.subr.mxu0 0.0
        %9776 = vmatpush1.msra.mxu0 0.0
        %9777 = vmatprep.subr.mxu0 0.0
        %9778 = vmatpush1.msra.mxu0 0.0
        %9779 = vmatprep.mubr.f32.mxu0 0.0
        %v9780 = vand.u32 %v9614, 4294901760
        %9781 = vmatmul.mubr.f32.gmra.mrb[0].mxu0 %v9780
        %v9782 = vpop.f32.mrb[0].mxu0
        %v9783 = vadd.f32 %v9692, %v9782
        %v9784 = vpop.f32.mrb[0].mxu0
        %9785 = vdwg.mxu0
        %9786 = vmatprep.subr.mxu0 0.0
        %v9787 = vand.u32 %v9602, 4294901760
        %v9788 = vsub.f32 %v9602, %v9787
        %9789 = vmatpush1.msra.mxu0 %v9788
        %9790 = vmatprep.subr.mxu0 0.0
        %v9791 = vand.u32 %v9603, 4294901760
        %v9792 = vsub.f32 %v9603, %v9791
        %9793 = vmatpush1.msra.mxu0 %v9792
        %9794 = vmatprep.subr.mxu0 0.0
        %v9795 = vand.u32 %v9604, 4294901760
        %v9796 = vsub.f32 %v9604, %v9795
        %9797 = vmatpush1.msra.mxu0 %v9796
        %9798 = vmatprep.subr.mxu0 0.0
        %v9799 = vand.u32 %v9605, 4294901760
        %v9800 = vsub.f32 %v9605, %v9799
        %9801 = vmatpush1.msra.mxu0 %v9800
        %9802 = vmatprep.subr.mxu0 0.0
        %9803 = vmatpush1.msra.mxu0 0.0
        %9804 = vmatprep.subr.mxu0 0.0
        %9805 = vmatpush1.msra.mxu0 0.0
        %9806 = vmatprep.subr.mxu0 0.0
        %9807 = vmatpush1.msra.mxu0 0.0
        %9808 = vmatprep.subr.mxu0 0.0
        %9809 = vmatpush1.msra.mxu0 0.0
        %9810 = vmatprep.subr.mxu0 0.0
        %9811 = vmatpush1.msra.mxu0 0.0
        %9812 = vmatprep.subr.mxu0 0.0
        %9813 = vmatpush1.msra.mxu0 0.0
        %9814 = vmatprep.subr.mxu0 0.0
        %9815 = vmatpush1.msra.mxu0 0.0
        %9816 = vmatprep.subr.mxu0 0.0
        %9817 = vmatpush1.msra.mxu0 0.0
        %9818 = vmatprep.subr.mxu0 0.0
        %9819 = vmatpush1.msra.mxu0 0.0
        %9820 = vmatprep.subr.mxu0 0.0
        %9821 = vmatpush1.msra.mxu0 0.0
        %9822 = vmatprep.subr.mxu0 0.0
        %9823 = vmatpush1.msra.mxu0 0.0
        %9824 = vmatprep.subr.mxu0 0.0
        %9825 = vmatpush1.msra.mxu0 0.0
        %9826 = vmatprep.subr.mxu0 0.0
        %9827 = vmatpush1.msra.mxu0 0.0
        %9828 = vmatprep.subr.mxu0 0.0
        %9829 = vmatpush1.msra.mxu0 0.0
        %9830 = vmatprep.subr.mxu0 0.0
        %9831 = vmatpush1.msra.mxu0 0.0
        %9832 = vmatprep.subr.mxu0 0.0
        %9833 = vmatpush1.msra.mxu0 0.0
        %9834 = vmatprep.subr.mxu0 0.0
        %9835 = vmatpush1.msra.mxu0 0.0
        %9836 = vmatprep.subr.mxu0 0.0
        %9837 = vmatpush1.msra.mxu0 0.0
        %9838 = vmatprep.subr.mxu0 0.0
        %9839 = vmatpush1.msra.mxu0 0.0
        %9840 = vmatprep.subr.mxu0 0.0
        %9841 = vmatpush1.msra.mxu0 0.0
        %9842 = vmatprep.subr.mxu0 0.0
        %9843 = vmatpush1.msra.mxu0 0.0
        %9844 = vmatprep.subr.mxu0 0.0
        %9845 = vmatpush1.msra.mxu0 0.0
        %9846 = vmatprep.subr.mxu0 0.0
        %9847 = vmatpush1.msra.mxu0 0.0
        %9848 = vmatprep.subr.mxu0 0.0
        %9849 = vmatpush1.msra.mxu0 0.0
        %9850 = vmatprep.subr.mxu0 0.0
        %9851 = vmatpush1.msra.mxu0 0.0
        %9852 = vmatprep.subr.mxu0 0.0
        %9853 = vmatpush1.msra.mxu0 0.0
        %9854 = vmatprep.subr.mxu0 0.0
        %9855 = vmatpush1.msra.mxu0 0.0
        %9856 = vmatprep.subr.mxu0 0.0
        %9857 = vmatpush1.msra.mxu0 0.0
        %9858 = vmatprep.mubr.f32.mxu0 0.0
        %v9859 = vand.u32 %v9614, 4294901760
        %v9860 = vsub.f32 %v9614, %v9859
        %9861 = vmatmul.mubr.f32.gmra.mrb[0].mxu0 %v9860
        %v9862 = vpop.f32.mrb[0].mxu0
        %v9863 = vadd.f32 %v9783, %v9862
        %v9864 = vpop.f32.mrb[0].mxu0
        %9865 = vdwg.mxu0
        %9866 = vmatprep.subr.mxu0 0.0
        %v9867 = vand.u32 %v9602, 4294901760
        %9868 = vmatpush1.msra.mxu0 %v9867
        %9869 = vmatprep.subr.mxu0 0.0
        %v9870 = vand.u32 %v9603, 4294901760
        %9871 = vmatpush1.msra.mxu0 %v9870
        %9872 = vmatprep.subr.mxu0 0.0
        %v9873 = vand.u32 %v9604, 4294901760
        %9874 = vmatpush1.msra.mxu0 %v9873
        %9875 = vmatprep.subr.mxu0 0.0
        %v9876 = vand.u32 %v9605, 4294901760
        %9877 = vmatpush1.msra.mxu0 %v9876
        %9878 = vmatprep.subr.mxu0 0.0
        %9879 = vmatpush1.msra.mxu0 0.0
        %9880 = vmatprep.subr.mxu0 0.0
        %9881 = vmatpush1.msra.mxu0 0.0
        %9882 = vmatprep.subr.mxu0 0.0
        %9883 = vmatpush1.msra.mxu0 0.0
        %9884 = vmatprep.subr.mxu0 0.0
        %9885 = vmatpush1.msra.mxu0 0.0
        %9886 = vmatprep.subr.mxu0 0.0
        %9887 = vmatpush1.msra.mxu0 0.0
        %9888 = vmatprep.subr.mxu0 0.0
        %9889 = vmatpush1.msra.mxu0 0.0
        %9890 = vmatprep.subr.mxu0 0.0
        %9891 = vmatpush1.msra.mxu0 0.0
        %9892 = vmatprep.subr.mxu0 0.0
        %9893 = vmatpush1.msra.mxu0 0.0
        %9894 = vmatprep.subr.mxu0 0.0
        %9895 = vmatpush1.msra.mxu0 0.0
        %9896 = vmatprep.subr.mxu0 0.0
        %9897 = vmatpush1.msra.mxu0 0.0
        %9898 = vmatprep.subr.mxu0 0.0
        %9899 = vmatpush1.msra.mxu0 0.0
        %9900 = vmatprep.subr.mxu0 0.0
        %9901 = vmatpush1.msra.mxu0 0.0
        %9902 = vmatprep.subr.mxu0 0.0
        %9903 = vmatpush1.msra.mxu0 0.0
        %9904 = vmatprep.subr.mxu0 0.0
        %9905 = vmatpush1.msra.mxu0 0.0
        %9906 = vmatprep.subr.mxu0 0.0
        %9907 = vmatpush1.msra.mxu0 0.0
        %9908 = vmatprep.subr.mxu0 0.0
        %9909 = vmatpush1.msra.mxu0 0.0
        %9910 = vmatprep.subr.mxu0 0.0
        %9911 = vmatpush1.msra.mxu0 0.0
        %9912 = vmatprep.subr.mxu0 0.0
        %9913 = vmatpush1.msra.mxu0 0.0
        %9914 = vmatprep.subr.mxu0 0.0
        %9915 = vmatpush1.msra.mxu0 0.0
        %9916 = vmatprep.subr.mxu0 0.0
        %9917 = vmatpush1.msra.mxu0 0.0
        %9918 = vmatprep.subr.mxu0 0.0
        %9919 = vmatpush1.msra.mxu0 0.0
        %9920 = vmatprep.subr.mxu0 0.0
        %9921 = vmatpush1.msra.mxu0 0.0
        %9922 = vmatprep.subr.mxu0 0.0
        %9923 = vmatpush1.msra.mxu0 0.0
        %9924 = vmatprep.subr.mxu0 0.0
        %9925 = vmatpush1.msra.mxu0 0.0
        %9926 = vmatprep.subr.mxu0 0.0
        %9927 = vmatpush1.msra.mxu0 0.0
        %9928 = vmatprep.subr.mxu0 0.0
        %9929 = vmatpush1.msra.mxu0 0.0
        %9930 = vmatprep.subr.mxu0 0.0
        %9931 = vmatpush1.msra.mxu0 0.0
        %9932 = vmatprep.subr.mxu0 0.0
        %9933 = vmatpush1.msra.mxu0 0.0
        %9934 = vmatprep.mubr.f32.mxu0 0.0
        %v9935 = vand.u32 %v9614, 4294901760
        %v9936 = vsub.f32 %v9614, %v9935
        %v9937 = vand.u32 %v9936, 4294901760
        %9938 = vmatmul.mubr.f32.gmra.mrb[0].mxu0 %v9937
        %v9939 = vpop.f32.mrb[0].mxu0
        %v9940 = vadd.f32 %v9863, %v9939
        %v9941 = vpop.f32.mrb[0].mxu0
        %9942 = vdwg.mxu0
        %9943 = vmatprep.subr.mxu0 0.0
        %v9944 = vand.u32 %v9602, 4294901760
        %v9945 = vsub.f32 %v9602, %v9944
        %v9946 = vand.u32 %v9945, 4294901760
        %9947 = vmatpush1.msra.mxu0 %v9946
        %9948 = vmatprep.subr.mxu0 0.0
        %v9949 = vand.u32 %v9603, 4294901760
        %v9950 = vsub.f32 %v9603, %v9949
        %v9951 = vand.u32 %v9950, 4294901760
        %9952 = vmatpush1.msra.mxu0 %v9951
        %9953 = vmatprep.subr.mxu0 0.0
        %v9954 = vand.u32 %v9604, 4294901760
        %v9955 = vsub.f32 %v9604, %v9954
        %v9956 = vand.u32 %v9955, 4294901760
        %9957 = vmatpush1.msra.mxu0 %v9956
        %9958 = vmatprep.subr.mxu0 0.0
        %v9959 = vand.u32 %v9605, 4294901760
        %v9960 = vsub.f32 %v9605, %v9959
        %v9961 = vand.u32 %v9960, 4294901760
        %9962 = vmatpush1.msra.mxu0 %v9961
        %9963 = vmatprep.subr.mxu0 0.0
        %9964 = vmatpush1.msra.mxu0 0.0
        %9965 = vmatprep.subr.mxu0 0.0
        %9966 = vmatpush1.msra.mxu0 0.0
        %9967 = vmatprep.subr.mxu0 0.0
        %9968 = vmatpush1.msra.mxu0 0.0
        %9969 = vmatprep.subr.mxu0 0.0
        %9970 = vmatpush1.msra.mxu0 0.0
        %9971 = vmatprep.subr.mxu0 0.0
        %9972 = vmatpush1.msra.mxu0 0.0
        %9973 = vmatprep.subr.mxu0 0.0
        %9974 = vmatpush1.msra.mxu0 0.0
        %9975 = vmatprep.subr.mxu0 0.0
        %9976 = vmatpush1.msra.mxu0 0.0
        %9977 = vmatprep.subr.mxu0 0.0
        %9978 = vmatpush1.msra.mxu0 0.0
        %9979 = vmatprep.subr.mxu0 0.0
        %9980 = vmatpush1.msra.mxu0 0.0
        %9981 = vmatprep.subr.mxu0 0.0
        %9982 = vmatpush1.msra.mxu0 0.0
        %9983 = vmatprep.subr.mxu0 0.0
        %9984 = vmatpush1.msra.mxu0 0.0
        %9985 = vmatprep.subr.mxu0 0.0
        %9986 = vmatpush1.msra.mxu0 0.0
        %9987 = vmatprep.subr.mxu0 0.0
        %9988 = vmatpush1.msra.mxu0 0.0
        %9989 = vmatprep.subr.mxu0 0.0
        %9990 = vmatpush1.msra.mxu0 0.0
        %9991 = vmatprep.subr.mxu0 0.0
        %9992 = vmatpush1.msra.mxu0 0.0
        %9993 = vmatprep.subr.mxu0 0.0
        %9994 = vmatpush1.msra.mxu0 0.0
        %9995 = vmatprep.subr.mxu0 0.0
        %9996 = vmatpush1.msra.mxu0 0.0
        %9997 = vmatprep.subr.mxu0 0.0
        %9998 = vmatpush1.msra.mxu0 0.0
        %9999 = vmatprep.subr.mxu0 0.0
        %10000 = vmatpush1.msra.mxu0 0.0
        %10001 = vmatprep.subr.mxu0 0.0
        %10002 = vmatpush1.msra.mxu0 0.0
        %10003 = vmatprep.subr.mxu0 0.0
        %10004 = vmatpush1.msra.mxu0 0.0
        %10005 = vmatprep.subr.mxu0 0.0
        %10006 = vmatpush1.msra.mxu0 0.0
        %10007 = vmatprep.subr.mxu0 0.0
        %10008 = vmatpush1.msra.mxu0 0.0
        %10009 = vmatprep.subr.mxu0 0.0
        %10010 = vmatpush1.msra.mxu0 0.0
        %10011 = vmatprep.subr.mxu0 0.0
        %10012 = vmatpush1.msra.mxu0 0.0
        %10013 = vmatprep.subr.mxu0 0.0
        %10014 = vmatpush1.msra.mxu0 0.0
        %10015 = vmatprep.subr.mxu0 0.0
        %10016 = vmatpush1.msra.mxu0 0.0
        %10017 = vmatprep.subr.mxu0 0.0
        %10018 = vmatpush1.msra.mxu0 0.0
        %10019 = vmatprep.mubr.f32.mxu0 0.0
        %v10020 = vand.u32 %v9614, 4294901760
        %10021 = vmatmul.mubr.f32.gmra.mrb[0].mxu0 %v10020
        %v10022 = vpop.f32.mrb[0].mxu0
        %v10023 = vadd.f32 %v9940, %v10022
        %v10024 = vpop.f32.mrb[0].mxu0
        %10025 = vdwg.mxu0
        %10026 = vmatprep.subr.mxu0 0.0
        %v10027 = vand.u32 %v9602, 4294901760
        %10028 = vmatpush1.msra.mxu0 %v10027
        %10029 = vmatprep.subr.mxu0 0.0
        %v10030 = vand.u32 %v9603, 4294901760
        %10031 = vmatpush1.msra.mxu0 %v10030
        %10032 = vmatprep.subr.mxu0 0.0
        %v10033 = vand.u32 %v9604, 4294901760
        %10034 = vmatpush1.msra.mxu0 %v10033
        %10035 = vmatprep.subr.mxu0 0.0
        %v10036 = vand.u32 %v9605, 4294901760
        %10037 = vmatpush1.msra.mxu0 %v10036
        %10038 = vmatprep.subr.mxu0 0.0
        %10039 = vmatpush1.msra.mxu0 0.0
        %10040 = vmatprep.subr.mxu0 0.0
        %10041 = vmatpush1.msra.mxu0 0.0
        %10042 = vmatprep.subr.mxu0 0.0
        %10043 = vmatpush1.msra.mxu0 0.0
        %10044 = vmatprep.subr.mxu0 0.0
        %10045 = vmatpush1.msra.mxu0 0.0
        %10046 = vmatprep.subr.mxu0 0.0
        %10047 = vmatpush1.msra.mxu0 0.0
        %10048 = vmatprep.subr.mxu0 0.0
        %10049 = vmatpush1.msra.mxu0 0.0
        %10050 = vmatprep.subr.mxu0 0.0
        %10051 = vmatpush1.msra.mxu0 0.0
        %10052 = vmatprep.subr.mxu0 0.0
        %10053 = vmatpush1.msra.mxu0 0.0
        %10054 = vmatprep.subr.mxu0 0.0
        %10055 = vmatpush1.msra.mxu0 0.0
        %10056 = vmatprep.subr.mxu0 0.0
        %10057 = vmatpush1.msra.mxu0 0.0
        %10058 = vmatprep.subr.mxu0 0.0
        %10059 = vmatpush1.msra.mxu0 0.0
        %10060 = vmatprep.subr.mxu0 0.0
        %10061 = vmatpush1.msra.mxu0 0.0
        %10062 = vmatprep.subr.mxu0 0.0
        %10063 = vmatpush1.msra.mxu0 0.0
        %10064 = vmatprep.subr.mxu0 0.0
        %10065 = vmatpush1.msra.mxu0 0.0
        %10066 = vmatprep.subr.mxu0 0.0
        %10067 = vmatpush1.msra.mxu0 0.0
        %10068 = vmatprep.subr.mxu0 0.0
        %10069 = vmatpush1.msra.mxu0 0.0
        %10070 = vmatprep.subr.mxu0 0.0
        %10071 = vmatpush1.msra.mxu0 0.0
        %10072 = vmatprep.subr.mxu0 0.0
        %10073 = vmatpush1.msra.mxu0 0.0
        %10074 = vmatprep.subr.mxu0 0.0
        %10075 = vmatpush1.msra.mxu0 0.0
        %10076 = vmatprep.subr.mxu0 0.0
        %10077 = vmatpush1.msra.mxu0 0.0
        %10078 = vmatprep.subr.mxu0 0.0
        %10079 = vmatpush1.msra.mxu0 0.0
        %10080 = vmatprep.subr.mxu0 0.0
        %10081 = vmatpush1.msra.mxu0 0.0
        %10082 = vmatprep.subr.mxu0 0.0
        %10083 = vmatpush1.msra.mxu0 0.0
        %10084 = vmatprep.subr.mxu0 0.0
        %10085 = vmatpush1.msra.mxu0 0.0
        %10086 = vmatprep.subr.mxu0 0.0
        %10087 = vmatpush1.msra.mxu0 0.0
        %10088 = vmatprep.subr.mxu0 0.0
        %10089 = vmatpush1.msra.mxu0 0.0
        %10090 = vmatprep.subr.mxu0 0.0
        %10091 = vmatpush1.msra.mxu0 0.0
        %10092 = vmatprep.subr.mxu0 0.0
        %10093 = vmatpush1.msra.mxu0 0.0
        %10094 = vmatprep.mubr.f32.mxu0 0.0
        %v10095 = vand.u32 %v9614, 4294901760
        %10096 = vmatmul.mubr.f32.gmra.mrb[0].mxu0 %v10095
        %v10097 = vpop.f32.mrb[0].mxu0
        %v10098 = vadd.f32 %v10023, %v10097
        %v10099 = vpop.f32.mrb[0].mxu0
        %10100 = vdwg.mxu0
        %v10101 = vsel %vm6583, 0.0, %v10098
        %10102 = vst [vmem:[%s717] sm:$0xff] %v10101
        %p10103 = scmp.lt.s32.totalorder %s34, 3
        %s10104 = scalar_select %p10103, %s34, 3
        %s10105 = smul.addr %s10104, 8
        %s10106 = scalar_lea.vmem %s18, %s10105
        // Predicated region
        $region129: #{refil_forward.1} parent=91 // pred_check
          %p10107 = pneg %p445
        $region130: #{refil_forward.1} parent=91 // pred_check_branch
          %10109 = sbr.rel (%p10107) target = $region132
        $region131: #{refil_forward.1} parent=91 // pred_region
          _
        $region132: #{refil_forward.1} parent=91 // pred_fallthru
          _
      $region92: #{refil_forward.1} parent=5 // pred_fallthru
        _
      %p10110 = scmp.le.s32.totalorder 2, %s29
      // Predicated region
      $region133: #{refil_forward.1} parent=5 // pred_check
        %p10111 = pneg %p10110
      $region134: #{refil_forward.1} parent=5 // pred_check_branch
        %10113 = sbr.rel (%p10111) target = $region136
      $region135: #{refil_forward.1} parent=5 // pred_region
        %s10114 = ssub.s32 %s29, 2
        // Predicated region
        $region137: #{refil_forward.1} parent=135 // pred_check
          %p10115 = pneg %p451
        $region138: #{refil_forward.1} parent=135 // pred_check_branch
          %10117 = sbr.rel (%p10115) target = $region140
        $region139: #{refil_forward.1} parent=135 // pred_region
          %p10118 = scmp.lt.s32.totalorder %s35, 3
          %s10119 = scalar_select %p10118, %s35, 3
          %s10120 = smul.addr %s10119, 8
          %s10121 = scalar_lea.vmem %s18, %s10120
        $region140: #{refil_forward.1} parent=135 // pred_fallthru
          _
      $region136: #{refil_forward.1} parent=5 // pred_fallthru
        _
    $region6: #{refil_forward.1} parent=1 // loop_footer
      %s33 = sadd.s32 1, %s29
    $region7: #{refil_forward.1} parent=1 // loop_footer_branch
      %28 = sbr.rel target = $region3
    $region8: #{refil_forward.1} parent=1 // loop_exit
      _
    %10122 = vsyncpa [#allocation4], 1
    %s10123 = scalar_lea.sflag [#allocation4], 1
    %10124 = vsyncpa %s10123, 1
    %10125 = vsyncpa [#allocation6], 1
    %10126 = vsyncpa [#allocation9], 1
    %10127 = vsyncpa [#allocation12], 1
    %10128 = vsyncpa [#allocation15], 1

</llo_original>
